<compile_context>
chip_gen: v7x
topology: tpu7x:2x2x1
jax: 0.10.0
libtpu: 0.0.40
codegen_flags: <defaults>
</compile_context>

<pallas_src>
import jax
import jax.numpy as jnp
from jax.experimental import pallas as pl
from jax.experimental.pallas import tpu as pltpu

NUM_CLASSES = 14

# Scaled-down LocalizerVGG instance (the real module takes `features` as arg):
# features = [Conv3x3(3->16), ReLU, MaxPool2, Conv3x3(16->32), ReLU, MaxPool2]
# classifier = Linear(32*4*4 -> 128), ReLU, Dropout, Linear(128->128), ReLU,
#              Dropout, Linear(128 -> 14)
CIN, C1, C2 = 3, 16, 32
H, W = 16, 16            # input spatial
H2, W2 = H // 2, W // 2  # after pool1
H3, W3 = H2 // 2, W2 // 2  # after pool2
N1, N2 = 128, 128        # classifier hidden sizes

CIN_PAD = 8              # conv1 input channels padded 3 -> 8 (minimal)
CP = 128                 # all other channel dims padded to one lane tile
LPAD = 8                 # left halo width = f32 sublane tile -> aligned interior store
VMEM_LIMIT = 32 * 1024 * 1024


# ------------------------------ fused forward kernel -------------------------
def _localizer_vgg_fused_kernel(
        x_ref, w1_ref, b1_ref, sel1_ref, w2_ref, b2_ref, sel2_ref,
        fw1_ref, fb1_ref, fw2_ref, fb2_ref, fw3_ref, fb3_ref,
        out_ref,
        x1p_ref, acc1_ref, x2p_ref, acc2_ref):
    """One image per grid step: conv/pool stack + classifier, all in VMEM."""

    def conv3x3_relu(xp_ref, w_ref, acc_ref, bias, h, w):
        # Implicit GEMM over the whole image: 9 tap dots of (h*w, Cin)x(Cin, CP)
        # into one f32 accumulator initialised with the (broadcast) bias.
        acc_ref[...] = jnp.broadcast_to(bias, acc_ref.shape)
        for kh in range(3):
            for kw in range(3):
                patch = xp_ref[pl.ds(kh, h), pl.ds(LPAD - 1 + kw, w), :]
                patch = patch.reshape(h * w, patch.shape[-1]).astype(jnp.bfloat16)
                acc_ref[...] += jnp.dot(patch, w_ref[kh, kw],
                                        preferred_element_type=jnp.float32)
        return jnp.maximum(acc_ref[...], 0.0).astype(jnp.bfloat16)

    def maxpool2x2(y, sel_ref):
        # Exact fused 2x2 maxpool: 4 precomputed 0/1 row-selection matmuls
        # (each result is an exact copy of selected rows) + elementwise max.
        p = jnp.dot(sel_ref[0], y, preferred_element_type=jnp.float32)
        for k in range(1, 4):
            p = jnp.maximum(p, jnp.dot(sel_ref[k], y,
                                       preferred_element_type=jnp.float32))
        return p

    # ---- conv1 + ReLU + pool: in-kernel halo pad (no HBM jnp.pad copy) ----
    x1p_ref[...] = jnp.zeros(x1p_ref.shape, x1p_ref.dtype)
    x1p_ref[pl.ds(1, H), pl.ds(LPAD, W), :] = x_ref[0]
    y1 = conv3x3_relu(x1p_ref, w1_ref, acc1_ref, b1_ref[...], H, W)   # (256,128)
    p1 = maxpool2x2(y1, sel1_ref)                                     # (64, 128)

    # ---- conv2 + ReLU + pool ----
    x2p_ref[...] = jnp.zeros(x2p_ref.shape, x2p_ref.dtype)
    x2p_ref[pl.ds(1, H2), pl.ds(LPAD, W2), :] = p1.reshape(H2, W2, CP)
    y2 = conv3x3_relu(x2p_ref, w2_ref, acc2_ref, b2_ref[...], H2, W2)  # (64,128)
    p2 = maxpool2x2(y2, sel2_ref)                                      # (16,128)

    # ---- classifier: Linear+ReLU -> Linear+ReLU -> Linear (fused) ----
    # fc1 contracts over (spatial, padded-channel); weights were permuted in
    # prepare_params to match PyTorch's NCHW flatten.  M=1 per dot is inherent
    # to one-image-per-step; the classifier is launch-bound, not MXU-bound.
    # TODO(synk): Dropout implemented as eval-mode identity (no RNG masking).
    h = fb1_ref[...]                                                   # (1,128) f32
    for q in range(H3 * W3):
        h = h + jnp.dot(p2[q:q + 1, :].astype(jnp.bfloat16), fw1_ref[q],
                        preferred_element_type=jnp.float32)
    h = jnp.maximum(h, 0.0).astype(jnp.bfloat16)
    h = jnp.dot(h, fw2_ref[...], preferred_element_type=jnp.float32) + fb2_ref[...]
    h = jnp.maximum(h, 0.0).astype(jnp.bfloat16)
    logits = jnp.dot(h, fw3_ref[...], preferred_element_type=jnp.float32) + fb3_ref[...]
    out_ref[0] = logits


# ------------------------------ parameter init -------------------------------
def init_params(key):
    ks = jax.random.split(key, 5)

    def conv_init(k, oc, ic):
        # PyTorch init: normal(0, sqrt(2 / (kh*kw*out_channels))), zero bias.
        n = 3 * 3 * oc
        w = jax.random.normal(k, (oc, ic, 3, 3), jnp.float32) * jnp.sqrt(2.0 / n)
        return w, jnp.zeros((oc,), jnp.float32)

    def lin_init(k, out_f, in_f):
        # PyTorch init: normal(0, 0.01), zero bias.
        w = jax.random.normal(k, (out_f, in_f), jnp.float32) * 0.01
        return w, jnp.zeros((out_f,), jnp.float32)

    return {
        "conv1": conv_init(ks[0], C1, CIN),
        "conv2": conv_init(ks[1], C2, C1),
        "fc1": lin_init(ks[2], N1, C2 * H3 * W3),
        "fc2": lin_init(ks[3], N2, N1),
        "fc3": lin_init(ks[4], NUM_CLASSES, N2),
    }


def _pool_select(h, w, dtype=jnp.bfloat16):
    """4 exact 0/1 selection matrices (hh*wh, h*w), one per 2x2-window corner."""
    hh, wh = h // 2, w // 2
    q = jnp.arange(hh * wh)
    ph, pw = q // wh, q % wh
    cols = jnp.arange(h * w)
    mats = []
    for a in range(2):
        for b in range(2):
            src = (2 * ph + a) * w + (2 * pw + b)
            mats.append((cols[None, :] == src[:, None]).astype(dtype))
    return jnp.stack(mats)


def prepare_params(p):
    """One-time conversion of PyTorch-layout params to the NHWC / channel-padded
    bf16 layout the fused kernel consumes (no per-call re-layouts)."""
    (w1, b1), (w2, b2) = p["conv1"], p["conv2"]
    (f1w, f1b), (f2w, f2b), (f3w, f3b) = p["fc1"], p["fc2"], p["fc3"]

    def conv_prep(w, b, cin_pad):
        oc, ic = w.shape[0], w.shape[1]
        wk = jnp.transpose(w, (2, 3, 1, 0))                       # (3,3,ic,oc)
        wk = jnp.pad(wk, ((0, 0), (0, 0), (0, cin_pad - ic), (0, CP - oc)))
        bk = jnp.pad(b, (0, CP - oc)).reshape(1, CP).astype(jnp.float32)
        return wk.astype(jnp.bfloat16), bk

    c1w, c1b = conv_prep(w1, b1, CIN_PAD)
    c2w, c2b = conv_prep(w2, b2, CP)

    # fc1: PyTorch flattens NCHW (c,h,w); kernel indexes (h*W3+w, padded c, n).
    f1 = f1w.reshape(N1, C2, H3, W3)
    f1 = jnp.transpose(f1, (2, 3, 1, 0))                           # (H3,W3,C2,N1)
    f1 = jnp.pad(f1, ((0, 0), (0, 0), (0, CP - C2), (0, 0)))
    f1 = f1.reshape(H3 * W3, CP, N1).astype(jnp.bfloat16)

    def fc_prep(w, b, n_pad):
        out_f = w.shape[0]
        wk = jnp.pad(jnp.transpose(w), ((0, 0), (0, n_pad - out_f)))
        bk = jnp.pad(b, (0, n_pad - out_f)).reshape(1, n_pad).astype(jnp.float32)
        return wk.astype(jnp.bfloat16), bk

    f2wk, f2bk = fc_prep(f2w, f2b, N2)
    f3wk, f3bk = fc_prep(f3w, f3b, CP)

    return {
        "conv1_w": c1w, "conv1_b": c1b,
        "conv2_w": c2w, "conv2_b": c2b,
        "sel1": _pool_select(H, W),       # (4, 64, 256)
        "sel2": _pool_select(H2, W2),     # (4, 16, 64)
        "fc1_w": f1, "fc1_b": f1b.reshape(1, N1).astype(jnp.float32),
        "fc2_w": f2wk, "fc2_b": f2bk,
        "fc3_w": f3wk, "fc3_b": f3bk,
    }


# -------------------------------- forward pass -------------------------------
def localizer_vgg_forward(params, x):
    """x: NCHW float32 (PyTorch layout at the module boundary)."""
    B = x.shape[0]
    # One-time NCHW -> NHWC relayout; the small channel pad (3 -> 8) fuses into
    # it.  The spatial halo pad happens inside the kernel (VMEM only).
    xk = jnp.transpose(x, (0, 2, 3, 1)).astype(jnp.float32)
    xk = jnp.pad(xk, ((0, 0), (0, 0), (0, 0), (0, CIN_PAD - xk.shape[-1])))

    out = pl.pallas_call(
        _localizer_vgg_fused_kernel,
        out_shape=jax.ShapeDtypeStruct((B, 1, CP), jnp.float32),
        grid=(B,),
        in_specs=[
            pl.BlockSpec((1, H, W, CIN_PAD), lambda b: (b, 0, 0, 0)),
            pl.BlockSpec((3, 3, CIN_PAD, CP), lambda b: (0, 0, 0, 0)),
            pl.BlockSpec((1, CP), lambda b: (0, 0)),
            pl.BlockSpec((4, H2 * W2, H * W), lambda b: (0, 0, 0)),
            pl.BlockSpec((3, 3, CP, CP), lambda b: (0, 0, 0, 0)),
            pl.BlockSpec((1, CP), lambda b: (0, 0)),
            pl.BlockSpec((4, H3 * W3, H2 * W2), lambda b: (0, 0, 0)),
            pl.BlockSpec((H3 * W3, CP, N1), lambda b: (0, 0, 0)),
            pl.BlockSpec((1, N1), lambda b: (0, 0)),
            pl.BlockSpec((N1, N2), lambda b: (0, 0)),
            pl.BlockSpec((1, N2), lambda b: (0, 0)),
            pl.BlockSpec((N2, CP), lambda b: (0, 0)),
            pl.BlockSpec((1, CP), lambda b: (0, 0)),
        ],
        out_specs=pl.BlockSpec((1, 1, CP), lambda b: (b, 0, 0)),
        scratch_shapes=[
            pltpu.VMEM((H + 2, LPAD + W + 1, CIN_PAD), jnp.float32),   # conv1 halo
            pltpu.VMEM((H * W, CP), jnp.float32),                      # conv1 acc
            pltpu.VMEM((H2 + 2, LPAD + W2 + 1, CP), jnp.float32),      # conv2 halo
            pltpu.VMEM((H2 * W2, CP), jnp.float32),                    # conv2 acc
        ],
        compiler_params=pltpu.CompilerParams(
            dimension_semantics=("parallel",),      # batch across v7x's 2 TCs
            vmem_limit_bytes=VMEM_LIMIT),
    )(xk, params["conv1_w"], params["conv1_b"], params["sel1"],
      params["conv2_w"], params["conv2_b"], params["sel2"],
      params["fc1_w"], params["fc1_b"], params["fc2_w"], params["fc2_b"],
      params["fc3_w"], params["fc3_b"])

    return out[:, 0, :NUM_CLASSES]       # drop the output-channel padding


if __name__ == "__main__":
    key = jax.random.PRNGKey(0)
    pkey, xkey = jax.random.split(key)
    raw_params = init_params(pkey)                        # PyTorch-layout params
    params = prepare_params(raw_params)                   # one-time kernel layout
    x = jax.random.normal(xkey, (2, CIN, H, W), jnp.float32)   # NCHW input
    out = jax.jit(localizer_vgg_forward)(params, x)
    out = jax.block_until_ready(out)
    assert out.shape == (2, NUM_CLASSES)
    assert out.dtype == jnp.float32
    assert bool(jnp.all(jnp.isfinite(out)))
    print("KERNEL_OK")
</pallas_src>

<mosaic_0001>
module attributes {stable_mosaic.version = 11 : i64} {
  func.func @_localizer_vgg_fused_kernel(%arg0: i32, %arg1: memref<1x16x16x8xf32, #tpu.memory_space<vmem>>, %arg2: memref<3x3x8x128xbf16, #tpu.memory_space<vmem>>, %arg3: memref<1x128xf32, #tpu.memory_space<vmem>>, %arg4: memref<4x64x256xbf16, #tpu.memory_space<vmem>>, %arg5: memref<3x3x128x128xbf16, #tpu.memory_space<vmem>>, %arg6: memref<1x128xf32, #tpu.memory_space<vmem>>, %arg7: memref<4x16x64xbf16, #tpu.memory_space<vmem>>, %arg8: memref<16x128x128xbf16, #tpu.memory_space<vmem>>, %arg9: memref<1x128xf32, #tpu.memory_space<vmem>>, %arg10: memref<128x128xbf16, #tpu.memory_space<vmem>>, %arg11: memref<1x128xf32, #tpu.memory_space<vmem>>, %arg12: memref<128x128xbf16, #tpu.memory_space<vmem>>, %arg13: memref<1x128xf32, #tpu.memory_space<vmem>>, %arg14: memref<1x1x128xf32, #tpu.memory_space<vmem>>, %arg15: memref<18x25x8xf32, #tpu.memory_space<vmem>>, %arg16: memref<256x128xf32, #tpu.memory_space<vmem>>, %arg17: memref<10x17x128xf32, #tpu.memory_space<vmem>>, %arg18: memref<64x128xf32, #tpu.memory_space<vmem>>) attributes {dimension_semantics = [#tpu.dimension_semantics<parallel>], iteration_bounds = array<i64: 2>, scalar_prefetch = 0 : i64, scratch_operands = 4 : i64, tpu.core_type = #tpu.core_type<tc>, window_params = [{transform_indices = @transform_0, window_bounds = array<i64: 1, 16, 16, 8>}, {pipeline_mode = #tpu.pipeline_mode<synchronous>, transform_indices = @transform_1, window_bounds = array<i64: 3, 3, 8, 128>}, {pipeline_mode = #tpu.pipeline_mode<synchronous>, transform_indices = @transform_2, window_bounds = array<i64: 1, 128>}, {pipeline_mode = #tpu.pipeline_mode<synchronous>, transform_indices = @transform_3, window_bounds = array<i64: 4, 64, 256>}, {pipeline_mode = #tpu.pipeline_mode<synchronous>, transform_indices = @transform_4, window_bounds = array<i64: 3, 3, 128, 128>}, {pipeline_mode = #tpu.pipeline_mode<synchronous>, transform_indices = @transform_5, window_bounds = array<i64: 1, 128>}, {pipeline_mode = #tpu.pipeline_mode<synchronous>, transform_indices = @transform_6, window_bounds = array<i64: 4, 16, 64>}, {pipeline_mode = #tpu.pipeline_mode<synchronous>, transform_indices = @transform_7, window_bounds = array<i64: 16, 128, 128>}, {pipeline_mode = #tpu.pipeline_mode<synchronous>, transform_indices = @transform_8, window_bounds = array<i64: 1, 128>}, {pipeline_mode = #tpu.pipeline_mode<synchronous>, transform_indices = @transform_9, window_bounds = array<i64: 128, 128>}, {pipeline_mode = #tpu.pipeline_mode<synchronous>, transform_indices = @transform_10, window_bounds = array<i64: 1, 128>}, {pipeline_mode = #tpu.pipeline_mode<synchronous>, transform_indices = @transform_11, window_bounds = array<i64: 128, 128>}, {pipeline_mode = #tpu.pipeline_mode<synchronous>, transform_indices = @transform_12, window_bounds = array<i64: 1, 128>}, {transform_indices = @transform_13, window_bounds = array<i64: 1, 1, 128>}]} {
    %cst = arith.constant 0.000000e+00 : f32
    %0 = vector.broadcast %cst : f32 to vector<18x25x8xf32>
    %c0 = arith.constant 0 : index
    %c0_0 = arith.constant 0 : index
    %c0_1 = arith.constant 0 : index
    %1 = vector.load %arg15[%c0, %c0_0, %c0_1] : memref<18x25x8xf32, #tpu.memory_space<vmem>>, vector<18x25x8xf32>
    tpu.vector_store %arg15[%c0, %c0_0, %c0_1], %0 {strides = array<i32>} : memref<18x25x8xf32, #tpu.memory_space<vmem>>, vector<18x25x8xf32>,
    %c0_2 = arith.constant 0 : index
    %c0_3 = arith.constant 0 : index
    %c0_4 = arith.constant 0 : index
    %c0_5 = arith.constant 0 : index
    %2 = vector.load %arg1[%c0_2, %c0_3, %c0_4, %c0_5] : memref<1x16x16x8xf32, #tpu.memory_space<vmem>>, vector<1x16x16x8xf32>
    %3 = vector.shape_cast %2 : vector<1x16x16x8xf32> to vector<16x16x8xf32>
    %c1 = arith.constant 1 : index
    %c8 = arith.constant 8 : index
    %c0_6 = arith.constant 0 : index
    %4 = vector.load %arg15[%c1, %c8, %c0_6] : memref<18x25x8xf32, #tpu.memory_space<vmem>>, vector<16x16x8xf32>
    tpu.vector_store %arg15[%c1, %c8, %c0_6], %3 {strides = array<i32>} : memref<18x25x8xf32, #tpu.memory_space<vmem>>, vector<16x16x8xf32>,
    %c0_7 = arith.constant 0 : index
    %c0_8 = arith.constant 0 : index
    %5 = vector.load %arg3[%c0_7, %c0_8] : memref<1x128xf32, #tpu.memory_space<vmem>>, vector<1x128xf32>
    %6 = vector.shape_cast %5 : vector<1x128xf32> to vector<1x128xf32>
    %7 = vector.broadcast %6 : vector<1x128xf32> to vector<256x128xf32>
    %c0_9 = arith.constant 0 : index
    %c0_10 = arith.constant 0 : index
    %8 = vector.load %arg16[%c0_9, %c0_10] : memref<256x128xf32, #tpu.memory_space<vmem>>, vector<256x128xf32>
    tpu.vector_store %arg16[%c0_9, %c0_10], %7 {strides = array<i32>} : memref<256x128xf32, #tpu.memory_space<vmem>>, vector<256x128xf32>,
    %c0_11 = arith.constant 0 : index
    %c7 = arith.constant 7 : index
    %c0_12 = arith.constant 0 : index
    %9 = vector.load %arg15[%c0_11, %c7, %c0_12] : memref<18x25x8xf32, #tpu.memory_space<vmem>>, vector<16x16x8xf32>
    %10 = vector.shape_cast %9 : vector<16x16x8xf32> to vector<256x8xf32>
    %11 = arith.truncf %10 : vector<256x8xf32> to vector<256x8xbf16>
    %c0_13 = arith.constant 0 : index
    %c0_14 = arith.constant 0 : index
    %12 = vector.load %arg16[%c0_13, %c0_14] : memref<256x128xf32, #tpu.memory_space<vmem>>, vector<256x128xf32>
    %c0_15 = arith.constant 0 : index
    %c0_16 = arith.constant 0 : index
    %c0_17 = arith.constant 0 : index
    %c0_18 = arith.constant 0 : index
    %13 = vector.load %arg2[%c0_15, %c0_16, %c0_17, %c0_18] : memref<3x3x8x128xbf16, #tpu.memory_space<vmem>>, vector<1x1x8x128xbf16>
    %14 = vector.shape_cast %13 : vector<1x1x8x128xbf16> to vector<8x128xbf16>
    %cst_19 = arith.constant dense<0.000000e+00> : vector<256x128xf32>
    %15 = tpu.matmul %11, %14, %cst_19 {dimension_numbers = #tpu.dot_dimension_numbers<[1], [0], [0], [1], [0, 0, 1, 1], [], []>} : vector<256x8xbf16>, vector<8x128xbf16>, vector<256x128xf32> -> vector<256x128xf32>
    %16 = arith.addf %12, %15 : vector<256x128xf32>
    %c0_20 = arith.constant 0 : index
    %c0_21 = arith.constant 0 : index
    %17 = vector.load %arg16[%c0_20, %c0_21] : memref<256x128xf32, #tpu.memory_space<vmem>>, vector<256x128xf32>
    tpu.vector_store %arg16[%c0_20, %c0_21], %16 {strides = array<i32>} : memref<256x128xf32, #tpu.memory_space<vmem>>, vector<256x128xf32>,
    %c0_22 = arith.constant 0 : index
    %c8_23 = arith.constant 8 : index
    %c0_24 = arith.constant 0 : index
    %18 = vector.load %arg15[%c0_22, %c8_23, %c0_24] : memref<18x25x8xf32, #tpu.memory_space<vmem>>, vector<16x16x8xf32>
    %19 = vector.shape_cast %18 : vector<16x16x8xf32> to vector<256x8xf32>
    %20 = arith.truncf %19 : vector<256x8xf32> to vector<256x8xbf16>
    %c0_25 = arith.constant 0 : index
    %c0_26 = arith.constant 0 : index
    %21 = vector.load %arg16[%c0_25, %c0_26] : memref<256x128xf32, #tpu.memory_space<vmem>>, vector<256x128xf32>
    %c0_27 = arith.constant 0 : index
    %c1_28 = arith.constant 1 : index
    %c0_29 = arith.constant 0 : index
    %c0_30 = arith.constant 0 : index
    %22 = vector.load %arg2[%c0_27, %c1_28, %c0_29, %c0_30] : memref<3x3x8x128xbf16, #tpu.memory_space<vmem>>, vector<1x1x8x128xbf16>
    %23 = vector.shape_cast %22 : vector<1x1x8x128xbf16> to vector<8x128xbf16>
    %cst_31 = arith.constant dense<0.000000e+00> : vector<256x128xf32>
    %24 = tpu.matmul %20, %23, %cst_31 {dimension_numbers = #tpu.dot_dimension_numbers<[1], [0], [0], [1], [0, 0, 1, 1], [], []>} : vector<256x8xbf16>, vector<8x128xbf16>, vector<256x128xf32> -> vector<256x128xf32>
    %25 = arith.addf %21, %24 : vector<256x128xf32>
    %c0_32 = arith.constant 0 : index
    %c0_33 = arith.constant 0 : index
    %26 = vector.load %arg16[%c0_32, %c0_33] : memref<256x128xf32, #tpu.memory_space<vmem>>, vector<256x128xf32>
    tpu.vector_store %arg16[%c0_32, %c0_33], %25 {strides = array<i32>} : memref<256x128xf32, #tpu.memory_space<vmem>>, vector<256x128xf32>,
    %c0_34 = arith.constant 0 : index
    %c9 = arith.constant 9 : index
    %c0_35 = arith.constant 0 : index
    %27 = vector.load %arg15[%c0_34, %c9, %c0_35] : memref<18x25x8xf32, #tpu.memory_space<vmem>>, vector<16x16x8xf32>
    %28 = vector.shape_cast %27 : vector<16x16x8xf32> to vector<256x8xf32>
    %29 = arith.truncf %28 : vector<256x8xf32> to vector<256x8xbf16>
    %c0_36 = arith.constant 0 : index
    %c0_37 = arith.constant 0 : index
    %30 = vector.load %arg16[%c0_36, %c0_37] : memref<256x128xf32, #tpu.memory_space<vmem>>, vector<256x128xf32>
    %c0_38 = arith.constant 0 : index
    %c2 = arith.constant 2 : index
    %c0_39 = arith.constant 0 : index
    %c0_40 = arith.constant 0 : index
    %31 = vector.load %arg2[%c0_38, %c2, %c0_39, %c0_40] : memref<3x3x8x128xbf16, #tpu.memory_space<vmem>>, vector<1x1x8x128xbf16>
    %32 = vector.shape_cast %31 : vector<1x1x8x128xbf16> to vector<8x128xbf16>
    %cst_41 = arith.constant dense<0.000000e+00> : vector<256x128xf32>
    %33 = tpu.matmul %29, %32, %cst_41 {dimension_numbers = #tpu.dot_dimension_numbers<[1], [0], [0], [1], [0, 0, 1, 1], [], []>} : vector<256x8xbf16>, vector<8x128xbf16>, vector<256x128xf32> -> vector<256x128xf32>
    %34 = arith.addf %30, %33 : vector<256x128xf32>
    %c0_42 = arith.constant 0 : index
    %c0_43 = arith.constant 0 : index
    %35 = vector.load %arg16[%c0_42, %c0_43] : memref<256x128xf32, #tpu.memory_space<vmem>>, vector<256x128xf32>
    tpu.vector_store %arg16[%c0_42, %c0_43], %34 {strides = array<i32>} : memref<256x128xf32, #tpu.memory_space<vmem>>, vector<256x128xf32>,
    %c1_44 = arith.constant 1 : index
    %c7_45 = arith.constant 7 : index
    %c0_46 = arith.constant 0 : index
    %36 = vector.load %arg15[%c1_44, %c7_45, %c0_46] : memref<18x25x8xf32, #tpu.memory_space<vmem>>, vector<16x16x8xf32>
    %37 = vector.shape_cast %36 : vector<16x16x8xf32> to vector<256x8xf32>
    %38 = arith.truncf %37 : vector<256x8xf32> to vector<256x8xbf16>
    %c0_47 = arith.constant 0 : index
    %c0_48 = arith.constant 0 : index
    %39 = vector.load %arg16[%c0_47, %c0_48] : memref<256x128xf32, #tpu.memory_space<vmem>>, vector<256x128xf32>
    %c1_49 = arith.constant 1 : index
    %c0_50 = arith.constant 0 : index
    %c0_51 = arith.constant 0 : index
    %c0_52 = arith.constant 0 : index
    %40 = vector.load %arg2[%c1_49, %c0_50, %c0_51, %c0_52] : memref<3x3x8x128xbf16, #tpu.memory_space<vmem>>, vector<1x1x8x128xbf16>
    %41 = vector.shape_cast %40 : vector<1x1x8x128xbf16> to vector<8x128xbf16>
    %cst_53 = arith.constant dense<0.000000e+00> : vector<256x128xf32>
    %42 = tpu.matmul %38, %41, %cst_53 {dimension_numbers = #tpu.dot_dimension_numbers<[1], [0], [0], [1], [0, 0, 1, 1], [], []>} : vector<256x8xbf16>, vector<8x128xbf16>, vector<256x128xf32> -> vector<256x128xf32>
    %43 = arith.addf %39, %42 : vector<256x128xf32>
    %c0_54 = arith.constant 0 : index
    %c0_55 = arith.constant 0 : index
    %44 = vector.load %arg16[%c0_54, %c0_55] : memref<256x128xf32, #tpu.memory_space<vmem>>, vector<256x128xf32>
    tpu.vector_store %arg16[%c0_54, %c0_55], %43 {strides = array<i32>} : memref<256x128xf32, #tpu.memory_space<vmem>>, vector<256x128xf32>,
    %c1_56 = arith.constant 1 : index
    %c8_57 = arith.constant 8 : index
    %c0_58 = arith.constant 0 : index
    %45 = vector.load %arg15[%c1_56, %c8_57, %c0_58] : memref<18x25x8xf32, #tpu.memory_space<vmem>>, vector<16x16x8xf32>
    %46 = vector.shape_cast %45 : vector<16x16x8xf32> to vector<256x8xf32>
    %47 = arith.truncf %46 : vector<256x8xf32> to vector<256x8xbf16>
    %c0_59 = arith.constant 0 : index
    %c0_60 = arith.constant 0 : index
    %48 = vector.load %arg16[%c0_59, %c0_60] : memref<256x128xf32, #tpu.memory_space<vmem>>, vector<256x128xf32>
    %c1_61 = arith.constant 1 : index
    %c1_62 = arith.constant 1 : index
    %c0_63 = arith.constant 0 : index
    %c0_64 = arith.constant 0 : index
    %49 = vector.load %arg2[%c1_61, %c1_62, %c0_63, %c0_64] : memref<3x3x8x128xbf16, #tpu.memory_space<vmem>>, vector<1x1x8x128xbf16>
    %50 = vector.shape_cast %49 : vector<1x1x8x128xbf16> to vector<8x128xbf16>
    %cst_65 = arith.constant dense<0.000000e+00> : vector<256x128xf32>
    %51 = tpu.matmul %47, %50, %cst_65 {dimension_numbers = #tpu.dot_dimension_numbers<[1], [0], [0], [1], [0, 0, 1, 1], [], []>} : vector<256x8xbf16>, vector<8x128xbf16>, vector<256x128xf32> -> vector<256x128xf32>
    %52 = arith.addf %48, %51 : vector<256x128xf32>
    %c0_66 = arith.constant 0 : index
    %c0_67 = arith.constant 0 : index
    %53 = vector.load %arg16[%c0_66, %c0_67] : memref<256x128xf32, #tpu.memory_space<vmem>>, vector<256x128xf32>
    tpu.vector_store %arg16[%c0_66, %c0_67], %52 {strides = array<i32>} : memref<256x128xf32, #tpu.memory_space<vmem>>, vector<256x128xf32>,
    %c1_68 = arith.constant 1 : index
    %c9_69 = arith.constant 9 : index
    %c0_70 = arith.constant 0 : index
    %54 = vector.load %arg15[%c1_68, %c9_69, %c0_70] : memref<18x25x8xf32, #tpu.memory_space<vmem>>, vector<16x16x8xf32>
    %55 = vector.shape_cast %54 : vector<16x16x8xf32> to vector<256x8xf32>
    %56 = arith.truncf %55 : vector<256x8xf32> to vector<256x8xbf16>
    %c0_71 = arith.constant 0 : index
    %c0_72 = arith.constant 0 : index
    %57 = vector.load %arg16[%c0_71, %c0_72] : memref<256x128xf32, #tpu.memory_space<vmem>>, vector<256x128xf32>
    %c1_73 = arith.constant 1 : index
    %c2_74 = arith.constant 2 : index
    %c0_75 = arith.constant 0 : index
    %c0_76 = arith.constant 0 : index
    %58 = vector.load %arg2[%c1_73, %c2_74, %c0_75, %c0_76] : memref<3x3x8x128xbf16, #tpu.memory_space<vmem>>, vector<1x1x8x128xbf16>
    %59 = vector.shape_cast %58 : vector<1x1x8x128xbf16> to vector<8x128xbf16>
    %cst_77 = arith.constant dense<0.000000e+00> : vector<256x128xf32>
    %60 = tpu.matmul %56, %59, %cst_77 {dimension_numbers = #tpu.dot_dimension_numbers<[1], [0], [0], [1], [0, 0, 1, 1], [], []>} : vector<256x8xbf16>, vector<8x128xbf16>, vector<256x128xf32> -> vector<256x128xf32>
    %61 = arith.addf %57, %60 : vector<256x128xf32>
    %c0_78 = arith.constant 0 : index
    %c0_79 = arith.constant 0 : index
    %62 = vector.load %arg16[%c0_78, %c0_79] : memref<256x128xf32, #tpu.memory_space<vmem>>, vector<256x128xf32>
    tpu.vector_store %arg16[%c0_78, %c0_79], %61 {strides = array<i32>} : memref<256x128xf32, #tpu.memory_space<vmem>>, vector<256x128xf32>,
    %c2_80 = arith.constant 2 : index
    %c7_81 = arith.constant 7 : index
    %c0_82 = arith.constant 0 : index
    %63 = vector.load %arg15[%c2_80, %c7_81, %c0_82] : memref<18x25x8xf32, #tpu.memory_space<vmem>>, vector<16x16x8xf32>
    %64 = vector.shape_cast %63 : vector<16x16x8xf32> to vector<256x8xf32>
    %65 = arith.truncf %64 : vector<256x8xf32> to vector<256x8xbf16>
    %c0_83 = arith.constant 0 : index
    %c0_84 = arith.constant 0 : index
    %66 = vector.load %arg16[%c0_83, %c0_84] : memref<256x128xf32, #tpu.memory_space<vmem>>, vector<256x128xf32>
    %c2_85 = arith.constant 2 : index
    %c0_86 = arith.constant 0 : index
    %c0_87 = arith.constant 0 : index
    %c0_88 = arith.constant 0 : index
    %67 = vector.load %arg2[%c2_85, %c0_86, %c0_87, %c0_88] : memref<3x3x8x128xbf16, #tpu.memory_space<vmem>>, vector<1x1x8x128xbf16>
    %68 = vector.shape_cast %67 : vector<1x1x8x128xbf16> to vector<8x128xbf16>
    %cst_89 = arith.constant dense<0.000000e+00> : vector<256x128xf32>
    %69 = tpu.matmul %65, %68, %cst_89 {dimension_numbers = #tpu.dot_dimension_numbers<[1], [0], [0], [1], [0, 0, 1, 1], [], []>} : vector<256x8xbf16>, vector<8x128xbf16>, vector<256x128xf32> -> vector<256x128xf32>
    %70 = arith.addf %66, %69 : vector<256x128xf32>
    %c0_90 = arith.constant 0 : index
    %c0_91 = arith.constant 0 : index
    %71 = vector.load %arg16[%c0_90, %c0_91] : memref<256x128xf32, #tpu.memory_space<vmem>>, vector<256x128xf32>
    tpu.vector_store %arg16[%c0_90, %c0_91], %70 {strides = array<i32>} : memref<256x128xf32, #tpu.memory_space<vmem>>, vector<256x128xf32>,
    %c2_92 = arith.constant 2 : index
    %c8_93 = arith.constant 8 : index
    %c0_94 = arith.constant 0 : index
    %72 = vector.load %arg15[%c2_92, %c8_93, %c0_94] : memref<18x25x8xf32, #tpu.memory_space<vmem>>, vector<16x16x8xf32>
    %73 = vector.shape_cast %72 : vector<16x16x8xf32> to vector<256x8xf32>
    %74 = arith.truncf %73 : vector<256x8xf32> to vector<256x8xbf16>
    %c0_95 = arith.constant 0 : index
    %c0_96 = arith.constant 0 : index
    %75 = vector.load %arg16[%c0_95, %c0_96] : memref<256x128xf32, #tpu.memory_space<vmem>>, vector<256x128xf32>
    %c2_97 = arith.constant 2 : index
    %c1_98 = arith.constant 1 : index
    %c0_99 = arith.constant 0 : index
    %c0_100 = arith.constant 0 : index
    %76 = vector.load %arg2[%c2_97, %c1_98, %c0_99, %c0_100] : memref<3x3x8x128xbf16, #tpu.memory_space<vmem>>, vector<1x1x8x128xbf16>
    %77 = vector.shape_cast %76 : vector<1x1x8x128xbf16> to vector<8x128xbf16>
    %cst_101 = arith.constant dense<0.000000e+00> : vector<256x128xf32>
    %78 = tpu.matmul %74, %77, %cst_101 {dimension_numbers = #tpu.dot_dimension_numbers<[1], [0], [0], [1], [0, 0, 1, 1], [], []>} : vector<256x8xbf16>, vector<8x128xbf16>, vector<256x128xf32> -> vector<256x128xf32>
    %79 = arith.addf %75, %78 : vector<256x128xf32>
    %c0_102 = arith.constant 0 : index
    %c0_103 = arith.constant 0 : index
    %80 = vector.load %arg16[%c0_102, %c0_103] : memref<256x128xf32, #tpu.memory_space<vmem>>, vector<256x128xf32>
    tpu.vector_store %arg16[%c0_102, %c0_103], %79 {strides = array<i32>} : memref<256x128xf32, #tpu.memory_space<vmem>>, vector<256x128xf32>,
    %c2_104 = arith.constant 2 : index
    %c9_105 = arith.constant 9 : index
    %c0_106 = arith.constant 0 : index
    %81 = vector.load %arg15[%c2_104, %c9_105, %c0_106] : memref<18x25x8xf32, #tpu.memory_space<vmem>>, vector<16x16x8xf32>
    %82 = vector.shape_cast %81 : vector<16x16x8xf32> to vector<256x8xf32>
    %83 = arith.truncf %82 : vector<256x8xf32> to vector<256x8xbf16>
    %c0_107 = arith.constant 0 : index
    %c0_108 = arith.constant 0 : index
    %84 = vector.load %arg16[%c0_107, %c0_108] : memref<256x128xf32, #tpu.memory_space<vmem>>, vector<256x128xf32>
    %c2_109 = arith.constant 2 : index
    %c2_110 = arith.constant 2 : index
    %c0_111 = arith.constant 0 : index
    %c0_112 = arith.constant 0 : index
    %85 = vector.load %arg2[%c2_109, %c2_110, %c0_111, %c0_112] : memref<3x3x8x128xbf16, #tpu.memory_space<vmem>>, vector<1x1x8x128xbf16>
    %86 = vector.shape_cast %85 : vector<1x1x8x128xbf16> to vector<8x128xbf16>
    %cst_113 = arith.constant dense<0.000000e+00> : vector<256x128xf32>
    %87 = tpu.matmul %83, %86, %cst_113 {dimension_numbers = #tpu.dot_dimension_numbers<[1], [0], [0], [1], [0, 0, 1, 1], [], []>} : vector<256x8xbf16>, vector<8x128xbf16>, vector<256x128xf32> -> vector<256x128xf32>
    %88 = arith.addf %84, %87 : vector<256x128xf32>
    %c0_114 = arith.constant 0 : index
    %c0_115 = arith.constant 0 : index
    %89 = vector.load %arg16[%c0_114, %c0_115] : memref<256x128xf32, #tpu.memory_space<vmem>>, vector<256x128xf32>
    tpu.vector_store %arg16[%c0_114, %c0_115], %88 {strides = array<i32>} : memref<256x128xf32, #tpu.memory_space<vmem>>, vector<256x128xf32>,
    %c0_116 = arith.constant 0 : index
    %c0_117 = arith.constant 0 : index
    %90 = vector.load %arg16[%c0_116, %c0_117] : memref<256x128xf32, #tpu.memory_space<vmem>>, vector<256x128xf32>
    %cst_118 = arith.constant 0.000000e+00 : f32
    %91 = vector.broadcast %cst_118 : f32 to vector<256x128xf32>
    %92 = arith.maximumf %90, %91 : vector<256x128xf32>
    %93 = arith.truncf %92 : vector<256x128xf32> to vector<256x128xbf16>
    %c0_119 = arith.constant 0 : index
    %c0_120 = arith.constant 0 : index
    %c0_121 = arith.constant 0 : index
    %94 = vector.load %arg4[%c0_119, %c0_120, %c0_121] : memref<4x64x256xbf16, #tpu.memory_space<vmem>>, vector<1x64x256xbf16>
    %95 = vector.shape_cast %94 : vector<1x64x256xbf16> to vector<64x256xbf16>
    %cst_122 = arith.constant dense<0.000000e+00> : vector<64x128xf32>
    %96 = tpu.matmul %95, %93, %cst_122 {dimension_numbers = #tpu.dot_dimension_numbers<[1], [0], [0], [1], [0, 0, 1, 1], [], []>} : vector<64x256xbf16>, vector<256x128xbf16>, vector<64x128xf32> -> vector<64x128xf32>
    %c1_123 = arith.constant 1 : index
    %c0_124 = arith.constant 0 : index
    %c0_125 = arith.constant 0 : index
    %97 = vector.load %arg4[%c1_123, %c0_124, %c0_125] : memref<4x64x256xbf16, #tpu.memory_space<vmem>>, vector<1x64x256xbf16>
    %98 = vector.shape_cast %97 : vector<1x64x256xbf16> to vector<64x256xbf16>
    %cst_126 = arith.constant dense<0.000000e+00> : vector<64x128xf32>
    %99 = tpu.matmul %98, %93, %cst_126 {dimension_numbers = #tpu.dot_dimension_numbers<[1], [0], [0], [1], [0, 0, 1, 1], [], []>} : vector<64x256xbf16>, vector<256x128xbf16>, vector<64x128xf32> -> vector<64x128xf32>
    %100 = arith.maximumf %96, %99 : vector<64x128xf32>
    %c2_127 = arith.constant 2 : index
    %c0_128 = arith.constant 0 : index
    %c0_129 = arith.constant 0 : index
    %101 = vector.load %arg4[%c2_127, %c0_128, %c0_129] : memref<4x64x256xbf16, #tpu.memory_space<vmem>>, vector<1x64x256xbf16>
    %102 = vector.shape_cast %101 : vector<1x64x256xbf16> to vector<64x256xbf16>
    %cst_130 = arith.constant dense<0.000000e+00> : vector<64x128xf32>
    %103 = tpu.matmul %102, %93, %cst_130 {dimension_numbers = #tpu.dot_dimension_numbers<[1], [0], [0], [1], [0, 0, 1, 1], [], []>} : vector<64x256xbf16>, vector<256x128xbf16>, vector<64x128xf32> -> vector<64x128xf32>
    %104 = arith.maximumf %100, %103 : vector<64x128xf32>
    %c3 = arith.constant 3 : index
    %c0_131 = arith.constant 0 : index
    %c0_132 = arith.constant 0 : index
    %105 = vector.load %arg4[%c3, %c0_131, %c0_132] : memref<4x64x256xbf16, #tpu.memory_space<vmem>>, vector<1x64x256xbf16>
    %106 = vector.shape_cast %105 : vector<1x64x256xbf16> to vector<64x256xbf16>
    %cst_133 = arith.constant dense<0.000000e+00> : vector<64x128xf32>
    %107 = tpu.matmul %106, %93, %cst_133 {dimension_numbers = #tpu.dot_dimension_numbers<[1], [0], [0], [1], [0, 0, 1, 1], [], []>} : vector<64x256xbf16>, vector<256x128xbf16>, vector<64x128xf32> -> vector<64x128xf32>
    %108 = arith.maximumf %104, %107 : vector<64x128xf32>
    %cst_134 = arith.constant 0.000000e+00 : f32
    %109 = vector.broadcast %cst_134 : f32 to vector<10x17x128xf32>
    %c0_135 = arith.constant 0 : index
    %c0_136 = arith.constant 0 : index
    %c0_137 = arith.constant 0 : index
    %110 = vector.load %arg17[%c0_135, %c0_136, %c0_137] : memref<10x17x128xf32, #tpu.memory_space<vmem>>, vector<10x17x128xf32>
    tpu.vector_store %arg17[%c0_135, %c0_136, %c0_137], %109 {strides = array<i32>} : memref<10x17x128xf32, #tpu.memory_space<vmem>>, vector<10x17x128xf32>,
    %111 = vector.shape_cast %108 : vector<64x128xf32> to vector<8x8x128xf32>
    %c1_138 = arith.constant 1 : index
    %c8_139 = arith.constant 8 : index
    %c0_140 = arith.constant 0 : index
    %112 = vector.load %arg17[%c1_138, %c8_139, %c0_140] : memref<10x17x128xf32, #tpu.memory_space<vmem>>, vector<8x8x128xf32>
    tpu.vector_store %arg17[%c1_138, %c8_139, %c0_140], %111 {strides = array<i32>} : memref<10x17x128xf32, #tpu.memory_space<vmem>>, vector<8x8x128xf32>,
    %c0_141 = arith.constant 0 : index
    %c0_142 = arith.constant 0 : index
    %113 = vector.load %arg6[%c0_141, %c0_142] : memref<1x128xf32, #tpu.memory_space<vmem>>, vector<1x128xf32>
    %114 = vector.shape_cast %113 : vector<1x128xf32> to vector<1x128xf32>
    %115 = vector.broadcast %114 : vector<1x128xf32> to vector<64x128xf32>
    %c0_143 = arith.constant 0 : index
    %c0_144 = arith.constant 0 : index
    %116 = vector.load %arg18[%c0_143, %c0_144] : memref<64x128xf32, #tpu.memory_space<vmem>>, vector<64x128xf32>
    tpu.vector_store %arg18[%c0_143, %c0_144], %115 {strides = array<i32>} : memref<64x128xf32, #tpu.memory_space<vmem>>, vector<64x128xf32>,
    %c0_145 = arith.constant 0 : index
    %c7_146 = arith.constant 7 : index
    %c0_147 = arith.constant 0 : index
    %117 = vector.load %arg17[%c0_145, %c7_146, %c0_147] : memref<10x17x128xf32, #tpu.memory_space<vmem>>, vector<8x8x128xf32>
    %118 = vector.shape_cast %117 : vector<8x8x128xf32> to vector<64x128xf32>
    %119 = arith.truncf %118 : vector<64x128xf32> to vector<64x128xbf16>
    %c0_148 = arith.constant 0 : index
    %c0_149 = arith.constant 0 : index
    %120 = vector.load %arg18[%c0_148, %c0_149] : memref<64x128xf32, #tpu.memory_space<vmem>>, vector<64x128xf32>
    %c0_150 = arith.constant 0 : index
    %c0_151 = arith.constant 0 : index
    %c0_152 = arith.constant 0 : index
    %c0_153 = arith.constant 0 : index
    %121 = vector.load %arg5[%c0_150, %c0_151, %c0_152, %c0_153] : memref<3x3x128x128xbf16, #tpu.memory_space<vmem>>, vector<1x1x128x128xbf16>
    %122 = vector.shape_cast %121 : vector<1x1x128x128xbf16> to vector<128x128xbf16>
    %cst_154 = arith.constant dense<0.000000e+00> : vector<64x128xf32>
    %123 = tpu.matmul %119, %122, %cst_154 {dimension_numbers = #tpu.dot_dimension_numbers<[1], [0], [0], [1], [0, 0, 1, 1], [], []>} : vector<64x128xbf16>, vector<128x128xbf16>, vector<64x128xf32> -> vector<64x128xf32>
    %124 = arith.addf %120, %123 : vector<64x128xf32>
    %c0_155 = arith.constant 0 : index
    %c0_156 = arith.constant 0 : index
    %125 = vector.load %arg18[%c0_155, %c0_156] : memref<64x128xf32, #tpu.memory_space<vmem>>, vector<64x128xf32>
    tpu.vector_store %arg18[%c0_155, %c0_156], %124 {strides = array<i32>} : memref<64x128xf32, #tpu.memory_space<vmem>>, vector<64x128xf32>,
    %c0_157 = arith.constant 0 : index
    %c8_158 = arith.constant 8 : index
    %c0_159 = arith.constant 0 : index
    %126 = vector.load %arg17[%c0_157, %c8_158, %c0_159] : memref<10x17x128xf32, #tpu.memory_space<vmem>>, vector<8x8x128xf32>
    %127 = vector.shape_cast %126 : vector<8x8x128xf32> to vector<64x128xf32>
    %128 = arith.truncf %127 : vector<64x128xf32> to vector<64x128xbf16>
    %c0_160 = arith.constant 0 : index
    %c0_161 = arith.constant 0 : index
    %129 = vector.load %arg18[%c0_160, %c0_161] : memref<64x128xf32, #tpu.memory_space<vmem>>, vector<64x128xf32>
    %c0_162 = arith.constant 0 : index
    %c1_163 = arith.constant 1 : index
    %c0_164 = arith.constant 0 : index
    %c0_165 = arith.constant 0 : index
    %130 = vector.load %arg5[%c0_162, %c1_163, %c0_164, %c0_165] : memref<3x3x128x128xbf16, #tpu.memory_space<vmem>>, vector<1x1x128x128xbf16>
    %131 = vector.shape_cast %130 : vector<1x1x128x128xbf16> to vector<128x128xbf16>
    %cst_166 = arith.constant dense<0.000000e+00> : vector<64x128xf32>
    %132 = tpu.matmul %128, %131, %cst_166 {dimension_numbers = #tpu.dot_dimension_numbers<[1], [0], [0], [1], [0, 0, 1, 1], [], []>} : vector<64x128xbf16>, vector<128x128xbf16>, vector<64x128xf32> -> vector<64x128xf32>
    %133 = arith.addf %129, %132 : vector<64x128xf32>
    %c0_167 = arith.constant 0 : index
    %c0_168 = arith.constant 0 : index
    %134 = vector.load %arg18[%c0_167, %c0_168] : memref<64x128xf32, #tpu.memory_space<vmem>>, vector<64x128xf32>
    tpu.vector_store %arg18[%c0_167, %c0_168], %133 {strides = array<i32>} : memref<64x128xf32, #tpu.memory_space<vmem>>, vector<64x128xf32>,
    %c0_169 = arith.constant 0 : index
    %c9_170 = arith.constant 9 : index
    %c0_171 = arith.constant 0 : index
    %135 = vector.load %arg17[%c0_169, %c9_170, %c0_171] : memref<10x17x128xf32, #tpu.memory_space<vmem>>, vector<8x8x128xf32>
    %136 = vector.shape_cast %135 : vector<8x8x128xf32> to vector<64x128xf32>
    %137 = arith.truncf %136 : vector<64x128xf32> to vector<64x128xbf16>
    %c0_172 = arith.constant 0 : index
    %c0_173 = arith.constant 0 : index
    %138 = vector.load %arg18[%c0_172, %c0_173] : memref<64x128xf32, #tpu.memory_space<vmem>>, vector<64x128xf32>
    %c0_174 = arith.constant 0 : index
    %c2_175 = arith.constant 2 : index
    %c0_176 = arith.constant 0 : index
    %c0_177 = arith.constant 0 : index
    %139 = vector.load %arg5[%c0_174, %c2_175, %c0_176, %c0_177] : memref<3x3x128x128xbf16, #tpu.memory_space<vmem>>, vector<1x1x128x128xbf16>
    %140 = vector.shape_cast %139 : vector<1x1x128x128xbf16> to vector<128x128xbf16>
    %cst_178 = arith.constant dense<0.000000e+00> : vector<64x128xf32>
    %141 = tpu.matmul %137, %140, %cst_178 {dimension_numbers = #tpu.dot_dimension_numbers<[1], [0], [0], [1], [0, 0, 1, 1], [], []>} : vector<64x128xbf16>, vector<128x128xbf16>, vector<64x128xf32> -> vector<64x128xf32>
    %142 = arith.addf %138, %141 : vector<64x128xf32>
    %c0_179 = arith.constant 0 : index
    %c0_180 = arith.constant 0 : index
    %143 = vector.load %arg18[%c0_179, %c0_180] : memref<64x128xf32, #tpu.memory_space<vmem>>, vector<64x128xf32>
    tpu.vector_store %arg18[%c0_179, %c0_180], %142 {strides = array<i32>} : memref<64x128xf32, #tpu.memory_space<vmem>>, vector<64x128xf32>,
    %c1_181 = arith.constant 1 : index
    %c7_182 = arith.constant 7 : index
    %c0_183 = arith.constant 0 : index
    %144 = vector.load %arg17[%c1_181, %c7_182, %c0_183] : memref<10x17x128xf32, #tpu.memory_space<vmem>>, vector<8x8x128xf32>
    %145 = vector.shape_cast %144 : vector<8x8x128xf32> to vector<64x128xf32>
    %146 = arith.truncf %145 : vector<64x128xf32> to vector<64x128xbf16>
    %c0_184 = arith.constant 0 : index
    %c0_185 = arith.constant 0 : index
    %147 = vector.load %arg18[%c0_184, %c0_185] : memref<64x128xf32, #tpu.memory_space<vmem>>, vector<64x128xf32>
    %c1_186 = arith.constant 1 : index
    %c0_187 = arith.constant 0 : index
    %c0_188 = arith.constant 0 : index
    %c0_189 = arith.constant 0 : index
    %148 = vector.load %arg5[%c1_186, %c0_187, %c0_188, %c0_189] : memref<3x3x128x128xbf16, #tpu.memory_space<vmem>>, vector<1x1x128x128xbf16>
    %149 = vector.shape_cast %148 : vector<1x1x128x128xbf16> to vector<128x128xbf16>
    %cst_190 = arith.constant dense<0.000000e+00> : vector<64x128xf32>
    %150 = tpu.matmul %146, %149, %cst_190 {dimension_numbers = #tpu.dot_dimension_numbers<[1], [0], [0], [1], [0, 0, 1, 1], [], []>} : vector<64x128xbf16>, vector<128x128xbf16>, vector<64x128xf32> -> vector<64x128xf32>
    %151 = arith.addf %147, %150 : vector<64x128xf32>
    %c0_191 = arith.constant 0 : index
    %c0_192 = arith.constant 0 : index
    %152 = vector.load %arg18[%c0_191, %c0_192] : memref<64x128xf32, #tpu.memory_space<vmem>>, vector<64x128xf32>
    tpu.vector_store %arg18[%c0_191, %c0_192], %151 {strides = array<i32>} : memref<64x128xf32, #tpu.memory_space<vmem>>, vector<64x128xf32>,
    %c1_193 = arith.constant 1 : index
    %c8_194 = arith.constant 8 : index
    %c0_195 = arith.constant 0 : index
    %153 = vector.load %arg17[%c1_193, %c8_194, %c0_195] : memref<10x17x128xf32, #tpu.memory_space<vmem>>, vector<8x8x128xf32>
    %154 = vector.shape_cast %153 : vector<8x8x128xf32> to vector<64x128xf32>
    %155 = arith.truncf %154 : vector<64x128xf32> to vector<64x128xbf16>
    %c0_196 = arith.constant 0 : index
    %c0_197 = arith.constant 0 : index
    %156 = vector.load %arg18[%c0_196, %c0_197] : memref<64x128xf32, #tpu.memory_space<vmem>>, vector<64x128xf32>
    %c1_198 = arith.constant 1 : index
    %c1_199 = arith.constant 1 : index
    %c0_200 = arith.constant 0 : index
    %c0_201 = arith.constant 0 : index
    %157 = vector.load %arg5[%c1_198, %c1_199, %c0_200, %c0_201] : memref<3x3x128x128xbf16, #tpu.memory_space<vmem>>, vector<1x1x128x128xbf16>
    %158 = vector.shape_cast %157 : vector<1x1x128x128xbf16> to vector<128x128xbf16>
    %cst_202 = arith.constant dense<0.000000e+00> : vector<64x128xf32>
    %159 = tpu.matmul %155, %158, %cst_202 {dimension_numbers = #tpu.dot_dimension_numbers<[1], [0], [0], [1], [0, 0, 1, 1], [], []>} : vector<64x128xbf16>, vector<128x128xbf16>, vector<64x128xf32> -> vector<64x128xf32>
    %160 = arith.addf %156, %159 : vector<64x128xf32>
    %c0_203 = arith.constant 0 : index
    %c0_204 = arith.constant 0 : index
    %161 = vector.load %arg18[%c0_203, %c0_204] : memref<64x128xf32, #tpu.memory_space<vmem>>, vector<64x128xf32>
    tpu.vector_store %arg18[%c0_203, %c0_204], %160 {strides = array<i32>} : memref<64x128xf32, #tpu.memory_space<vmem>>, vector<64x128xf32>,
    %c1_205 = arith.constant 1 : index
    %c9_206 = arith.constant 9 : index
    %c0_207 = arith.constant 0 : index
    %162 = vector.load %arg17[%c1_205, %c9_206, %c0_207] : memref<10x17x128xf32, #tpu.memory_space<vmem>>, vector<8x8x128xf32>
    %163 = vector.shape_cast %162 : vector<8x8x128xf32> to vector<64x128xf32>
    %164 = arith.truncf %163 : vector<64x128xf32> to vector<64x128xbf16>
    %c0_208 = arith.constant 0 : index
    %c0_209 = arith.constant 0 : index
    %165 = vector.load %arg18[%c0_208, %c0_209] : memref<64x128xf32, #tpu.memory_space<vmem>>, vector<64x128xf32>
    %c1_210 = arith.constant 1 : index
    %c2_211 = arith.constant 2 : index
    %c0_212 = arith.constant 0 : index
    %c0_213 = arith.constant 0 : index
    %166 = vector.load %arg5[%c1_210, %c2_211, %c0_212, %c0_213] : memref<3x3x128x128xbf16, #tpu.memory_space<vmem>>, vector<1x1x128x128xbf16>
    %167 = vector.shape_cast %166 : vector<1x1x128x128xbf16> to vector<128x128xbf16>
    %cst_214 = arith.constant dense<0.000000e+00> : vector<64x128xf32>
    %168 = tpu.matmul %164, %167, %cst_214 {dimension_numbers = #tpu.dot_dimension_numbers<[1], [0], [0], [1], [0, 0, 1, 1], [], []>} : vector<64x128xbf16>, vector<128x128xbf16>, vector<64x128xf32> -> vector<64x128xf32>
    %169 = arith.addf %165, %168 : vector<64x128xf32>
    %c0_215 = arith.constant 0 : index
    %c0_216 = arith.constant 0 : index
    %170 = vector.load %arg18[%c0_215, %c0_216] : memref<64x128xf32, #tpu.memory_space<vmem>>, vector<64x128xf32>
    tpu.vector_store %arg18[%c0_215, %c0_216], %169 {strides = array<i32>} : memref<64x128xf32, #tpu.memory_space<vmem>>, vector<64x128xf32>,
    %c2_217 = arith.constant 2 : index
    %c7_218 = arith.constant 7 : index
    %c0_219 = arith.constant 0 : index
    %171 = vector.load %arg17[%c2_217, %c7_218, %c0_219] : memref<10x17x128xf32, #tpu.memory_space<vmem>>, vector<8x8x128xf32>
    %172 = vector.shape_cast %171 : vector<8x8x128xf32> to vector<64x128xf32>
    %173 = arith.truncf %172 : vector<64x128xf32> to vector<64x128xbf16>
    %c0_220 = arith.constant 0 : index
    %c0_221 = arith.constant 0 : index
    %174 = vector.load %arg18[%c0_220, %c0_221] : memref<64x128xf32, #tpu.memory_space<vmem>>, vector<64x128xf32>
    %c2_222 = arith.constant 2 : index
    %c0_223 = arith.constant 0 : index
    %c0_224 = arith.constant 0 : index
    %c0_225 = arith.constant 0 : index
    %175 = vector.load %arg5[%c2_222, %c0_223, %c0_224, %c0_225] : memref<3x3x128x128xbf16, #tpu.memory_space<vmem>>, vector<1x1x128x128xbf16>
    %176 = vector.shape_cast %175 : vector<1x1x128x128xbf16> to vector<128x128xbf16>
    %cst_226 = arith.constant dense<0.000000e+00> : vector<64x128xf32>
    %177 = tpu.matmul %173, %176, %cst_226 {dimension_numbers = #tpu.dot_dimension_numbers<[1], [0], [0], [1], [0, 0, 1, 1], [], []>} : vector<64x128xbf16>, vector<128x128xbf16>, vector<64x128xf32> -> vector<64x128xf32>
    %178 = arith.addf %174, %177 : vector<64x128xf32>
    %c0_227 = arith.constant 0 : index
    %c0_228 = arith.constant 0 : index
    %179 = vector.load %arg18[%c0_227, %c0_228] : memref<64x128xf32, #tpu.memory_space<vmem>>, vector<64x128xf32>
    tpu.vector_store %arg18[%c0_227, %c0_228], %178 {strides = array<i32>} : memref<64x128xf32, #tpu.memory_space<vmem>>, vector<64x128xf32>,
    %c2_229 = arith.constant 2 : index
    %c8_230 = arith.constant 8 : index
    %c0_231 = arith.constant 0 : index
    %180 = vector.load %arg17[%c2_229, %c8_230, %c0_231] : memref<10x17x128xf32, #tpu.memory_space<vmem>>, vector<8x8x128xf32>
    %181 = vector.shape_cast %180 : vector<8x8x128xf32> to vector<64x128xf32>
    %182 = arith.truncf %181 : vector<64x128xf32> to vector<64x128xbf16>
    %c0_232 = arith.constant 0 : index
    %c0_233 = arith.constant 0 : index
    %183 = vector.load %arg18[%c0_232, %c0_233] : memref<64x128xf32, #tpu.memory_space<vmem>>, vector<64x128xf32>
    %c2_234 = arith.constant 2 : index
    %c1_235 = arith.constant 1 : index
    %c0_236 = arith.constant 0 : index
    %c0_237 = arith.constant 0 : index
    %184 = vector.load %arg5[%c2_234, %c1_235, %c0_236, %c0_237] : memref<3x3x128x128xbf16, #tpu.memory_space<vmem>>, vector<1x1x128x128xbf16>
    %185 = vector.shape_cast %184 : vector<1x1x128x128xbf16> to vector<128x128xbf16>
    %cst_238 = arith.constant dense<0.000000e+00> : vector<64x128xf32>
    %186 = tpu.matmul %182, %185, %cst_238 {dimension_numbers = #tpu.dot_dimension_numbers<[1], [0], [0], [1], [0, 0, 1, 1], [], []>} : vector<64x128xbf16>, vector<128x128xbf16>, vector<64x128xf32> -> vector<64x128xf32>
    %187 = arith.addf %183, %186 : vector<64x128xf32>
    %c0_239 = arith.constant 0 : index
    %c0_240 = arith.constant 0 : index
    %188 = vector.load %arg18[%c0_239, %c0_240] : memref<64x128xf32, #tpu.memory_space<vmem>>, vector<64x128xf32>
    tpu.vector_store %arg18[%c0_239, %c0_240], %187 {strides = array<i32>} : memref<64x128xf32, #tpu.memory_space<vmem>>, vector<64x128xf32>,
    %c2_241 = arith.constant 2 : index
    %c9_242 = arith.constant 9 : index
    %c0_243 = arith.constant 0 : index
    %189 = vector.load %arg17[%c2_241, %c9_242, %c0_243] : memref<10x17x128xf32, #tpu.memory_space<vmem>>, vector<8x8x128xf32>
    %190 = vector.shape_cast %189 : vector<8x8x128xf32> to vector<64x128xf32>
    %191 = arith.truncf %190 : vector<64x128xf32> to vector<64x128xbf16>
    %c0_244 = arith.constant 0 : index
    %c0_245 = arith.constant 0 : index
    %192 = vector.load %arg18[%c0_244, %c0_245] : memref<64x128xf32, #tpu.memory_space<vmem>>, vector<64x128xf32>
    %c2_246 = arith.constant 2 : index
    %c2_247 = arith.constant 2 : index
    %c0_248 = arith.constant 0 : index
    %c0_249 = arith.constant 0 : index
    %193 = vector.load %arg5[%c2_246, %c2_247, %c0_248, %c0_249] : memref<3x3x128x128xbf16, #tpu.memory_space<vmem>>, vector<1x1x128x128xbf16>
    %194 = vector.shape_cast %193 : vector<1x1x128x128xbf16> to vector<128x128xbf16>
    %cst_250 = arith.constant dense<0.000000e+00> : vector<64x128xf32>
    %195 = tpu.matmul %191, %194, %cst_250 {dimension_numbers = #tpu.dot_dimension_numbers<[1], [0], [0], [1], [0, 0, 1, 1], [], []>} : vector<64x128xbf16>, vector<128x128xbf16>, vector<64x128xf32> -> vector<64x128xf32>
    %196 = arith.addf %192, %195 : vector<64x128xf32>
    %c0_251 = arith.constant 0 : index
    %c0_252 = arith.constant 0 : index
    %197 = vector.load %arg18[%c0_251, %c0_252] : memref<64x128xf32, #tpu.memory_space<vmem>>, vector<64x128xf32>
    tpu.vector_store %arg18[%c0_251, %c0_252], %196 {strides = array<i32>} : memref<64x128xf32, #tpu.memory_space<vmem>>, vector<64x128xf32>,
    %c0_253 = arith.constant 0 : index
    %c0_254 = arith.constant 0 : index
    %198 = vector.load %arg18[%c0_253, %c0_254] : memref<64x128xf32, #tpu.memory_space<vmem>>, vector<64x128xf32>
    %cst_255 = arith.constant 0.000000e+00 : f32
    %199 = vector.broadcast %cst_255 : f32 to vector<64x128xf32>
    %200 = arith.maximumf %198, %199 : vector<64x128xf32>
    %201 = arith.truncf %200 : vector<64x128xf32> to vector<64x128xbf16>
    %c0_256 = arith.constant 0 : index
    %c0_257 = arith.constant 0 : index
    %c0_258 = arith.constant 0 : index
    %202 = vector.load %arg7[%c0_256, %c0_257, %c0_258] : memref<4x16x64xbf16, #tpu.memory_space<vmem>>, vector<1x16x64xbf16>
    %203 = vector.shape_cast %202 : vector<1x16x64xbf16> to vector<16x64xbf16>
    %cst_259 = arith.constant dense<0.000000e+00> : vector<16x128xf32>
    %204 = tpu.matmul %203, %201, %cst_259 {dimension_numbers = #tpu.dot_dimension_numbers<[1], [0], [0], [1], [0, 0, 1, 1], [], []>} : vector<16x64xbf16>, vector<64x128xbf16>, vector<16x128xf32> -> vector<16x128xf32>
    %c1_260 = arith.constant 1 : index
    %c0_261 = arith.constant 0 : index
    %c0_262 = arith.constant 0 : index
    %205 = vector.load %arg7[%c1_260, %c0_261, %c0_262] : memref<4x16x64xbf16, #tpu.memory_space<vmem>>, vector<1x16x64xbf16>
    %206 = vector.shape_cast %205 : vector<1x16x64xbf16> to vector<16x64xbf16>
    %cst_263 = arith.constant dense<0.000000e+00> : vector<16x128xf32>
    %207 = tpu.matmul %206, %201, %cst_263 {dimension_numbers = #tpu.dot_dimension_numbers<[1], [0], [0], [1], [0, 0, 1, 1], [], []>} : vector<16x64xbf16>, vector<64x128xbf16>, vector<16x128xf32> -> vector<16x128xf32>
    %208 = arith.maximumf %204, %207 : vector<16x128xf32>
    %c2_264 = arith.constant 2 : index
    %c0_265 = arith.constant 0 : index
    %c0_266 = arith.constant 0 : index
    %209 = vector.load %arg7[%c2_264, %c0_265, %c0_266] : memref<4x16x64xbf16, #tpu.memory_space<vmem>>, vector<1x16x64xbf16>
    %210 = vector.shape_cast %209 : vector<1x16x64xbf16> to vector<16x64xbf16>
    %cst_267 = arith.constant dense<0.000000e+00> : vector<16x128xf32>
    %211 = tpu.matmul %210, %201, %cst_267 {dimension_numbers = #tpu.dot_dimension_numbers<[1], [0], [0], [1], [0, 0, 1, 1], [], []>} : vector<16x64xbf16>, vector<64x128xbf16>, vector<16x128xf32> -> vector<16x128xf32>
    %212 = arith.maximumf %208, %211 : vector<16x128xf32>
    %c3_268 = arith.constant 3 : index
    %c0_269 = arith.constant 0 : index
    %c0_270 = arith.constant 0 : index
    %213 = vector.load %arg7[%c3_268, %c0_269, %c0_270] : memref<4x16x64xbf16, #tpu.memory_space<vmem>>, vector<1x16x64xbf16>
    %214 = vector.shape_cast %213 : vector<1x16x64xbf16> to vector<16x64xbf16>
    %cst_271 = arith.constant dense<0.000000e+00> : vector<16x128xf32>
    %215 = tpu.matmul %214, %201, %cst_271 {dimension_numbers = #tpu.dot_dimension_numbers<[1], [0], [0], [1], [0, 0, 1, 1], [], []>} : vector<16x64xbf16>, vector<64x128xbf16>, vector<16x128xf32> -> vector<16x128xf32>
    %216 = arith.maximumf %212, %215 : vector<16x128xf32>
    %c0_272 = arith.constant 0 : index
    %c0_273 = arith.constant 0 : index
    %217 = vector.load %arg9[%c0_272, %c0_273] : memref<1x128xf32, #tpu.memory_space<vmem>>, vector<1x128xf32>
    %218 = vector.extract_strided_slice %216 {offsets = [0, 0], sizes = [1, 128], strides = [1, 1]} : vector<16x128xf32> to vector<1x128xf32>
    %219 = arith.truncf %218 : vector<1x128xf32> to vector<1x128xbf16>
    %c0_274 = arith.constant 0 : index
    %c0_275 = arith.constant 0 : index
    %c0_276 = arith.constant 0 : index
    %220 = vector.load %arg8[%c0_274, %c0_275, %c0_276] : memref<16x128x128xbf16, #tpu.memory_space<vmem>>, vector<1x128x128xbf16>
    %221 = vector.shape_cast %220 : vector<1x128x128xbf16> to vector<128x128xbf16>
    %cst_277 = arith.constant dense<0.000000e+00> : vector<1x128xf32>
    %222 = tpu.matmul %219, %221, %cst_277 {dimension_numbers = #tpu.dot_dimension_numbers<[1], [0], [0], [1], [0, 0, 1, 1], [], []>} : vector<1x128xbf16>, vector<128x128xbf16>, vector<1x128xf32> -> vector<1x128xf32>
    %223 = arith.addf %217, %222 : vector<1x128xf32>
    %224 = vector.extract_strided_slice %216 {offsets = [1, 0], sizes = [1, 128], strides = [1, 1]} : vector<16x128xf32> to vector<1x128xf32>
    %225 = arith.truncf %224 : vector<1x128xf32> to vector<1x128xbf16>
    %c1_278 = arith.constant 1 : index
    %c0_279 = arith.constant 0 : index
    %c0_280 = arith.constant 0 : index
    %226 = vector.load %arg8[%c1_278, %c0_279, %c0_280] : memref<16x128x128xbf16, #tpu.memory_space<vmem>>, vector<1x128x128xbf16>
    %227 = vector.shape_cast %226 : vector<1x128x128xbf16> to vector<128x128xbf16>
    %cst_281 = arith.constant dense<0.000000e+00> : vector<1x128xf32>
    %228 = tpu.matmul %225, %227, %cst_281 {dimension_numbers = #tpu.dot_dimension_numbers<[1], [0], [0], [1], [0, 0, 1, 1], [], []>} : vector<1x128xbf16>, vector<128x128xbf16>, vector<1x128xf32> -> vector<1x128xf32>
    %229 = arith.addf %223, %228 : vector<1x128xf32>
    %230 = vector.extract_strided_slice %216 {offsets = [2, 0], sizes = [1, 128], strides = [1, 1]} : vector<16x128xf32> to vector<1x128xf32>
    %231 = arith.truncf %230 : vector<1x128xf32> to vector<1x128xbf16>
    %c2_282 = arith.constant 2 : index
    %c0_283 = arith.constant 0 : index
    %c0_284 = arith.constant 0 : index
    %232 = vector.load %arg8[%c2_282, %c0_283, %c0_284] : memref<16x128x128xbf16, #tpu.memory_space<vmem>>, vector<1x128x128xbf16>
    %233 = vector.shape_cast %232 : vector<1x128x128xbf16> to vector<128x128xbf16>
    %cst_285 = arith.constant dense<0.000000e+00> : vector<1x128xf32>
    %234 = tpu.matmul %231, %233, %cst_285 {dimension_numbers = #tpu.dot_dimension_numbers<[1], [0], [0], [1], [0, 0, 1, 1], [], []>} : vector<1x128xbf16>, vector<128x128xbf16>, vector<1x128xf32> -> vector<1x128xf32>
    %235 = arith.addf %229, %234 : vector<1x128xf32>
    %236 = vector.extract_strided_slice %216 {offsets = [3, 0], sizes = [1, 128], strides = [1, 1]} : vector<16x128xf32> to vector<1x128xf32>
    %237 = arith.truncf %236 : vector<1x128xf32> to vector<1x128xbf16>
    %c3_286 = arith.constant 3 : index
    %c0_287 = arith.constant 0 : index
    %c0_288 = arith.constant 0 : index
    %238 = vector.load %arg8[%c3_286, %c0_287, %c0_288] : memref<16x128x128xbf16, #tpu.memory_space<vmem>>, vector<1x128x128xbf16>
    %239 = vector.shape_cast %238 : vector<1x128x128xbf16> to vector<128x128xbf16>
    %cst_289 = arith.constant dense<0.000000e+00> : vector<1x128xf32>
    %240 = tpu.matmul %237, %239, %cst_289 {dimension_numbers = #tpu.dot_dimension_numbers<[1], [0], [0], [1], [0, 0, 1, 1], [], []>} : vector<1x128xbf16>, vector<128x128xbf16>, vector<1x128xf32> -> vector<1x128xf32>
    %241 = arith.addf %235, %240 : vector<1x128xf32>
    %242 = vector.extract_strided_slice %216 {offsets = [4, 0], sizes = [1, 128], strides = [1, 1]} : vector<16x128xf32> to vector<1x128xf32>
    %243 = arith.truncf %242 : vector<1x128xf32> to vector<1x128xbf16>
    %c4 = arith.constant 4 : index
    %c0_290 = arith.constant 0 : index
    %c0_291 = arith.constant 0 : index
    %244 = vector.load %arg8[%c4, %c0_290, %c0_291] : memref<16x128x128xbf16, #tpu.memory_space<vmem>>, vector<1x128x128xbf16>
    %245 = vector.shape_cast %244 : vector<1x128x128xbf16> to vector<128x128xbf16>
    %cst_292 = arith.constant dense<0.000000e+00> : vector<1x128xf32>
    %246 = tpu.matmul %243, %245, %cst_292 {dimension_numbers = #tpu.dot_dimension_numbers<[1], [0], [0], [1], [0, 0, 1, 1], [], []>} : vector<1x128xbf16>, vector<128x128xbf16>, vector<1x128xf32> -> vector<1x128xf32>
    %247 = arith.addf %241, %246 : vector<1x128xf32>
    %248 = vector.extract_strided_slice %216 {offsets = [5, 0], sizes = [1, 128], strides = [1, 1]} : vector<16x128xf32> to vector<1x128xf32>
    %249 = arith.truncf %248 : vector<1x128xf32> to vector<1x128xbf16>
    %c5 = arith.constant 5 : index
    %c0_293 = arith.constant 0 : index
    %c0_294 = arith.constant 0 : index
    %250 = vector.load %arg8[%c5, %c0_293, %c0_294] : memref<16x128x128xbf16, #tpu.memory_space<vmem>>, vector<1x128x128xbf16>
    %251 = vector.shape_cast %250 : vector<1x128x128xbf16> to vector<128x128xbf16>
    %cst_295 = arith.constant dense<0.000000e+00> : vector<1x128xf32>
    %252 = tpu.matmul %249, %251, %cst_295 {dimension_numbers = #tpu.dot_dimension_numbers<[1], [0], [0], [1], [0, 0, 1, 1], [], []>} : vector<1x128xbf16>, vector<128x128xbf16>, vector<1x128xf32> -> vector<1x128xf32>
    %253 = arith.addf %247, %252 : vector<1x128xf32>
    %254 = vector.extract_strided_slice %216 {offsets = [6, 0], sizes = [1, 128], strides = [1, 1]} : vector<16x128xf32> to vector<1x128xf32>
    %255 = arith.truncf %254 : vector<1x128xf32> to vector<1x128xbf16>
    %c6 = arith.constant 6 : index
    %c0_296 = arith.constant 0 : index
    %c0_297 = arith.constant 0 : index
    %256 = vector.load %arg8[%c6, %c0_296, %c0_297] : memref<16x128x128xbf16, #tpu.memory_space<vmem>>, vector<1x128x128xbf16>
    %257 = vector.shape_cast %256 : vector<1x128x128xbf16> to vector<128x128xbf16>
    %cst_298 = arith.constant dense<0.000000e+00> : vector<1x128xf32>
    %258 = tpu.matmul %255, %257, %cst_298 {dimension_numbers = #tpu.dot_dimension_numbers<[1], [0], [0], [1], [0, 0, 1, 1], [], []>} : vector<1x128xbf16>, vector<128x128xbf16>, vector<1x128xf32> -> vector<1x128xf32>
    %259 = arith.addf %253, %258 : vector<1x128xf32>
    %260 = vector.extract_strided_slice %216 {offsets = [7, 0], sizes = [1, 128], strides = [1, 1]} : vector<16x128xf32> to vector<1x128xf32>
    %261 = arith.truncf %260 : vector<1x128xf32> to vector<1x128xbf16>
    %c7_299 = arith.constant 7 : index
    %c0_300 = arith.constant 0 : index
    %c0_301 = arith.constant 0 : index
    %262 = vector.load %arg8[%c7_299, %c0_300, %c0_301] : memref<16x128x128xbf16, #tpu.memory_space<vmem>>, vector<1x128x128xbf16>
    %263 = vector.shape_cast %262 : vector<1x128x128xbf16> to vector<128x128xbf16>
    %cst_302 = arith.constant dense<0.000000e+00> : vector<1x128xf32>
    %264 = tpu.matmul %261, %263, %cst_302 {dimension_numbers = #tpu.dot_dimension_numbers<[1], [0], [0], [1], [0, 0, 1, 1], [], []>} : vector<1x128xbf16>, vector<128x128xbf16>, vector<1x128xf32> -> vector<1x128xf32>
    %265 = arith.addf %259, %264 : vector<1x128xf32>
    %266 = vector.extract_strided_slice %216 {offsets = [8, 0], sizes = [1, 128], strides = [1, 1]} : vector<16x128xf32> to vector<1x128xf32>
    %267 = arith.truncf %266 : vector<1x128xf32> to vector<1x128xbf16>
    %c8_303 = arith.constant 8 : index
    %c0_304 = arith.constant 0 : index
    %c0_305 = arith.constant 0 : index
    %268 = vector.load %arg8[%c8_303, %c0_304, %c0_305] : memref<16x128x128xbf16, #tpu.memory_space<vmem>>, vector<1x128x128xbf16>
    %269 = vector.shape_cast %268 : vector<1x128x128xbf16> to vector<128x128xbf16>
    %cst_306 = arith.constant dense<0.000000e+00> : vector<1x128xf32>
    %270 = tpu.matmul %267, %269, %cst_306 {dimension_numbers = #tpu.dot_dimension_numbers<[1], [0], [0], [1], [0, 0, 1, 1], [], []>} : vector<1x128xbf16>, vector<128x128xbf16>, vector<1x128xf32> -> vector<1x128xf32>
    %271 = arith.addf %265, %270 : vector<1x128xf32>
    %272 = vector.extract_strided_slice %216 {offsets = [9, 0], sizes = [1, 128], strides = [1, 1]} : vector<16x128xf32> to vector<1x128xf32>
    %273 = arith.truncf %272 : vector<1x128xf32> to vector<1x128xbf16>
    %c9_307 = arith.constant 9 : index
    %c0_308 = arith.constant 0 : index
    %c0_309 = arith.constant 0 : index
    %274 = vector.load %arg8[%c9_307, %c0_308, %c0_309] : memref<16x128x128xbf16, #tpu.memory_space<vmem>>, vector<1x128x128xbf16>
    %275 = vector.shape_cast %274 : vector<1x128x128xbf16> to vector<128x128xbf16>
    %cst_310 = arith.constant dense<0.000000e+00> : vector<1x128xf32>
    %276 = tpu.matmul %273, %275, %cst_310 {dimension_numbers = #tpu.dot_dimension_numbers<[1], [0], [0], [1], [0, 0, 1, 1], [], []>} : vector<1x128xbf16>, vector<128x128xbf16>, vector<1x128xf32> -> vector<1x128xf32>
    %277 = arith.addf %271, %276 : vector<1x128xf32>
    %278 = vector.extract_strided_slice %216 {offsets = [10, 0], sizes = [1, 128], strides = [1, 1]} : vector<16x128xf32> to vector<1x128xf32>
    %279 = arith.truncf %278 : vector<1x128xf32> to vector<1x128xbf16>
    %c10 = arith.constant 10 : index
    %c0_311 = arith.constant 0 : index
    %c0_312 = arith.constant 0 : index
    %280 = vector.load %arg8[%c10, %c0_311, %c0_312] : memref<16x128x128xbf16, #tpu.memory_space<vmem>>, vector<1x128x128xbf16>
    %281 = vector.shape_cast %280 : vector<1x128x128xbf16> to vector<128x128xbf16>
    %cst_313 = arith.constant dense<0.000000e+00> : vector<1x128xf32>
    %282 = tpu.matmul %279, %281, %cst_313 {dimension_numbers = #tpu.dot_dimension_numbers<[1], [0], [0], [1], [0, 0, 1, 1], [], []>} : vector<1x128xbf16>, vector<128x128xbf16>, vector<1x128xf32> -> vector<1x128xf32>
    %283 = arith.addf %277, %282 : vector<1x128xf32>
    %284 = vector.extract_strided_slice %216 {offsets = [11, 0], sizes = [1, 128], strides = [1, 1]} : vector<16x128xf32> to vector<1x128xf32>
    %285 = arith.truncf %284 : vector<1x128xf32> to vector<1x128xbf16>
    %c11 = arith.constant 11 : index
    %c0_314 = arith.constant 0 : index
    %c0_315 = arith.constant 0 : index
    %286 = vector.load %arg8[%c11, %c0_314, %c0_315] : memref<16x128x128xbf16, #tpu.memory_space<vmem>>, vector<1x128x128xbf16>
    %287 = vector.shape_cast %286 : vector<1x128x128xbf16> to vector<128x128xbf16>
    %cst_316 = arith.constant dense<0.000000e+00> : vector<1x128xf32>
    %288 = tpu.matmul %285, %287, %cst_316 {dimension_numbers = #tpu.dot_dimension_numbers<[1], [0], [0], [1], [0, 0, 1, 1], [], []>} : vector<1x128xbf16>, vector<128x128xbf16>, vector<1x128xf32> -> vector<1x128xf32>
    %289 = arith.addf %283, %288 : vector<1x128xf32>
    %290 = vector.extract_strided_slice %216 {offsets = [12, 0], sizes = [1, 128], strides = [1, 1]} : vector<16x128xf32> to vector<1x128xf32>
    %291 = arith.truncf %290 : vector<1x128xf32> to vector<1x128xbf16>
    %c12 = arith.constant 12 : index
    %c0_317 = arith.constant 0 : index
    %c0_318 = arith.constant 0 : index
    %292 = vector.load %arg8[%c12, %c0_317, %c0_318] : memref<16x128x128xbf16, #tpu.memory_space<vmem>>, vector<1x128x128xbf16>
    %293 = vector.shape_cast %292 : vector<1x128x128xbf16> to vector<128x128xbf16>
    %cst_319 = arith.constant dense<0.000000e+00> : vector<1x128xf32>
    %294 = tpu.matmul %291, %293, %cst_319 {dimension_numbers = #tpu.dot_dimension_numbers<[1], [0], [0], [1], [0, 0, 1, 1], [], []>} : vector<1x128xbf16>, vector<128x128xbf16>, vector<1x128xf32> -> vector<1x128xf32>
    %295 = arith.addf %289, %294 : vector<1x128xf32>
    %296 = vector.extract_strided_slice %216 {offsets = [13, 0], sizes = [1, 128], strides = [1, 1]} : vector<16x128xf32> to vector<1x128xf32>
    %297 = arith.truncf %296 : vector<1x128xf32> to vector<1x128xbf16>
    %c13 = arith.constant 13 : index
    %c0_320 = arith.constant 0 : index
    %c0_321 = arith.constant 0 : index
    %298 = vector.load %arg8[%c13, %c0_320, %c0_321] : memref<16x128x128xbf16, #tpu.memory_space<vmem>>, vector<1x128x128xbf16>
    %299 = vector.shape_cast %298 : vector<1x128x128xbf16> to vector<128x128xbf16>
    %cst_322 = arith.constant dense<0.000000e+00> : vector<1x128xf32>
    %300 = tpu.matmul %297, %299, %cst_322 {dimension_numbers = #tpu.dot_dimension_numbers<[1], [0], [0], [1], [0, 0, 1, 1], [], []>} : vector<1x128xbf16>, vector<128x128xbf16>, vector<1x128xf32> -> vector<1x128xf32>
    %301 = arith.addf %295, %300 : vector<1x128xf32>
    %302 = vector.extract_strided_slice %216 {offsets = [14, 0], sizes = [1, 128], strides = [1, 1]} : vector<16x128xf32> to vector<1x128xf32>
    %303 = arith.truncf %302 : vector<1x128xf32> to vector<1x128xbf16>
    %c14 = arith.constant 14 : index
    %c0_323 = arith.constant 0 : index
    %c0_324 = arith.constant 0 : index
    %304 = vector.load %arg8[%c14, %c0_323, %c0_324] : memref<16x128x128xbf16, #tpu.memory_space<vmem>>, vector<1x128x128xbf16>
    %305 = vector.shape_cast %304 : vector<1x128x128xbf16> to vector<128x128xbf16>
    %cst_325 = arith.constant dense<0.000000e+00> : vector<1x128xf32>
    %306 = tpu.matmul %303, %305, %cst_325 {dimension_numbers = #tpu.dot_dimension_numbers<[1], [0], [0], [1], [0, 0, 1, 1], [], []>} : vector<1x128xbf16>, vector<128x128xbf16>, vector<1x128xf32> -> vector<1x128xf32>
    %307 = arith.addf %301, %306 : vector<1x128xf32>
    %308 = vector.extract_strided_slice %216 {offsets = [15, 0], sizes = [1, 128], strides = [1, 1]} : vector<16x128xf32> to vector<1x128xf32>
    %309 = arith.truncf %308 : vector<1x128xf32> to vector<1x128xbf16>
    %c15 = arith.constant 15 : index
    %c0_326 = arith.constant 0 : index
    %c0_327 = arith.constant 0 : index
    %310 = vector.load %arg8[%c15, %c0_326, %c0_327] : memref<16x128x128xbf16, #tpu.memory_space<vmem>>, vector<1x128x128xbf16>
    %311 = vector.shape_cast %310 : vector<1x128x128xbf16> to vector<128x128xbf16>
    %cst_328 = arith.constant dense<0.000000e+00> : vector<1x128xf32>
    %312 = tpu.matmul %309, %311, %cst_328 {dimension_numbers = #tpu.dot_dimension_numbers<[1], [0], [0], [1], [0, 0, 1, 1], [], []>} : vector<1x128xbf16>, vector<128x128xbf16>, vector<1x128xf32> -> vector<1x128xf32>
    %313 = arith.addf %307, %312 : vector<1x128xf32>
    %cst_329 = arith.constant 0.000000e+00 : f32
    %314 = vector.broadcast %cst_329 : f32 to vector<1x128xf32>
    %315 = arith.maximumf %313, %314 : vector<1x128xf32>
    %316 = arith.truncf %315 : vector<1x128xf32> to vector<1x128xbf16>
    %c0_330 = arith.constant 0 : index
    %c0_331 = arith.constant 0 : index
    %317 = vector.load %arg10[%c0_330, %c0_331] : memref<128x128xbf16, #tpu.memory_space<vmem>>, vector<128x128xbf16>
    %cst_332 = arith.constant dense<0.000000e+00> : vector<1x128xf32>
    %318 = tpu.matmul %316, %317, %cst_332 {dimension_numbers = #tpu.dot_dimension_numbers<[1], [0], [0], [1], [0, 0, 1, 1], [], []>} : vector<1x128xbf16>, vector<128x128xbf16>, vector<1x128xf32> -> vector<1x128xf32>
    %c0_333 = arith.constant 0 : index
    %c0_334 = arith.constant 0 : index
    %319 = vector.load %arg11[%c0_333, %c0_334] : memref<1x128xf32, #tpu.memory_space<vmem>>, vector<1x128xf32>
    %320 = arith.addf %318, %319 : vector<1x128xf32>
    %cst_335 = arith.constant 0.000000e+00 : f32
    %321 = vector.broadcast %cst_335 : f32 to vector<1x128xf32>
    %322 = arith.maximumf %320, %321 : vector<1x128xf32>
    %323 = arith.truncf %322 : vector<1x128xf32> to vector<1x128xbf16>
    %c0_336 = arith.constant 0 : index
    %c0_337 = arith.constant 0 : index
    %324 = vector.load %arg12[%c0_336, %c0_337] : memref<128x128xbf16, #tpu.memory_space<vmem>>, vector<128x128xbf16>
    %cst_338 = arith.constant dense<0.000000e+00> : vector<1x128xf32>
    %325 = tpu.matmul %323, %324, %cst_338 {dimension_numbers = #tpu.dot_dimension_numbers<[1], [0], [0], [1], [0, 0, 1, 1], [], []>} : vector<1x128xbf16>, vector<128x128xbf16>, vector<1x128xf32> -> vector<1x128xf32>
    %c0_339 = arith.constant 0 : index
    %c0_340 = arith.constant 0 : index
    %326 = vector.load %arg13[%c0_339, %c0_340] : memref<1x128xf32, #tpu.memory_space<vmem>>, vector<1x128xf32>
    %327 = arith.addf %325, %326 : vector<1x128xf32>
    %c0_341 = arith.constant 0 : index
    %c0_342 = arith.constant 0 : index
    %c0_343 = arith.constant 0 : index
    %328 = vector.load %arg14[%c0_341, %c0_342, %c0_343] : memref<1x1x128xf32, #tpu.memory_space<vmem>>, vector<1x1x128xf32>
    %329 = vector.shape_cast %328 : vector<1x1x128xf32> to vector<1x128xf32>
    %330 = vector.shape_cast %327 : vector<1x128xf32> to vector<1x1x128xf32>
    tpu.vector_store %arg14[%c0_341, %c0_342, %c0_343], %330 {strides = array<i32>} : memref<1x1x128xf32, #tpu.memory_space<vmem>>, vector<1x1x128xf32>,
    return
  }
  func.func @transform_0(%arg0: i32) -> (i32, i32, i32, i32) {
    %c0_i32 = arith.constant 0 : i32
    %c0_i32_0 = arith.constant 0 : i32
    %c0_i32_1 = arith.constant 0 : i32
    %c0_i32_2 = arith.constant 0 : i32
    return %arg0, %c0_i32, %c0_i32_0, %c0_i32_1 : i32, i32, i32, i32
  }
  func.func @transform_1(%arg0: i32) -> (i32, i32, i32, i32) {
    %c0_i32 = arith.constant 0 : i32
    %c0_i32_0 = arith.constant 0 : i32
    %c0_i32_1 = arith.constant 0 : i32
    %c0_i32_2 = arith.constant 0 : i32
    %c0_i32_3 = arith.constant 0 : i32
    return %c0_i32, %c0_i32_0, %c0_i32_1, %c0_i32_2 : i32, i32, i32, i32
  }
  func.func @transform_2(%arg0: i32) -> (i32, i32) {
    %c0_i32 = arith.constant 0 : i32
    %c0_i32_0 = arith.constant 0 : i32
    %c0_i32_1 = arith.constant 0 : i32
    return %c0_i32, %c0_i32_0 : i32, i32
  }
  func.func @transform_3(%arg0: i32) -> (i32, i32, i32) {
    %c0_i32 = arith.constant 0 : i32
    %c0_i32_0 = arith.constant 0 : i32
    %c0_i32_1 = arith.constant 0 : i32
    %c0_i32_2 = arith.constant 0 : i32
    return %c0_i32, %c0_i32_0, %c0_i32_1 : i32, i32, i32
  }
  func.func @transform_4(%arg0: i32) -> (i32, i32, i32, i32) {
    %c0_i32 = arith.constant 0 : i32
    %c0_i32_0 = arith.constant 0 : i32
    %c0_i32_1 = arith.constant 0 : i32
    %c0_i32_2 = arith.constant 0 : i32
    %c0_i32_3 = arith.constant 0 : i32
    return %c0_i32, %c0_i32_0, %c0_i32_1, %c0_i32_2 : i32, i32, i32, i32
  }
  func.func @transform_5(%arg0: i32) -> (i32, i32) {
    %c0_i32 = arith.constant 0 : i32
    %c0_i32_0 = arith.constant 0 : i32
    %c0_i32_1 = arith.constant 0 : i32
    return %c0_i32, %c0_i32_0 : i32, i32
  }
  func.func @transform_6(%arg0: i32) -> (i32, i32, i32) {
    %c0_i32 = arith.constant 0 : i32
    %c0_i32_0 = arith.constant 0 : i32
    %c0_i32_1 = arith.constant 0 : i32
    %c0_i32_2 = arith.constant 0 : i32
    return %c0_i32, %c0_i32_0, %c0_i32_1 : i32, i32, i32
  }
  func.func @transform_7(%arg0: i32) -> (i32, i32, i32) {
    %c0_i32 = arith.constant 0 : i32
    %c0_i32_0 = arith.constant 0 : i32
    %c0_i32_1 = arith.constant 0 : i32
    %c0_i32_2 = arith.constant 0 : i32
    return %c0_i32, %c0_i32_0, %c0_i32_1 : i32, i32, i32
  }
  func.func @transform_8(%arg0: i32) -> (i32, i32) {
    %c0_i32 = arith.constant 0 : i32
    %c0_i32_0 = arith.constant 0 : i32
    %c0_i32_1 = arith.constant 0 : i32
    return %c0_i32, %c0_i32_0 : i32, i32
  }
  func.func @transform_9(%arg0: i32) -> (i32, i32) {
    %c0_i32 = arith.constant 0 : i32
    %c0_i32_0 = arith.constant 0 : i32
    %c0_i32_1 = arith.constant 0 : i32
    return %c0_i32, %c0_i32_0 : i32, i32
  }
  func.func @transform_10(%arg0: i32) -> (i32, i32) {
    %c0_i32 = arith.constant 0 : i32
    %c0_i32_0 = arith.constant 0 : i32
    %c0_i32_1 = arith.constant 0 : i32
    return %c0_i32, %c0_i32_0 : i32, i32
  }
  func.func @transform_11(%arg0: i32) -> (i32, i32) {
    %c0_i32 = arith.constant 0 : i32
    %c0_i32_0 = arith.constant 0 : i32
    %c0_i32_1 = arith.constant 0 : i32
    return %c0_i32, %c0_i32_0 : i32, i32
  }
  func.func @transform_12(%arg0: i32) -> (i32, i32) {
    %c0_i32 = arith.constant 0 : i32
    %c0_i32_0 = arith.constant 0 : i32
    %c0_i32_1 = arith.constant 0 : i32
    return %c0_i32, %c0_i32_0 : i32, i32
  }
  func.func @transform_13(%arg0: i32) -> (i32, i32, i32) {
    %c0_i32 = arith.constant 0 : i32
    %c0_i32_0 = arith.constant 0 : i32
    %c0_i32_1 = arith.constant 0 : i32
    return %arg0, %c0_i32, %c0_i32_0 : i32, i32, i32
  }
}

</mosaic_0001>

<llo_original>
// kernel: localizer_vgg_forward.1
$region0: #{localizer_vgg_forward.1}
  #allocation0 [shape = 'u32[]', space=smem, size = 0x4, offset = 0x4, fixed_abs, tag = 'smem constant byte address 0x4 - core index']
  #allocation1 [shape = 'u32[144,128]{1,0:T(1,128)}', space=vmem, size = 0x12000, scoped, tag = 'internal scratch']
  #allocation2 [shape = 'f32[18,25,8]{2,1,0:T(8,128)}', space=vmem, size = 0x48000, scoped, tag = 'scratch operand']
  #allocation3 [shape = 'f32[256,128]{1,0:T(8,128)}', space=vmem, size = 0x20000, scoped, tag = 'scratch operand']
  #allocation4 [shape = 'f32[10,17,128]{2,1,0:T(8,128)}', space=vmem, size = 0x1e000, scoped, tag = 'scratch operand']
  #allocation5 [shape = 'f32[64,128]{1,0:T(8,128)}', space=vmem, size = 0x8000, scoped, tag = 'scratch operand']
  %s0 = inlined_call_operand.vmem [shape: f32[2,16,16,8], index: 0, kind: input, shape index: {}]
  %s1 = inlined_call_operand.vmem [shape: bf16[3,3,8,128], index: 1, kind: input, shape index: {}]
  %s2 = inlined_call_operand.vmem [shape: f32[1,128], index: 2, kind: input, shape index: {}]
  %s3 = inlined_call_operand.hbm [shape: bf16[4,64,256], index: 3, kind: input, shape index: {}]
  %s4 = inlined_call_operand.vmem [shape: bf16[3,3,128,128], index: 4, kind: input, shape index: {}]
  %s5 = inlined_call_operand.vmem [shape: f32[1,128], index: 5, kind: input, shape index: {}]
  %s6 = inlined_call_operand.vmem [shape: bf16[4,16,64], index: 6, kind: input, shape index: {}]
  %s7 = inlined_call_operand.vmem [shape: bf16[16,128,128], index: 7, kind: input, shape index: {}]
  %s8 = inlined_call_operand.vmem [shape: f32[1,128], index: 8, kind: input, shape index: {}]
  %s9 = inlined_call_operand.hbm [shape: bf16[128,128], index: 9, kind: input, shape index: {}]
  %s10 = inlined_call_operand.vmem [shape: f32[1,128], index: 10, kind: input, shape index: {}]
  %s11 = inlined_call_operand.hbm [shape: bf16[128,128], index: 11, kind: input, shape index: {}]
  %s12 = inlined_call_operand.vmem [shape: f32[1,128], index: 12, kind: input, shape index: {}]
  %s13 = inlined_call_operand.hbm [shape: f32[2,1,128], index: 13, kind: output, shape index: {}]
  %s14 = sld [smem:[#allocation0]]
  $region97: #{localizer_vgg_forward.1} parent=0
    _
  %s16 = ssub.s32 1, %s14
  %s17 = scalar_select 0, %s16, %s14
  $region1: #{localizer_vgg_forward.1} parent=0
    #allocation6 [shape = 'u8[131072]{0}', space=vmem, size = 0x20000, scoped, tag = 'input window, operand 3, single buffered']
    #allocation7 [shape = 's32[2]{0}', space=sflag, size = 0x8, scoped, tag = 'scoped memory for localizer_vgg_forward.1']
    #allocation8 [shape = 's32[2]{0}', space=sflag, size = 0x8, scoped, tag = 'scoped memory for localizer_vgg_forward.1']
    #allocation9 [shape = 'u8[32768]{0}', space=vmem, size = 0x8000, scoped, tag = 'input window, operand 9, single buffered']
    #allocation10 [shape = 's32[1]{0}', space=sflag, size = 0x4, scoped, tag = 'scoped memory for localizer_vgg_forward.1']
    #allocation11 [shape = 'u8[32768]{0}', space=vmem, size = 0x8000, scoped, tag = 'input window, operand 11, single buffered']
    #allocation12 [shape = 'u8[1024]{0}', space=vmem, size = 0x400, scoped, tag = 'output window, operand 0']
    %18 = vsyncpa [#allocation7], 0
    %19 = vsyncpa [#allocation10], 0
    %20 = vsyncpa [#allocation8], 0
    %s21 = scalar_lea.sflag [#allocation8], 1
    %22 = vsyncpa %s21, 0
    loop: start=0, step=1, limit=4
    $region2: #{localizer_vgg_forward.1} parent=1 // loop_pre_header
      _
    $region3: #{localizer_vgg_forward.1} parent=1 // loop_header
      %s24 = sphi 0, %s28
      %p25 = scmp.ge.s32.totalorder %s24, 4
      %s34 = sphi 0, %s36
      %s37 = sphi 0, %s34
      %s38 = sphi 0, %s37
      %s54 = sphi 0, %s38
      %s58 = sphi 0, %s58
      %s60 = sphi 0, %s58
      %s61 = sphi 0, %s60
      %s75 = sphi 0, %s61
      %s79 = sphi 0, %s79
      %s81 = sphi 0, %s79
      %s82 = sphi 0, %s81
      %s96 = sphi 0, %s82
      %s100 = sphi 0, %s100
      %s102 = sphi 0, %s100
      %s103 = sphi 0, %s102
      %s117 = sphi 0, %s103
      %s121 = sphi 0, %s121
      %s123 = sphi 0, %s121
      %s124 = sphi 0, %s123
      %s138 = sphi 0, %s124
      %s142 = sphi 0, %s142
      %s144 = sphi 0, %s142
      %s145 = sphi 0, %s144
      %s159 = sphi 0, %s145
      %s163 = sphi 0, %s163
      %s165 = sphi 0, %s163
      %s166 = sphi 0, %s165
      %s180 = sphi 0, %s166
      %s184 = sphi 0, %s184
      %s186 = sphi 0, %s184
      %s187 = sphi 0, %s186
      %s201 = sphi 0, %s187
      %s205 = sphi 0, %s205
      %s207 = sphi 0, %s205
      %s208 = sphi 0, %s207
      %s222 = sphi 0, %s208
      %s226 = sphi 0, %s226
      %s228 = sphi 0, %s226
      %s229 = sphi 0, %s228
      %s243 = sphi 0, %s229
      %s247 = sphi 0, %s247
      %s249 = sphi 0, %s247
      %s250 = sphi 0, %s249
      %s264 = sphi 0, %s250
      %s268 = sphi 0, %s268
      %s270 = sphi 0, %s268
      %s271 = sphi 0, %s270
      %s285 = sphi 0, %s271
      %s289 = sphi 0, %s289
      %s291 = sphi 0, %s289
      %s292 = sphi 0, %s291
      %s306 = sphi 0, %s292
      %s312 = sphi 0, %s314
      %s315 = sphi 0, %s312
      %s316 = sphi 0, %s315
      %s332 = sphi 0, %s316
    $region4: #{localizer_vgg_forward.1} parent=1 // loop_header_branch
      %27 = sbr.rel (%p25) target = $region8
    $region5: #{localizer_vgg_forward.1} parent=1 // loop_body
      %s29 = ssub.s32 %s24, 1
      %s30 = ssub.s32 %s24, 2
      %s31 = sadd.s32 %s24, 1
      %s32 = ssub.s32 %s24, %s31
      %p33 = scmp.eq.s32.totalorder %s32, 0
      %s35 = sadd.s32 %s34, 1
      %s36 = scalar_select %p33, %s34, %s35
      %p39 = pneg %p33
      %p40 = scmp.eq.s32.totalorder %s24, 1
      %p41 = por %p39, %p40
      %p42 = scmp.ne.s32.totalorder %s34, %s37
      %p43 = scmp.eq.s32.totalorder %s24, 0
      %p44 = por %p42, %p43
      %p45 = scmp.ne.s32.totalorder %s34, %s37
      %p46 = scmp.eq.s32.totalorder %s29, 1
      %p47 = por %p45, %p46
      %p48 = scmp.ne.s32.totalorder %s37, %s38
      %p49 = scmp.eq.s32.totalorder %s29, 0
      %p50 = por %p48, %p49
      %p51 = scmp.ne.s32.totalorder %s37, %s38
      %p52 = scmp.eq.s32.totalorder %s30, 1
      %p53 = por %p51, %p52
      %p55 = scmp.ne.s32.totalorder %s38, %s54
      %p56 = scmp.eq.s32.totalorder %s30, 0
      %p57 = por %p55, %p56
      %s59 = sadd.s32 %s58, 1
      %p62 = scmp.eq.s32.totalorder %s24, 1
      %p63 = scmp.ne.s32.totalorder %s58, %s60
      %p64 = scmp.eq.s32.totalorder %s24, 0
      %p65 = por %p63, %p64
      %p66 = scmp.ne.s32.totalorder %s58, %s60
      %p67 = scmp.eq.s32.totalorder %s29, 1
      %p68 = por %p66, %p67
      %p69 = scmp.ne.s32.totalorder %s60, %s61
      %p70 = scmp.eq.s32.totalorder %s29, 0
      %p71 = por %p69, %p70
      %p72 = scmp.ne.s32.totalorder %s60, %s61
      %p73 = scmp.eq.s32.totalorder %s30, 1
      %p74 = por %p72, %p73
      %p76 = scmp.ne.s32.totalorder %s61, %s75
      %p77 = scmp.eq.s32.totalorder %s30, 0
      %p78 = por %p76, %p77
      %s80 = sadd.s32 %s79, 1
      %p83 = scmp.eq.s32.totalorder %s24, 1
      %p84 = scmp.ne.s32.totalorder %s79, %s81
      %p85 = scmp.eq.s32.totalorder %s24, 0
      %p86 = por %p84, %p85
      %p87 = scmp.ne.s32.totalorder %s79, %s81
      %p88 = scmp.eq.s32.totalorder %s29, 1
      %p89 = por %p87, %p88
      %p90 = scmp.ne.s32.totalorder %s81, %s82
      %p91 = scmp.eq.s32.totalorder %s29, 0
      %p92 = por %p90, %p91
      %p93 = scmp.ne.s32.totalorder %s81, %s82
      %p94 = scmp.eq.s32.totalorder %s30, 1
      %p95 = por %p93, %p94
      %p97 = scmp.ne.s32.totalorder %s82, %s96
      %p98 = scmp.eq.s32.totalorder %s30, 0
      %p99 = por %p97, %p98
      %s101 = sadd.s32 %s100, 1
      %p104 = scmp.eq.s32.totalorder %s24, 1
      %p105 = scmp.ne.s32.totalorder %s100, %s102
      %p106 = scmp.eq.s32.totalorder %s24, 0
      %p107 = por %p105, %p106
      %p108 = scmp.ne.s32.totalorder %s100, %s102
      %p109 = scmp.eq.s32.totalorder %s29, 1
      %p110 = por %p108, %p109
      %p111 = scmp.ne.s32.totalorder %s102, %s103
      %p112 = scmp.eq.s32.totalorder %s29, 0
      %p113 = por %p111, %p112
      %p114 = scmp.ne.s32.totalorder %s102, %s103
      %p115 = scmp.eq.s32.totalorder %s30, 1
      %p116 = por %p114, %p115
      %p118 = scmp.ne.s32.totalorder %s103, %s117
      %p119 = scmp.eq.s32.totalorder %s30, 0
      %p120 = por %p118, %p119
      %s122 = sadd.s32 %s121, 1
      %p125 = scmp.eq.s32.totalorder %s24, 1
      %p126 = scmp.ne.s32.totalorder %s121, %s123
      %p127 = scmp.eq.s32.totalorder %s24, 0
      %p128 = por %p126, %p127
      %p129 = scmp.ne.s32.totalorder %s121, %s123
      %p130 = scmp.eq.s32.totalorder %s29, 1
      %p131 = por %p129, %p130
      %p132 = scmp.ne.s32.totalorder %s123, %s124
      %p133 = scmp.eq.s32.totalorder %s29, 0
      %p134 = por %p132, %p133
      %p135 = scmp.ne.s32.totalorder %s123, %s124
      %p136 = scmp.eq.s32.totalorder %s30, 1
      %p137 = por %p135, %p136
      %p139 = scmp.ne.s32.totalorder %s124, %s138
      %p140 = scmp.eq.s32.totalorder %s30, 0
      %p141 = por %p139, %p140
      %s143 = sadd.s32 %s142, 1
      %p146 = scmp.eq.s32.totalorder %s24, 1
      %p147 = scmp.ne.s32.totalorder %s142, %s144
      %p148 = scmp.eq.s32.totalorder %s24, 0
      %p149 = por %p147, %p148
      %p150 = scmp.ne.s32.totalorder %s142, %s144
      %p151 = scmp.eq.s32.totalorder %s29, 1
      %p152 = por %p150, %p151
      %p153 = scmp.ne.s32.totalorder %s144, %s145
      %p154 = scmp.eq.s32.totalorder %s29, 0
      %p155 = por %p153, %p154
      %p156 = scmp.ne.s32.totalorder %s144, %s145
      %p157 = scmp.eq.s32.totalorder %s30, 1
      %p158 = por %p156, %p157
      %p160 = scmp.ne.s32.totalorder %s145, %s159
      %p161 = scmp.eq.s32.totalorder %s30, 0
      %p162 = por %p160, %p161
      %s164 = sadd.s32 %s163, 1
      %p167 = scmp.eq.s32.totalorder %s24, 1
      %p168 = scmp.ne.s32.totalorder %s163, %s165
      %p169 = scmp.eq.s32.totalorder %s24, 0
      %p170 = por %p168, %p169
      %p171 = scmp.ne.s32.totalorder %s163, %s165
      %p172 = scmp.eq.s32.totalorder %s29, 1
      %p173 = por %p171, %p172
      %p174 = scmp.ne.s32.totalorder %s165, %s166
      %p175 = scmp.eq.s32.totalorder %s29, 0
      %p176 = por %p174, %p175
      %p177 = scmp.ne.s32.totalorder %s165, %s166
      %p178 = scmp.eq.s32.totalorder %s30, 1
      %p179 = por %p177, %p178
      %p181 = scmp.ne.s32.totalorder %s166, %s180
      %p182 = scmp.eq.s32.totalorder %s30, 0
      %p183 = por %p181, %p182
      %s185 = sadd.s32 %s184, 1
      %p188 = scmp.eq.s32.totalorder %s24, 1
      %p189 = scmp.ne.s32.totalorder %s184, %s186
      %p190 = scmp.eq.s32.totalorder %s24, 0
      %p191 = por %p189, %p190
      %p192 = scmp.ne.s32.totalorder %s184, %s186
      %p193 = scmp.eq.s32.totalorder %s29, 1
      %p194 = por %p192, %p193
      %p195 = scmp.ne.s32.totalorder %s186, %s187
      %p196 = scmp.eq.s32.totalorder %s29, 0
      %p197 = por %p195, %p196
      %p198 = scmp.ne.s32.totalorder %s186, %s187
      %p199 = scmp.eq.s32.totalorder %s30, 1
      %p200 = por %p198, %p199
      %p202 = scmp.ne.s32.totalorder %s187, %s201
      %p203 = scmp.eq.s32.totalorder %s30, 0
      %p204 = por %p202, %p203
      %s206 = sadd.s32 %s205, 1
      %p209 = scmp.eq.s32.totalorder %s24, 1
      %p210 = scmp.ne.s32.totalorder %s205, %s207
      %p211 = scmp.eq.s32.totalorder %s24, 0
      %p212 = por %p210, %p211
      %p213 = scmp.ne.s32.totalorder %s205, %s207
      %p214 = scmp.eq.s32.totalorder %s29, 1
      %p215 = por %p213, %p214
      %p216 = scmp.ne.s32.totalorder %s207, %s208
      %p217 = scmp.eq.s32.totalorder %s29, 0
      %p218 = por %p216, %p217
      %p219 = scmp.ne.s32.totalorder %s207, %s208
      %p220 = scmp.eq.s32.totalorder %s30, 1
      %p221 = por %p219, %p220
      %p223 = scmp.ne.s32.totalorder %s208, %s222
      %p224 = scmp.eq.s32.totalorder %s30, 0
      %p225 = por %p223, %p224
      %s227 = sadd.s32 %s226, 1
      %p230 = scmp.eq.s32.totalorder %s24, 1
      %p231 = scmp.ne.s32.totalorder %s226, %s228
      %p232 = scmp.eq.s32.totalorder %s24, 0
      %p233 = por %p231, %p232
      %p234 = scmp.ne.s32.totalorder %s226, %s228
      %p235 = scmp.eq.s32.totalorder %s29, 1
      %p236 = por %p234, %p235
      %p237 = scmp.ne.s32.totalorder %s228, %s229
      %p238 = scmp.eq.s32.totalorder %s29, 0
      %p239 = por %p237, %p238
      %p240 = scmp.ne.s32.totalorder %s228, %s229
      %p241 = scmp.eq.s32.totalorder %s30, 1
      %p242 = por %p240, %p241
      %p244 = scmp.ne.s32.totalorder %s229, %s243
      %p245 = scmp.eq.s32.totalorder %s30, 0
      %p246 = por %p244, %p245
      %s248 = sadd.s32 %s247, 1
      %p251 = scmp.eq.s32.totalorder %s24, 1
      %p252 = scmp.ne.s32.totalorder %s247, %s249
      %p253 = scmp.eq.s32.totalorder %s24, 0
      %p254 = por %p252, %p253
      %p255 = scmp.ne.s32.totalorder %s247, %s249
      %p256 = scmp.eq.s32.totalorder %s29, 1
      %p257 = por %p255, %p256
      %p258 = scmp.ne.s32.totalorder %s249, %s250
      %p259 = scmp.eq.s32.totalorder %s29, 0
      %p260 = por %p258, %p259
      %p261 = scmp.ne.s32.totalorder %s249, %s250
      %p262 = scmp.eq.s32.totalorder %s30, 1
      %p263 = por %p261, %p262
      %p265 = scmp.ne.s32.totalorder %s250, %s264
      %p266 = scmp.eq.s32.totalorder %s30, 0
      %p267 = por %p265, %p266
      %s269 = sadd.s32 %s268, 1
      %p272 = scmp.eq.s32.totalorder %s24, 1
      %p273 = scmp.ne.s32.totalorder %s268, %s270
      %p274 = scmp.eq.s32.totalorder %s24, 0
      %p275 = por %p273, %p274
      %p276 = scmp.ne.s32.totalorder %s268, %s270
      %p277 = scmp.eq.s32.totalorder %s29, 1
      %p278 = por %p276, %p277
      %p279 = scmp.ne.s32.totalorder %s270, %s271
      %p280 = scmp.eq.s32.totalorder %s29, 0
      %p281 = por %p279, %p280
      %p282 = scmp.ne.s32.totalorder %s270, %s271
      %p283 = scmp.eq.s32.totalorder %s30, 1
      %p284 = por %p282, %p283
      %p286 = scmp.ne.s32.totalorder %s271, %s285
      %p287 = scmp.eq.s32.totalorder %s30, 0
      %p288 = por %p286, %p287
      %s290 = sadd.s32 %s289, 1
      %p293 = scmp.eq.s32.totalorder %s24, 1
      %p294 = scmp.ne.s32.totalorder %s289, %s291
      %p295 = scmp.eq.s32.totalorder %s24, 0
      %p296 = por %p294, %p295
      %p297 = scmp.ne.s32.totalorder %s289, %s291
      %p298 = scmp.eq.s32.totalorder %s29, 1
      %p299 = por %p297, %p298
      %p300 = scmp.ne.s32.totalorder %s291, %s292
      %p301 = scmp.eq.s32.totalorder %s29, 0
      %p302 = por %p300, %p301
      %p303 = scmp.ne.s32.totalorder %s291, %s292
      %p304 = scmp.eq.s32.totalorder %s30, 1
      %p305 = por %p303, %p304
      %p307 = scmp.ne.s32.totalorder %s292, %s306
      %p308 = scmp.eq.s32.totalorder %s30, 0
      %p309 = por %p307, %p308
      %s310 = ssub.s32 %s24, %s31
      %p311 = scmp.eq.s32.totalorder %s310, 0
      %s313 = sadd.s32 %s312, 1
      %s314 = scalar_select %p311, %s312, %s313
      %p317 = pneg %p311
      %p318 = scmp.eq.s32.totalorder %s24, 1
      %p319 = por %p317, %p318
      %p320 = scmp.ne.s32.totalorder %s312, %s315
      %p321 = scmp.eq.s32.totalorder %s24, 0
      %p322 = por %p320, %p321
      %p323 = scmp.ne.s32.totalorder %s312, %s315
      %p324 = scmp.eq.s32.totalorder %s29, 1
      %p325 = por %p323, %p324
      %p326 = scmp.ne.s32.totalorder %s315, %s316
      %p327 = scmp.eq.s32.totalorder %s29, 0
      %p328 = por %p326, %p327
      %p329 = scmp.ne.s32.totalorder %s315, %s316
      %p330 = scmp.eq.s32.totalorder %s30, 1
      %p331 = por %p329, %p330
      %p333 = scmp.ne.s32.totalorder %s316, %s332
      %p334 = scmp.eq.s32.totalorder %s30, 0
      %p335 = por %p333, %p334
      %p336 = scmp.le.s32.totalorder 1, %s24
      %p337 = scmp.lt.s32.totalorder %s24, 3
      %p338 = pnand %p336, %p337
      %p339 = pneg %p338
      // Predicated region
      $region9: #{localizer_vgg_forward.1} parent=5 // pred_check
        _
      $region10: #{localizer_vgg_forward.1} parent=5 // pred_check_branch
        %341 = sbr.rel (%p338) target = $region12
      $region11: #{localizer_vgg_forward.1} parent=5 // pred_region
        %s342 = ssub.s32 %s24, 1
        // Predicated region
        $region13: #{localizer_vgg_forward.1} parent=11 // pred_check
          %p343 = pneg %p71
        $region14: #{localizer_vgg_forward.1} parent=11 // pred_check_branch
          %345 = sbr.rel (%p343) target = $region16
        $region15: #{localizer_vgg_forward.1} parent=11 // pred_region
          _
        $region16: #{localizer_vgg_forward.1} parent=11 // pred_fallthru
          _
        // Predicated region
        $region17: #{localizer_vgg_forward.1} parent=11 // pred_check
          %p346 = pneg %p92
        $region18: #{localizer_vgg_forward.1} parent=11 // pred_check_branch
          %348 = sbr.rel (%p346) target = $region20
        $region19: #{localizer_vgg_forward.1} parent=11 // pred_region
          _
        $region20: #{localizer_vgg_forward.1} parent=11 // pred_fallthru
          _
        // Predicated region
        $region21: #{localizer_vgg_forward.1} parent=11 // pred_check
          %p349 = pneg %p113
        $region22: #{localizer_vgg_forward.1} parent=11 // pred_check_branch
          %351 = sbr.rel (%p349) target = $region24
        $region23: #{localizer_vgg_forward.1} parent=11 // pred_region
          %s353 = ssub.s32 4096, 4096
          %354 = vsyncadd [#allocation7], %s353
          %s355 = sshll.u32 [#allocation6], 4
          %s356 = int_to_ptr.vmem [resolvable:$true] %s355
          %361 = dma.hbm_to_vmem [thread:$0]  %s3, 4096, %s356, [#allocation7], 128, 128, 8
        $region24: #{localizer_vgg_forward.1} parent=11 // pred_fallthru
          _
        // Predicated region
        $region25: #{localizer_vgg_forward.1} parent=11 // pred_check
          %p362 = pneg %p134
        $region26: #{localizer_vgg_forward.1} parent=11 // pred_check_branch
          %364 = sbr.rel (%p362) target = $region28
        $region27: #{localizer_vgg_forward.1} parent=11 // pred_region
          _
        $region28: #{localizer_vgg_forward.1} parent=11 // pred_fallthru
          _
        // Predicated region
        $region29: #{localizer_vgg_forward.1} parent=11 // pred_check
          %p365 = pneg %p155
        $region30: #{localizer_vgg_forward.1} parent=11 // pred_check_branch
          %367 = sbr.rel (%p365) target = $region32
        $region31: #{localizer_vgg_forward.1} parent=11 // pred_region
          _
        $region32: #{localizer_vgg_forward.1} parent=11 // pred_fallthru
          _
        // Predicated region
        $region33: #{localizer_vgg_forward.1} parent=11 // pred_check
          %p368 = pneg %p176
        $region34: #{localizer_vgg_forward.1} parent=11 // pred_check_branch
          %370 = sbr.rel (%p368) target = $region36
        $region35: #{localizer_vgg_forward.1} parent=11 // pred_region
          _
        $region36: #{localizer_vgg_forward.1} parent=11 // pred_fallthru
          _
        // Predicated region
        $region37: #{localizer_vgg_forward.1} parent=11 // pred_check
          %p371 = pneg %p197
        $region38: #{localizer_vgg_forward.1} parent=11 // pred_check_branch
          %373 = sbr.rel (%p371) target = $region40
        $region39: #{localizer_vgg_forward.1} parent=11 // pred_region
          _
        $region40: #{localizer_vgg_forward.1} parent=11 // pred_fallthru
          _
        // Predicated region
        $region41: #{localizer_vgg_forward.1} parent=11 // pred_check
          %p374 = pneg %p218
        $region42: #{localizer_vgg_forward.1} parent=11 // pred_check_branch
          %376 = sbr.rel (%p374) target = $region44
        $region43: #{localizer_vgg_forward.1} parent=11 // pred_region
          _
        $region44: #{localizer_vgg_forward.1} parent=11 // pred_fallthru
          _
        // Predicated region
        $region45: #{localizer_vgg_forward.1} parent=11 // pred_check
          %p377 = pneg %p239
        $region46: #{localizer_vgg_forward.1} parent=11 // pred_check_branch
          %379 = sbr.rel (%p377) target = $region48
        $region47: #{localizer_vgg_forward.1} parent=11 // pred_region
          %s381 = ssub.s32 1024, 1024
          %382 = vsyncadd [#allocation10], %s381
          %s383 = sshll.u32 [#allocation9], 4
          %s384 = int_to_ptr.vmem [resolvable:$true] %s383
          %389 = dma.hbm_to_vmem [thread:$0]  %s9, 1024, %s384, [#allocation10], 64, 64, 4
        $region48: #{localizer_vgg_forward.1} parent=11 // pred_fallthru
          _
        // Predicated region
        $region49: #{localizer_vgg_forward.1} parent=11 // pred_check
          %p390 = pneg %p260
        $region50: #{localizer_vgg_forward.1} parent=11 // pred_check_branch
          %392 = sbr.rel (%p390) target = $region52
        $region51: #{localizer_vgg_forward.1} parent=11 // pred_region
          _
        $region52: #{localizer_vgg_forward.1} parent=11 // pred_fallthru
          _
        // Predicated region
        $region53: #{localizer_vgg_forward.1} parent=11 // pred_check
          %p393 = pneg %p281
        $region54: #{localizer_vgg_forward.1} parent=11 // pred_check_branch
          %395 = sbr.rel (%p393) target = $region56
        $region55: #{localizer_vgg_forward.1} parent=11 // pred_region
          %s397 = ssub.s32 1024, 1024
          %398 = vsyncadd [#allocation10], %s397
          %s399 = sshll.u32 [#allocation11], 4
          %s400 = int_to_ptr.vmem [resolvable:$true] %s399
          %405 = dma.hbm_to_vmem [thread:$0]  %s11, 1024, %s400, [#allocation10], 64, 64, 4
        $region56: #{localizer_vgg_forward.1} parent=11 // pred_fallthru
          _
        // Predicated region
        $region57: #{localizer_vgg_forward.1} parent=11 // pred_check
          %p406 = pneg %p302
        $region58: #{localizer_vgg_forward.1} parent=11 // pred_check_branch
          %408 = sbr.rel (%p406) target = $region60
        $region59: #{localizer_vgg_forward.1} parent=11 // pred_region
          _
        $region60: #{localizer_vgg_forward.1} parent=11 // pred_fallthru
          _
      $region12: #{localizer_vgg_forward.1} parent=5 // pred_fallthru
        _
      %p409 = scmp.lt.s32.totalorder %s24, 2
      // Predicated region
      $region61: #{localizer_vgg_forward.1} parent=5 // pred_check
        %p410 = pneg %p409
      $region62: #{localizer_vgg_forward.1} parent=5 // pred_check_branch
        %412 = sbr.rel (%p410) target = $region64
      $region63: #{localizer_vgg_forward.1} parent=5 // pred_region
        // Predicated region
        $region65: #{localizer_vgg_forward.1} parent=63 // pred_check
          %p413 = pneg %p44
        $region66: #{localizer_vgg_forward.1} parent=63 // pred_check_branch
          %415 = sbr.rel (%p413) target = $region68
        $region67: #{localizer_vgg_forward.1} parent=63 // pred_region
          %p416 = scmp.lt.s32.totalorder %s24, 1
          %s417 = scalar_select %p416, %s24, 1
          %s418 = smul.addr %s417, 32
          %s419 = smul.addr %s418, 8
          %s420 = scalar_lea.vmem %s0, %s419
        $region68: #{localizer_vgg_forward.1} parent=63 // pred_fallthru
          _
      $region64: #{localizer_vgg_forward.1} parent=5 // pred_fallthru
        _
      %p421 = scmp.le.s32.totalorder 1, %s24
      %p422 = scmp.lt.s32.totalorder %s24, 3
      %p423 = pnand %p421, %p422
      %p424 = pneg %p423
      // Predicated region
      $region69: #{localizer_vgg_forward.1} parent=5 // pred_check
        _
      $region70: #{localizer_vgg_forward.1} parent=5 // pred_check_branch
        %426 = sbr.rel (%p423) target = $region72
      $region71: #{localizer_vgg_forward.1} parent=5 // pred_region
        %s427 = ssub.s32 %s24, 1
        // Predicated region
        $region73: #{localizer_vgg_forward.1} parent=71 // pred_check
          %p428 = pneg %p113
        $region74: #{localizer_vgg_forward.1} parent=71 // pred_check_branch
          %430 = sbr.rel (%p428) target = $region76
        $region75: #{localizer_vgg_forward.1} parent=71 // pred_region
          %431 = dma.done [#allocation7], 4096
        $region76: #{localizer_vgg_forward.1} parent=71 // pred_fallthru
          _
        // Predicated region
        $region77: #{localizer_vgg_forward.1} parent=71 // pred_check
          %p432 = pneg %p239
        $region78: #{localizer_vgg_forward.1} parent=71 // pred_check_branch
          %434 = sbr.rel (%p432) target = $region80
        $region79: #{localizer_vgg_forward.1} parent=71 // pred_region
          %435 = dma.done [#allocation10], 1024
        $region80: #{localizer_vgg_forward.1} parent=71 // pred_fallthru
          _
        // Predicated region
        $region81: #{localizer_vgg_forward.1} parent=71 // pred_check
          %p436 = pneg %p281
        $region82: #{localizer_vgg_forward.1} parent=71 // pred_check_branch
          %438 = sbr.rel (%p436) target = $region84
        $region83: #{localizer_vgg_forward.1} parent=71 // pred_region
          %439 = dma.done [#allocation10], 1024
        $region84: #{localizer_vgg_forward.1} parent=71 // pred_fallthru
          _
        %p440 = scmp.lt.s32.totalorder %s29, 1
        %s441 = scalar_select %p440, %s29, 1
        %s442 = smul.addr %s441, 32
        %s443 = smul.addr %s442, 8
        %s444 = scalar_lea.vmem %s0, %s443
        %p445 = pneg %p50
        %p446 = pneg %p47
        %p447 = pneg %p71
        %p448 = pneg %p68
        %p449 = pneg %p92
        %p450 = pneg %p89
        %p451 = pneg %p113
        %p452 = pneg %p110
        %p453 = pneg %p134
        %p454 = pneg %p131
        %p455 = pneg %p155
        %p456 = pneg %p152
        %p457 = pneg %p176
        %p458 = pneg %p173
        %p459 = pneg %p197
        %p460 = pneg %p194
        %p461 = pneg %p218
        %p462 = pneg %p215
        %p463 = pneg %p239
        %p464 = pneg %p236
        %p465 = pneg %p260
        %p466 = pneg %p257
        %p467 = pneg %p281
        %p468 = pneg %p278
        %p469 = pneg %p302
        %p470 = pneg %p299
        %p471 = pneg %p328
        %p472 = pneg %p325
        %s473 = sand.u32 %s315, 1
        %s474 = scalar_lea.sflag [#allocation8], %s473
        %s475 = sand.u32 %s315, 1
        %s476 = scalar_lea.vmem [#allocation12], %s475
        %p477 = scmp.lt.s32.totalorder %s29, 1
        %s478 = scalar_select %p477, %s29, 1
        %s479 = smul.addr %s478, 32
        %s480 = smul.addr %s479, 8
        %s481 = scalar_lea.vmem %s0, %s480
        %vm483 = vcmask 64512
        %484 = vst.msk [vmem:[#allocation2] sm:$0xff] %vm483, 0.0
        %485 = vst.msk [vmem:[#allocation2 + $0x8] sm:$0xff] %vm483, 0.0
        %486 = vst.msk [vmem:[#allocation2 + $0x10] sm:$0xff] %vm483, 0.0
        %vm487 = vcmask 57344
        %488 = vst.msk [vmem:[#allocation2 + $0x18] sm:$0x1] %vm487, 0.0
        %489 = vst.msk [vmem:[#allocation2 + $0x20] sm:$0xff] %vm483, 0.0
        %490 = vst.msk [vmem:[#allocation2 + $0x28] sm:$0xff] %vm483, 0.0
        %491 = vst.msk [vmem:[#allocation2 + $0x30] sm:$0xff] %vm483, 0.0
        %492 = vst.msk [vmem:[#allocation2 + $0x38] sm:$0x1] %vm487, 0.0
        %493 = vst.msk [vmem:[#allocation2 + $0x40] sm:$0xff] %vm483, 0.0
        %494 = vst.msk [vmem:[#allocation2 + $0x48] sm:$0xff] %vm483, 0.0
        %495 = vst.msk [vmem:[#allocation2 + $0x50] sm:$0xff] %vm483, 0.0
        %496 = vst.msk [vmem:[#allocation2 + $0x58] sm:$0x1] %vm487, 0.0
        %497 = vst.msk [vmem:[#allocation2 + $0x60] sm:$0xff] %vm483, 0.0
        %498 = vst.msk [vmem:[#allocation2 + $0x68] sm:$0xff] %vm483, 0.0
        %499 = vst.msk [vmem:[#allocation2 + $0x70] sm:$0xff] %vm483, 0.0
        %500 = vst.msk [vmem:[#allocation2 + $0x78] sm:$0x1] %vm487, 0.0
        %501 = vst.msk [vmem:[#allocation2 + $0x80] sm:$0xff] %vm483, 0.0
        %502 = vst.msk [vmem:[#allocation2 + $0x88] sm:$0xff] %vm483, 0.0
        %503 = vst.msk [vmem:[#allocation2 + $0x90] sm:$0xff] %vm483, 0.0
        %504 = vst.msk [vmem:[#allocation2 + $0x98] sm:$0x1] %vm487, 0.0
        %505 = vst.msk [vmem:[#allocation2 + $0xa0] sm:$0xff] %vm483, 0.0
        %506 = vst.msk [vmem:[#allocation2 + $0xa8] sm:$0xff] %vm483, 0.0
        %507 = vst.msk [vmem:[#allocation2 + $0xb0] sm:$0xff] %vm483, 0.0
        %508 = vst.msk [vmem:[#allocation2 + $0xb8] sm:$0x1] %vm487, 0.0
        %509 = vst.msk [vmem:[#allocation2 + $0xc0] sm:$0xff] %vm483, 0.0
        %510 = vst.msk [vmem:[#allocation2 + $0xc8] sm:$0xff] %vm483, 0.0
        %511 = vst.msk [vmem:[#allocation2 + $0xd0] sm:$0xff] %vm483, 0.0
        %512 = vst.msk [vmem:[#allocation2 + $0xd8] sm:$0x1] %vm487, 0.0
        %513 = vst.msk [vmem:[#allocation2 + $0xe0] sm:$0xff] %vm483, 0.0
        %514 = vst.msk [vmem:[#allocation2 + $0xe8] sm:$0xff] %vm483, 0.0
        %515 = vst.msk [vmem:[#allocation2 + $0xf0] sm:$0xff] %vm483, 0.0
        %516 = vst.msk [vmem:[#allocation2 + $0xf8] sm:$0x1] %vm487, 0.0
        %517 = vst.msk [vmem:[#allocation2 + $0x100] sm:$0xff] %vm483, 0.0
        %518 = vst.msk [vmem:[#allocation2 + $0x108] sm:$0xff] %vm483, 0.0
        %519 = vst.msk [vmem:[#allocation2 + $0x110] sm:$0xff] %vm483, 0.0
        %520 = vst.msk [vmem:[#allocation2 + $0x118] sm:$0x1] %vm487, 0.0
        %521 = vst.msk [vmem:[#allocation2 + $0x120] sm:$0xff] %vm483, 0.0
        %522 = vst.msk [vmem:[#allocation2 + $0x128] sm:$0xff] %vm483, 0.0
        %523 = vst.msk [vmem:[#allocation2 + $0x130] sm:$0xff] %vm483, 0.0
        %524 = vst.msk [vmem:[#allocation2 + $0x138] sm:$0x1] %vm487, 0.0
        %525 = vst.msk [vmem:[#allocation2 + $0x140] sm:$0xff] %vm483, 0.0
        %526 = vst.msk [vmem:[#allocation2 + $0x148] sm:$0xff] %vm483, 0.0
        %527 = vst.msk [vmem:[#allocation2 + $0x150] sm:$0xff] %vm483, 0.0
        %528 = vst.msk [vmem:[#allocation2 + $0x158] sm:$0x1] %vm487, 0.0
        %529 = vst.msk [vmem:[#allocation2 + $0x160] sm:$0xff] %vm483, 0.0
        %530 = vst.msk [vmem:[#allocation2 + $0x168] sm:$0xff] %vm483, 0.0
        %531 = vst.msk [vmem:[#allocation2 + $0x170] sm:$0xff] %vm483, 0.0
        %532 = vst.msk [vmem:[#allocation2 + $0x178] sm:$0x1] %vm487, 0.0
        %533 = vst.msk [vmem:[#allocation2 + $0x180] sm:$0xff] %vm483, 0.0
        %534 = vst.msk [vmem:[#allocation2 + $0x188] sm:$0xff] %vm483, 0.0
        %535 = vst.msk [vmem:[#allocation2 + $0x190] sm:$0xff] %vm483, 0.0
        %536 = vst.msk [vmem:[#allocation2 + $0x198] sm:$0x1] %vm487, 0.0
        %537 = vst.msk [vmem:[#allocation2 + $0x1a0] sm:$0xff] %vm483, 0.0
        %538 = vst.msk [vmem:[#allocation2 + $0x1a8] sm:$0xff] %vm483, 0.0
        %539 = vst.msk [vmem:[#allocation2 + $0x1b0] sm:$0xff] %vm483, 0.0
        %540 = vst.msk [vmem:[#allocation2 + $0x1b8] sm:$0x1] %vm487, 0.0
        %541 = vst.msk [vmem:[#allocation2 + $0x1c0] sm:$0xff] %vm483, 0.0
        %542 = vst.msk [vmem:[#allocation2 + $0x1c8] sm:$0xff] %vm483, 0.0
        %543 = vst.msk [vmem:[#allocation2 + $0x1d0] sm:$0xff] %vm483, 0.0
        %544 = vst.msk [vmem:[#allocation2 + $0x1d8] sm:$0x1] %vm487, 0.0
        %545 = vst.msk [vmem:[#allocation2 + $0x1e0] sm:$0xff] %vm483, 0.0
        %546 = vst.msk [vmem:[#allocation2 + $0x1e8] sm:$0xff] %vm483, 0.0
        %547 = vst.msk [vmem:[#allocation2 + $0x1f0] sm:$0xff] %vm483, 0.0
        %548 = vst.msk [vmem:[#allocation2 + $0x1f8] sm:$0x1] %vm487, 0.0
        %549 = vst.msk [vmem:[#allocation2 + $0x200] sm:$0xff] %vm483, 0.0
        %550 = vst.msk [vmem:[#allocation2 + $0x208] sm:$0xff] %vm483, 0.0
        %551 = vst.msk [vmem:[#allocation2 + $0x210] sm:$0xff] %vm483, 0.0
        %552 = vst.msk [vmem:[#allocation2 + $0x218] sm:$0x1] %vm487, 0.0
        %553 = vst.msk [vmem:[#allocation2 + $0x220] sm:$0xff] %vm483, 0.0
        %554 = vst.msk [vmem:[#allocation2 + $0x228] sm:$0xff] %vm483, 0.0
        %555 = vst.msk [vmem:[#allocation2 + $0x230] sm:$0xff] %vm483, 0.0
        %556 = vst.msk [vmem:[#allocation2 + $0x238] sm:$0x1] %vm487, 0.0
        %v557 = vld [vmem:[%s481] sm:$0xff]
        %v558 = vld [vmem:[%s481 + $0x8] sm:$0xff]
        %v559 = vld [vmem:[%s481 + $0x10] sm:$0xff]
        %v560 = vld [vmem:[%s481 + $0x18] sm:$0xff]
        %v561 = vld [vmem:[%s481 + $0x20] sm:$0xff]
        %v562 = vld [vmem:[%s481 + $0x28] sm:$0xff]
        %v563 = vld [vmem:[%s481 + $0x30] sm:$0xff]
        %v564 = vld [vmem:[%s481 + $0x38] sm:$0xff]
        %v565 = vld [vmem:[%s481 + $0x40] sm:$0xff]
        %v566 = vld [vmem:[%s481 + $0x48] sm:$0xff]
        %v567 = vld [vmem:[%s481 + $0x50] sm:$0xff]
        %v568 = vld [vmem:[%s481 + $0x58] sm:$0xff]
        %v569 = vld [vmem:[%s481 + $0x60] sm:$0xff]
        %v570 = vld [vmem:[%s481 + $0x68] sm:$0xff]
        %v571 = vld [vmem:[%s481 + $0x70] sm:$0xff]
        %v572 = vld [vmem:[%s481 + $0x78] sm:$0xff]
        %v573 = vld [vmem:[%s481 + $0x80] sm:$0xff]
        %v574 = vld [vmem:[%s481 + $0x88] sm:$0xff]
        %v575 = vld [vmem:[%s481 + $0x90] sm:$0xff]
        %v576 = vld [vmem:[%s481 + $0x98] sm:$0xff]
        %v577 = vld [vmem:[%s481 + $0xa0] sm:$0xff]
        %v578 = vld [vmem:[%s481 + $0xa8] sm:$0xff]
        %v579 = vld [vmem:[%s481 + $0xb0] sm:$0xff]
        %v580 = vld [vmem:[%s481 + $0xb8] sm:$0xff]
        %v581 = vld [vmem:[%s481 + $0xc0] sm:$0xff]
        %v582 = vld [vmem:[%s481 + $0xc8] sm:$0xff]
        %v583 = vld [vmem:[%s481 + $0xd0] sm:$0xff]
        %v584 = vld [vmem:[%s481 + $0xd8] sm:$0xff]
        %v585 = vld [vmem:[%s481 + $0xe0] sm:$0xff]
        %v586 = vld [vmem:[%s481 + $0xe8] sm:$0xff]
        %v587 = vld [vmem:[%s481 + $0xf0] sm:$0xff]
        %v588 = vld [vmem:[%s481 + $0xf8] sm:$0xff]
        %s589 = scalar_lea.vmem [#allocation2], 32
        %590 = vst.msk [vmem:[%s589 + $0x8] sm:$0xff] %vm483, %v557
        %591 = vst.msk [vmem:[%s589 + $0x10] sm:$0xff] %vm483, %v558
        %592 = vst.msk [vmem:[%s589 + $0x28] sm:$0xff] %vm483, %v559
        %593 = vst.msk [vmem:[%s589 + $0x30] sm:$0xff] %vm483, %v560
        %594 = vst.msk [vmem:[%s589 + $0x48] sm:$0xff] %vm483, %v561
        %595 = vst.msk [vmem:[%s589 + $0x50] sm:$0xff] %vm483, %v562
        %596 = vst.msk [vmem:[%s589 + $0x68] sm:$0xff] %vm483, %v563
        %597 = vst.msk [vmem:[%s589 + $0x70] sm:$0xff] %vm483, %v564
        %598 = vst.msk [vmem:[%s589 + $0x88] sm:$0xff] %vm483, %v565
        %599 = vst.msk [vmem:[%s589 + $0x90] sm:$0xff] %vm483, %v566
        %600 = vst.msk [vmem:[%s589 + $0xa8] sm:$0xff] %vm483, %v567
        %601 = vst.msk [vmem:[%s589 + $0xb0] sm:$0xff] %vm483, %v568
        %602 = vst.msk [vmem:[%s589 + $0xc8] sm:$0xff] %vm483, %v569
        %603 = vst.msk [vmem:[%s589 + $0xd0] sm:$0xff] %vm483, %v570
        %604 = vst.msk [vmem:[%s589 + $0xe8] sm:$0xff] %vm483, %v571
        %605 = vst.msk [vmem:[%s589 + $0xf0] sm:$0xff] %vm483, %v572
        %606 = vst.msk [vmem:[%s589 + $0x108] sm:$0xff] %vm483, %v573
        %607 = vst.msk [vmem:[%s589 + $0x110] sm:$0xff] %vm483, %v574
        %608 = vst.msk [vmem:[%s589 + $0x128] sm:$0xff] %vm483, %v575
        %609 = vst.msk [vmem:[%s589 + $0x130] sm:$0xff] %vm483, %v576
        %610 = vst.msk [vmem:[%s589 + $0x148] sm:$0xff] %vm483, %v577
        %611 = vst.msk [vmem:[%s589 + $0x150] sm:$0xff] %vm483, %v578
        %612 = vst.msk [vmem:[%s589 + $0x168] sm:$0xff] %vm483, %v579
        %613 = vst.msk [vmem:[%s589 + $0x170] sm:$0xff] %vm483, %v580
        %614 = vst.msk [vmem:[%s589 + $0x188] sm:$0xff] %vm483, %v581
        %615 = vst.msk [vmem:[%s589 + $0x190] sm:$0xff] %vm483, %v582
        %616 = vst.msk [vmem:[%s589 + $0x1a8] sm:$0xff] %vm483, %v583
        %617 = vst.msk [vmem:[%s589 + $0x1b0] sm:$0xff] %vm483, %v584
        %618 = vst.msk [vmem:[%s589 + $0x1c8] sm:$0xff] %vm483, %v585
        %619 = vst.msk [vmem:[%s589 + $0x1d0] sm:$0xff] %vm483, %v586
        %620 = vst.msk [vmem:[%s589 + $0x1e8] sm:$0xff] %vm483, %v587
        %621 = vst.msk [vmem:[%s589 + $0x1f0] sm:$0xff] %vm483, %v588
        %v622 = vld [vmem:[%s2] sm:$0x1]
        %v624 = vlaneseq
        %v625 = vshrl.u32 %v624, 7
        %v626 = vsub.s32 0, %v625
        %v627 = vrot.slane %v622, %v626
        %629 = vst [vmem:[#allocation3] sm:$0xff] %v627
        %630 = vst [vmem:[#allocation3 + $0x8] sm:$0xff] %v627
        %631 = vst [vmem:[#allocation3 + $0x10] sm:$0xff] %v627
        %632 = vst [vmem:[#allocation3 + $0x18] sm:$0xff] %v627
        %633 = vst [vmem:[#allocation3 + $0x20] sm:$0xff] %v627
        %634 = vst [vmem:[#allocation3 + $0x28] sm:$0xff] %v627
        %635 = vst [vmem:[#allocation3 + $0x30] sm:$0xff] %v627
        %636 = vst [vmem:[#allocation3 + $0x38] sm:$0xff] %v627
        %637 = vst [vmem:[#allocation3 + $0x40] sm:$0xff] %v627
        %638 = vst [vmem:[#allocation3 + $0x48] sm:$0xff] %v627
        %639 = vst [vmem:[#allocation3 + $0x50] sm:$0xff] %v627
        %640 = vst [vmem:[#allocation3 + $0x58] sm:$0xff] %v627
        %641 = vst [vmem:[#allocation3 + $0x60] sm:$0xff] %v627
        %642 = vst [vmem:[#allocation3 + $0x68] sm:$0xff] %v627
        %643 = vst [vmem:[#allocation3 + $0x70] sm:$0xff] %v627
        %644 = vst [vmem:[#allocation3 + $0x78] sm:$0xff] %v627
        %645 = vst [vmem:[#allocation3 + $0x80] sm:$0xff] %v627
        %646 = vst [vmem:[#allocation3 + $0x88] sm:$0xff] %v627
        %647 = vst [vmem:[#allocation3 + $0x90] sm:$0xff] %v627
        %648 = vst [vmem:[#allocation3 + $0x98] sm:$0xff] %v627
        %649 = vst [vmem:[#allocation3 + $0xa0] sm:$0xff] %v627
        %650 = vst [vmem:[#allocation3 + $0xa8] sm:$0xff] %v627
        %651 = vst [vmem:[#allocation3 + $0xb0] sm:$0xff] %v627
        %652 = vst [vmem:[#allocation3 + $0xb8] sm:$0xff] %v627
        %653 = vst [vmem:[#allocation3 + $0xc0] sm:$0xff] %v627
        %654 = vst [vmem:[#allocation3 + $0xc8] sm:$0xff] %v627
        %655 = vst [vmem:[#allocation3 + $0xd0] sm:$0xff] %v627
        %656 = vst [vmem:[#allocation3 + $0xd8] sm:$0xff] %v627
        %657 = vst [vmem:[#allocation3 + $0xe0] sm:$0xff] %v627
        %658 = vst [vmem:[#allocation3 + $0xe8] sm:$0xff] %v627
        %659 = vst [vmem:[#allocation3 + $0xf0] sm:$0xff] %v627
        %660 = vst [vmem:[#allocation3 + $0xf8] sm:$0xff] %v627
        %v661 = vld [vmem:[#allocation2 + $0x7] sm:$0xff]
        %v662 = vld [vmem:[#allocation2 + $0xf] sm:$0xff]
        %v663 = vld [vmem:[#allocation2 + $0x27] sm:$0xff]
        %v664 = vld [vmem:[#allocation2 + $0x2f] sm:$0xff]
        %v665 = vld [vmem:[#allocation2 + $0x47] sm:$0xff]
        %v666 = vld [vmem:[#allocation2 + $0x4f] sm:$0xff]
        %v667 = vld [vmem:[#allocation2 + $0x67] sm:$0xff]
        %v668 = vld [vmem:[#allocation2 + $0x6f] sm:$0xff]
        %v669 = vld [vmem:[#allocation2 + $0x87] sm:$0xff]
        %v670 = vld [vmem:[#allocation2 + $0x8f] sm:$0xff]
        %v671 = vld [vmem:[#allocation2 + $0xa7] sm:$0xff]
        %v672 = vld [vmem:[#allocation2 + $0xaf] sm:$0xff]
        %v673 = vld [vmem:[#allocation2 + $0xc7] sm:$0xff]
        %v674 = vld [vmem:[#allocation2 + $0xcf] sm:$0xff]
        %v675 = vld [vmem:[#allocation2 + $0xe7] sm:$0xff]
        %v676 = vld [vmem:[#allocation2 + $0xef] sm:$0xff]
        %v677 = vld [vmem:[#allocation2 + $0x107] sm:$0xff]
        %v678 = vld [vmem:[#allocation2 + $0x10f] sm:$0xff]
        %v679 = vld [vmem:[#allocation2 + $0x127] sm:$0xff]
        %v680 = vld [vmem:[#allocation2 + $0x12f] sm:$0xff]
        %v681 = vld [vmem:[#allocation2 + $0x147] sm:$0xff]
        %v682 = vld [vmem:[#allocation2 + $0x14f] sm:$0xff]
        %v683 = vld [vmem:[#allocation2 + $0x167] sm:$0xff]
        %v684 = vld [vmem:[#allocation2 + $0x16f] sm:$0xff]
        %v685 = vld [vmem:[#allocation2 + $0x187] sm:$0xff]
        %v686 = vld [vmem:[#allocation2 + $0x18f] sm:$0xff]
        %v687 = vld [vmem:[#allocation2 + $0x1a7] sm:$0xff]
        %v688 = vld [vmem:[#allocation2 + $0x1af] sm:$0xff]
        %v689 = vld [vmem:[#allocation2 + $0x1c7] sm:$0xff]
        %v690 = vld [vmem:[#allocation2 + $0x1cf] sm:$0xff]
        %v691 = vld [vmem:[#allocation2 + $0x1e7] sm:$0xff]
        %v692 = vld [vmem:[#allocation2 + $0x1ef] sm:$0xff]
        %v693 = vpack.c.bf16 %v662, %v661
        %v694 = vpack.c.bf16 %v664, %v663
        %v695 = vpack.c.bf16 %v666, %v665
        %v696 = vpack.c.bf16 %v668, %v667
        %v697 = vpack.c.bf16 %v670, %v669
        %v698 = vpack.c.bf16 %v672, %v671
        %v699 = vpack.c.bf16 %v674, %v673
        %v700 = vpack.c.bf16 %v676, %v675
        %v701 = vpack.c.bf16 %v678, %v677
        %v702 = vpack.c.bf16 %v680, %v679
        %v703 = vpack.c.bf16 %v682, %v681
        %v704 = vpack.c.bf16 %v684, %v683
        %v705 = vpack.c.bf16 %v686, %v685
        %v706 = vpack.c.bf16 %v688, %v687
        %v707 = vpack.c.bf16 %v690, %v689
        %v708 = vpack.c.bf16 %v692, %v691
        %v709 = vld [vmem:[#allocation3] sm:$0xff]
        %v710 = vld [vmem:[#allocation3 + $0x8] sm:$0xff]
        %v711 = vld [vmem:[#allocation3 + $0x10] sm:$0xff]
        %v712 = vld [vmem:[#allocation3 + $0x18] sm:$0xff]
        %v713 = vld [vmem:[#allocation3 + $0x20] sm:$0xff]
        %v714 = vld [vmem:[#allocation3 + $0x28] sm:$0xff]
        %v715 = vld [vmem:[#allocation3 + $0x30] sm:$0xff]
        %v716 = vld [vmem:[#allocation3 + $0x38] sm:$0xff]
        %v717 = vld [vmem:[#allocation3 + $0x40] sm:$0xff]
        %v718 = vld [vmem:[#allocation3 + $0x48] sm:$0xff]
        %v719 = vld [vmem:[#allocation3 + $0x50] sm:$0xff]
        %v720 = vld [vmem:[#allocation3 + $0x58] sm:$0xff]
        %v721 = vld [vmem:[#allocation3 + $0x60] sm:$0xff]
        %v722 = vld [vmem:[#allocation3 + $0x68] sm:$0xff]
        %v723 = vld [vmem:[#allocation3 + $0x70] sm:$0xff]
        %v724 = vld [vmem:[#allocation3 + $0x78] sm:$0xff]
        %v725 = vld [vmem:[#allocation3 + $0x80] sm:$0xff]
        %v726 = vld [vmem:[#allocation3 + $0x88] sm:$0xff]
        %v727 = vld [vmem:[#allocation3 + $0x90] sm:$0xff]
        %v728 = vld [vmem:[#allocation3 + $0x98] sm:$0xff]
        %v729 = vld [vmem:[#allocation3 + $0xa0] sm:$0xff]
        %v730 = vld [vmem:[#allocation3 + $0xa8] sm:$0xff]
        %v731 = vld [vmem:[#allocation3 + $0xb0] sm:$0xff]
        %v732 = vld [vmem:[#allocation3 + $0xb8] sm:$0xff]
        %v733 = vld [vmem:[#allocation3 + $0xc0] sm:$0xff]
        %v734 = vld [vmem:[#allocation3 + $0xc8] sm:$0xff]
        %v735 = vld [vmem:[#allocation3 + $0xd0] sm:$0xff]
        %v736 = vld [vmem:[#allocation3 + $0xd8] sm:$0xff]
        %v737 = vld [vmem:[#allocation3 + $0xe0] sm:$0xff]
        %v738 = vld [vmem:[#allocation3 + $0xe8] sm:$0xff]
        %v739 = vld [vmem:[#allocation3 + $0xf0] sm:$0xff]
        %v740 = vld [vmem:[#allocation3 + $0xf8] sm:$0xff]
        %v741 = vld [vmem:[%s1] sm:$0xf]
        %v743 = vsel %vm483, %v693, 0
        %v746 = vsel %vm483, %v694, 0
        %v749 = vsel %vm483, %v695, 0
        %v752 = vsel %vm483, %v696, 0
        %v755 = vsel %vm483, %v697, 0
        %v758 = vsel %vm483, %v698, 0
        %v761 = vsel %vm483, %v699, 0
        %v764 = vsel %vm483, %v700, 0
        %v767 = vsel %vm483, %v701, 0
        %v770 = vsel %vm483, %v702, 0
        %v773 = vsel %vm483, %v703, 0
        %v776 = vsel %vm483, %v704, 0
        %v779 = vsel %vm483, %v705, 0
        %v782 = vsel %vm483, %v706, 0
        %v785 = vsel %vm483, %v707, 0
        %v788 = vsel %vm483, %v708, 0
        %vm790 = vcmask 1043456
        %v792 = vsel %vm790, %v741, 0
        %794 = vmatprep.subr.bf16.mxu0 0
        %795 = vmatpush1.bf16.msra.mxu0 %v792
        %796 = vmatprep.subr.bf16.mxu0 0
        %797 = vmatpush1.bf16.msra.mxu0 0
        %798 = vmatprep.subr.bf16.mxu0 0
        %799 = vmatpush1.bf16.msra.mxu0 0
        %800 = vmatprep.subr.bf16.mxu0 0
        %801 = vmatpush1.bf16.msra.mxu0 0
        %802 = vmatprep.subr.bf16.mxu0 0
        %803 = vmatpush1.bf16.msra.mxu0 0
        %804 = vmatprep.subr.bf16.mxu0 0
        %805 = vmatpush1.bf16.msra.mxu0 0
        %806 = vmatprep.subr.bf16.mxu0 0
        %807 = vmatpush1.bf16.msra.mxu0 0
        %808 = vmatprep.subr.bf16.mxu0 0
        %809 = vmatpush1.bf16.msra.mxu0 0
        %810 = vmatprep.subr.bf16.mxu0 0
        %811 = vmatpush1.bf16.msra.mxu0 0
        %812 = vmatprep.subr.bf16.mxu0 0
        %813 = vmatpush1.bf16.msra.mxu0 0
        %814 = vmatprep.subr.bf16.mxu0 0
        %815 = vmatpush1.bf16.msra.mxu0 0
        %816 = vmatprep.subr.bf16.mxu0 0
        %817 = vmatpush1.bf16.msra.mxu0 0
        %818 = vmatprep.subr.bf16.mxu0 0
        %819 = vmatpush1.bf16.msra.mxu0 0
        %820 = vmatprep.subr.bf16.mxu0 0
        %821 = vmatpush1.bf16.msra.mxu0 0
        %822 = vmatprep.subr.bf16.mxu0 0
        %823 = vmatpush1.bf16.msra.mxu0 0
        %824 = vmatprep.subr.bf16.mxu0 0
        %825 = vmatpush1.bf16.msra.mxu0 0
        %826 = vmatprep.mubr.bf16.mxu0 0
        %827 = vmatmul.mubr.bf16.gmra.mrb[0].mxu0 %v743
        %v828 = vpop.f32.mrb[0].mxu0
        %v829 = vadd.f32 0.0, %v828
        %v830 = vpop.f32.mrb[0].mxu0
        %v831 = vpop.f32.mrb[0].mxu0
        %v832 = vadd.f32 0.0, %v831
        %v833 = vpop.f32.mrb[0].mxu0
        %834 = vmatprep.mubr.bf16.mxu0 0
        %835 = vmatmul.mubr.bf16.gmra.mrb[0].mxu0 %v746
        %v836 = vpop.f32.mrb[0].mxu0
        %v837 = vadd.f32 0.0, %v836
        %v838 = vpop.f32.mrb[0].mxu0
        %v839 = vpop.f32.mrb[0].mxu0
        %v840 = vadd.f32 0.0, %v839
        %v841 = vpop.f32.mrb[0].mxu0
        %842 = vmatprep.mubr.bf16.mxu0 0
        %843 = vmatmul.mubr.bf16.gmra.mrb[0].mxu0 %v749
        %v844 = vpop.f32.mrb[0].mxu0
        %v845 = vadd.f32 0.0, %v844
        %v846 = vpop.f32.mrb[0].mxu0
        %v847 = vpop.f32.mrb[0].mxu0
        %v848 = vadd.f32 0.0, %v847
        %v849 = vpop.f32.mrb[0].mxu0
        %850 = vmatprep.mubr.bf16.mxu0 0
        %851 = vmatmul.mubr.bf16.gmra.mrb[0].mxu0 %v752
        %v852 = vpop.f32.mrb[0].mxu0
        %v853 = vadd.f32 0.0, %v852
        %v854 = vpop.f32.mrb[0].mxu0
        %v855 = vpop.f32.mrb[0].mxu0
        %v856 = vadd.f32 0.0, %v855
        %v857 = vpop.f32.mrb[0].mxu0
        %858 = vmatprep.mubr.bf16.mxu0 0
        %859 = vmatmul.mubr.bf16.gmra.mrb[0].mxu0 %v755
        %v860 = vpop.f32.mrb[0].mxu0
        %v861 = vadd.f32 0.0, %v860
        %v862 = vpop.f32.mrb[0].mxu0
        %v863 = vpop.f32.mrb[0].mxu0
        %v864 = vadd.f32 0.0, %v863
        %v865 = vpop.f32.mrb[0].mxu0
        %866 = vmatprep.mubr.bf16.mxu0 0
        %867 = vmatmul.mubr.bf16.gmra.mrb[0].mxu0 %v758
        %v868 = vpop.f32.mrb[0].mxu0
        %v869 = vadd.f32 0.0, %v868
        %v870 = vpop.f32.mrb[0].mxu0
        %v871 = vpop.f32.mrb[0].mxu0
        %v872 = vadd.f32 0.0, %v871
        %v873 = vpop.f32.mrb[0].mxu0
        %874 = vmatprep.mubr.bf16.mxu0 0
        %875 = vmatmul.mubr.bf16.gmra.mrb[0].mxu0 %v761
        %v876 = vpop.f32.mrb[0].mxu0
        %v877 = vadd.f32 0.0, %v876
        %v878 = vpop.f32.mrb[0].mxu0
        %v879 = vpop.f32.mrb[0].mxu0
        %v880 = vadd.f32 0.0, %v879
        %v881 = vpop.f32.mrb[0].mxu0
        %882 = vmatprep.mubr.bf16.mxu0 0
        %883 = vmatmul.mubr.bf16.gmra.mrb[0].mxu0 %v764
        %v884 = vpop.f32.mrb[0].mxu0
        %v885 = vadd.f32 0.0, %v884
        %v886 = vpop.f32.mrb[0].mxu0
        %v887 = vpop.f32.mrb[0].mxu0
        %v888 = vadd.f32 0.0, %v887
        %v889 = vpop.f32.mrb[0].mxu0
        %890 = vmatprep.mubr.bf16.mxu0 0
        %891 = vmatmul.mubr.bf16.gmra.mrb[0].mxu0 %v767
        %v892 = vpop.f32.mrb[0].mxu0
        %v893 = vadd.f32 0.0, %v892
        %v894 = vpop.f32.mrb[0].mxu0
        %v895 = vpop.f32.mrb[0].mxu0
        %v896 = vadd.f32 0.0, %v895
        %v897 = vpop.f32.mrb[0].mxu0
        %898 = vmatprep.mubr.bf16.mxu0 0
        %899 = vmatmul.mubr.bf16.gmra.mrb[0].mxu0 %v770
        %v900 = vpop.f32.mrb[0].mxu0
        %v901 = vadd.f32 0.0, %v900
        %v902 = vpop.f32.mrb[0].mxu0
        %v903 = vpop.f32.mrb[0].mxu0
        %v904 = vadd.f32 0.0, %v903
        %v905 = vpop.f32.mrb[0].mxu0
        %906 = vmatprep.mubr.bf16.mxu0 0
        %907 = vmatmul.mubr.bf16.gmra.mrb[0].mxu0 %v773
        %v908 = vpop.f32.mrb[0].mxu0
        %v909 = vadd.f32 0.0, %v908
        %v910 = vpop.f32.mrb[0].mxu0
        %v911 = vpop.f32.mrb[0].mxu0
        %v912 = vadd.f32 0.0, %v911
        %v913 = vpop.f32.mrb[0].mxu0
        %914 = vmatprep.mubr.bf16.mxu0 0
        %915 = vmatmul.mubr.bf16.gmra.mrb[0].mxu0 %v776
        %v916 = vpop.f32.mrb[0].mxu0
        %v917 = vadd.f32 0.0, %v916
        %v918 = vpop.f32.mrb[0].mxu0
        %v919 = vpop.f32.mrb[0].mxu0
        %v920 = vadd.f32 0.0, %v919
        %v921 = vpop.f32.mrb[0].mxu0
        %922 = vmatprep.mubr.bf16.mxu0 0
        %923 = vmatmul.mubr.bf16.gmra.mrb[0].mxu0 %v779
        %v924 = vpop.f32.mrb[0].mxu0
        %v925 = vadd.f32 0.0, %v924
        %v926 = vpop.f32.mrb[0].mxu0
        %v927 = vpop.f32.mrb[0].mxu0
        %v928 = vadd.f32 0.0, %v927
        %v929 = vpop.f32.mrb[0].mxu0
        %930 = vmatprep.mubr.bf16.mxu0 0
        %931 = vmatmul.mubr.bf16.gmra.mrb[0].mxu0 %v782
        %v932 = vpop.f32.mrb[0].mxu0
        %v933 = vadd.f32 0.0, %v932
        %v934 = vpop.f32.mrb[0].mxu0
        %v935 = vpop.f32.mrb[0].mxu0
        %v936 = vadd.f32 0.0, %v935
        %v937 = vpop.f32.mrb[0].mxu0
        %938 = vmatprep.mubr.bf16.mxu0 0
        %939 = vmatmul.mubr.bf16.gmra.mrb[0].mxu0 %v785
        %v940 = vpop.f32.mrb[0].mxu0
        %v941 = vadd.f32 0.0, %v940
        %v942 = vpop.f32.mrb[0].mxu0
        %v943 = vpop.f32.mrb[0].mxu0
        %v944 = vadd.f32 0.0, %v943
        %v945 = vpop.f32.mrb[0].mxu0
        %946 = vmatprep.mubr.bf16.mxu0 0
        %947 = vmatmul.mubr.bf16.gmra.mrb[0].mxu0 %v788
        %v948 = vpop.f32.mrb[0].mxu0
        %v949 = vadd.f32 0.0, %v948
        %v950 = vpop.f32.mrb[0].mxu0
        %v951 = vpop.f32.mrb[0].mxu0
        %v952 = vadd.f32 0.0, %v951
        %v953 = vpop.f32.mrb[0].mxu0
        %954 = vdwg.mxu0
        %v955 = vadd.f32 %v709, %v829
        %v956 = vadd.f32 %v710, %v832
        %v957 = vadd.f32 %v711, %v837
        %v958 = vadd.f32 %v712, %v840
        %v959 = vadd.f32 %v713, %v845
        %v960 = vadd.f32 %v714, %v848
        %v961 = vadd.f32 %v715, %v853
        %v962 = vadd.f32 %v716, %v856
        %v963 = vadd.f32 %v717, %v861
        %v964 = vadd.f32 %v718, %v864
        %v965 = vadd.f32 %v719, %v869
        %v966 = vadd.f32 %v720, %v872
        %v967 = vadd.f32 %v721, %v877
        %v968 = vadd.f32 %v722, %v880
        %v969 = vadd.f32 %v723, %v885
        %v970 = vadd.f32 %v724, %v888
        %v971 = vadd.f32 %v725, %v893
        %v972 = vadd.f32 %v726, %v896
        %v973 = vadd.f32 %v727, %v901
        %v974 = vadd.f32 %v728, %v904
        %v975 = vadd.f32 %v729, %v909
        %v976 = vadd.f32 %v730, %v912
        %v977 = vadd.f32 %v731, %v917
        %v978 = vadd.f32 %v732, %v920
        %v979 = vadd.f32 %v733, %v925
        %v980 = vadd.f32 %v734, %v928
        %v981 = vadd.f32 %v735, %v933
        %v982 = vadd.f32 %v736, %v936
        %v983 = vadd.f32 %v737, %v941
        %v984 = vadd.f32 %v738, %v944
        %v985 = vadd.f32 %v739, %v949
        %v986 = vadd.f32 %v740, %v952
        %987 = vst [vmem:[#allocation3] sm:$0xff] %v955
        %988 = vst [vmem:[#allocation3 + $0x8] sm:$0xff] %v956
        %989 = vst [vmem:[#allocation3 + $0x10] sm:$0xff] %v957
        %990 = vst [vmem:[#allocation3 + $0x18] sm:$0xff] %v958
        %991 = vst [vmem:[#allocation3 + $0x20] sm:$0xff] %v959
        %992 = vst [vmem:[#allocation3 + $0x28] sm:$0xff] %v960
        %993 = vst [vmem:[#allocation3 + $0x30] sm:$0xff] %v961
        %994 = vst [vmem:[#allocation3 + $0x38] sm:$0xff] %v962
        %995 = vst [vmem:[#allocation3 + $0x40] sm:$0xff] %v963
        %996 = vst [vmem:[#allocation3 + $0x48] sm:$0xff] %v964
        %997 = vst [vmem:[#allocation3 + $0x50] sm:$0xff] %v965
        %998 = vst [vmem:[#allocation3 + $0x58] sm:$0xff] %v966
        %999 = vst [vmem:[#allocation3 + $0x60] sm:$0xff] %v967
        %1000 = vst [vmem:[#allocation3 + $0x68] sm:$0xff] %v968
        %1001 = vst [vmem:[#allocation3 + $0x70] sm:$0xff] %v969
        %1002 = vst [vmem:[#allocation3 + $0x78] sm:$0xff] %v970
        %1003 = vst [vmem:[#allocation3 + $0x80] sm:$0xff] %v971
        %1004 = vst [vmem:[#allocation3 + $0x88] sm:$0xff] %v972
        %1005 = vst [vmem:[#allocation3 + $0x90] sm:$0xff] %v973
        %1006 = vst [vmem:[#allocation3 + $0x98] sm:$0xff] %v974
        %1007 = vst [vmem:[#allocation3 + $0xa0] sm:$0xff] %v975
        %1008 = vst [vmem:[#allocation3 + $0xa8] sm:$0xff] %v976
        %1009 = vst [vmem:[#allocation3 + $0xb0] sm:$0xff] %v977
        %1010 = vst [vmem:[#allocation3 + $0xb8] sm:$0xff] %v978
        %1011 = vst [vmem:[#allocation3 + $0xc0] sm:$0xff] %v979
        %1012 = vst [vmem:[#allocation3 + $0xc8] sm:$0xff] %v980
        %1013 = vst [vmem:[#allocation3 + $0xd0] sm:$0xff] %v981
        %1014 = vst [vmem:[#allocation3 + $0xd8] sm:$0xff] %v982
        %1015 = vst [vmem:[#allocation3 + $0xe0] sm:$0xff] %v983
        %1016 = vst [vmem:[#allocation3 + $0xe8] sm:$0xff] %v984
        %1017 = vst [vmem:[#allocation3 + $0xf0] sm:$0xff] %v985
        %1018 = vst [vmem:[#allocation3 + $0xf8] sm:$0xff] %v986
        %v1019 = vld [vmem:[#allocation2 + $0x8] sm:$0xff]
        %v1020 = vld [vmem:[#allocation2 + $0x10] sm:$0xff]
        %v1021 = vld [vmem:[#allocation2 + $0x28] sm:$0xff]
        %v1022 = vld [vmem:[#allocation2 + $0x30] sm:$0xff]
        %v1023 = vld [vmem:[#allocation2 + $0x48] sm:$0xff]
        %v1024 = vld [vmem:[#allocation2 + $0x50] sm:$0xff]
        %v1025 = vld [vmem:[#allocation2 + $0x68] sm:$0xff]
        %v1026 = vld [vmem:[#allocation2 + $0x70] sm:$0xff]
        %v1027 = vld [vmem:[#allocation2 + $0x88] sm:$0xff]
        %v1028 = vld [vmem:[#allocation2 + $0x90] sm:$0xff]
        %v1029 = vld [vmem:[#allocation2 + $0xa8] sm:$0xff]
        %v1030 = vld [vmem:[#allocation2 + $0xb0] sm:$0xff]
        %v1031 = vld [vmem:[#allocation2 + $0xc8] sm:$0xff]
        %v1032 = vld [vmem:[#allocation2 + $0xd0] sm:$0xff]
        %v1033 = vld [vmem:[#allocation2 + $0xe8] sm:$0xff]
        %v1034 = vld [vmem:[#allocation2 + $0xf0] sm:$0xff]
        %v1035 = vld [vmem:[#allocation2 + $0x108] sm:$0xff]
        %v1036 = vld [vmem:[#allocation2 + $0x110] sm:$0xff]
        %v1037 = vld [vmem:[#allocation2 + $0x128] sm:$0xff]
        %v1038 = vld [vmem:[#allocation2 + $0x130] sm:$0xff]
        %v1039 = vld [vmem:[#allocation2 + $0x148] sm:$0xff]
        %v1040 = vld [vmem:[#allocation2 + $0x150] sm:$0xff]
        %v1041 = vld [vmem:[#allocation2 + $0x168] sm:$0xff]
        %v1042 = vld [vmem:[#allocation2 + $0x170] sm:$0xff]
        %v1043 = vld [vmem:[#allocation2 + $0x188] sm:$0xff]
        %v1044 = vld [vmem:[#allocation2 + $0x190] sm:$0xff]
        %v1045 = vld [vmem:[#allocation2 + $0x1a8] sm:$0xff]
        %v1046 = vld [vmem:[#allocation2 + $0x1b0] sm:$0xff]
        %v1047 = vld [vmem:[#allocation2 + $0x1c8] sm:$0xff]
        %v1048 = vld [vmem:[#allocation2 + $0x1d0] sm:$0xff]
        %v1049 = vld [vmem:[#allocation2 + $0x1e8] sm:$0xff]
        %v1050 = vld [vmem:[#allocation2 + $0x1f0] sm:$0xff]
        %v1051 = vpack.c.bf16 %v1020, %v1019
        %v1052 = vpack.c.bf16 %v1022, %v1021
        %v1053 = vpack.c.bf16 %v1024, %v1023
        %v1054 = vpack.c.bf16 %v1026, %v1025
        %v1055 = vpack.c.bf16 %v1028, %v1027
        %v1056 = vpack.c.bf16 %v1030, %v1029
        %v1057 = vpack.c.bf16 %v1032, %v1031
        %v1058 = vpack.c.bf16 %v1034, %v1033
        %v1059 = vpack.c.bf16 %v1036, %v1035
        %v1060 = vpack.c.bf16 %v1038, %v1037
        %v1061 = vpack.c.bf16 %v1040, %v1039
        %v1062 = vpack.c.bf16 %v1042, %v1041
        %v1063 = vpack.c.bf16 %v1044, %v1043
        %v1064 = vpack.c.bf16 %v1046, %v1045
        %v1065 = vpack.c.bf16 %v1048, %v1047
        %v1066 = vpack.c.bf16 %v1050, %v1049
        %v1067 = vld [vmem:[#allocation3] sm:$0xff]
        %v1068 = vld [vmem:[#allocation3 + $0x8] sm:$0xff]
        %v1069 = vld [vmem:[#allocation3 + $0x10] sm:$0xff]
        %v1070 = vld [vmem:[#allocation3 + $0x18] sm:$0xff]
        %v1071 = vld [vmem:[#allocation3 + $0x20] sm:$0xff]
        %v1072 = vld [vmem:[#allocation3 + $0x28] sm:$0xff]
        %v1073 = vld [vmem:[#allocation3 + $0x30] sm:$0xff]
        %v1074 = vld [vmem:[#allocation3 + $0x38] sm:$0xff]
        %v1075 = vld [vmem:[#allocation3 + $0x40] sm:$0xff]
        %v1076 = vld [vmem:[#allocation3 + $0x48] sm:$0xff]
        %v1077 = vld [vmem:[#allocation3 + $0x50] sm:$0xff]
        %v1078 = vld [vmem:[#allocation3 + $0x58] sm:$0xff]
        %v1079 = vld [vmem:[#allocation3 + $0x60] sm:$0xff]
        %v1080 = vld [vmem:[#allocation3 + $0x68] sm:$0xff]
        %v1081 = vld [vmem:[#allocation3 + $0x70] sm:$0xff]
        %v1082 = vld [vmem:[#allocation3 + $0x78] sm:$0xff]
        %v1083 = vld [vmem:[#allocation3 + $0x80] sm:$0xff]
        %v1084 = vld [vmem:[#allocation3 + $0x88] sm:$0xff]
        %v1085 = vld [vmem:[#allocation3 + $0x90] sm:$0xff]
        %v1086 = vld [vmem:[#allocation3 + $0x98] sm:$0xff]
        %v1087 = vld [vmem:[#allocation3 + $0xa0] sm:$0xff]
        %v1088 = vld [vmem:[#allocation3 + $0xa8] sm:$0xff]
        %v1089 = vld [vmem:[#allocation3 + $0xb0] sm:$0xff]
        %v1090 = vld [vmem:[#allocation3 + $0xb8] sm:$0xff]
        %v1091 = vld [vmem:[#allocation3 + $0xc0] sm:$0xff]
        %v1092 = vld [vmem:[#allocation3 + $0xc8] sm:$0xff]
        %v1093 = vld [vmem:[#allocation3 + $0xd0] sm:$0xff]
        %v1094 = vld [vmem:[#allocation3 + $0xd8] sm:$0xff]
        %v1095 = vld [vmem:[#allocation3 + $0xe0] sm:$0xff]
        %v1096 = vld [vmem:[#allocation3 + $0xe8] sm:$0xff]
        %v1097 = vld [vmem:[#allocation3 + $0xf0] sm:$0xff]
        %v1098 = vld [vmem:[#allocation3 + $0xf8] sm:$0xff]
        %s1099 = scalar_lea.vmem %s1, 4
        %v1100 = vld [vmem:[%s1099] sm:$0xf]
        %v1102 = vsel %vm483, %v1051, 0
        %v1105 = vsel %vm483, %v1052, 0
        %v1108 = vsel %vm483, %v1053, 0
        %v1111 = vsel %vm483, %v1054, 0
        %v1114 = vsel %vm483, %v1055, 0
        %v1117 = vsel %vm483, %v1056, 0
        %v1120 = vsel %vm483, %v1057, 0
        %v1123 = vsel %vm483, %v1058, 0
        %v1126 = vsel %vm483, %v1059, 0
        %v1129 = vsel %vm483, %v1060, 0
        %v1132 = vsel %vm483, %v1061, 0
        %v1135 = vsel %vm483, %v1062, 0
        %v1138 = vsel %vm483, %v1063, 0
        %v1141 = vsel %vm483, %v1064, 0
        %v1144 = vsel %vm483, %v1065, 0
        %v1147 = vsel %vm483, %v1066, 0
        %v1150 = vsel %vm790, %v1100, 0
        %1152 = vmatprep.subr.bf16.mxu0 0
        %1153 = vmatpush1.bf16.msra.mxu0 %v1150
        %1154 = vmatprep.subr.bf16.mxu0 0
        %1155 = vmatpush1.bf16.msra.mxu0 0
        %1156 = vmatprep.subr.bf16.mxu0 0
        %1157 = vmatpush1.bf16.msra.mxu0 0
        %1158 = vmatprep.subr.bf16.mxu0 0
        %1159 = vmatpush1.bf16.msra.mxu0 0
        %1160 = vmatprep.subr.bf16.mxu0 0
        %1161 = vmatpush1.bf16.msra.mxu0 0
        %1162 = vmatprep.subr.bf16.mxu0 0
        %1163 = vmatpush1.bf16.msra.mxu0 0
        %1164 = vmatprep.subr.bf16.mxu0 0
        %1165 = vmatpush1.bf16.msra.mxu0 0
        %1166 = vmatprep.subr.bf16.mxu0 0
        %1167 = vmatpush1.bf16.msra.mxu0 0
        %1168 = vmatprep.subr.bf16.mxu0 0
        %1169 = vmatpush1.bf16.msra.mxu0 0
        %1170 = vmatprep.subr.bf16.mxu0 0
        %1171 = vmatpush1.bf16.msra.mxu0 0
        %1172 = vmatprep.subr.bf16.mxu0 0
        %1173 = vmatpush1.bf16.msra.mxu0 0
        %1174 = vmatprep.subr.bf16.mxu0 0
        %1175 = vmatpush1.bf16.msra.mxu0 0
        %1176 = vmatprep.subr.bf16.mxu0 0
        %1177 = vmatpush1.bf16.msra.mxu0 0
        %1178 = vmatprep.subr.bf16.mxu0 0
        %1179 = vmatpush1.bf16.msra.mxu0 0
        %1180 = vmatprep.subr.bf16.mxu0 0
        %1181 = vmatpush1.bf16.msra.mxu0 0
        %1182 = vmatprep.subr.bf16.mxu0 0
        %1183 = vmatpush1.bf16.msra.mxu0 0
        %1184 = vmatprep.mubr.bf16.mxu0 0
        %1185 = vmatmul.mubr.bf16.gmra.mrb[0].mxu0 %v1102
        %v1186 = vpop.f32.mrb[0].mxu0
        %v1187 = vadd.f32 0.0, %v1186
        %v1188 = vpop.f32.mrb[0].mxu0
        %v1189 = vpop.f32.mrb[0].mxu0
        %v1190 = vadd.f32 0.0, %v1189
        %v1191 = vpop.f32.mrb[0].mxu0
        %1192 = vmatprep.mubr.bf16.mxu0 0
        %1193 = vmatmul.mubr.bf16.gmra.mrb[0].mxu0 %v1105
        %v1194 = vpop.f32.mrb[0].mxu0
        %v1195 = vadd.f32 0.0, %v1194
        %v1196 = vpop.f32.mrb[0].mxu0
        %v1197 = vpop.f32.mrb[0].mxu0
        %v1198 = vadd.f32 0.0, %v1197
        %v1199 = vpop.f32.mrb[0].mxu0
        %1200 = vmatprep.mubr.bf16.mxu0 0
        %1201 = vmatmul.mubr.bf16.gmra.mrb[0].mxu0 %v1108
        %v1202 = vpop.f32.mrb[0].mxu0
        %v1203 = vadd.f32 0.0, %v1202
        %v1204 = vpop.f32.mrb[0].mxu0
        %v1205 = vpop.f32.mrb[0].mxu0
        %v1206 = vadd.f32 0.0, %v1205
        %v1207 = vpop.f32.mrb[0].mxu0
        %1208 = vmatprep.mubr.bf16.mxu0 0
        %1209 = vmatmul.mubr.bf16.gmra.mrb[0].mxu0 %v1111
        %v1210 = vpop.f32.mrb[0].mxu0
        %v1211 = vadd.f32 0.0, %v1210
        %v1212 = vpop.f32.mrb[0].mxu0
        %v1213 = vpop.f32.mrb[0].mxu0
        %v1214 = vadd.f32 0.0, %v1213
        %v1215 = vpop.f32.mrb[0].mxu0
        %1216 = vmatprep.mubr.bf16.mxu0 0
        %1217 = vmatmul.mubr.bf16.gmra.mrb[0].mxu0 %v1114
        %v1218 = vpop.f32.mrb[0].mxu0
        %v1219 = vadd.f32 0.0, %v1218
        %v1220 = vpop.f32.mrb[0].mxu0
        %v1221 = vpop.f32.mrb[0].mxu0
        %v1222 = vadd.f32 0.0, %v1221
        %v1223 = vpop.f32.mrb[0].mxu0
        %1224 = vmatprep.mubr.bf16.mxu0 0
        %1225 = vmatmul.mubr.bf16.gmra.mrb[0].mxu0 %v1117
        %v1226 = vpop.f32.mrb[0].mxu0
        %v1227 = vadd.f32 0.0, %v1226
        %v1228 = vpop.f32.mrb[0].mxu0
        %v1229 = vpop.f32.mrb[0].mxu0
        %v1230 = vadd.f32 0.0, %v1229
        %v1231 = vpop.f32.mrb[0].mxu0
        %1232 = vmatprep.mubr.bf16.mxu0 0
        %1233 = vmatmul.mubr.bf16.gmra.mrb[0].mxu0 %v1120
        %v1234 = vpop.f32.mrb[0].mxu0
        %v1235 = vadd.f32 0.0, %v1234
        %v1236 = vpop.f32.mrb[0].mxu0
        %v1237 = vpop.f32.mrb[0].mxu0
        %v1238 = vadd.f32 0.0, %v1237
        %v1239 = vpop.f32.mrb[0].mxu0
        %1240 = vmatprep.mubr.bf16.mxu0 0
        %1241 = vmatmul.mubr.bf16.gmra.mrb[0].mxu0 %v1123
        %v1242 = vpop.f32.mrb[0].mxu0
        %v1243 = vadd.f32 0.0, %v1242
        %v1244 = vpop.f32.mrb[0].mxu0
        %v1245 = vpop.f32.mrb[0].mxu0
        %v1246 = vadd.f32 0.0, %v1245
        %v1247 = vpop.f32.mrb[0].mxu0
        %1248 = vmatprep.mubr.bf16.mxu0 0
        %1249 = vmatmul.mubr.bf16.gmra.mrb[0].mxu0 %v1126
        %v1250 = vpop.f32.mrb[0].mxu0
        %v1251 = vadd.f32 0.0, %v1250
        %v1252 = vpop.f32.mrb[0].mxu0
        %v1253 = vpop.f32.mrb[0].mxu0
        %v1254 = vadd.f32 0.0, %v1253
        %v1255 = vpop.f32.mrb[0].mxu0
        %1256 = vmatprep.mubr.bf16.mxu0 0
        %1257 = vmatmul.mubr.bf16.gmra.mrb[0].mxu0 %v1129
        %v1258 = vpop.f32.mrb[0].mxu0
        %v1259 = vadd.f32 0.0, %v1258
        %v1260 = vpop.f32.mrb[0].mxu0
        %v1261 = vpop.f32.mrb[0].mxu0
        %v1262 = vadd.f32 0.0, %v1261
        %v1263 = vpop.f32.mrb[0].mxu0
        %1264 = vmatprep.mubr.bf16.mxu0 0
        %1265 = vmatmul.mubr.bf16.gmra.mrb[0].mxu0 %v1132
        %v1266 = vpop.f32.mrb[0].mxu0
        %v1267 = vadd.f32 0.0, %v1266
        %v1268 = vpop.f32.mrb[0].mxu0
        %v1269 = vpop.f32.mrb[0].mxu0
        %v1270 = vadd.f32 0.0, %v1269
        %v1271 = vpop.f32.mrb[0].mxu0
        %1272 = vmatprep.mubr.bf16.mxu0 0
        %1273 = vmatmul.mubr.bf16.gmra.mrb[0].mxu0 %v1135
        %v1274 = vpop.f32.mrb[0].mxu0
        %v1275 = vadd.f32 0.0, %v1274
        %v1276 = vpop.f32.mrb[0].mxu0
        %v1277 = vpop.f32.mrb[0].mxu0
        %v1278 = vadd.f32 0.0, %v1277
        %v1279 = vpop.f32.mrb[0].mxu0
        %1280 = vmatprep.mubr.bf16.mxu0 0
        %1281 = vmatmul.mubr.bf16.gmra.mrb[0].mxu0 %v1138
        %v1282 = vpop.f32.mrb[0].mxu0
        %v1283 = vadd.f32 0.0, %v1282
        %v1284 = vpop.f32.mrb[0].mxu0
        %v1285 = vpop.f32.mrb[0].mxu0
        %v1286 = vadd.f32 0.0, %v1285
        %v1287 = vpop.f32.mrb[0].mxu0
        %1288 = vmatprep.mubr.bf16.mxu0 0
        %1289 = vmatmul.mubr.bf16.gmra.mrb[0].mxu0 %v1141
        %v1290 = vpop.f32.mrb[0].mxu0
        %v1291 = vadd.f32 0.0, %v1290
        %v1292 = vpop.f32.mrb[0].mxu0
        %v1293 = vpop.f32.mrb[0].mxu0
        %v1294 = vadd.f32 0.0, %v1293
        %v1295 = vpop.f32.mrb[0].mxu0
        %1296 = vmatprep.mubr.bf16.mxu0 0
        %1297 = vmatmul.mubr.bf16.gmra.mrb[0].mxu0 %v1144
        %v1298 = vpop.f32.mrb[0].mxu0
        %v1299 = vadd.f32 0.0, %v1298
        %v1300 = vpop.f32.mrb[0].mxu0
        %v1301 = vpop.f32.mrb[0].mxu0
        %v1302 = vadd.f32 0.0, %v1301
        %v1303 = vpop.f32.mrb[0].mxu0
        %1304 = vmatprep.mubr.bf16.mxu0 0
        %1305 = vmatmul.mubr.bf16.gmra.mrb[0].mxu0 %v1147
        %v1306 = vpop.f32.mrb[0].mxu0
        %v1307 = vadd.f32 0.0, %v1306
        %v1308 = vpop.f32.mrb[0].mxu0
        %v1309 = vpop.f32.mrb[0].mxu0
        %v1310 = vadd.f32 0.0, %v1309
        %v1311 = vpop.f32.mrb[0].mxu0
        %1312 = vdwg.mxu0
        %v1313 = vadd.f32 %v1067, %v1187
        %v1314 = vadd.f32 %v1068, %v1190
        %v1315 = vadd.f32 %v1069, %v1195
        %v1316 = vadd.f32 %v1070, %v1198
        %v1317 = vadd.f32 %v1071, %v1203
        %v1318 = vadd.f32 %v1072, %v1206
        %v1319 = vadd.f32 %v1073, %v1211
        %v1320 = vadd.f32 %v1074, %v1214
        %v1321 = vadd.f32 %v1075, %v1219
        %v1322 = vadd.f32 %v1076, %v1222
        %v1323 = vadd.f32 %v1077, %v1227
        %v1324 = vadd.f32 %v1078, %v1230
        %v1325 = vadd.f32 %v1079, %v1235
        %v1326 = vadd.f32 %v1080, %v1238
        %v1327 = vadd.f32 %v1081, %v1243
        %v1328 = vadd.f32 %v1082, %v1246
        %v1329 = vadd.f32 %v1083, %v1251
        %v1330 = vadd.f32 %v1084, %v1254
        %v1331 = vadd.f32 %v1085, %v1259
        %v1332 = vadd.f32 %v1086, %v1262
        %v1333 = vadd.f32 %v1087, %v1267
        %v1334 = vadd.f32 %v1088, %v1270
        %v1335 = vadd.f32 %v1089, %v1275
        %v1336 = vadd.f32 %v1090, %v1278
        %v1337 = vadd.f32 %v1091, %v1283
        %v1338 = vadd.f32 %v1092, %v1286
        %v1339 = vadd.f32 %v1093, %v1291
        %v1340 = vadd.f32 %v1094, %v1294
        %v1341 = vadd.f32 %v1095, %v1299
        %v1342 = vadd.f32 %v1096, %v1302
        %v1343 = vadd.f32 %v1097, %v1307
        %v1344 = vadd.f32 %v1098, %v1310
        %1345 = vst [vmem:[#allocation3] sm:$0xff] %v1313
        %1346 = vst [vmem:[#allocation3 + $0x8] sm:$0xff] %v1314
        %1347 = vst [vmem:[#allocation3 + $0x10] sm:$0xff] %v1315
        %1348 = vst [vmem:[#allocation3 + $0x18] sm:$0xff] %v1316
        %1349 = vst [vmem:[#allocation3 + $0x20] sm:$0xff] %v1317
        %1350 = vst [vmem:[#allocation3 + $0x28] sm:$0xff] %v1318
        %1351 = vst [vmem:[#allocation3 + $0x30] sm:$0xff] %v1319
        %1352 = vst [vmem:[#allocation3 + $0x38] sm:$0xff] %v1320
        %1353 = vst [vmem:[#allocation3 + $0x40] sm:$0xff] %v1321
        %1354 = vst [vmem:[#allocation3 + $0x48] sm:$0xff] %v1322
        %1355 = vst [vmem:[#allocation3 + $0x50] sm:$0xff] %v1323
        %1356 = vst [vmem:[#allocation3 + $0x58] sm:$0xff] %v1324
        %1357 = vst [vmem:[#allocation3 + $0x60] sm:$0xff] %v1325
        %1358 = vst [vmem:[#allocation3 + $0x68] sm:$0xff] %v1326
        %1359 = vst [vmem:[#allocation3 + $0x70] sm:$0xff] %v1327
        %1360 = vst [vmem:[#allocation3 + $0x78] sm:$0xff] %v1328
        %1361 = vst [vmem:[#allocation3 + $0x80] sm:$0xff] %v1329
        %1362 = vst [vmem:[#allocation3 + $0x88] sm:$0xff] %v1330
        %1363 = vst [vmem:[#allocation3 + $0x90] sm:$0xff] %v1331
        %1364 = vst [vmem:[#allocation3 + $0x98] sm:$0xff] %v1332
        %1365 = vst [vmem:[#allocation3 + $0xa0] sm:$0xff] %v1333
        %1366 = vst [vmem:[#allocation3 + $0xa8] sm:$0xff] %v1334
        %1367 = vst [vmem:[#allocation3 + $0xb0] sm:$0xff] %v1335
        %1368 = vst [vmem:[#allocation3 + $0xb8] sm:$0xff] %v1336
        %1369 = vst [vmem:[#allocation3 + $0xc0] sm:$0xff] %v1337
        %1370 = vst [vmem:[#allocation3 + $0xc8] sm:$0xff] %v1338
        %1371 = vst [vmem:[#allocation3 + $0xd0] sm:$0xff] %v1339
        %1372 = vst [vmem:[#allocation3 + $0xd8] sm:$0xff] %v1340
        %1373 = vst [vmem:[#allocation3 + $0xe0] sm:$0xff] %v1341
        %1374 = vst [vmem:[#allocation3 + $0xe8] sm:$0xff] %v1342
        %1375 = vst [vmem:[#allocation3 + $0xf0] sm:$0xff] %v1343
        %1376 = vst [vmem:[#allocation3 + $0xf8] sm:$0xff] %v1344
        %v1377 = vld [vmem:[#allocation2 + $0x9] sm:$0xff]
        %v1378 = vld [vmem:[#allocation2 + $0x11] sm:$0xff]
        %v1379 = vld [vmem:[#allocation2 + $0x29] sm:$0xff]
        %v1380 = vld [vmem:[#allocation2 + $0x31] sm:$0xff]
        %v1381 = vld [vmem:[#allocation2 + $0x49] sm:$0xff]
        %v1382 = vld [vmem:[#allocation2 + $0x51] sm:$0xff]
        %v1383 = vld [vmem:[#allocation2 + $0x69] sm:$0xff]
        %v1384 = vld [vmem:[#allocation2 + $0x71] sm:$0xff]
        %v1385 = vld [vmem:[#allocation2 + $0x89] sm:$0xff]
        %v1386 = vld [vmem:[#allocation2 + $0x91] sm:$0xff]
        %v1387 = vld [vmem:[#allocation2 + $0xa9] sm:$0xff]
        %v1388 = vld [vmem:[#allocation2 + $0xb1] sm:$0xff]
        %v1389 = vld [vmem:[#allocation2 + $0xc9] sm:$0xff]
        %v1390 = vld [vmem:[#allocation2 + $0xd1] sm:$0xff]
        %v1391 = vld [vmem:[#allocation2 + $0xe9] sm:$0xff]
        %v1392 = vld [vmem:[#allocation2 + $0xf1] sm:$0xff]
        %v1393 = vld [vmem:[#allocation2 + $0x109] sm:$0xff]
        %v1394 = vld [vmem:[#allocation2 + $0x111] sm:$0xff]
        %v1395 = vld [vmem:[#allocation2 + $0x129] sm:$0xff]
        %v1396 = vld [vmem:[#allocation2 + $0x131] sm:$0xff]
        %v1397 = vld [vmem:[#allocation2 + $0x149] sm:$0xff]
        %v1398 = vld [vmem:[#allocation2 + $0x151] sm:$0xff]
        %v1399 = vld [vmem:[#allocation2 + $0x169] sm:$0xff]
        %v1400 = vld [vmem:[#allocation2 + $0x171] sm:$0xff]
        %v1401 = vld [vmem:[#allocation2 + $0x189] sm:$0xff]
        %v1402 = vld [vmem:[#allocation2 + $0x191] sm:$0xff]
        %v1403 = vld [vmem:[#allocation2 + $0x1a9] sm:$0xff]
        %v1404 = vld [vmem:[#allocation2 + $0x1b1] sm:$0xff]
        %v1405 = vld [vmem:[#allocation2 + $0x1c9] sm:$0xff]
        %v1406 = vld [vmem:[#allocation2 + $0x1d1] sm:$0xff]
        %v1407 = vld [vmem:[#allocation2 + $0x1e9] sm:$0xff]
        %v1408 = vld [vmem:[#allocation2 + $0x1f1] sm:$0xff]
        %v1409 = vpack.c.bf16 %v1378, %v1377
        %v1410 = vpack.c.bf16 %v1380, %v1379
        %v1411 = vpack.c.bf16 %v1382, %v1381
        %v1412 = vpack.c.bf16 %v1384, %v1383
        %v1413 = vpack.c.bf16 %v1386, %v1385
        %v1414 = vpack.c.bf16 %v1388, %v1387
        %v1415 = vpack.c.bf16 %v1390, %v1389
        %v1416 = vpack.c.bf16 %v1392, %v1391
        %v1417 = vpack.c.bf16 %v1394, %v1393
        %v1418 = vpack.c.bf16 %v1396, %v1395
        %v1419 = vpack.c.bf16 %v1398, %v1397
        %v1420 = vpack.c.bf16 %v1400, %v1399
        %v1421 = vpack.c.bf16 %v1402, %v1401
        %v1422 = vpack.c.bf16 %v1404, %v1403
        %v1423 = vpack.c.bf16 %v1406, %v1405
        %v1424 = vpack.c.bf16 %v1408, %v1407
        %v1425 = vld [vmem:[#allocation3] sm:$0xff]
        %v1426 = vld [vmem:[#allocation3 + $0x8] sm:$0xff]
        %v1427 = vld [vmem:[#allocation3 + $0x10] sm:$0xff]
        %v1428 = vld [vmem:[#allocation3 + $0x18] sm:$0xff]
        %v1429 = vld [vmem:[#allocation3 + $0x20] sm:$0xff]
        %v1430 = vld [vmem:[#allocation3 + $0x28] sm:$0xff]
        %v1431 = vld [vmem:[#allocation3 + $0x30] sm:$0xff]
        %v1432 = vld [vmem:[#allocation3 + $0x38] sm:$0xff]
        %v1433 = vld [vmem:[#allocation3 + $0x40] sm:$0xff]
        %v1434 = vld [vmem:[#allocation3 + $0x48] sm:$0xff]
        %v1435 = vld [vmem:[#allocation3 + $0x50] sm:$0xff]
        %v1436 = vld [vmem:[#allocation3 + $0x58] sm:$0xff]
        %v1437 = vld [vmem:[#allocation3 + $0x60] sm:$0xff]
        %v1438 = vld [vmem:[#allocation3 + $0x68] sm:$0xff]
        %v1439 = vld [vmem:[#allocation3 + $0x70] sm:$0xff]
        %v1440 = vld [vmem:[#allocation3 + $0x78] sm:$0xff]
        %v1441 = vld [vmem:[#allocation3 + $0x80] sm:$0xff]
        %v1442 = vld [vmem:[#allocation3 + $0x88] sm:$0xff]
        %v1443 = vld [vmem:[#allocation3 + $0x90] sm:$0xff]
        %v1444 = vld [vmem:[#allocation3 + $0x98] sm:$0xff]
        %v1445 = vld [vmem:[#allocation3 + $0xa0] sm:$0xff]
        %v1446 = vld [vmem:[#allocation3 + $0xa8] sm:$0xff]
        %v1447 = vld [vmem:[#allocation3 + $0xb0] sm:$0xff]
        %v1448 = vld [vmem:[#allocation3 + $0xb8] sm:$0xff]
        %v1449 = vld [vmem:[#allocation3 + $0xc0] sm:$0xff]
        %v1450 = vld [vmem:[#allocation3 + $0xc8] sm:$0xff]
        %v1451 = vld [vmem:[#allocation3 + $0xd0] sm:$0xff]
        %v1452 = vld [vmem:[#allocation3 + $0xd8] sm:$0xff]
        %v1453 = vld [vmem:[#allocation3 + $0xe0] sm:$0xff]
        %v1454 = vld [vmem:[#allocation3 + $0xe8] sm:$0xff]
        %v1455 = vld [vmem:[#allocation3 + $0xf0] sm:$0xff]
        %v1456 = vld [vmem:[#allocation3 + $0xf8] sm:$0xff]
        %s1457 = scalar_lea.vmem %s1, 8
        %v1458 = vld [vmem:[%s1457] sm:$0xf]
        %v1460 = vsel %vm483, %v1409, 0
        %v1463 = vsel %vm483, %v1410, 0
        %v1466 = vsel %vm483, %v1411, 0
        %v1469 = vsel %vm483, %v1412, 0
        %v1472 = vsel %vm483, %v1413, 0
        %v1475 = vsel %vm483, %v1414, 0
        %v1478 = vsel %vm483, %v1415, 0
        %v1481 = vsel %vm483, %v1416, 0
        %v1484 = vsel %vm483, %v1417, 0
        %v1487 = vsel %vm483, %v1418, 0
        %v1490 = vsel %vm483, %v1419, 0
        %v1493 = vsel %vm483, %v1420, 0
        %v1496 = vsel %vm483, %v1421, 0
        %v1499 = vsel %vm483, %v1422, 0
        %v1502 = vsel %vm483, %v1423, 0
        %v1505 = vsel %vm483, %v1424, 0
        %v1508 = vsel %vm790, %v1458, 0
        %1510 = vmatprep.subr.bf16.mxu0 0
        %1511 = vmatpush1.bf16.msra.mxu0 %v1508
        %1512 = vmatprep.subr.bf16.mxu0 0
        %1513 = vmatpush1.bf16.msra.mxu0 0
        %1514 = vmatprep.subr.bf16.mxu0 0
        %1515 = vmatpush1.bf16.msra.mxu0 0
        %1516 = vmatprep.subr.bf16.mxu0 0
        %1517 = vmatpush1.bf16.msra.mxu0 0
        %1518 = vmatprep.subr.bf16.mxu0 0
        %1519 = vmatpush1.bf16.msra.mxu0 0
        %1520 = vmatprep.subr.bf16.mxu0 0
        %1521 = vmatpush1.bf16.msra.mxu0 0
        %1522 = vmatprep.subr.bf16.mxu0 0
        %1523 = vmatpush1.bf16.msra.mxu0 0
        %1524 = vmatprep.subr.bf16.mxu0 0
        %1525 = vmatpush1.bf16.msra.mxu0 0
        %1526 = vmatprep.subr.bf16.mxu0 0
        %1527 = vmatpush1.bf16.msra.mxu0 0
        %1528 = vmatprep.subr.bf16.mxu0 0
        %1529 = vmatpush1.bf16.msra.mxu0 0
        %1530 = vmatprep.subr.bf16.mxu0 0
        %1531 = vmatpush1.bf16.msra.mxu0 0
        %1532 = vmatprep.subr.bf16.mxu0 0
        %1533 = vmatpush1.bf16.msra.mxu0 0
        %1534 = vmatprep.subr.bf16.mxu0 0
        %1535 = vmatpush1.bf16.msra.mxu0 0
        %1536 = vmatprep.subr.bf16.mxu0 0
        %1537 = vmatpush1.bf16.msra.mxu0 0
        %1538 = vmatprep.subr.bf16.mxu0 0
        %1539 = vmatpush1.bf16.msra.mxu0 0
        %1540 = vmatprep.subr.bf16.mxu0 0
        %1541 = vmatpush1.bf16.msra.mxu0 0
        %1542 = vmatprep.mubr.bf16.mxu0 0
        %1543 = vmatmul.mubr.bf16.gmra.mrb[0].mxu0 %v1460
        %v1544 = vpop.f32.mrb[0].mxu0
        %v1545 = vadd.f32 0.0, %v1544
        %v1546 = vpop.f32.mrb[0].mxu0
        %v1547 = vpop.f32.mrb[0].mxu0
        %v1548 = vadd.f32 0.0, %v1547
        %v1549 = vpop.f32.mrb[0].mxu0
        %1550 = vmatprep.mubr.bf16.mxu0 0
        %1551 = vmatmul.mubr.bf16.gmra.mrb[0].mxu0 %v1463
        %v1552 = vpop.f32.mrb[0].mxu0
        %v1553 = vadd.f32 0.0, %v1552
        %v1554 = vpop.f32.mrb[0].mxu0
        %v1555 = vpop.f32.mrb[0].mxu0
        %v1556 = vadd.f32 0.0, %v1555
        %v1557 = vpop.f32.mrb[0].mxu0
        %1558 = vmatprep.mubr.bf16.mxu0 0
        %1559 = vmatmul.mubr.bf16.gmra.mrb[0].mxu0 %v1466
        %v1560 = vpop.f32.mrb[0].mxu0
        %v1561 = vadd.f32 0.0, %v1560
        %v1562 = vpop.f32.mrb[0].mxu0
        %v1563 = vpop.f32.mrb[0].mxu0
        %v1564 = vadd.f32 0.0, %v1563
        %v1565 = vpop.f32.mrb[0].mxu0
        %1566 = vmatprep.mubr.bf16.mxu0 0
        %1567 = vmatmul.mubr.bf16.gmra.mrb[0].mxu0 %v1469
        %v1568 = vpop.f32.mrb[0].mxu0
        %v1569 = vadd.f32 0.0, %v1568
        %v1570 = vpop.f32.mrb[0].mxu0
        %v1571 = vpop.f32.mrb[0].mxu0
        %v1572 = vadd.f32 0.0, %v1571
        %v1573 = vpop.f32.mrb[0].mxu0
        %1574 = vmatprep.mubr.bf16.mxu0 0
        %1575 = vmatmul.mubr.bf16.gmra.mrb[0].mxu0 %v1472
        %v1576 = vpop.f32.mrb[0].mxu0
        %v1577 = vadd.f32 0.0, %v1576
        %v1578 = vpop.f32.mrb[0].mxu0
        %v1579 = vpop.f32.mrb[0].mxu0
        %v1580 = vadd.f32 0.0, %v1579
        %v1581 = vpop.f32.mrb[0].mxu0
        %1582 = vmatprep.mubr.bf16.mxu0 0
        %1583 = vmatmul.mubr.bf16.gmra.mrb[0].mxu0 %v1475
        %v1584 = vpop.f32.mrb[0].mxu0
        %v1585 = vadd.f32 0.0, %v1584
        %v1586 = vpop.f32.mrb[0].mxu0
        %v1587 = vpop.f32.mrb[0].mxu0
        %v1588 = vadd.f32 0.0, %v1587
        %v1589 = vpop.f32.mrb[0].mxu0
        %1590 = vmatprep.mubr.bf16.mxu0 0
        %1591 = vmatmul.mubr.bf16.gmra.mrb[0].mxu0 %v1478
        %v1592 = vpop.f32.mrb[0].mxu0
        %v1593 = vadd.f32 0.0, %v1592
        %v1594 = vpop.f32.mrb[0].mxu0
        %v1595 = vpop.f32.mrb[0].mxu0
        %v1596 = vadd.f32 0.0, %v1595
        %v1597 = vpop.f32.mrb[0].mxu0
        %1598 = vmatprep.mubr.bf16.mxu0 0
        %1599 = vmatmul.mubr.bf16.gmra.mrb[0].mxu0 %v1481
        %v1600 = vpop.f32.mrb[0].mxu0
        %v1601 = vadd.f32 0.0, %v1600
        %v1602 = vpop.f32.mrb[0].mxu0
        %v1603 = vpop.f32.mrb[0].mxu0
        %v1604 = vadd.f32 0.0, %v1603
        %v1605 = vpop.f32.mrb[0].mxu0
        %1606 = vmatprep.mubr.bf16.mxu0 0
        %1607 = vmatmul.mubr.bf16.gmra.mrb[0].mxu0 %v1484
        %v1608 = vpop.f32.mrb[0].mxu0
        %v1609 = vadd.f32 0.0, %v1608
        %v1610 = vpop.f32.mrb[0].mxu0
        %v1611 = vpop.f32.mrb[0].mxu0
        %v1612 = vadd.f32 0.0, %v1611
        %v1613 = vpop.f32.mrb[0].mxu0
        %1614 = vmatprep.mubr.bf16.mxu0 0
        %1615 = vmatmul.mubr.bf16.gmra.mrb[0].mxu0 %v1487
        %v1616 = vpop.f32.mrb[0].mxu0
        %v1617 = vadd.f32 0.0, %v1616
        %v1618 = vpop.f32.mrb[0].mxu0
        %v1619 = vpop.f32.mrb[0].mxu0
        %v1620 = vadd.f32 0.0, %v1619
        %v1621 = vpop.f32.mrb[0].mxu0
        %1622 = vmatprep.mubr.bf16.mxu0 0
        %1623 = vmatmul.mubr.bf16.gmra.mrb[0].mxu0 %v1490
        %v1624 = vpop.f32.mrb[0].mxu0
        %v1625 = vadd.f32 0.0, %v1624
        %v1626 = vpop.f32.mrb[0].mxu0
        %v1627 = vpop.f32.mrb[0].mxu0
        %v1628 = vadd.f32 0.0, %v1627
        %v1629 = vpop.f32.mrb[0].mxu0
        %1630 = vmatprep.mubr.bf16.mxu0 0
        %1631 = vmatmul.mubr.bf16.gmra.mrb[0].mxu0 %v1493
        %v1632 = vpop.f32.mrb[0].mxu0
        %v1633 = vadd.f32 0.0, %v1632
        %v1634 = vpop.f32.mrb[0].mxu0
        %v1635 = vpop.f32.mrb[0].mxu0
        %v1636 = vadd.f32 0.0, %v1635
        %v1637 = vpop.f32.mrb[0].mxu0
        %1638 = vmatprep.mubr.bf16.mxu0 0
        %1639 = vmatmul.mubr.bf16.gmra.mrb[0].mxu0 %v1496
        %v1640 = vpop.f32.mrb[0].mxu0
        %v1641 = vadd.f32 0.0, %v1640
        %v1642 = vpop.f32.mrb[0].mxu0
        %v1643 = vpop.f32.mrb[0].mxu0
        %v1644 = vadd.f32 0.0, %v1643
        %v1645 = vpop.f32.mrb[0].mxu0
        %1646 = vmatprep.mubr.bf16.mxu0 0
        %1647 = vmatmul.mubr.bf16.gmra.mrb[0].mxu0 %v1499
        %v1648 = vpop.f32.mrb[0].mxu0
        %v1649 = vadd.f32 0.0, %v1648
        %v1650 = vpop.f32.mrb[0].mxu0
        %v1651 = vpop.f32.mrb[0].mxu0
        %v1652 = vadd.f32 0.0, %v1651
        %v1653 = vpop.f32.mrb[0].mxu0
        %1654 = vmatprep.mubr.bf16.mxu0 0
        %1655 = vmatmul.mubr.bf16.gmra.mrb[0].mxu0 %v1502
        %v1656 = vpop.f32.mrb[0].mxu0
        %v1657 = vadd.f32 0.0, %v1656
        %v1658 = vpop.f32.mrb[0].mxu0
        %v1659 = vpop.f32.mrb[0].mxu0
        %v1660 = vadd.f32 0.0, %v1659
        %v1661 = vpop.f32.mrb[0].mxu0
        %1662 = vmatprep.mubr.bf16.mxu0 0
        %1663 = vmatmul.mubr.bf16.gmra.mrb[0].mxu0 %v1505
        %v1664 = vpop.f32.mrb[0].mxu0
        %v1665 = vadd.f32 0.0, %v1664
        %v1666 = vpop.f32.mrb[0].mxu0
        %v1667 = vpop.f32.mrb[0].mxu0
        %v1668 = vadd.f32 0.0, %v1667
        %v1669 = vpop.f32.mrb[0].mxu0
        %1670 = vdwg.mxu0
        %v1671 = vadd.f32 %v1425, %v1545
        %v1672 = vadd.f32 %v1426, %v1548
        %v1673 = vadd.f32 %v1427, %v1553
        %v1674 = vadd.f32 %v1428, %v1556
        %v1675 = vadd.f32 %v1429, %v1561
        %v1676 = vadd.f32 %v1430, %v1564
        %v1677 = vadd.f32 %v1431, %v1569
        %v1678 = vadd.f32 %v1432, %v1572
        %v1679 = vadd.f32 %v1433, %v1577
        %v1680 = vadd.f32 %v1434, %v1580
        %v1681 = vadd.f32 %v1435, %v1585
        %v1682 = vadd.f32 %v1436, %v1588
        %v1683 = vadd.f32 %v1437, %v1593
        %v1684 = vadd.f32 %v1438, %v1596
        %v1685 = vadd.f32 %v1439, %v1601
        %v1686 = vadd.f32 %v1440, %v1604
        %v1687 = vadd.f32 %v1441, %v1609
        %v1688 = vadd.f32 %v1442, %v1612
        %v1689 = vadd.f32 %v1443, %v1617
        %v1690 = vadd.f32 %v1444, %v1620
        %v1691 = vadd.f32 %v1445, %v1625
        %v1692 = vadd.f32 %v1446, %v1628
        %v1693 = vadd.f32 %v1447, %v1633
        %v1694 = vadd.f32 %v1448, %v1636
        %v1695 = vadd.f32 %v1449, %v1641
        %v1696 = vadd.f32 %v1450, %v1644
        %v1697 = vadd.f32 %v1451, %v1649
        %v1698 = vadd.f32 %v1452, %v1652
        %v1699 = vadd.f32 %v1453, %v1657
        %v1700 = vadd.f32 %v1454, %v1660
        %v1701 = vadd.f32 %v1455, %v1665
        %v1702 = vadd.f32 %v1456, %v1668
        %1703 = vst [vmem:[#allocation3] sm:$0xff] %v1671
        %1704 = vst [vmem:[#allocation3 + $0x8] sm:$0xff] %v1672
        %1705 = vst [vmem:[#allocation3 + $0x10] sm:$0xff] %v1673
        %1706 = vst [vmem:[#allocation3 + $0x18] sm:$0xff] %v1674
        %1707 = vst [vmem:[#allocation3 + $0x20] sm:$0xff] %v1675
        %1708 = vst [vmem:[#allocation3 + $0x28] sm:$0xff] %v1676
        %1709 = vst [vmem:[#allocation3 + $0x30] sm:$0xff] %v1677
        %1710 = vst [vmem:[#allocation3 + $0x38] sm:$0xff] %v1678
        %1711 = vst [vmem:[#allocation3 + $0x40] sm:$0xff] %v1679
        %1712 = vst [vmem:[#allocation3 + $0x48] sm:$0xff] %v1680
        %1713 = vst [vmem:[#allocation3 + $0x50] sm:$0xff] %v1681
        %1714 = vst [vmem:[#allocation3 + $0x58] sm:$0xff] %v1682
        %1715 = vst [vmem:[#allocation3 + $0x60] sm:$0xff] %v1683
        %1716 = vst [vmem:[#allocation3 + $0x68] sm:$0xff] %v1684
        %1717 = vst [vmem:[#allocation3 + $0x70] sm:$0xff] %v1685
        %1718 = vst [vmem:[#allocation3 + $0x78] sm:$0xff] %v1686
        %1719 = vst [vmem:[#allocation3 + $0x80] sm:$0xff] %v1687
        %1720 = vst [vmem:[#allocation3 + $0x88] sm:$0xff] %v1688
        %1721 = vst [vmem:[#allocation3 + $0x90] sm:$0xff] %v1689
        %1722 = vst [vmem:[#allocation3 + $0x98] sm:$0xff] %v1690
        %1723 = vst [vmem:[#allocation3 + $0xa0] sm:$0xff] %v1691
        %1724 = vst [vmem:[#allocation3 + $0xa8] sm:$0xff] %v1692
        %1725 = vst [vmem:[#allocation3 + $0xb0] sm:$0xff] %v1693
        %1726 = vst [vmem:[#allocation3 + $0xb8] sm:$0xff] %v1694
        %1727 = vst [vmem:[#allocation3 + $0xc0] sm:$0xff] %v1695
        %1728 = vst [vmem:[#allocation3 + $0xc8] sm:$0xff] %v1696
        %1729 = vst [vmem:[#allocation3 + $0xd0] sm:$0xff] %v1697
        %1730 = vst [vmem:[#allocation3 + $0xd8] sm:$0xff] %v1698
        %1731 = vst [vmem:[#allocation3 + $0xe0] sm:$0xff] %v1699
        %1732 = vst [vmem:[#allocation3 + $0xe8] sm:$0xff] %v1700
        %1733 = vst [vmem:[#allocation3 + $0xf0] sm:$0xff] %v1701
        %1734 = vst [vmem:[#allocation3 + $0xf8] sm:$0xff] %v1702
        %v1735 = vld [vmem:[%s589 + $0x7] sm:$0xff]
        %v1736 = vld [vmem:[%s589 + $0xf] sm:$0xff]
        %v1737 = vld [vmem:[%s589 + $0x27] sm:$0xff]
        %v1738 = vld [vmem:[%s589 + $0x2f] sm:$0xff]
        %v1739 = vld [vmem:[%s589 + $0x47] sm:$0xff]
        %v1740 = vld [vmem:[%s589 + $0x4f] sm:$0xff]
        %v1741 = vld [vmem:[%s589 + $0x67] sm:$0xff]
        %v1742 = vld [vmem:[%s589 + $0x6f] sm:$0xff]
        %v1743 = vld [vmem:[%s589 + $0x87] sm:$0xff]
        %v1744 = vld [vmem:[%s589 + $0x8f] sm:$0xff]
        %v1745 = vld [vmem:[%s589 + $0xa7] sm:$0xff]
        %v1746 = vld [vmem:[%s589 + $0xaf] sm:$0xff]
        %v1747 = vld [vmem:[%s589 + $0xc7] sm:$0xff]
        %v1748 = vld [vmem:[%s589 + $0xcf] sm:$0xff]
        %v1749 = vld [vmem:[%s589 + $0xe7] sm:$0xff]
        %v1750 = vld [vmem:[%s589 + $0xef] sm:$0xff]
        %v1751 = vld [vmem:[%s589 + $0x107] sm:$0xff]
        %v1752 = vld [vmem:[%s589 + $0x10f] sm:$0xff]
        %v1753 = vld [vmem:[%s589 + $0x127] sm:$0xff]
        %v1754 = vld [vmem:[%s589 + $0x12f] sm:$0xff]
        %v1755 = vld [vmem:[%s589 + $0x147] sm:$0xff]
        %v1756 = vld [vmem:[%s589 + $0x14f] sm:$0xff]
        %v1757 = vld [vmem:[%s589 + $0x167] sm:$0xff]
        %v1758 = vld [vmem:[%s589 + $0x16f] sm:$0xff]
        %v1759 = vld [vmem:[%s589 + $0x187] sm:$0xff]
        %v1760 = vld [vmem:[%s589 + $0x18f] sm:$0xff]
        %v1761 = vld [vmem:[%s589 + $0x1a7] sm:$0xff]
        %v1762 = vld [vmem:[%s589 + $0x1af] sm:$0xff]
        %v1763 = vld [vmem:[%s589 + $0x1c7] sm:$0xff]
        %v1764 = vld [vmem:[%s589 + $0x1cf] sm:$0xff]
        %v1765 = vld [vmem:[%s589 + $0x1e7] sm:$0xff]
        %v1766 = vld [vmem:[%s589 + $0x1ef] sm:$0xff]
        %v1767 = vpack.c.bf16 %v1736, %v1735
        %v1768 = vpack.c.bf16 %v1738, %v1737
        %v1769 = vpack.c.bf16 %v1740, %v1739
        %v1770 = vpack.c.bf16 %v1742, %v1741
        %v1771 = vpack.c.bf16 %v1744, %v1743
        %v1772 = vpack.c.bf16 %v1746, %v1745
        %v1773 = vpack.c.bf16 %v1748, %v1747
        %v1774 = vpack.c.bf16 %v1750, %v1749
        %v1775 = vpack.c.bf16 %v1752, %v1751
        %v1776 = vpack.c.bf16 %v1754, %v1753
        %v1777 = vpack.c.bf16 %v1756, %v1755
        %v1778 = vpack.c.bf16 %v1758, %v1757
        %v1779 = vpack.c.bf16 %v1760, %v1759
        %v1780 = vpack.c.bf16 %v1762, %v1761
        %v1781 = vpack.c.bf16 %v1764, %v1763
        %v1782 = vpack.c.bf16 %v1766, %v1765
        %v1783 = vld [vmem:[#allocation3] sm:$0xff]
        %v1784 = vld [vmem:[#allocation3 + $0x8] sm:$0xff]
        %v1785 = vld [vmem:[#allocation3 + $0x10] sm:$0xff]
        %v1786 = vld [vmem:[#allocation3 + $0x18] sm:$0xff]
        %v1787 = vld [vmem:[#allocation3 + $0x20] sm:$0xff]
        %v1788 = vld [vmem:[#allocation3 + $0x28] sm:$0xff]
        %v1789 = vld [vmem:[#allocation3 + $0x30] sm:$0xff]
        %v1790 = vld [vmem:[#allocation3 + $0x38] sm:$0xff]
        %v1791 = vld [vmem:[#allocation3 + $0x40] sm:$0xff]
        %v1792 = vld [vmem:[#allocation3 + $0x48] sm:$0xff]
        %v1793 = vld [vmem:[#allocation3 + $0x50] sm:$0xff]
        %v1794 = vld [vmem:[#allocation3 + $0x58] sm:$0xff]
        %v1795 = vld [vmem:[#allocation3 + $0x60] sm:$0xff]
        %v1796 = vld [vmem:[#allocation3 + $0x68] sm:$0xff]
        %v1797 = vld [vmem:[#allocation3 + $0x70] sm:$0xff]
        %v1798 = vld [vmem:[#allocation3 + $0x78] sm:$0xff]
        %v1799 = vld [vmem:[#allocation3 + $0x80] sm:$0xff]
        %v1800 = vld [vmem:[#allocation3 + $0x88] sm:$0xff]
        %v1801 = vld [vmem:[#allocation3 + $0x90] sm:$0xff]
        %v1802 = vld [vmem:[#allocation3 + $0x98] sm:$0xff]
        %v1803 = vld [vmem:[#allocation3 + $0xa0] sm:$0xff]
        %v1804 = vld [vmem:[#allocation3 + $0xa8] sm:$0xff]
        %v1805 = vld [vmem:[#allocation3 + $0xb0] sm:$0xff]
        %v1806 = vld [vmem:[#allocation3 + $0xb8] sm:$0xff]
        %v1807 = vld [vmem:[#allocation3 + $0xc0] sm:$0xff]
        %v1808 = vld [vmem:[#allocation3 + $0xc8] sm:$0xff]
        %v1809 = vld [vmem:[#allocation3 + $0xd0] sm:$0xff]
        %v1810 = vld [vmem:[#allocation3 + $0xd8] sm:$0xff]
        %v1811 = vld [vmem:[#allocation3 + $0xe0] sm:$0xff]
        %v1812 = vld [vmem:[#allocation3 + $0xe8] sm:$0xff]
        %v1813 = vld [vmem:[#allocation3 + $0xf0] sm:$0xff]
        %v1814 = vld [vmem:[#allocation3 + $0xf8] sm:$0xff]
        %s1815 = scalar_lea.vmem %s1, 12
        %v1816 = vld [vmem:[%s1815] sm:$0xf]
        %v1818 = vsel %vm483, %v1767, 0
        %v1821 = vsel %vm483, %v1768, 0
        %v1824 = vsel %vm483, %v1769, 0
        %v1827 = vsel %vm483, %v1770, 0
        %v1830 = vsel %vm483, %v1771, 0
        %v1833 = vsel %vm483, %v1772, 0
        %v1836 = vsel %vm483, %v1773, 0
        %v1839 = vsel %vm483, %v1774, 0
        %v1842 = vsel %vm483, %v1775, 0
        %v1845 = vsel %vm483, %v1776, 0
        %v1848 = vsel %vm483, %v1777, 0
        %v1851 = vsel %vm483, %v1778, 0
        %v1854 = vsel %vm483, %v1779, 0
        %v1857 = vsel %vm483, %v1780, 0
        %v1860 = vsel %vm483, %v1781, 0
        %v1863 = vsel %vm483, %v1782, 0
        %v1866 = vsel %vm790, %v1816, 0
        %1868 = vmatprep.subr.bf16.mxu0 0
        %1869 = vmatpush1.bf16.msra.mxu0 %v1866
        %1870 = vmatprep.subr.bf16.mxu0 0
        %1871 = vmatpush1.bf16.msra.mxu0 0
        %1872 = vmatprep.subr.bf16.mxu0 0
        %1873 = vmatpush1.bf16.msra.mxu0 0
        %1874 = vmatprep.subr.bf16.mxu0 0
        %1875 = vmatpush1.bf16.msra.mxu0 0
        %1876 = vmatprep.subr.bf16.mxu0 0
        %1877 = vmatpush1.bf16.msra.mxu0 0
        %1878 = vmatprep.subr.bf16.mxu0 0
        %1879 = vmatpush1.bf16.msra.mxu0 0
        %1880 = vmatprep.subr.bf16.mxu0 0
        %1881 = vmatpush1.bf16.msra.mxu0 0
        %1882 = vmatprep.subr.bf16.mxu0 0
        %1883 = vmatpush1.bf16.msra.mxu0 0
        %1884 = vmatprep.subr.bf16.mxu0 0
        %1885 = vmatpush1.bf16.msra.mxu0 0
        %1886 = vmatprep.subr.bf16.mxu0 0
        %1887 = vmatpush1.bf16.msra.mxu0 0
        %1888 = vmatprep.subr.bf16.mxu0 0
        %1889 = vmatpush1.bf16.msra.mxu0 0
        %1890 = vmatprep.subr.bf16.mxu0 0
        %1891 = vmatpush1.bf16.msra.mxu0 0
        %1892 = vmatprep.subr.bf16.mxu0 0
        %1893 = vmatpush1.bf16.msra.mxu0 0
        %1894 = vmatprep.subr.bf16.mxu0 0
        %1895 = vmatpush1.bf16.msra.mxu0 0
        %1896 = vmatprep.subr.bf16.mxu0 0
        %1897 = vmatpush1.bf16.msra.mxu0 0
        %1898 = vmatprep.subr.bf16.mxu0 0
        %1899 = vmatpush1.bf16.msra.mxu0 0
        %1900 = vmatprep.mubr.bf16.mxu0 0
        %1901 = vmatmul.mubr.bf16.gmra.mrb[0].mxu0 %v1818
        %v1902 = vpop.f32.mrb[0].mxu0
        %v1903 = vadd.f32 0.0, %v1902
        %v1904 = vpop.f32.mrb[0].mxu0
        %v1905 = vpop.f32.mrb[0].mxu0
        %v1906 = vadd.f32 0.0, %v1905
        %v1907 = vpop.f32.mrb[0].mxu0
        %1908 = vmatprep.mubr.bf16.mxu0 0
        %1909 = vmatmul.mubr.bf16.gmra.mrb[0].mxu0 %v1821
        %v1910 = vpop.f32.mrb[0].mxu0
        %v1911 = vadd.f32 0.0, %v1910
        %v1912 = vpop.f32.mrb[0].mxu0
        %v1913 = vpop.f32.mrb[0].mxu0
        %v1914 = vadd.f32 0.0, %v1913
        %v1915 = vpop.f32.mrb[0].mxu0
        %1916 = vmatprep.mubr.bf16.mxu0 0
        %1917 = vmatmul.mubr.bf16.gmra.mrb[0].mxu0 %v1824
        %v1918 = vpop.f32.mrb[0].mxu0
        %v1919 = vadd.f32 0.0, %v1918
        %v1920 = vpop.f32.mrb[0].mxu0
        %v1921 = vpop.f32.mrb[0].mxu0
        %v1922 = vadd.f32 0.0, %v1921
        %v1923 = vpop.f32.mrb[0].mxu0
        %1924 = vmatprep.mubr.bf16.mxu0 0
        %1925 = vmatmul.mubr.bf16.gmra.mrb[0].mxu0 %v1827
        %v1926 = vpop.f32.mrb[0].mxu0
        %v1927 = vadd.f32 0.0, %v1926
        %v1928 = vpop.f32.mrb[0].mxu0
        %v1929 = vpop.f32.mrb[0].mxu0
        %v1930 = vadd.f32 0.0, %v1929
        %v1931 = vpop.f32.mrb[0].mxu0
        %1932 = vmatprep.mubr.bf16.mxu0 0
        %1933 = vmatmul.mubr.bf16.gmra.mrb[0].mxu0 %v1830
        %v1934 = vpop.f32.mrb[0].mxu0
        %v1935 = vadd.f32 0.0, %v1934
        %v1936 = vpop.f32.mrb[0].mxu0
        %v1937 = vpop.f32.mrb[0].mxu0
        %v1938 = vadd.f32 0.0, %v1937
        %v1939 = vpop.f32.mrb[0].mxu0
        %1940 = vmatprep.mubr.bf16.mxu0 0
        %1941 = vmatmul.mubr.bf16.gmra.mrb[0].mxu0 %v1833
        %v1942 = vpop.f32.mrb[0].mxu0
        %v1943 = vadd.f32 0.0, %v1942
        %v1944 = vpop.f32.mrb[0].mxu0
        %v1945 = vpop.f32.mrb[0].mxu0
        %v1946 = vadd.f32 0.0, %v1945
        %v1947 = vpop.f32.mrb[0].mxu0
        %1948 = vmatprep.mubr.bf16.mxu0 0
        %1949 = vmatmul.mubr.bf16.gmra.mrb[0].mxu0 %v1836
        %v1950 = vpop.f32.mrb[0].mxu0
        %v1951 = vadd.f32 0.0, %v1950
        %v1952 = vpop.f32.mrb[0].mxu0
        %v1953 = vpop.f32.mrb[0].mxu0
        %v1954 = vadd.f32 0.0, %v1953
        %v1955 = vpop.f32.mrb[0].mxu0
        %1956 = vmatprep.mubr.bf16.mxu0 0
        %1957 = vmatmul.mubr.bf16.gmra.mrb[0].mxu0 %v1839
        %v1958 = vpop.f32.mrb[0].mxu0
        %v1959 = vadd.f32 0.0, %v1958
        %v1960 = vpop.f32.mrb[0].mxu0
        %v1961 = vpop.f32.mrb[0].mxu0
        %v1962 = vadd.f32 0.0, %v1961
        %v1963 = vpop.f32.mrb[0].mxu0
        %1964 = vmatprep.mubr.bf16.mxu0 0
        %1965 = vmatmul.mubr.bf16.gmra.mrb[0].mxu0 %v1842
        %v1966 = vpop.f32.mrb[0].mxu0
        %v1967 = vadd.f32 0.0, %v1966
        %v1968 = vpop.f32.mrb[0].mxu0
        %v1969 = vpop.f32.mrb[0].mxu0
        %v1970 = vadd.f32 0.0, %v1969
        %v1971 = vpop.f32.mrb[0].mxu0
        %1972 = vmatprep.mubr.bf16.mxu0 0
        %1973 = vmatmul.mubr.bf16.gmra.mrb[0].mxu0 %v1845
        %v1974 = vpop.f32.mrb[0].mxu0
        %v1975 = vadd.f32 0.0, %v1974
        %v1976 = vpop.f32.mrb[0].mxu0
        %v1977 = vpop.f32.mrb[0].mxu0
        %v1978 = vadd.f32 0.0, %v1977
        %v1979 = vpop.f32.mrb[0].mxu0
        %1980 = vmatprep.mubr.bf16.mxu0 0
        %1981 = vmatmul.mubr.bf16.gmra.mrb[0].mxu0 %v1848
        %v1982 = vpop.f32.mrb[0].mxu0
        %v1983 = vadd.f32 0.0, %v1982
        %v1984 = vpop.f32.mrb[0].mxu0
        %v1985 = vpop.f32.mrb[0].mxu0
        %v1986 = vadd.f32 0.0, %v1985
        %v1987 = vpop.f32.mrb[0].mxu0
        %1988 = vmatprep.mubr.bf16.mxu0 0
        %1989 = vmatmul.mubr.bf16.gmra.mrb[0].mxu0 %v1851
        %v1990 = vpop.f32.mrb[0].mxu0
        %v1991 = vadd.f32 0.0, %v1990
        %v1992 = vpop.f32.mrb[0].mxu0
        %v1993 = vpop.f32.mrb[0].mxu0
        %v1994 = vadd.f32 0.0, %v1993
        %v1995 = vpop.f32.mrb[0].mxu0
        %1996 = vmatprep.mubr.bf16.mxu0 0
        %1997 = vmatmul.mubr.bf16.gmra.mrb[0].mxu0 %v1854
        %v1998 = vpop.f32.mrb[0].mxu0
        %v1999 = vadd.f32 0.0, %v1998
        %v2000 = vpop.f32.mrb[0].mxu0
        %v2001 = vpop.f32.mrb[0].mxu0
        %v2002 = vadd.f32 0.0, %v2001
        %v2003 = vpop.f32.mrb[0].mxu0
        %2004 = vmatprep.mubr.bf16.mxu0 0
        %2005 = vmatmul.mubr.bf16.gmra.mrb[0].mxu0 %v1857
        %v2006 = vpop.f32.mrb[0].mxu0
        %v2007 = vadd.f32 0.0, %v2006
        %v2008 = vpop.f32.mrb[0].mxu0
        %v2009 = vpop.f32.mrb[0].mxu0
        %v2010 = vadd.f32 0.0, %v2009
        %v2011 = vpop.f32.mrb[0].mxu0
        %2012 = vmatprep.mubr.bf16.mxu0 0
        %2013 = vmatmul.mubr.bf16.gmra.mrb[0].mxu0 %v1860
        %v2014 = vpop.f32.mrb[0].mxu0
        %v2015 = vadd.f32 0.0, %v2014
        %v2016 = vpop.f32.mrb[0].mxu0
        %v2017 = vpop.f32.mrb[0].mxu0
        %v2018 = vadd.f32 0.0, %v2017
        %v2019 = vpop.f32.mrb[0].mxu0
        %2020 = vmatprep.mubr.bf16.mxu0 0
        %2021 = vmatmul.mubr.bf16.gmra.mrb[0].mxu0 %v1863
        %v2022 = vpop.f32.mrb[0].mxu0
        %v2023 = vadd.f32 0.0, %v2022
        %v2024 = vpop.f32.mrb[0].mxu0
        %v2025 = vpop.f32.mrb[0].mxu0
        %v2026 = vadd.f32 0.0, %v2025
        %v2027 = vpop.f32.mrb[0].mxu0
        %2028 = vdwg.mxu0
        %v2029 = vadd.f32 %v1783, %v1903
        %v2030 = vadd.f32 %v1784, %v1906
        %v2031 = vadd.f32 %v1785, %v1911
        %v2032 = vadd.f32 %v1786, %v1914
        %v2033 = vadd.f32 %v1787, %v1919
        %v2034 = vadd.f32 %v1788, %v1922
        %v2035 = vadd.f32 %v1789, %v1927
        %v2036 = vadd.f32 %v1790, %v1930
        %v2037 = vadd.f32 %v1791, %v1935
        %v2038 = vadd.f32 %v1792, %v1938
        %v2039 = vadd.f32 %v1793, %v1943
        %v2040 = vadd.f32 %v1794, %v1946
        %v2041 = vadd.f32 %v1795, %v1951
        %v2042 = vadd.f32 %v1796, %v1954
        %v2043 = vadd.f32 %v1797, %v1959
        %v2044 = vadd.f32 %v1798, %v1962
        %v2045 = vadd.f32 %v1799, %v1967
        %v2046 = vadd.f32 %v1800, %v1970
        %v2047 = vadd.f32 %v1801, %v1975
        %v2048 = vadd.f32 %v1802, %v1978
        %v2049 = vadd.f32 %v1803, %v1983
        %v2050 = vadd.f32 %v1804, %v1986
        %v2051 = vadd.f32 %v1805, %v1991
        %v2052 = vadd.f32 %v1806, %v1994
        %v2053 = vadd.f32 %v1807, %v1999
        %v2054 = vadd.f32 %v1808, %v2002
        %v2055 = vadd.f32 %v1809, %v2007
        %v2056 = vadd.f32 %v1810, %v2010
        %v2057 = vadd.f32 %v1811, %v2015
        %v2058 = vadd.f32 %v1812, %v2018
        %v2059 = vadd.f32 %v1813, %v2023
        %v2060 = vadd.f32 %v1814, %v2026
        %2061 = vst [vmem:[#allocation3] sm:$0xff] %v2029
        %2062 = vst [vmem:[#allocation3 + $0x8] sm:$0xff] %v2030
        %2063 = vst [vmem:[#allocation3 + $0x10] sm:$0xff] %v2031
        %2064 = vst [vmem:[#allocation3 + $0x18] sm:$0xff] %v2032
        %2065 = vst [vmem:[#allocation3 + $0x20] sm:$0xff] %v2033
        %2066 = vst [vmem:[#allocation3 + $0x28] sm:$0xff] %v2034
        %2067 = vst [vmem:[#allocation3 + $0x30] sm:$0xff] %v2035
        %2068 = vst [vmem:[#allocation3 + $0x38] sm:$0xff] %v2036
        %2069 = vst [vmem:[#allocation3 + $0x40] sm:$0xff] %v2037
        %2070 = vst [vmem:[#allocation3 + $0x48] sm:$0xff] %v2038
        %2071 = vst [vmem:[#allocation3 + $0x50] sm:$0xff] %v2039
        %2072 = vst [vmem:[#allocation3 + $0x58] sm:$0xff] %v2040
        %2073 = vst [vmem:[#allocation3 + $0x60] sm:$0xff] %v2041
        %2074 = vst [vmem:[#allocation3 + $0x68] sm:$0xff] %v2042
        %2075 = vst [vmem:[#allocation3 + $0x70] sm:$0xff] %v2043
        %2076 = vst [vmem:[#allocation3 + $0x78] sm:$0xff] %v2044
        %2077 = vst [vmem:[#allocation3 + $0x80] sm:$0xff] %v2045
        %2078 = vst [vmem:[#allocation3 + $0x88] sm:$0xff] %v2046
        %2079 = vst [vmem:[#allocation3 + $0x90] sm:$0xff] %v2047
        %2080 = vst [vmem:[#allocation3 + $0x98] sm:$0xff] %v2048
        %2081 = vst [vmem:[#allocation3 + $0xa0] sm:$0xff] %v2049
        %2082 = vst [vmem:[#allocation3 + $0xa8] sm:$0xff] %v2050
        %2083 = vst [vmem:[#allocation3 + $0xb0] sm:$0xff] %v2051
        %2084 = vst [vmem:[#allocation3 + $0xb8] sm:$0xff] %v2052
        %2085 = vst [vmem:[#allocation3 + $0xc0] sm:$0xff] %v2053
        %2086 = vst [vmem:[#allocation3 + $0xc8] sm:$0xff] %v2054
        %2087 = vst [vmem:[#allocation3 + $0xd0] sm:$0xff] %v2055
        %2088 = vst [vmem:[#allocation3 + $0xd8] sm:$0xff] %v2056
        %2089 = vst [vmem:[#allocation3 + $0xe0] sm:$0xff] %v2057
        %2090 = vst [vmem:[#allocation3 + $0xe8] sm:$0xff] %v2058
        %2091 = vst [vmem:[#allocation3 + $0xf0] sm:$0xff] %v2059
        %2092 = vst [vmem:[#allocation3 + $0xf8] sm:$0xff] %v2060
        %v2093 = vld [vmem:[%s589 + $0x8] sm:$0xff]
        %v2094 = vld [vmem:[%s589 + $0x10] sm:$0xff]
        %v2095 = vld [vmem:[%s589 + $0x28] sm:$0xff]
        %v2096 = vld [vmem:[%s589 + $0x30] sm:$0xff]
        %v2097 = vld [vmem:[%s589 + $0x48] sm:$0xff]
        %v2098 = vld [vmem:[%s589 + $0x50] sm:$0xff]
        %v2099 = vld [vmem:[%s589 + $0x68] sm:$0xff]
        %v2100 = vld [vmem:[%s589 + $0x70] sm:$0xff]
        %v2101 = vld [vmem:[%s589 + $0x88] sm:$0xff]
        %v2102 = vld [vmem:[%s589 + $0x90] sm:$0xff]
        %v2103 = vld [vmem:[%s589 + $0xa8] sm:$0xff]
        %v2104 = vld [vmem:[%s589 + $0xb0] sm:$0xff]
        %v2105 = vld [vmem:[%s589 + $0xc8] sm:$0xff]
        %v2106 = vld [vmem:[%s589 + $0xd0] sm:$0xff]
        %v2107 = vld [vmem:[%s589 + $0xe8] sm:$0xff]
        %v2108 = vld [vmem:[%s589 + $0xf0] sm:$0xff]
        %v2109 = vld [vmem:[%s589 + $0x108] sm:$0xff]
        %v2110 = vld [vmem:[%s589 + $0x110] sm:$0xff]
        %v2111 = vld [vmem:[%s589 + $0x128] sm:$0xff]
        %v2112 = vld [vmem:[%s589 + $0x130] sm:$0xff]
        %v2113 = vld [vmem:[%s589 + $0x148] sm:$0xff]
        %v2114 = vld [vmem:[%s589 + $0x150] sm:$0xff]
        %v2115 = vld [vmem:[%s589 + $0x168] sm:$0xff]
        %v2116 = vld [vmem:[%s589 + $0x170] sm:$0xff]
        %v2117 = vld [vmem:[%s589 + $0x188] sm:$0xff]
        %v2118 = vld [vmem:[%s589 + $0x190] sm:$0xff]
        %v2119 = vld [vmem:[%s589 + $0x1a8] sm:$0xff]
        %v2120 = vld [vmem:[%s589 + $0x1b0] sm:$0xff]
        %v2121 = vld [vmem:[%s589 + $0x1c8] sm:$0xff]
        %v2122 = vld [vmem:[%s589 + $0x1d0] sm:$0xff]
        %v2123 = vld [vmem:[%s589 + $0x1e8] sm:$0xff]
        %v2124 = vld [vmem:[%s589 + $0x1f0] sm:$0xff]
        %v2125 = vpack.c.bf16 %v2094, %v2093
        %v2126 = vpack.c.bf16 %v2096, %v2095
        %v2127 = vpack.c.bf16 %v2098, %v2097
        %v2128 = vpack.c.bf16 %v2100, %v2099
        %v2129 = vpack.c.bf16 %v2102, %v2101
        %v2130 = vpack.c.bf16 %v2104, %v2103
        %v2131 = vpack.c.bf16 %v2106, %v2105
        %v2132 = vpack.c.bf16 %v2108, %v2107
        %v2133 = vpack.c.bf16 %v2110, %v2109
        %v2134 = vpack.c.bf16 %v2112, %v2111
        %v2135 = vpack.c.bf16 %v2114, %v2113
        %v2136 = vpack.c.bf16 %v2116, %v2115
        %v2137 = vpack.c.bf16 %v2118, %v2117
        %v2138 = vpack.c.bf16 %v2120, %v2119
        %v2139 = vpack.c.bf16 %v2122, %v2121
        %v2140 = vpack.c.bf16 %v2124, %v2123
        %v2141 = vld [vmem:[#allocation3] sm:$0xff]
        %v2142 = vld [vmem:[#allocation3 + $0x8] sm:$0xff]
        %v2143 = vld [vmem:[#allocation3 + $0x10] sm:$0xff]
        %v2144 = vld [vmem:[#allocation3 + $0x18] sm:$0xff]
        %v2145 = vld [vmem:[#allocation3 + $0x20] sm:$0xff]
        %v2146 = vld [vmem:[#allocation3 + $0x28] sm:$0xff]
        %v2147 = vld [vmem:[#allocation3 + $0x30] sm:$0xff]
        %v2148 = vld [vmem:[#allocation3 + $0x38] sm:$0xff]
        %v2149 = vld [vmem:[#allocation3 + $0x40] sm:$0xff]
        %v2150 = vld [vmem:[#allocation3 + $0x48] sm:$0xff]
        %v2151 = vld [vmem:[#allocation3 + $0x50] sm:$0xff]
        %v2152 = vld [vmem:[#allocation3 + $0x58] sm:$0xff]
        %v2153 = vld [vmem:[#allocation3 + $0x60] sm:$0xff]
        %v2154 = vld [vmem:[#allocation3 + $0x68] sm:$0xff]
        %v2155 = vld [vmem:[#allocation3 + $0x70] sm:$0xff]
        %v2156 = vld [vmem:[#allocation3 + $0x78] sm:$0xff]
        %v2157 = vld [vmem:[#allocation3 + $0x80] sm:$0xff]
        %v2158 = vld [vmem:[#allocation3 + $0x88] sm:$0xff]
        %v2159 = vld [vmem:[#allocation3 + $0x90] sm:$0xff]
        %v2160 = vld [vmem:[#allocation3 + $0x98] sm:$0xff]
        %v2161 = vld [vmem:[#allocation3 + $0xa0] sm:$0xff]
        %v2162 = vld [vmem:[#allocation3 + $0xa8] sm:$0xff]
        %v2163 = vld [vmem:[#allocation3 + $0xb0] sm:$0xff]
        %v2164 = vld [vmem:[#allocation3 + $0xb8] sm:$0xff]
        %v2165 = vld [vmem:[#allocation3 + $0xc0] sm:$0xff]
        %v2166 = vld [vmem:[#allocation3 + $0xc8] sm:$0xff]
        %v2167 = vld [vmem:[#allocation3 + $0xd0] sm:$0xff]
        %v2168 = vld [vmem:[#allocation3 + $0xd8] sm:$0xff]
        %v2169 = vld [vmem:[#allocation3 + $0xe0] sm:$0xff]
        %v2170 = vld [vmem:[#allocation3 + $0xe8] sm:$0xff]
        %v2171 = vld [vmem:[#allocation3 + $0xf0] sm:$0xff]
        %v2172 = vld [vmem:[#allocation3 + $0xf8] sm:$0xff]
        %s2173 = scalar_lea.vmem %s1, 16
        %v2174 = vld [vmem:[%s2173] sm:$0xf]
        %v2176 = vsel %vm483, %v2125, 0
        %v2179 = vsel %vm483, %v2126, 0
        %v2182 = vsel %vm483, %v2127, 0
        %v2185 = vsel %vm483, %v2128, 0
        %v2188 = vsel %vm483, %v2129, 0
        %v2191 = vsel %vm483, %v2130, 0
        %v2194 = vsel %vm483, %v2131, 0
        %v2197 = vsel %vm483, %v2132, 0
        %v2200 = vsel %vm483, %v2133, 0
        %v2203 = vsel %vm483, %v2134, 0
        %v2206 = vsel %vm483, %v2135, 0
        %v2209 = vsel %vm483, %v2136, 0
        %v2212 = vsel %vm483, %v2137, 0
        %v2215 = vsel %vm483, %v2138, 0
        %v2218 = vsel %vm483, %v2139, 0
        %v2221 = vsel %vm483, %v2140, 0
        %v2224 = vsel %vm790, %v2174, 0
        %2226 = vmatprep.subr.bf16.mxu0 0
        %2227 = vmatpush1.bf16.msra.mxu0 %v2224
        %2228 = vmatprep.subr.bf16.mxu0 0
        %2229 = vmatpush1.bf16.msra.mxu0 0
        %2230 = vmatprep.subr.bf16.mxu0 0
        %2231 = vmatpush1.bf16.msra.mxu0 0
        %2232 = vmatprep.subr.bf16.mxu0 0
        %2233 = vmatpush1.bf16.msra.mxu0 0
        %2234 = vmatprep.subr.bf16.mxu0 0
        %2235 = vmatpush1.bf16.msra.mxu0 0
        %2236 = vmatprep.subr.bf16.mxu0 0
        %2237 = vmatpush1.bf16.msra.mxu0 0
        %2238 = vmatprep.subr.bf16.mxu0 0
        %2239 = vmatpush1.bf16.msra.mxu0 0
        %2240 = vmatprep.subr.bf16.mxu0 0
        %2241 = vmatpush1.bf16.msra.mxu0 0
        %2242 = vmatprep.subr.bf16.mxu0 0
        %2243 = vmatpush1.bf16.msra.mxu0 0
        %2244 = vmatprep.subr.bf16.mxu0 0
        %2245 = vmatpush1.bf16.msra.mxu0 0
        %2246 = vmatprep.subr.bf16.mxu0 0
        %2247 = vmatpush1.bf16.msra.mxu0 0
        %2248 = vmatprep.subr.bf16.mxu0 0
        %2249 = vmatpush1.bf16.msra.mxu0 0
        %2250 = vmatprep.subr.bf16.mxu0 0
        %2251 = vmatpush1.bf16.msra.mxu0 0
        %2252 = vmatprep.subr.bf16.mxu0 0
        %2253 = vmatpush1.bf16.msra.mxu0 0
        %2254 = vmatprep.subr.bf16.mxu0 0
        %2255 = vmatpush1.bf16.msra.mxu0 0
        %2256 = vmatprep.subr.bf16.mxu0 0
        %2257 = vmatpush1.bf16.msra.mxu0 0
        %2258 = vmatprep.mubr.bf16.mxu0 0
        %2259 = vmatmul.mubr.bf16.gmra.mrb[0].mxu0 %v2176
        %v2260 = vpop.f32.mrb[0].mxu0
        %v2261 = vadd.f32 0.0, %v2260
        %v2262 = vpop.f32.mrb[0].mxu0
        %v2263 = vpop.f32.mrb[0].mxu0
        %v2264 = vadd.f32 0.0, %v2263
        %v2265 = vpop.f32.mrb[0].mxu0
        %2266 = vmatprep.mubr.bf16.mxu0 0
        %2267 = vmatmul.mubr.bf16.gmra.mrb[0].mxu0 %v2179
        %v2268 = vpop.f32.mrb[0].mxu0
        %v2269 = vadd.f32 0.0, %v2268
        %v2270 = vpop.f32.mrb[0].mxu0
        %v2271 = vpop.f32.mrb[0].mxu0
        %v2272 = vadd.f32 0.0, %v2271
        %v2273 = vpop.f32.mrb[0].mxu0
        %2274 = vmatprep.mubr.bf16.mxu0 0
        %2275 = vmatmul.mubr.bf16.gmra.mrb[0].mxu0 %v2182
        %v2276 = vpop.f32.mrb[0].mxu0
        %v2277 = vadd.f32 0.0, %v2276
        %v2278 = vpop.f32.mrb[0].mxu0
        %v2279 = vpop.f32.mrb[0].mxu0
        %v2280 = vadd.f32 0.0, %v2279
        %v2281 = vpop.f32.mrb[0].mxu0
        %2282 = vmatprep.mubr.bf16.mxu0 0
        %2283 = vmatmul.mubr.bf16.gmra.mrb[0].mxu0 %v2185
        %v2284 = vpop.f32.mrb[0].mxu0
        %v2285 = vadd.f32 0.0, %v2284
        %v2286 = vpop.f32.mrb[0].mxu0
        %v2287 = vpop.f32.mrb[0].mxu0
        %v2288 = vadd.f32 0.0, %v2287
        %v2289 = vpop.f32.mrb[0].mxu0
        %2290 = vmatprep.mubr.bf16.mxu0 0
        %2291 = vmatmul.mubr.bf16.gmra.mrb[0].mxu0 %v2188
        %v2292 = vpop.f32.mrb[0].mxu0
        %v2293 = vadd.f32 0.0, %v2292
        %v2294 = vpop.f32.mrb[0].mxu0
        %v2295 = vpop.f32.mrb[0].mxu0
        %v2296 = vadd.f32 0.0, %v2295
        %v2297 = vpop.f32.mrb[0].mxu0
        %2298 = vmatprep.mubr.bf16.mxu0 0
        %2299 = vmatmul.mubr.bf16.gmra.mrb[0].mxu0 %v2191
        %v2300 = vpop.f32.mrb[0].mxu0
        %v2301 = vadd.f32 0.0, %v2300
        %v2302 = vpop.f32.mrb[0].mxu0
        %v2303 = vpop.f32.mrb[0].mxu0
        %v2304 = vadd.f32 0.0, %v2303
        %v2305 = vpop.f32.mrb[0].mxu0
        %2306 = vmatprep.mubr.bf16.mxu0 0
        %2307 = vmatmul.mubr.bf16.gmra.mrb[0].mxu0 %v2194
        %v2308 = vpop.f32.mrb[0].mxu0
        %v2309 = vadd.f32 0.0, %v2308
        %v2310 = vpop.f32.mrb[0].mxu0
        %v2311 = vpop.f32.mrb[0].mxu0
        %v2312 = vadd.f32 0.0, %v2311
        %v2313 = vpop.f32.mrb[0].mxu0
        %2314 = vmatprep.mubr.bf16.mxu0 0
        %2315 = vmatmul.mubr.bf16.gmra.mrb[0].mxu0 %v2197
        %v2316 = vpop.f32.mrb[0].mxu0
        %v2317 = vadd.f32 0.0, %v2316
        %v2318 = vpop.f32.mrb[0].mxu0
        %v2319 = vpop.f32.mrb[0].mxu0
        %v2320 = vadd.f32 0.0, %v2319
        %v2321 = vpop.f32.mrb[0].mxu0
        %2322 = vmatprep.mubr.bf16.mxu0 0
        %2323 = vmatmul.mubr.bf16.gmra.mrb[0].mxu0 %v2200
        %v2324 = vpop.f32.mrb[0].mxu0
        %v2325 = vadd.f32 0.0, %v2324
        %v2326 = vpop.f32.mrb[0].mxu0
        %v2327 = vpop.f32.mrb[0].mxu0
        %v2328 = vadd.f32 0.0, %v2327
        %v2329 = vpop.f32.mrb[0].mxu0
        %2330 = vmatprep.mubr.bf16.mxu0 0
        %2331 = vmatmul.mubr.bf16.gmra.mrb[0].mxu0 %v2203
        %v2332 = vpop.f32.mrb[0].mxu0
        %v2333 = vadd.f32 0.0, %v2332
        %v2334 = vpop.f32.mrb[0].mxu0
        %v2335 = vpop.f32.mrb[0].mxu0
        %v2336 = vadd.f32 0.0, %v2335
        %v2337 = vpop.f32.mrb[0].mxu0
        %2338 = vmatprep.mubr.bf16.mxu0 0
        %2339 = vmatmul.mubr.bf16.gmra.mrb[0].mxu0 %v2206
        %v2340 = vpop.f32.mrb[0].mxu0
        %v2341 = vadd.f32 0.0, %v2340
        %v2342 = vpop.f32.mrb[0].mxu0
        %v2343 = vpop.f32.mrb[0].mxu0
        %v2344 = vadd.f32 0.0, %v2343
        %v2345 = vpop.f32.mrb[0].mxu0
        %2346 = vmatprep.mubr.bf16.mxu0 0
        %2347 = vmatmul.mubr.bf16.gmra.mrb[0].mxu0 %v2209
        %v2348 = vpop.f32.mrb[0].mxu0
        %v2349 = vadd.f32 0.0, %v2348
        %v2350 = vpop.f32.mrb[0].mxu0
        %v2351 = vpop.f32.mrb[0].mxu0
        %v2352 = vadd.f32 0.0, %v2351
        %v2353 = vpop.f32.mrb[0].mxu0
        %2354 = vmatprep.mubr.bf16.mxu0 0
        %2355 = vmatmul.mubr.bf16.gmra.mrb[0].mxu0 %v2212
        %v2356 = vpop.f32.mrb[0].mxu0
        %v2357 = vadd.f32 0.0, %v2356
        %v2358 = vpop.f32.mrb[0].mxu0
        %v2359 = vpop.f32.mrb[0].mxu0
        %v2360 = vadd.f32 0.0, %v2359
        %v2361 = vpop.f32.mrb[0].mxu0
        %2362 = vmatprep.mubr.bf16.mxu0 0
        %2363 = vmatmul.mubr.bf16.gmra.mrb[0].mxu0 %v2215
        %v2364 = vpop.f32.mrb[0].mxu0
        %v2365 = vadd.f32 0.0, %v2364
        %v2366 = vpop.f32.mrb[0].mxu0
        %v2367 = vpop.f32.mrb[0].mxu0
        %v2368 = vadd.f32 0.0, %v2367
        %v2369 = vpop.f32.mrb[0].mxu0
        %2370 = vmatprep.mubr.bf16.mxu0 0
        %2371 = vmatmul.mubr.bf16.gmra.mrb[0].mxu0 %v2218
        %v2372 = vpop.f32.mrb[0].mxu0
        %v2373 = vadd.f32 0.0, %v2372
        %v2374 = vpop.f32.mrb[0].mxu0
        %v2375 = vpop.f32.mrb[0].mxu0
        %v2376 = vadd.f32 0.0, %v2375
        %v2377 = vpop.f32.mrb[0].mxu0
        %2378 = vmatprep.mubr.bf16.mxu0 0
        %2379 = vmatmul.mubr.bf16.gmra.mrb[0].mxu0 %v2221
        %v2380 = vpop.f32.mrb[0].mxu0
        %v2381 = vadd.f32 0.0, %v2380
        %v2382 = vpop.f32.mrb[0].mxu0
        %v2383 = vpop.f32.mrb[0].mxu0
        %v2384 = vadd.f32 0.0, %v2383
        %v2385 = vpop.f32.mrb[0].mxu0
        %2386 = vdwg.mxu0
        %v2387 = vadd.f32 %v2141, %v2261
        %v2388 = vadd.f32 %v2142, %v2264
        %v2389 = vadd.f32 %v2143, %v2269
        %v2390 = vadd.f32 %v2144, %v2272
        %v2391 = vadd.f32 %v2145, %v2277
        %v2392 = vadd.f32 %v2146, %v2280
        %v2393 = vadd.f32 %v2147, %v2285
        %v2394 = vadd.f32 %v2148, %v2288
        %v2395 = vadd.f32 %v2149, %v2293
        %v2396 = vadd.f32 %v2150, %v2296
        %v2397 = vadd.f32 %v2151, %v2301
        %v2398 = vadd.f32 %v2152, %v2304
        %v2399 = vadd.f32 %v2153, %v2309
        %v2400 = vadd.f32 %v2154, %v2312
        %v2401 = vadd.f32 %v2155, %v2317
        %v2402 = vadd.f32 %v2156, %v2320
        %v2403 = vadd.f32 %v2157, %v2325
        %v2404 = vadd.f32 %v2158, %v2328
        %v2405 = vadd.f32 %v2159, %v2333
        %v2406 = vadd.f32 %v2160, %v2336
        %v2407 = vadd.f32 %v2161, %v2341
        %v2408 = vadd.f32 %v2162, %v2344
        %v2409 = vadd.f32 %v2163, %v2349
        %v2410 = vadd.f32 %v2164, %v2352
        %v2411 = vadd.f32 %v2165, %v2357
        %v2412 = vadd.f32 %v2166, %v2360
        %v2413 = vadd.f32 %v2167, %v2365
        %v2414 = vadd.f32 %v2168, %v2368
        %v2415 = vadd.f32 %v2169, %v2373
        %v2416 = vadd.f32 %v2170, %v2376
        %v2417 = vadd.f32 %v2171, %v2381
        %v2418 = vadd.f32 %v2172, %v2384
        %2419 = vst [vmem:[#allocation3] sm:$0xff] %v2387
        %2420 = vst [vmem:[#allocation3 + $0x8] sm:$0xff] %v2388
        %2421 = vst [vmem:[#allocation3 + $0x10] sm:$0xff] %v2389
        %2422 = vst [vmem:[#allocation3 + $0x18] sm:$0xff] %v2390
        %2423 = vst [vmem:[#allocation3 + $0x20] sm:$0xff] %v2391
        %2424 = vst [vmem:[#allocation3 + $0x28] sm:$0xff] %v2392
        %2425 = vst [vmem:[#allocation3 + $0x30] sm:$0xff] %v2393
        %2426 = vst [vmem:[#allocation3 + $0x38] sm:$0xff] %v2394
        %2427 = vst [vmem:[#allocation3 + $0x40] sm:$0xff] %v2395
        %2428 = vst [vmem:[#allocation3 + $0x48] sm:$0xff] %v2396
        %2429 = vst [vmem:[#allocation3 + $0x50] sm:$0xff] %v2397
        %2430 = vst [vmem:[#allocation3 + $0x58] sm:$0xff] %v2398
        %2431 = vst [vmem:[#allocation3 + $0x60] sm:$0xff] %v2399
        %2432 = vst [vmem:[#allocation3 + $0x68] sm:$0xff] %v2400
        %2433 = vst [vmem:[#allocation3 + $0x70] sm:$0xff] %v2401
        %2434 = vst [vmem:[#allocation3 + $0x78] sm:$0xff] %v2402
        %2435 = vst [vmem:[#allocation3 + $0x80] sm:$0xff] %v2403
        %2436 = vst [vmem:[#allocation3 + $0x88] sm:$0xff] %v2404
        %2437 = vst [vmem:[#allocation3 + $0x90] sm:$0xff] %v2405
        %2438 = vst [vmem:[#allocation3 + $0x98] sm:$0xff] %v2406
        %2439 = vst [vmem:[#allocation3 + $0xa0] sm:$0xff] %v2407
        %2440 = vst [vmem:[#allocation3 + $0xa8] sm:$0xff] %v2408
        %2441 = vst [vmem:[#allocation3 + $0xb0] sm:$0xff] %v2409
        %2442 = vst [vmem:[#allocation3 + $0xb8] sm:$0xff] %v2410
        %2443 = vst [vmem:[#allocation3 + $0xc0] sm:$0xff] %v2411
        %2444 = vst [vmem:[#allocation3 + $0xc8] sm:$0xff] %v2412
        %2445 = vst [vmem:[#allocation3 + $0xd0] sm:$0xff] %v2413
        %2446 = vst [vmem:[#allocation3 + $0xd8] sm:$0xff] %v2414
        %2447 = vst [vmem:[#allocation3 + $0xe0] sm:$0xff] %v2415
        %2448 = vst [vmem:[#allocation3 + $0xe8] sm:$0xff] %v2416
        %2449 = vst [vmem:[#allocation3 + $0xf0] sm:$0xff] %v2417
        %2450 = vst [vmem:[#allocation3 + $0xf8] sm:$0xff] %v2418
        %v2451 = vld [vmem:[%s589 + $0x9] sm:$0xff]
        %v2452 = vld [vmem:[%s589 + $0x11] sm:$0xff]
        %v2453 = vld [vmem:[%s589 + $0x29] sm:$0xff]
        %v2454 = vld [vmem:[%s589 + $0x31] sm:$0xff]
        %v2455 = vld [vmem:[%s589 + $0x49] sm:$0xff]
        %v2456 = vld [vmem:[%s589 + $0x51] sm:$0xff]
        %v2457 = vld [vmem:[%s589 + $0x69] sm:$0xff]
        %v2458 = vld [vmem:[%s589 + $0x71] sm:$0xff]
        %v2459 = vld [vmem:[%s589 + $0x89] sm:$0xff]
        %v2460 = vld [vmem:[%s589 + $0x91] sm:$0xff]
        %v2461 = vld [vmem:[%s589 + $0xa9] sm:$0xff]
        %v2462 = vld [vmem:[%s589 + $0xb1] sm:$0xff]
        %v2463 = vld [vmem:[%s589 + $0xc9] sm:$0xff]
        %v2464 = vld [vmem:[%s589 + $0xd1] sm:$0xff]
        %v2465 = vld [vmem:[%s589 + $0xe9] sm:$0xff]
        %v2466 = vld [vmem:[%s589 + $0xf1] sm:$0xff]
        %v2467 = vld [vmem:[%s589 + $0x109] sm:$0xff]
        %v2468 = vld [vmem:[%s589 + $0x111] sm:$0xff]
        %v2469 = vld [vmem:[%s589 + $0x129] sm:$0xff]
        %v2470 = vld [vmem:[%s589 + $0x131] sm:$0xff]
        %v2471 = vld [vmem:[%s589 + $0x149] sm:$0xff]
        %v2472 = vld [vmem:[%s589 + $0x151] sm:$0xff]
        %v2473 = vld [vmem:[%s589 + $0x169] sm:$0xff]
        %v2474 = vld [vmem:[%s589 + $0x171] sm:$0xff]
        %v2475 = vld [vmem:[%s589 + $0x189] sm:$0xff]
        %v2476 = vld [vmem:[%s589 + $0x191] sm:$0xff]
        %v2477 = vld [vmem:[%s589 + $0x1a9] sm:$0xff]
        %v2478 = vld [vmem:[%s589 + $0x1b1] sm:$0xff]
        %v2479 = vld [vmem:[%s589 + $0x1c9] sm:$0xff]
        %v2480 = vld [vmem:[%s589 + $0x1d1] sm:$0xff]
        %v2481 = vld [vmem:[%s589 + $0x1e9] sm:$0xff]
        %v2482 = vld [vmem:[%s589 + $0x1f1] sm:$0xff]
        %v2483 = vpack.c.bf16 %v2452, %v2451
        %v2484 = vpack.c.bf16 %v2454, %v2453
        %v2485 = vpack.c.bf16 %v2456, %v2455
        %v2486 = vpack.c.bf16 %v2458, %v2457
        %v2487 = vpack.c.bf16 %v2460, %v2459
        %v2488 = vpack.c.bf16 %v2462, %v2461
        %v2489 = vpack.c.bf16 %v2464, %v2463
        %v2490 = vpack.c.bf16 %v2466, %v2465
        %v2491 = vpack.c.bf16 %v2468, %v2467
        %v2492 = vpack.c.bf16 %v2470, %v2469
        %v2493 = vpack.c.bf16 %v2472, %v2471
        %v2494 = vpack.c.bf16 %v2474, %v2473
        %v2495 = vpack.c.bf16 %v2476, %v2475
        %v2496 = vpack.c.bf16 %v2478, %v2477
        %v2497 = vpack.c.bf16 %v2480, %v2479
        %v2498 = vpack.c.bf16 %v2482, %v2481
        %v2499 = vld [vmem:[#allocation3] sm:$0xff]
        %v2500 = vld [vmem:[#allocation3 + $0x8] sm:$0xff]
        %v2501 = vld [vmem:[#allocation3 + $0x10] sm:$0xff]
        %v2502 = vld [vmem:[#allocation3 + $0x18] sm:$0xff]
        %v2503 = vld [vmem:[#allocation3 + $0x20] sm:$0xff]
        %v2504 = vld [vmem:[#allocation3 + $0x28] sm:$0xff]
        %v2505 = vld [vmem:[#allocation3 + $0x30] sm:$0xff]
        %v2506 = vld [vmem:[#allocation3 + $0x38] sm:$0xff]
        %v2507 = vld [vmem:[#allocation3 + $0x40] sm:$0xff]
        %v2508 = vld [vmem:[#allocation3 + $0x48] sm:$0xff]
        %v2509 = vld [vmem:[#allocation3 + $0x50] sm:$0xff]
        %v2510 = vld [vmem:[#allocation3 + $0x58] sm:$0xff]
        %v2511 = vld [vmem:[#allocation3 + $0x60] sm:$0xff]
        %v2512 = vld [vmem:[#allocation3 + $0x68] sm:$0xff]
        %v2513 = vld [vmem:[#allocation3 + $0x70] sm:$0xff]
        %v2514 = vld [vmem:[#allocation3 + $0x78] sm:$0xff]
        %v2515 = vld [vmem:[#allocation3 + $0x80] sm:$0xff]
        %v2516 = vld [vmem:[#allocation3 + $0x88] sm:$0xff]
        %v2517 = vld [vmem:[#allocation3 + $0x90] sm:$0xff]
        %v2518 = vld [vmem:[#allocation3 + $0x98] sm:$0xff]
        %v2519 = vld [vmem:[#allocation3 + $0xa0] sm:$0xff]
        %v2520 = vld [vmem:[#allocation3 + $0xa8] sm:$0xff]
        %v2521 = vld [vmem:[#allocation3 + $0xb0] sm:$0xff]
        %v2522 = vld [vmem:[#allocation3 + $0xb8] sm:$0xff]
        %v2523 = vld [vmem:[#allocation3 + $0xc0] sm:$0xff]
        %v2524 = vld [vmem:[#allocation3 + $0xc8] sm:$0xff]
        %v2525 = vld [vmem:[#allocation3 + $0xd0] sm:$0xff]
        %v2526 = vld [vmem:[#allocation3 + $0xd8] sm:$0xff]
        %v2527 = vld [vmem:[#allocation3 + $0xe0] sm:$0xff]
        %v2528 = vld [vmem:[#allocation3 + $0xe8] sm:$0xff]
        %v2529 = vld [vmem:[#allocation3 + $0xf0] sm:$0xff]
        %v2530 = vld [vmem:[#allocation3 + $0xf8] sm:$0xff]
        %s2531 = scalar_lea.vmem %s1, 20
        %v2532 = vld [vmem:[%s2531] sm:$0xf]
        %v2534 = vsel %vm483, %v2483, 0
        %v2537 = vsel %vm483, %v2484, 0
        %v2540 = vsel %vm483, %v2485, 0
        %v2543 = vsel %vm483, %v2486, 0
        %v2546 = vsel %vm483, %v2487, 0
        %v2549 = vsel %vm483, %v2488, 0
        %v2552 = vsel %vm483, %v2489, 0
        %v2555 = vsel %vm483, %v2490, 0
        %v2558 = vsel %vm483, %v2491, 0
        %v2561 = vsel %vm483, %v2492, 0
        %v2564 = vsel %vm483, %v2493, 0
        %v2567 = vsel %vm483, %v2494, 0
        %v2570 = vsel %vm483, %v2495, 0
        %v2573 = vsel %vm483, %v2496, 0
        %v2576 = vsel %vm483, %v2497, 0
        %v2579 = vsel %vm483, %v2498, 0
        %v2582 = vsel %vm790, %v2532, 0
        %2584 = vmatprep.subr.bf16.mxu0 0
        %2585 = vmatpush1.bf16.msra.mxu0 %v2582
        %2586 = vmatprep.subr.bf16.mxu0 0
        %2587 = vmatpush1.bf16.msra.mxu0 0
        %2588 = vmatprep.subr.bf16.mxu0 0
        %2589 = vmatpush1.bf16.msra.mxu0 0
        %2590 = vmatprep.subr.bf16.mxu0 0
        %2591 = vmatpush1.bf16.msra.mxu0 0
        %2592 = vmatprep.subr.bf16.mxu0 0
        %2593 = vmatpush1.bf16.msra.mxu0 0
        %2594 = vmatprep.subr.bf16.mxu0 0
        %2595 = vmatpush1.bf16.msra.mxu0 0
        %2596 = vmatprep.subr.bf16.mxu0 0
        %2597 = vmatpush1.bf16.msra.mxu0 0
        %2598 = vmatprep.subr.bf16.mxu0 0
        %2599 = vmatpush1.bf16.msra.mxu0 0
        %2600 = vmatprep.subr.bf16.mxu0 0
        %2601 = vmatpush1.bf16.msra.mxu0 0
        %2602 = vmatprep.subr.bf16.mxu0 0
        %2603 = vmatpush1.bf16.msra.mxu0 0
        %2604 = vmatprep.subr.bf16.mxu0 0
        %2605 = vmatpush1.bf16.msra.mxu0 0
        %2606 = vmatprep.subr.bf16.mxu0 0
        %2607 = vmatpush1.bf16.msra.mxu0 0
        %2608 = vmatprep.subr.bf16.mxu0 0
        %2609 = vmatpush1.bf16.msra.mxu0 0
        %2610 = vmatprep.subr.bf16.mxu0 0
        %2611 = vmatpush1.bf16.msra.mxu0 0
        %2612 = vmatprep.subr.bf16.mxu0 0
        %2613 = vmatpush1.bf16.msra.mxu0 0
        %2614 = vmatprep.subr.bf16.mxu0 0
        %2615 = vmatpush1.bf16.msra.mxu0 0
        %2616 = vmatprep.mubr.bf16.mxu0 0
        %2617 = vmatmul.mubr.bf16.gmra.mrb[0].mxu0 %v2534
        %v2618 = vpop.f32.mrb[0].mxu0
        %v2619 = vadd.f32 0.0, %v2618
        %v2620 = vpop.f32.mrb[0].mxu0
        %v2621 = vpop.f32.mrb[0].mxu0
        %v2622 = vadd.f32 0.0, %v2621
        %v2623 = vpop.f32.mrb[0].mxu0
        %2624 = vmatprep.mubr.bf16.mxu0 0
        %2625 = vmatmul.mubr.bf16.gmra.mrb[0].mxu0 %v2537
        %v2626 = vpop.f32.mrb[0].mxu0
        %v2627 = vadd.f32 0.0, %v2626
        %v2628 = vpop.f32.mrb[0].mxu0
        %v2629 = vpop.f32.mrb[0].mxu0
        %v2630 = vadd.f32 0.0, %v2629
        %v2631 = vpop.f32.mrb[0].mxu0
        %2632 = vmatprep.mubr.bf16.mxu0 0
        %2633 = vmatmul.mubr.bf16.gmra.mrb[0].mxu0 %v2540
        %v2634 = vpop.f32.mrb[0].mxu0
        %v2635 = vadd.f32 0.0, %v2634
        %v2636 = vpop.f32.mrb[0].mxu0
        %v2637 = vpop.f32.mrb[0].mxu0
        %v2638 = vadd.f32 0.0, %v2637
        %v2639 = vpop.f32.mrb[0].mxu0
        %2640 = vmatprep.mubr.bf16.mxu0 0
        %2641 = vmatmul.mubr.bf16.gmra.mrb[0].mxu0 %v2543
        %v2642 = vpop.f32.mrb[0].mxu0
        %v2643 = vadd.f32 0.0, %v2642
        %v2644 = vpop.f32.mrb[0].mxu0
        %v2645 = vpop.f32.mrb[0].mxu0
        %v2646 = vadd.f32 0.0, %v2645
        %v2647 = vpop.f32.mrb[0].mxu0
        %2648 = vmatprep.mubr.bf16.mxu0 0
        %2649 = vmatmul.mubr.bf16.gmra.mrb[0].mxu0 %v2546
        %v2650 = vpop.f32.mrb[0].mxu0
        %v2651 = vadd.f32 0.0, %v2650
        %v2652 = vpop.f32.mrb[0].mxu0
        %v2653 = vpop.f32.mrb[0].mxu0
        %v2654 = vadd.f32 0.0, %v2653
        %v2655 = vpop.f32.mrb[0].mxu0
        %2656 = vmatprep.mubr.bf16.mxu0 0
        %2657 = vmatmul.mubr.bf16.gmra.mrb[0].mxu0 %v2549
        %v2658 = vpop.f32.mrb[0].mxu0
        %v2659 = vadd.f32 0.0, %v2658
        %v2660 = vpop.f32.mrb[0].mxu0
        %v2661 = vpop.f32.mrb[0].mxu0
        %v2662 = vadd.f32 0.0, %v2661
        %v2663 = vpop.f32.mrb[0].mxu0
        %2664 = vmatprep.mubr.bf16.mxu0 0
        %2665 = vmatmul.mubr.bf16.gmra.mrb[0].mxu0 %v2552
        %v2666 = vpop.f32.mrb[0].mxu0
        %v2667 = vadd.f32 0.0, %v2666
        %v2668 = vpop.f32.mrb[0].mxu0
        %v2669 = vpop.f32.mrb[0].mxu0
        %v2670 = vadd.f32 0.0, %v2669
        %v2671 = vpop.f32.mrb[0].mxu0
        %2672 = vmatprep.mubr.bf16.mxu0 0
        %2673 = vmatmul.mubr.bf16.gmra.mrb[0].mxu0 %v2555
        %v2674 = vpop.f32.mrb[0].mxu0
        %v2675 = vadd.f32 0.0, %v2674
        %v2676 = vpop.f32.mrb[0].mxu0
        %v2677 = vpop.f32.mrb[0].mxu0
        %v2678 = vadd.f32 0.0, %v2677
        %v2679 = vpop.f32.mrb[0].mxu0
        %2680 = vmatprep.mubr.bf16.mxu0 0
        %2681 = vmatmul.mubr.bf16.gmra.mrb[0].mxu0 %v2558
        %v2682 = vpop.f32.mrb[0].mxu0
        %v2683 = vadd.f32 0.0, %v2682
        %v2684 = vpop.f32.mrb[0].mxu0
        %v2685 = vpop.f32.mrb[0].mxu0
        %v2686 = vadd.f32 0.0, %v2685
        %v2687 = vpop.f32.mrb[0].mxu0
        %2688 = vmatprep.mubr.bf16.mxu0 0
        %2689 = vmatmul.mubr.bf16.gmra.mrb[0].mxu0 %v2561
        %v2690 = vpop.f32.mrb[0].mxu0
        %v2691 = vadd.f32 0.0, %v2690
        %v2692 = vpop.f32.mrb[0].mxu0
        %v2693 = vpop.f32.mrb[0].mxu0
        %v2694 = vadd.f32 0.0, %v2693
        %v2695 = vpop.f32.mrb[0].mxu0
        %2696 = vmatprep.mubr.bf16.mxu0 0
        %2697 = vmatmul.mubr.bf16.gmra.mrb[0].mxu0 %v2564
        %v2698 = vpop.f32.mrb[0].mxu0
        %v2699 = vadd.f32 0.0, %v2698
        %v2700 = vpop.f32.mrb[0].mxu0
        %v2701 = vpop.f32.mrb[0].mxu0
        %v2702 = vadd.f32 0.0, %v2701
        %v2703 = vpop.f32.mrb[0].mxu0
        %2704 = vmatprep.mubr.bf16.mxu0 0
        %2705 = vmatmul.mubr.bf16.gmra.mrb[0].mxu0 %v2567
        %v2706 = vpop.f32.mrb[0].mxu0
        %v2707 = vadd.f32 0.0, %v2706
        %v2708 = vpop.f32.mrb[0].mxu0
        %v2709 = vpop.f32.mrb[0].mxu0
        %v2710 = vadd.f32 0.0, %v2709
        %v2711 = vpop.f32.mrb[0].mxu0
        %2712 = vmatprep.mubr.bf16.mxu0 0
        %2713 = vmatmul.mubr.bf16.gmra.mrb[0].mxu0 %v2570
        %v2714 = vpop.f32.mrb[0].mxu0
        %v2715 = vadd.f32 0.0, %v2714
        %v2716 = vpop.f32.mrb[0].mxu0
        %v2717 = vpop.f32.mrb[0].mxu0
        %v2718 = vadd.f32 0.0, %v2717
        %v2719 = vpop.f32.mrb[0].mxu0
        %2720 = vmatprep.mubr.bf16.mxu0 0
        %2721 = vmatmul.mubr.bf16.gmra.mrb[0].mxu0 %v2573
        %v2722 = vpop.f32.mrb[0].mxu0
        %v2723 = vadd.f32 0.0, %v2722
        %v2724 = vpop.f32.mrb[0].mxu0
        %v2725 = vpop.f32.mrb[0].mxu0
        %v2726 = vadd.f32 0.0, %v2725
        %v2727 = vpop.f32.mrb[0].mxu0
        %2728 = vmatprep.mubr.bf16.mxu0 0
        %2729 = vmatmul.mubr.bf16.gmra.mrb[0].mxu0 %v2576
        %v2730 = vpop.f32.mrb[0].mxu0
        %v2731 = vadd.f32 0.0, %v2730
        %v2732 = vpop.f32.mrb[0].mxu0
        %v2733 = vpop.f32.mrb[0].mxu0
        %v2734 = vadd.f32 0.0, %v2733
        %v2735 = vpop.f32.mrb[0].mxu0
        %2736 = vmatprep.mubr.bf16.mxu0 0
        %2737 = vmatmul.mubr.bf16.gmra.mrb[0].mxu0 %v2579
        %v2738 = vpop.f32.mrb[0].mxu0
        %v2739 = vadd.f32 0.0, %v2738
        %v2740 = vpop.f32.mrb[0].mxu0
        %v2741 = vpop.f32.mrb[0].mxu0
        %v2742 = vadd.f32 0.0, %v2741
        %v2743 = vpop.f32.mrb[0].mxu0
        %2744 = vdwg.mxu0
        %v2745 = vadd.f32 %v2499, %v2619
        %v2746 = vadd.f32 %v2500, %v2622
        %v2747 = vadd.f32 %v2501, %v2627
        %v2748 = vadd.f32 %v2502, %v2630
        %v2749 = vadd.f32 %v2503, %v2635
        %v2750 = vadd.f32 %v2504, %v2638
        %v2751 = vadd.f32 %v2505, %v2643
        %v2752 = vadd.f32 %v2506, %v2646
        %v2753 = vadd.f32 %v2507, %v2651
        %v2754 = vadd.f32 %v2508, %v2654
        %v2755 = vadd.f32 %v2509, %v2659
        %v2756 = vadd.f32 %v2510, %v2662
        %v2757 = vadd.f32 %v2511, %v2667
        %v2758 = vadd.f32 %v2512, %v2670
        %v2759 = vadd.f32 %v2513, %v2675
        %v2760 = vadd.f32 %v2514, %v2678
        %v2761 = vadd.f32 %v2515, %v2683
        %v2762 = vadd.f32 %v2516, %v2686
        %v2763 = vadd.f32 %v2517, %v2691
        %v2764 = vadd.f32 %v2518, %v2694
        %v2765 = vadd.f32 %v2519, %v2699
        %v2766 = vadd.f32 %v2520, %v2702
        %v2767 = vadd.f32 %v2521, %v2707
        %v2768 = vadd.f32 %v2522, %v2710
        %v2769 = vadd.f32 %v2523, %v2715
        %v2770 = vadd.f32 %v2524, %v2718
        %v2771 = vadd.f32 %v2525, %v2723
        %v2772 = vadd.f32 %v2526, %v2726
        %v2773 = vadd.f32 %v2527, %v2731
        %v2774 = vadd.f32 %v2528, %v2734
        %v2775 = vadd.f32 %v2529, %v2739
        %v2776 = vadd.f32 %v2530, %v2742
        %2777 = vst [vmem:[#allocation3] sm:$0xff] %v2745
        %2778 = vst [vmem:[#allocation3 + $0x8] sm:$0xff] %v2746
        %2779 = vst [vmem:[#allocation3 + $0x10] sm:$0xff] %v2747
        %2780 = vst [vmem:[#allocation3 + $0x18] sm:$0xff] %v2748
        %2781 = vst [vmem:[#allocation3 + $0x20] sm:$0xff] %v2749
        %2782 = vst [vmem:[#allocation3 + $0x28] sm:$0xff] %v2750
        %2783 = vst [vmem:[#allocation3 + $0x30] sm:$0xff] %v2751
        %2784 = vst [vmem:[#allocation3 + $0x38] sm:$0xff] %v2752
        %2785 = vst [vmem:[#allocation3 + $0x40] sm:$0xff] %v2753
        %2786 = vst [vmem:[#allocation3 + $0x48] sm:$0xff] %v2754
        %2787 = vst [vmem:[#allocation3 + $0x50] sm:$0xff] %v2755
        %2788 = vst [vmem:[#allocation3 + $0x58] sm:$0xff] %v2756
        %2789 = vst [vmem:[#allocation3 + $0x60] sm:$0xff] %v2757
        %2790 = vst [vmem:[#allocation3 + $0x68] sm:$0xff] %v2758
        %2791 = vst [vmem:[#allocation3 + $0x70] sm:$0xff] %v2759
        %2792 = vst [vmem:[#allocation3 + $0x78] sm:$0xff] %v2760
        %2793 = vst [vmem:[#allocation3 + $0x80] sm:$0xff] %v2761
        %2794 = vst [vmem:[#allocation3 + $0x88] sm:$0xff] %v2762
        %2795 = vst [vmem:[#allocation3 + $0x90] sm:$0xff] %v2763
        %2796 = vst [vmem:[#allocation3 + $0x98] sm:$0xff] %v2764
        %2797 = vst [vmem:[#allocation3 + $0xa0] sm:$0xff] %v2765
        %2798 = vst [vmem:[#allocation3 + $0xa8] sm:$0xff] %v2766
        %2799 = vst [vmem:[#allocation3 + $0xb0] sm:$0xff] %v2767
        %2800 = vst [vmem:[#allocation3 + $0xb8] sm:$0xff] %v2768
        %2801 = vst [vmem:[#allocation3 + $0xc0] sm:$0xff] %v2769
        %2802 = vst [vmem:[#allocation3 + $0xc8] sm:$0xff] %v2770
        %2803 = vst [vmem:[#allocation3 + $0xd0] sm:$0xff] %v2771
        %2804 = vst [vmem:[#allocation3 + $0xd8] sm:$0xff] %v2772
        %2805 = vst [vmem:[#allocation3 + $0xe0] sm:$0xff] %v2773
        %2806 = vst [vmem:[#allocation3 + $0xe8] sm:$0xff] %v2774
        %2807 = vst [vmem:[#allocation3 + $0xf0] sm:$0xff] %v2775
        %2808 = vst [vmem:[#allocation3 + $0xf8] sm:$0xff] %v2776
        %s2809 = scalar_lea.vmem [#allocation2], 64
        %v2810 = vld [vmem:[%s2809 + $0x7] sm:$0xff]
        %v2811 = vld [vmem:[%s2809 + $0xf] sm:$0xff]
        %v2812 = vld [vmem:[%s2809 + $0x27] sm:$0xff]
        %v2813 = vld [vmem:[%s2809 + $0x2f] sm:$0xff]
        %v2814 = vld [vmem:[%s2809 + $0x47] sm:$0xff]
        %v2815 = vld [vmem:[%s2809 + $0x4f] sm:$0xff]
        %v2816 = vld [vmem:[%s2809 + $0x67] sm:$0xff]
        %v2817 = vld [vmem:[%s2809 + $0x6f] sm:$0xff]
        %v2818 = vld [vmem:[%s2809 + $0x87] sm:$0xff]
        %v2819 = vld [vmem:[%s2809 + $0x8f] sm:$0xff]
        %v2820 = vld [vmem:[%s2809 + $0xa7] sm:$0xff]
        %v2821 = vld [vmem:[%s2809 + $0xaf] sm:$0xff]
        %v2822 = vld [vmem:[%s2809 + $0xc7] sm:$0xff]
        %v2823 = vld [vmem:[%s2809 + $0xcf] sm:$0xff]
        %v2824 = vld [vmem:[%s2809 + $0xe7] sm:$0xff]
        %v2825 = vld [vmem:[%s2809 + $0xef] sm:$0xff]
        %v2826 = vld [vmem:[%s2809 + $0x107] sm:$0xff]
        %v2827 = vld [vmem:[%s2809 + $0x10f] sm:$0xff]
        %v2828 = vld [vmem:[%s2809 + $0x127] sm:$0xff]
        %v2829 = vld [vmem:[%s2809 + $0x12f] sm:$0xff]
        %v2830 = vld [vmem:[%s2809 + $0x147] sm:$0xff]
        %v2831 = vld [vmem:[%s2809 + $0x14f] sm:$0xff]
        %v2832 = vld [vmem:[%s2809 + $0x167] sm:$0xff]
        %v2833 = vld [vmem:[%s2809 + $0x16f] sm:$0xff]
        %v2834 = vld [vmem:[%s2809 + $0x187] sm:$0xff]
        %v2835 = vld [vmem:[%s2809 + $0x18f] sm:$0xff]
        %v2836 = vld [vmem:[%s2809 + $0x1a7] sm:$0xff]
        %v2837 = vld [vmem:[%s2809 + $0x1af] sm:$0xff]
        %v2838 = vld [vmem:[%s2809 + $0x1c7] sm:$0xff]
        %v2839 = vld [vmem:[%s2809 + $0x1cf] sm:$0xff]
        %v2840 = vld [vmem:[%s2809 + $0x1e7] sm:$0xff]
        %v2841 = vld [vmem:[%s2809 + $0x1ef] sm:$0xff]
        %v2842 = vpack.c.bf16 %v2811, %v2810
        %v2843 = vpack.c.bf16 %v2813, %v2812
        %v2844 = vpack.c.bf16 %v2815, %v2814
        %v2845 = vpack.c.bf16 %v2817, %v2816
        %v2846 = vpack.c.bf16 %v2819, %v2818
        %v2847 = vpack.c.bf16 %v2821, %v2820
        %v2848 = vpack.c.bf16 %v2823, %v2822
        %v2849 = vpack.c.bf16 %v2825, %v2824
        %v2850 = vpack.c.bf16 %v2827, %v2826
        %v2851 = vpack.c.bf16 %v2829, %v2828
        %v2852 = vpack.c.bf16 %v2831, %v2830
        %v2853 = vpack.c.bf16 %v2833, %v2832
        %v2854 = vpack.c.bf16 %v2835, %v2834
        %v2855 = vpack.c.bf16 %v2837, %v2836
        %v2856 = vpack.c.bf16 %v2839, %v2838
        %v2857 = vpack.c.bf16 %v2841, %v2840
        %v2858 = vld [vmem:[#allocation3] sm:$0xff]
        %v2859 = vld [vmem:[#allocation3 + $0x8] sm:$0xff]
        %v2860 = vld [vmem:[#allocation3 + $0x10] sm:$0xff]
        %v2861 = vld [vmem:[#allocation3 + $0x18] sm:$0xff]
        %v2862 = vld [vmem:[#allocation3 + $0x20] sm:$0xff]
        %v2863 = vld [vmem:[#allocation3 + $0x28] sm:$0xff]
        %v2864 = vld [vmem:[#allocation3 + $0x30] sm:$0xff]
        %v2865 = vld [vmem:[#allocation3 + $0x38] sm:$0xff]
        %v2866 = vld [vmem:[#allocation3 + $0x40] sm:$0xff]
        %v2867 = vld [vmem:[#allocation3 + $0x48] sm:$0xff]
        %v2868 = vld [vmem:[#allocation3 + $0x50] sm:$0xff]
        %v2869 = vld [vmem:[#allocation3 + $0x58] sm:$0xff]
        %v2870 = vld [vmem:[#allocation3 + $0x60] sm:$0xff]
        %v2871 = vld [vmem:[#allocation3 + $0x68] sm:$0xff]
        %v2872 = vld [vmem:[#allocation3 + $0x70] sm:$0xff]
        %v2873 = vld [vmem:[#allocation3 + $0x78] sm:$0xff]
        %v2874 = vld [vmem:[#allocation3 + $0x80] sm:$0xff]
        %v2875 = vld [vmem:[#allocation3 + $0x88] sm:$0xff]
        %v2876 = vld [vmem:[#allocation3 + $0x90] sm:$0xff]
        %v2877 = vld [vmem:[#allocation3 + $0x98] sm:$0xff]
        %v2878 = vld [vmem:[#allocation3 + $0xa0] sm:$0xff]
        %v2879 = vld [vmem:[#allocation3 + $0xa8] sm:$0xff]
        %v2880 = vld [vmem:[#allocation3 + $0xb0] sm:$0xff]
        %v2881 = vld [vmem:[#allocation3 + $0xb8] sm:$0xff]
        %v2882 = vld [vmem:[#allocation3 + $0xc0] sm:$0xff]
        %v2883 = vld [vmem:[#allocation3 + $0xc8] sm:$0xff]
        %v2884 = vld [vmem:[#allocation3 + $0xd0] sm:$0xff]
        %v2885 = vld [vmem:[#allocation3 + $0xd8] sm:$0xff]
        %v2886 = vld [vmem:[#allocation3 + $0xe0] sm:$0xff]
        %v2887 = vld [vmem:[#allocation3 + $0xe8] sm:$0xff]
        %v2888 = vld [vmem:[#allocation3 + $0xf0] sm:$0xff]
        %v2889 = vld [vmem:[#allocation3 + $0xf8] sm:$0xff]
        %s2890 = scalar_lea.vmem %s1, 24
        %v2891 = vld [vmem:[%s2890] sm:$0xf]
        %v2893 = vsel %vm483, %v2842, 0
        %v2896 = vsel %vm483, %v2843, 0
        %v2899 = vsel %vm483, %v2844, 0
        %v2902 = vsel %vm483, %v2845, 0
        %v2905 = vsel %vm483, %v2846, 0
        %v2908 = vsel %vm483, %v2847, 0
        %v2911 = vsel %vm483, %v2848, 0
        %v2914 = vsel %vm483, %v2849, 0
        %v2917 = vsel %vm483, %v2850, 0
        %v2920 = vsel %vm483, %v2851, 0
        %v2923 = vsel %vm483, %v2852, 0
        %v2926 = vsel %vm483, %v2853, 0
        %v2929 = vsel %vm483, %v2854, 0
        %v2932 = vsel %vm483, %v2855, 0
        %v2935 = vsel %vm483, %v2856, 0
        %v2938 = vsel %vm483, %v2857, 0
        %v2941 = vsel %vm790, %v2891, 0
        %2943 = vmatprep.subr.bf16.mxu0 0
        %2944 = vmatpush1.bf16.msra.mxu0 %v2941
        %2945 = vmatprep.subr.bf16.mxu0 0
        %2946 = vmatpush1.bf16.msra.mxu0 0
        %2947 = vmatprep.subr.bf16.mxu0 0
        %2948 = vmatpush1.bf16.msra.mxu0 0
        %2949 = vmatprep.subr.bf16.mxu0 0
        %2950 = vmatpush1.bf16.msra.mxu0 0
        %2951 = vmatprep.subr.bf16.mxu0 0
        %2952 = vmatpush1.bf16.msra.mxu0 0
        %2953 = vmatprep.subr.bf16.mxu0 0
        %2954 = vmatpush1.bf16.msra.mxu0 0
        %2955 = vmatprep.subr.bf16.mxu0 0
        %2956 = vmatpush1.bf16.msra.mxu0 0
        %2957 = vmatprep.subr.bf16.mxu0 0
        %2958 = vmatpush1.bf16.msra.mxu0 0
        %2959 = vmatprep.subr.bf16.mxu0 0
        %2960 = vmatpush1.bf16.msra.mxu0 0
        %2961 = vmatprep.subr.bf16.mxu0 0
        %2962 = vmatpush1.bf16.msra.mxu0 0
        %2963 = vmatprep.subr.bf16.mxu0 0
        %2964 = vmatpush1.bf16.msra.mxu0 0
        %2965 = vmatprep.subr.bf16.mxu0 0
        %2966 = vmatpush1.bf16.msra.mxu0 0
        %2967 = vmatprep.subr.bf16.mxu0 0
        %2968 = vmatpush1.bf16.msra.mxu0 0
        %2969 = vmatprep.subr.bf16.mxu0 0
        %2970 = vmatpush1.bf16.msra.mxu0 0
        %2971 = vmatprep.subr.bf16.mxu0 0
        %2972 = vmatpush1.bf16.msra.mxu0 0
        %2973 = vmatprep.subr.bf16.mxu0 0
        %2974 = vmatpush1.bf16.msra.mxu0 0
        %2975 = vmatprep.mubr.bf16.mxu0 0
        %2976 = vmatmul.mubr.bf16.gmra.mrb[0].mxu0 %v2893
        %v2977 = vpop.f32.mrb[0].mxu0
        %v2978 = vadd.f32 0.0, %v2977
        %v2979 = vpop.f32.mrb[0].mxu0
        %v2980 = vpop.f32.mrb[0].mxu0
        %v2981 = vadd.f32 0.0, %v2980
        %v2982 = vpop.f32.mrb[0].mxu0
        %2983 = vmatprep.mubr.bf16.mxu0 0
        %2984 = vmatmul.mubr.bf16.gmra.mrb[0].mxu0 %v2896
        %v2985 = vpop.f32.mrb[0].mxu0
        %v2986 = vadd.f32 0.0, %v2985
        %v2987 = vpop.f32.mrb[0].mxu0
        %v2988 = vpop.f32.mrb[0].mxu0
        %v2989 = vadd.f32 0.0, %v2988
        %v2990 = vpop.f32.mrb[0].mxu0
        %2991 = vmatprep.mubr.bf16.mxu0 0
        %2992 = vmatmul.mubr.bf16.gmra.mrb[0].mxu0 %v2899
        %v2993 = vpop.f32.mrb[0].mxu0
        %v2994 = vadd.f32 0.0, %v2993
        %v2995 = vpop.f32.mrb[0].mxu0
        %v2996 = vpop.f32.mrb[0].mxu0
        %v2997 = vadd.f32 0.0, %v2996
        %v2998 = vpop.f32.mrb[0].mxu0
        %2999 = vmatprep.mubr.bf16.mxu0 0
        %3000 = vmatmul.mubr.bf16.gmra.mrb[0].mxu0 %v2902
        %v3001 = vpop.f32.mrb[0].mxu0
        %v3002 = vadd.f32 0.0, %v3001
        %v3003 = vpop.f32.mrb[0].mxu0
        %v3004 = vpop.f32.mrb[0].mxu0
        %v3005 = vadd.f32 0.0, %v3004
        %v3006 = vpop.f32.mrb[0].mxu0
        %3007 = vmatprep.mubr.bf16.mxu0 0
        %3008 = vmatmul.mubr.bf16.gmra.mrb[0].mxu0 %v2905
        %v3009 = vpop.f32.mrb[0].mxu0
        %v3010 = vadd.f32 0.0, %v3009
        %v3011 = vpop.f32.mrb[0].mxu0
        %v3012 = vpop.f32.mrb[0].mxu0
        %v3013 = vadd.f32 0.0, %v3012
        %v3014 = vpop.f32.mrb[0].mxu0
        %3015 = vmatprep.mubr.bf16.mxu0 0
        %3016 = vmatmul.mubr.bf16.gmra.mrb[0].mxu0 %v2908
        %v3017 = vpop.f32.mrb[0].mxu0
        %v3018 = vadd.f32 0.0, %v3017
        %v3019 = vpop.f32.mrb[0].mxu0
        %v3020 = vpop.f32.mrb[0].mxu0
        %v3021 = vadd.f32 0.0, %v3020
        %v3022 = vpop.f32.mrb[0].mxu0
        %3023 = vmatprep.mubr.bf16.mxu0 0
        %3024 = vmatmul.mubr.bf16.gmra.mrb[0].mxu0 %v2911
        %v3025 = vpop.f32.mrb[0].mxu0
        %v3026 = vadd.f32 0.0, %v3025
        %v3027 = vpop.f32.mrb[0].mxu0
        %v3028 = vpop.f32.mrb[0].mxu0
        %v3029 = vadd.f32 0.0, %v3028
        %v3030 = vpop.f32.mrb[0].mxu0
        %3031 = vmatprep.mubr.bf16.mxu0 0
        %3032 = vmatmul.mubr.bf16.gmra.mrb[0].mxu0 %v2914
        %v3033 = vpop.f32.mrb[0].mxu0
        %v3034 = vadd.f32 0.0, %v3033
        %v3035 = vpop.f32.mrb[0].mxu0
        %v3036 = vpop.f32.mrb[0].mxu0
        %v3037 = vadd.f32 0.0, %v3036
        %v3038 = vpop.f32.mrb[0].mxu0
        %3039 = vmatprep.mubr.bf16.mxu0 0
        %3040 = vmatmul.mubr.bf16.gmra.mrb[0].mxu0 %v2917
        %v3041 = vpop.f32.mrb[0].mxu0
        %v3042 = vadd.f32 0.0, %v3041
        %v3043 = vpop.f32.mrb[0].mxu0
        %v3044 = vpop.f32.mrb[0].mxu0
        %v3045 = vadd.f32 0.0, %v3044
        %v3046 = vpop.f32.mrb[0].mxu0
        %3047 = vmatprep.mubr.bf16.mxu0 0
        %3048 = vmatmul.mubr.bf16.gmra.mrb[0].mxu0 %v2920
        %v3049 = vpop.f32.mrb[0].mxu0
        %v3050 = vadd.f32 0.0, %v3049
        %v3051 = vpop.f32.mrb[0].mxu0
        %v3052 = vpop.f32.mrb[0].mxu0
        %v3053 = vadd.f32 0.0, %v3052
        %v3054 = vpop.f32.mrb[0].mxu0
        %3055 = vmatprep.mubr.bf16.mxu0 0
        %3056 = vmatmul.mubr.bf16.gmra.mrb[0].mxu0 %v2923
        %v3057 = vpop.f32.mrb[0].mxu0
        %v3058 = vadd.f32 0.0, %v3057
        %v3059 = vpop.f32.mrb[0].mxu0
        %v3060 = vpop.f32.mrb[0].mxu0
        %v3061 = vadd.f32 0.0, %v3060
        %v3062 = vpop.f32.mrb[0].mxu0
        %3063 = vmatprep.mubr.bf16.mxu0 0
        %3064 = vmatmul.mubr.bf16.gmra.mrb[0].mxu0 %v2926
        %v3065 = vpop.f32.mrb[0].mxu0
        %v3066 = vadd.f32 0.0, %v3065
        %v3067 = vpop.f32.mrb[0].mxu0
        %v3068 = vpop.f32.mrb[0].mxu0
        %v3069 = vadd.f32 0.0, %v3068
        %v3070 = vpop.f32.mrb[0].mxu0
        %3071 = vmatprep.mubr.bf16.mxu0 0
        %3072 = vmatmul.mubr.bf16.gmra.mrb[0].mxu0 %v2929
        %v3073 = vpop.f32.mrb[0].mxu0
        %v3074 = vadd.f32 0.0, %v3073
        %v3075 = vpop.f32.mrb[0].mxu0
        %v3076 = vpop.f32.mrb[0].mxu0
        %v3077 = vadd.f32 0.0, %v3076
        %v3078 = vpop.f32.mrb[0].mxu0
        %3079 = vmatprep.mubr.bf16.mxu0 0
        %3080 = vmatmul.mubr.bf16.gmra.mrb[0].mxu0 %v2932
        %v3081 = vpop.f32.mrb[0].mxu0
        %v3082 = vadd.f32 0.0, %v3081
        %v3083 = vpop.f32.mrb[0].mxu0
        %v3084 = vpop.f32.mrb[0].mxu0
        %v3085 = vadd.f32 0.0, %v3084
        %v3086 = vpop.f32.mrb[0].mxu0
        %3087 = vmatprep.mubr.bf16.mxu0 0
        %3088 = vmatmul.mubr.bf16.gmra.mrb[0].mxu0 %v2935
        %v3089 = vpop.f32.mrb[0].mxu0
        %v3090 = vadd.f32 0.0, %v3089
        %v3091 = vpop.f32.mrb[0].mxu0
        %v3092 = vpop.f32.mrb[0].mxu0
        %v3093 = vadd.f32 0.0, %v3092
        %v3094 = vpop.f32.mrb[0].mxu0
        %3095 = vmatprep.mubr.bf16.mxu0 0
        %3096 = vmatmul.mubr.bf16.gmra.mrb[0].mxu0 %v2938
        %v3097 = vpop.f32.mrb[0].mxu0
        %v3098 = vadd.f32 0.0, %v3097
        %v3099 = vpop.f32.mrb[0].mxu0
        %v3100 = vpop.f32.mrb[0].mxu0
        %v3101 = vadd.f32 0.0, %v3100
        %v3102 = vpop.f32.mrb[0].mxu0
        %3103 = vdwg.mxu0
        %v3104 = vadd.f32 %v2858, %v2978
        %v3105 = vadd.f32 %v2859, %v2981
        %v3106 = vadd.f32 %v2860, %v2986
        %v3107 = vadd.f32 %v2861, %v2989
        %v3108 = vadd.f32 %v2862, %v2994
        %v3109 = vadd.f32 %v2863, %v2997
        %v3110 = vadd.f32 %v2864, %v3002
        %v3111 = vadd.f32 %v2865, %v3005
        %v3112 = vadd.f32 %v2866, %v3010
        %v3113 = vadd.f32 %v2867, %v3013
        %v3114 = vadd.f32 %v2868, %v3018
        %v3115 = vadd.f32 %v2869, %v3021
        %v3116 = vadd.f32 %v2870, %v3026
        %v3117 = vadd.f32 %v2871, %v3029
        %v3118 = vadd.f32 %v2872, %v3034
        %v3119 = vadd.f32 %v2873, %v3037
        %v3120 = vadd.f32 %v2874, %v3042
        %v3121 = vadd.f32 %v2875, %v3045
        %v3122 = vadd.f32 %v2876, %v3050
        %v3123 = vadd.f32 %v2877, %v3053
        %v3124 = vadd.f32 %v2878, %v3058
        %v3125 = vadd.f32 %v2879, %v3061
        %v3126 = vadd.f32 %v2880, %v3066
        %v3127 = vadd.f32 %v2881, %v3069
        %v3128 = vadd.f32 %v2882, %v3074
        %v3129 = vadd.f32 %v2883, %v3077
        %v3130 = vadd.f32 %v2884, %v3082
        %v3131 = vadd.f32 %v2885, %v3085
        %v3132 = vadd.f32 %v2886, %v3090
        %v3133 = vadd.f32 %v2887, %v3093
        %v3134 = vadd.f32 %v2888, %v3098
        %v3135 = vadd.f32 %v2889, %v3101
        %3136 = vst [vmem:[#allocation3] sm:$0xff] %v3104
        %3137 = vst [vmem:[#allocation3 + $0x8] sm:$0xff] %v3105
        %3138 = vst [vmem:[#allocation3 + $0x10] sm:$0xff] %v3106
        %3139 = vst [vmem:[#allocation3 + $0x18] sm:$0xff] %v3107
        %3140 = vst [vmem:[#allocation3 + $0x20] sm:$0xff] %v3108
        %3141 = vst [vmem:[#allocation3 + $0x28] sm:$0xff] %v3109
        %3142 = vst [vmem:[#allocation3 + $0x30] sm:$0xff] %v3110
        %3143 = vst [vmem:[#allocation3 + $0x38] sm:$0xff] %v3111
        %3144 = vst [vmem:[#allocation3 + $0x40] sm:$0xff] %v3112
        %3145 = vst [vmem:[#allocation3 + $0x48] sm:$0xff] %v3113
        %3146 = vst [vmem:[#allocation3 + $0x50] sm:$0xff] %v3114
        %3147 = vst [vmem:[#allocation3 + $0x58] sm:$0xff] %v3115
        %3148 = vst [vmem:[#allocation3 + $0x60] sm:$0xff] %v3116
        %3149 = vst [vmem:[#allocation3 + $0x68] sm:$0xff] %v3117
        %3150 = vst [vmem:[#allocation3 + $0x70] sm:$0xff] %v3118
        %3151 = vst [vmem:[#allocation3 + $0x78] sm:$0xff] %v3119
        %3152 = vst [vmem:[#allocation3 + $0x80] sm:$0xff] %v3120
        %3153 = vst [vmem:[#allocation3 + $0x88] sm:$0xff] %v3121
        %3154 = vst [vmem:[#allocation3 + $0x90] sm:$0xff] %v3122
        %3155 = vst [vmem:[#allocation3 + $0x98] sm:$0xff] %v3123
        %3156 = vst [vmem:[#allocation3 + $0xa0] sm:$0xff] %v3124
        %3157 = vst [vmem:[#allocation3 + $0xa8] sm:$0xff] %v3125
        %3158 = vst [vmem:[#allocation3 + $0xb0] sm:$0xff] %v3126
        %3159 = vst [vmem:[#allocation3 + $0xb8] sm:$0xff] %v3127
        %3160 = vst [vmem:[#allocation3 + $0xc0] sm:$0xff] %v3128
        %3161 = vst [vmem:[#allocation3 + $0xc8] sm:$0xff] %v3129
        %3162 = vst [vmem:[#allocation3 + $0xd0] sm:$0xff] %v3130
        %3163 = vst [vmem:[#allocation3 + $0xd8] sm:$0xff] %v3131
        %3164 = vst [vmem:[#allocation3 + $0xe0] sm:$0xff] %v3132
        %3165 = vst [vmem:[#allocation3 + $0xe8] sm:$0xff] %v3133
        %3166 = vst [vmem:[#allocation3 + $0xf0] sm:$0xff] %v3134
        %3167 = vst [vmem:[#allocation3 + $0xf8] sm:$0xff] %v3135
        %v3168 = vld [vmem:[%s2809 + $0x8] sm:$0xff]
        %v3169 = vld [vmem:[%s2809 + $0x10] sm:$0xff]
        %v3170 = vld [vmem:[%s2809 + $0x28] sm:$0xff]
        %v3171 = vld [vmem:[%s2809 + $0x30] sm:$0xff]
        %v3172 = vld [vmem:[%s2809 + $0x48] sm:$0xff]
        %v3173 = vld [vmem:[%s2809 + $0x50] sm:$0xff]
        %v3174 = vld [vmem:[%s2809 + $0x68] sm:$0xff]
        %v3175 = vld [vmem:[%s2809 + $0x70] sm:$0xff]
        %v3176 = vld [vmem:[%s2809 + $0x88] sm:$0xff]
        %v3177 = vld [vmem:[%s2809 + $0x90] sm:$0xff]
        %v3178 = vld [vmem:[%s2809 + $0xa8] sm:$0xff]
        %v3179 = vld [vmem:[%s2809 + $0xb0] sm:$0xff]
        %v3180 = vld [vmem:[%s2809 + $0xc8] sm:$0xff]
        %v3181 = vld [vmem:[%s2809 + $0xd0] sm:$0xff]
        %v3182 = vld [vmem:[%s2809 + $0xe8] sm:$0xff]
        %v3183 = vld [vmem:[%s2809 + $0xf0] sm:$0xff]
        %v3184 = vld [vmem:[%s2809 + $0x108] sm:$0xff]
        %v3185 = vld [vmem:[%s2809 + $0x110] sm:$0xff]
        %v3186 = vld [vmem:[%s2809 + $0x128] sm:$0xff]
        %v3187 = vld [vmem:[%s2809 + $0x130] sm:$0xff]
        %v3188 = vld [vmem:[%s2809 + $0x148] sm:$0xff]
        %v3189 = vld [vmem:[%s2809 + $0x150] sm:$0xff]
        %v3190 = vld [vmem:[%s2809 + $0x168] sm:$0xff]
        %v3191 = vld [vmem:[%s2809 + $0x170] sm:$0xff]
        %v3192 = vld [vmem:[%s2809 + $0x188] sm:$0xff]
        %v3193 = vld [vmem:[%s2809 + $0x190] sm:$0xff]
        %v3194 = vld [vmem:[%s2809 + $0x1a8] sm:$0xff]
        %v3195 = vld [vmem:[%s2809 + $0x1b0] sm:$0xff]
        %v3196 = vld [vmem:[%s2809 + $0x1c8] sm:$0xff]
        %v3197 = vld [vmem:[%s2809 + $0x1d0] sm:$0xff]
        %v3198 = vld [vmem:[%s2809 + $0x1e8] sm:$0xff]
        %v3199 = vld [vmem:[%s2809 + $0x1f0] sm:$0xff]
        %v3200 = vpack.c.bf16 %v3169, %v3168
        %v3201 = vpack.c.bf16 %v3171, %v3170
        %v3202 = vpack.c.bf16 %v3173, %v3172
        %v3203 = vpack.c.bf16 %v3175, %v3174
        %v3204 = vpack.c.bf16 %v3177, %v3176
        %v3205 = vpack.c.bf16 %v3179, %v3178
        %v3206 = vpack.c.bf16 %v3181, %v3180
        %v3207 = vpack.c.bf16 %v3183, %v3182
        %v3208 = vpack.c.bf16 %v3185, %v3184
        %v3209 = vpack.c.bf16 %v3187, %v3186
        %v3210 = vpack.c.bf16 %v3189, %v3188
        %v3211 = vpack.c.bf16 %v3191, %v3190
        %v3212 = vpack.c.bf16 %v3193, %v3192
        %v3213 = vpack.c.bf16 %v3195, %v3194
        %v3214 = vpack.c.bf16 %v3197, %v3196
        %v3215 = vpack.c.bf16 %v3199, %v3198
        %v3216 = vld [vmem:[#allocation3] sm:$0xff]
        %v3217 = vld [vmem:[#allocation3 + $0x8] sm:$0xff]
        %v3218 = vld [vmem:[#allocation3 + $0x10] sm:$0xff]
        %v3219 = vld [vmem:[#allocation3 + $0x18] sm:$0xff]
        %v3220 = vld [vmem:[#allocation3 + $0x20] sm:$0xff]
        %v3221 = vld [vmem:[#allocation3 + $0x28] sm:$0xff]
        %v3222 = vld [vmem:[#allocation3 + $0x30] sm:$0xff]
        %v3223 = vld [vmem:[#allocation3 + $0x38] sm:$0xff]
        %v3224 = vld [vmem:[#allocation3 + $0x40] sm:$0xff]
        %v3225 = vld [vmem:[#allocation3 + $0x48] sm:$0xff]
        %v3226 = vld [vmem:[#allocation3 + $0x50] sm:$0xff]
        %v3227 = vld [vmem:[#allocation3 + $0x58] sm:$0xff]
        %v3228 = vld [vmem:[#allocation3 + $0x60] sm:$0xff]
        %v3229 = vld [vmem:[#allocation3 + $0x68] sm:$0xff]
        %v3230 = vld [vmem:[#allocation3 + $0x70] sm:$0xff]
        %v3231 = vld [vmem:[#allocation3 + $0x78] sm:$0xff]
        %v3232 = vld [vmem:[#allocation3 + $0x80] sm:$0xff]
        %v3233 = vld [vmem:[#allocation3 + $0x88] sm:$0xff]
        %v3234 = vld [vmem:[#allocation3 + $0x90] sm:$0xff]
        %v3235 = vld [vmem:[#allocation3 + $0x98] sm:$0xff]
        %v3236 = vld [vmem:[#allocation3 + $0xa0] sm:$0xff]
        %v3237 = vld [vmem:[#allocation3 + $0xa8] sm:$0xff]
        %v3238 = vld [vmem:[#allocation3 + $0xb0] sm:$0xff]
        %v3239 = vld [vmem:[#allocation3 + $0xb8] sm:$0xff]
        %v3240 = vld [vmem:[#allocation3 + $0xc0] sm:$0xff]
        %v3241 = vld [vmem:[#allocation3 + $0xc8] sm:$0xff]
        %v3242 = vld [vmem:[#allocation3 + $0xd0] sm:$0xff]
        %v3243 = vld [vmem:[#allocation3 + $0xd8] sm:$0xff]
        %v3244 = vld [vmem:[#allocation3 + $0xe0] sm:$0xff]
        %v3245 = vld [vmem:[#allocation3 + $0xe8] sm:$0xff]
        %v3246 = vld [vmem:[#allocation3 + $0xf0] sm:$0xff]
        %v3247 = vld [vmem:[#allocation3 + $0xf8] sm:$0xff]
        %s3248 = scalar_lea.vmem %s1, 28
        %v3249 = vld [vmem:[%s3248] sm:$0xf]
        %v3251 = vsel %vm483, %v3200, 0
        %v3254 = vsel %vm483, %v3201, 0
        %v3257 = vsel %vm483, %v3202, 0
        %v3260 = vsel %vm483, %v3203, 0
        %v3263 = vsel %vm483, %v3204, 0
        %v3266 = vsel %vm483, %v3205, 0
        %v3269 = vsel %vm483, %v3206, 0
        %v3272 = vsel %vm483, %v3207, 0
        %v3275 = vsel %vm483, %v3208, 0
        %v3278 = vsel %vm483, %v3209, 0
        %v3281 = vsel %vm483, %v3210, 0
        %v3284 = vsel %vm483, %v3211, 0
        %v3287 = vsel %vm483, %v3212, 0
        %v3290 = vsel %vm483, %v3213, 0
        %v3293 = vsel %vm483, %v3214, 0
        %v3296 = vsel %vm483, %v3215, 0
        %v3299 = vsel %vm790, %v3249, 0
        %3301 = vmatprep.subr.bf16.mxu0 0
        %3302 = vmatpush1.bf16.msra.mxu0 %v3299
        %3303 = vmatprep.subr.bf16.mxu0 0
        %3304 = vmatpush1.bf16.msra.mxu0 0
        %3305 = vmatprep.subr.bf16.mxu0 0
        %3306 = vmatpush1.bf16.msra.mxu0 0
        %3307 = vmatprep.subr.bf16.mxu0 0
        %3308 = vmatpush1.bf16.msra.mxu0 0
        %3309 = vmatprep.subr.bf16.mxu0 0
        %3310 = vmatpush1.bf16.msra.mxu0 0
        %3311 = vmatprep.subr.bf16.mxu0 0
        %3312 = vmatpush1.bf16.msra.mxu0 0
        %3313 = vmatprep.subr.bf16.mxu0 0
        %3314 = vmatpush1.bf16.msra.mxu0 0
        %3315 = vmatprep.subr.bf16.mxu0 0
        %3316 = vmatpush1.bf16.msra.mxu0 0
        %3317 = vmatprep.subr.bf16.mxu0 0
        %3318 = vmatpush1.bf16.msra.mxu0 0
        %3319 = vmatprep.subr.bf16.mxu0 0
        %3320 = vmatpush1.bf16.msra.mxu0 0
        %3321 = vmatprep.subr.bf16.mxu0 0
        %3322 = vmatpush1.bf16.msra.mxu0 0
        %3323 = vmatprep.subr.bf16.mxu0 0
        %3324 = vmatpush1.bf16.msra.mxu0 0
        %3325 = vmatprep.subr.bf16.mxu0 0
        %3326 = vmatpush1.bf16.msra.mxu0 0
        %3327 = vmatprep.subr.bf16.mxu0 0
        %3328 = vmatpush1.bf16.msra.mxu0 0
        %3329 = vmatprep.subr.bf16.mxu0 0
        %3330 = vmatpush1.bf16.msra.mxu0 0
        %3331 = vmatprep.subr.bf16.mxu0 0
        %3332 = vmatpush1.bf16.msra.mxu0 0
        %3333 = vmatprep.mubr.bf16.mxu0 0
        %3334 = vmatmul.mubr.bf16.gmra.mrb[0].mxu0 %v3251
        %v3335 = vpop.f32.mrb[0].mxu0
        %v3336 = vadd.f32 0.0, %v3335
        %v3337 = vpop.f32.mrb[0].mxu0
        %v3338 = vpop.f32.mrb[0].mxu0
        %v3339 = vadd.f32 0.0, %v3338
        %v3340 = vpop.f32.mrb[0].mxu0
        %3341 = vmatprep.mubr.bf16.mxu0 0
        %3342 = vmatmul.mubr.bf16.gmra.mrb[0].mxu0 %v3254
        %v3343 = vpop.f32.mrb[0].mxu0
        %v3344 = vadd.f32 0.0, %v3343
        %v3345 = vpop.f32.mrb[0].mxu0
        %v3346 = vpop.f32.mrb[0].mxu0
        %v3347 = vadd.f32 0.0, %v3346
        %v3348 = vpop.f32.mrb[0].mxu0
        %3349 = vmatprep.mubr.bf16.mxu0 0
        %3350 = vmatmul.mubr.bf16.gmra.mrb[0].mxu0 %v3257
        %v3351 = vpop.f32.mrb[0].mxu0
        %v3352 = vadd.f32 0.0, %v3351
        %v3353 = vpop.f32.mrb[0].mxu0
        %v3354 = vpop.f32.mrb[0].mxu0
        %v3355 = vadd.f32 0.0, %v3354
        %v3356 = vpop.f32.mrb[0].mxu0
        %3357 = vmatprep.mubr.bf16.mxu0 0
        %3358 = vmatmul.mubr.bf16.gmra.mrb[0].mxu0 %v3260
        %v3359 = vpop.f32.mrb[0].mxu0
        %v3360 = vadd.f32 0.0, %v3359
        %v3361 = vpop.f32.mrb[0].mxu0
        %v3362 = vpop.f32.mrb[0].mxu0
        %v3363 = vadd.f32 0.0, %v3362
        %v3364 = vpop.f32.mrb[0].mxu0
        %3365 = vmatprep.mubr.bf16.mxu0 0
        %3366 = vmatmul.mubr.bf16.gmra.mrb[0].mxu0 %v3263
        %v3367 = vpop.f32.mrb[0].mxu0
        %v3368 = vadd.f32 0.0, %v3367
        %v3369 = vpop.f32.mrb[0].mxu0
        %v3370 = vpop.f32.mrb[0].mxu0
        %v3371 = vadd.f32 0.0, %v3370
        %v3372 = vpop.f32.mrb[0].mxu0
        %3373 = vmatprep.mubr.bf16.mxu0 0
        %3374 = vmatmul.mubr.bf16.gmra.mrb[0].mxu0 %v3266
        %v3375 = vpop.f32.mrb[0].mxu0
        %v3376 = vadd.f32 0.0, %v3375
        %v3377 = vpop.f32.mrb[0].mxu0
        %v3378 = vpop.f32.mrb[0].mxu0
        %v3379 = vadd.f32 0.0, %v3378
        %v3380 = vpop.f32.mrb[0].mxu0
        %3381 = vmatprep.mubr.bf16.mxu0 0
        %3382 = vmatmul.mubr.bf16.gmra.mrb[0].mxu0 %v3269
        %v3383 = vpop.f32.mrb[0].mxu0
        %v3384 = vadd.f32 0.0, %v3383
        %v3385 = vpop.f32.mrb[0].mxu0
        %v3386 = vpop.f32.mrb[0].mxu0
        %v3387 = vadd.f32 0.0, %v3386
        %v3388 = vpop.f32.mrb[0].mxu0
        %3389 = vmatprep.mubr.bf16.mxu0 0
        %3390 = vmatmul.mubr.bf16.gmra.mrb[0].mxu0 %v3272
        %v3391 = vpop.f32.mrb[0].mxu0
        %v3392 = vadd.f32 0.0, %v3391
        %v3393 = vpop.f32.mrb[0].mxu0
        %v3394 = vpop.f32.mrb[0].mxu0
        %v3395 = vadd.f32 0.0, %v3394
        %v3396 = vpop.f32.mrb[0].mxu0
        %3397 = vmatprep.mubr.bf16.mxu0 0
        %3398 = vmatmul.mubr.bf16.gmra.mrb[0].mxu0 %v3275
        %v3399 = vpop.f32.mrb[0].mxu0
        %v3400 = vadd.f32 0.0, %v3399
        %v3401 = vpop.f32.mrb[0].mxu0
        %v3402 = vpop.f32.mrb[0].mxu0
        %v3403 = vadd.f32 0.0, %v3402
        %v3404 = vpop.f32.mrb[0].mxu0
        %3405 = vmatprep.mubr.bf16.mxu0 0
        %3406 = vmatmul.mubr.bf16.gmra.mrb[0].mxu0 %v3278
        %v3407 = vpop.f32.mrb[0].mxu0
        %v3408 = vadd.f32 0.0, %v3407
        %v3409 = vpop.f32.mrb[0].mxu0
        %v3410 = vpop.f32.mrb[0].mxu0
        %v3411 = vadd.f32 0.0, %v3410
        %v3412 = vpop.f32.mrb[0].mxu0
        %3413 = vmatprep.mubr.bf16.mxu0 0
        %3414 = vmatmul.mubr.bf16.gmra.mrb[0].mxu0 %v3281
        %v3415 = vpop.f32.mrb[0].mxu0
        %v3416 = vadd.f32 0.0, %v3415
        %v3417 = vpop.f32.mrb[0].mxu0
        %v3418 = vpop.f32.mrb[0].mxu0
        %v3419 = vadd.f32 0.0, %v3418
        %v3420 = vpop.f32.mrb[0].mxu0
        %3421 = vmatprep.mubr.bf16.mxu0 0
        %3422 = vmatmul.mubr.bf16.gmra.mrb[0].mxu0 %v3284
        %v3423 = vpop.f32.mrb[0].mxu0
        %v3424 = vadd.f32 0.0, %v3423
        %v3425 = vpop.f32.mrb[0].mxu0
        %v3426 = vpop.f32.mrb[0].mxu0
        %v3427 = vadd.f32 0.0, %v3426
        %v3428 = vpop.f32.mrb[0].mxu0
        %3429 = vmatprep.mubr.bf16.mxu0 0
        %3430 = vmatmul.mubr.bf16.gmra.mrb[0].mxu0 %v3287
        %v3431 = vpop.f32.mrb[0].mxu0
        %v3432 = vadd.f32 0.0, %v3431
        %v3433 = vpop.f32.mrb[0].mxu0
        %v3434 = vpop.f32.mrb[0].mxu0
        %v3435 = vadd.f32 0.0, %v3434
        %v3436 = vpop.f32.mrb[0].mxu0
        %3437 = vmatprep.mubr.bf16.mxu0 0
        %3438 = vmatmul.mubr.bf16.gmra.mrb[0].mxu0 %v3290
        %v3439 = vpop.f32.mrb[0].mxu0
        %v3440 = vadd.f32 0.0, %v3439
        %v3441 = vpop.f32.mrb[0].mxu0
        %v3442 = vpop.f32.mrb[0].mxu0
        %v3443 = vadd.f32 0.0, %v3442
        %v3444 = vpop.f32.mrb[0].mxu0
        %3445 = vmatprep.mubr.bf16.mxu0 0
        %3446 = vmatmul.mubr.bf16.gmra.mrb[0].mxu0 %v3293
        %v3447 = vpop.f32.mrb[0].mxu0
        %v3448 = vadd.f32 0.0, %v3447
        %v3449 = vpop.f32.mrb[0].mxu0
        %v3450 = vpop.f32.mrb[0].mxu0
        %v3451 = vadd.f32 0.0, %v3450
        %v3452 = vpop.f32.mrb[0].mxu0
        %3453 = vmatprep.mubr.bf16.mxu0 0
        %3454 = vmatmul.mubr.bf16.gmra.mrb[0].mxu0 %v3296
        %v3455 = vpop.f32.mrb[0].mxu0
        %v3456 = vadd.f32 0.0, %v3455
        %v3457 = vpop.f32.mrb[0].mxu0
        %v3458 = vpop.f32.mrb[0].mxu0
        %v3459 = vadd.f32 0.0, %v3458
        %v3460 = vpop.f32.mrb[0].mxu0
        %3461 = vdwg.mxu0
        %v3462 = vadd.f32 %v3216, %v3336
        %v3463 = vadd.f32 %v3217, %v3339
        %v3464 = vadd.f32 %v3218, %v3344
        %v3465 = vadd.f32 %v3219, %v3347
        %v3466 = vadd.f32 %v3220, %v3352
        %v3467 = vadd.f32 %v3221, %v3355
        %v3468 = vadd.f32 %v3222, %v3360
        %v3469 = vadd.f32 %v3223, %v3363
        %v3470 = vadd.f32 %v3224, %v3368
        %v3471 = vadd.f32 %v3225, %v3371
        %v3472 = vadd.f32 %v3226, %v3376
        %v3473 = vadd.f32 %v3227, %v3379
        %v3474 = vadd.f32 %v3228, %v3384
        %v3475 = vadd.f32 %v3229, %v3387
        %v3476 = vadd.f32 %v3230, %v3392
        %v3477 = vadd.f32 %v3231, %v3395
        %v3478 = vadd.f32 %v3232, %v3400
        %v3479 = vadd.f32 %v3233, %v3403
        %v3480 = vadd.f32 %v3234, %v3408
        %v3481 = vadd.f32 %v3235, %v3411
        %v3482 = vadd.f32 %v3236, %v3416
        %v3483 = vadd.f32 %v3237, %v3419
        %v3484 = vadd.f32 %v3238, %v3424
        %v3485 = vadd.f32 %v3239, %v3427
        %v3486 = vadd.f32 %v3240, %v3432
        %v3487 = vadd.f32 %v3241, %v3435
        %v3488 = vadd.f32 %v3242, %v3440
        %v3489 = vadd.f32 %v3243, %v3443
        %v3490 = vadd.f32 %v3244, %v3448
        %v3491 = vadd.f32 %v3245, %v3451
        %v3492 = vadd.f32 %v3246, %v3456
        %v3493 = vadd.f32 %v3247, %v3459
        %3494 = vst [vmem:[#allocation3] sm:$0xff] %v3462
        %3495 = vst [vmem:[#allocation3 + $0x8] sm:$0xff] %v3463
        %3496 = vst [vmem:[#allocation3 + $0x10] sm:$0xff] %v3464
        %3497 = vst [vmem:[#allocation3 + $0x18] sm:$0xff] %v3465
        %3498 = vst [vmem:[#allocation3 + $0x20] sm:$0xff] %v3466
        %3499 = vst [vmem:[#allocation3 + $0x28] sm:$0xff] %v3467
        %3500 = vst [vmem:[#allocation3 + $0x30] sm:$0xff] %v3468
        %3501 = vst [vmem:[#allocation3 + $0x38] sm:$0xff] %v3469
        %3502 = vst [vmem:[#allocation3 + $0x40] sm:$0xff] %v3470
        %3503 = vst [vmem:[#allocation3 + $0x48] sm:$0xff] %v3471
        %3504 = vst [vmem:[#allocation3 + $0x50] sm:$0xff] %v3472
        %3505 = vst [vmem:[#allocation3 + $0x58] sm:$0xff] %v3473
        %3506 = vst [vmem:[#allocation3 + $0x60] sm:$0xff] %v3474
        %3507 = vst [vmem:[#allocation3 + $0x68] sm:$0xff] %v3475
        %3508 = vst [vmem:[#allocation3 + $0x70] sm:$0xff] %v3476
        %3509 = vst [vmem:[#allocation3 + $0x78] sm:$0xff] %v3477
        %3510 = vst [vmem:[#allocation3 + $0x80] sm:$0xff] %v3478
        %3511 = vst [vmem:[#allocation3 + $0x88] sm:$0xff] %v3479
        %3512 = vst [vmem:[#allocation3 + $0x90] sm:$0xff] %v3480
        %3513 = vst [vmem:[#allocation3 + $0x98] sm:$0xff] %v3481
        %3514 = vst [vmem:[#allocation3 + $0xa0] sm:$0xff] %v3482
        %3515 = vst [vmem:[#allocation3 + $0xa8] sm:$0xff] %v3483
        %3516 = vst [vmem:[#allocation3 + $0xb0] sm:$0xff] %v3484
        %3517 = vst [vmem:[#allocation3 + $0xb8] sm:$0xff] %v3485
        %3518 = vst [vmem:[#allocation3 + $0xc0] sm:$0xff] %v3486
        %3519 = vst [vmem:[#allocation3 + $0xc8] sm:$0xff] %v3487
        %3520 = vst [vmem:[#allocation3 + $0xd0] sm:$0xff] %v3488
        %3521 = vst [vmem:[#allocation3 + $0xd8] sm:$0xff] %v3489
        %3522 = vst [vmem:[#allocation3 + $0xe0] sm:$0xff] %v3490
        %3523 = vst [vmem:[#allocation3 + $0xe8] sm:$0xff] %v3491
        %3524 = vst [vmem:[#allocation3 + $0xf0] sm:$0xff] %v3492
        %3525 = vst [vmem:[#allocation3 + $0xf8] sm:$0xff] %v3493
        %v3526 = vld [vmem:[%s2809 + $0x9] sm:$0xff]
        %v3527 = vld [vmem:[%s2809 + $0x11] sm:$0xff]
        %v3528 = vld [vmem:[%s2809 + $0x29] sm:$0xff]
        %v3529 = vld [vmem:[%s2809 + $0x31] sm:$0xff]
        %v3530 = vld [vmem:[%s2809 + $0x49] sm:$0xff]
        %v3531 = vld [vmem:[%s2809 + $0x51] sm:$0xff]
        %v3532 = vld [vmem:[%s2809 + $0x69] sm:$0xff]
        %v3533 = vld [vmem:[%s2809 + $0x71] sm:$0xff]
        %v3534 = vld [vmem:[%s2809 + $0x89] sm:$0xff]
        %v3535 = vld [vmem:[%s2809 + $0x91] sm:$0xff]
        %v3536 = vld [vmem:[%s2809 + $0xa9] sm:$0xff]
        %v3537 = vld [vmem:[%s2809 + $0xb1] sm:$0xff]
        %v3538 = vld [vmem:[%s2809 + $0xc9] sm:$0xff]
        %v3539 = vld [vmem:[%s2809 + $0xd1] sm:$0xff]
        %v3540 = vld [vmem:[%s2809 + $0xe9] sm:$0xff]
        %v3541 = vld [vmem:[%s2809 + $0xf1] sm:$0xff]
        %v3542 = vld [vmem:[%s2809 + $0x109] sm:$0xff]
        %v3543 = vld [vmem:[%s2809 + $0x111] sm:$0xff]
        %v3544 = vld [vmem:[%s2809 + $0x129] sm:$0xff]
        %v3545 = vld [vmem:[%s2809 + $0x131] sm:$0xff]
        %v3546 = vld [vmem:[%s2809 + $0x149] sm:$0xff]
        %v3547 = vld [vmem:[%s2809 + $0x151] sm:$0xff]
        %v3548 = vld [vmem:[%s2809 + $0x169] sm:$0xff]
        %v3549 = vld [vmem:[%s2809 + $0x171] sm:$0xff]
        %v3550 = vld [vmem:[%s2809 + $0x189] sm:$0xff]
        %v3551 = vld [vmem:[%s2809 + $0x191] sm:$0xff]
        %v3552 = vld [vmem:[%s2809 + $0x1a9] sm:$0xff]
        %v3553 = vld [vmem:[%s2809 + $0x1b1] sm:$0xff]
        %v3554 = vld [vmem:[%s2809 + $0x1c9] sm:$0xff]
        %v3555 = vld [vmem:[%s2809 + $0x1d1] sm:$0xff]
        %v3556 = vld [vmem:[%s2809 + $0x1e9] sm:$0xff]
        %v3557 = vld [vmem:[%s2809 + $0x1f1] sm:$0xff]
        %v3558 = vpack.c.bf16 %v3527, %v3526
        %v3559 = vpack.c.bf16 %v3529, %v3528
        %v3560 = vpack.c.bf16 %v3531, %v3530
        %v3561 = vpack.c.bf16 %v3533, %v3532
        %v3562 = vpack.c.bf16 %v3535, %v3534
        %v3563 = vpack.c.bf16 %v3537, %v3536
        %v3564 = vpack.c.bf16 %v3539, %v3538
        %v3565 = vpack.c.bf16 %v3541, %v3540
        %v3566 = vpack.c.bf16 %v3543, %v3542
        %v3567 = vpack.c.bf16 %v3545, %v3544
        %v3568 = vpack.c.bf16 %v3547, %v3546
        %v3569 = vpack.c.bf16 %v3549, %v3548
        %v3570 = vpack.c.bf16 %v3551, %v3550
        %v3571 = vpack.c.bf16 %v3553, %v3552
        %v3572 = vpack.c.bf16 %v3555, %v3554
        %v3573 = vpack.c.bf16 %v3557, %v3556
        %v3574 = vld [vmem:[#allocation3] sm:$0xff]
        %v3575 = vld [vmem:[#allocation3 + $0x8] sm:$0xff]
        %v3576 = vld [vmem:[#allocation3 + $0x10] sm:$0xff]
        %v3577 = vld [vmem:[#allocation3 + $0x18] sm:$0xff]
        %v3578 = vld [vmem:[#allocation3 + $0x20] sm:$0xff]
        %v3579 = vld [vmem:[#allocation3 + $0x28] sm:$0xff]
        %v3580 = vld [vmem:[#allocation3 + $0x30] sm:$0xff]
        %v3581 = vld [vmem:[#allocation3 + $0x38] sm:$0xff]
        %v3582 = vld [vmem:[#allocation3 + $0x40] sm:$0xff]
        %v3583 = vld [vmem:[#allocation3 + $0x48] sm:$0xff]
        %v3584 = vld [vmem:[#allocation3 + $0x50] sm:$0xff]
        %v3585 = vld [vmem:[#allocation3 + $0x58] sm:$0xff]
        %v3586 = vld [vmem:[#allocation3 + $0x60] sm:$0xff]
        %v3587 = vld [vmem:[#allocation3 + $0x68] sm:$0xff]
        %v3588 = vld [vmem:[#allocation3 + $0x70] sm:$0xff]
        %v3589 = vld [vmem:[#allocation3 + $0x78] sm:$0xff]
        %v3590 = vld [vmem:[#allocation3 + $0x80] sm:$0xff]
        %v3591 = vld [vmem:[#allocation3 + $0x88] sm:$0xff]
        %v3592 = vld [vmem:[#allocation3 + $0x90] sm:$0xff]
        %v3593 = vld [vmem:[#allocation3 + $0x98] sm:$0xff]
        %v3594 = vld [vmem:[#allocation3 + $0xa0] sm:$0xff]
        %v3595 = vld [vmem:[#allocation3 + $0xa8] sm:$0xff]
        %v3596 = vld [vmem:[#allocation3 + $0xb0] sm:$0xff]
        %v3597 = vld [vmem:[#allocation3 + $0xb8] sm:$0xff]
        %v3598 = vld [vmem:[#allocation3 + $0xc0] sm:$0xff]
        %v3599 = vld [vmem:[#allocation3 + $0xc8] sm:$0xff]
        %v3600 = vld [vmem:[#allocation3 + $0xd0] sm:$0xff]
        %v3601 = vld [vmem:[#allocation3 + $0xd8] sm:$0xff]
        %v3602 = vld [vmem:[#allocation3 + $0xe0] sm:$0xff]
        %v3603 = vld [vmem:[#allocation3 + $0xe8] sm:$0xff]
        %v3604 = vld [vmem:[#allocation3 + $0xf0] sm:$0xff]
        %v3605 = vld [vmem:[#allocation3 + $0xf8] sm:$0xff]
        %s3606 = scalar_lea.vmem %s1, 32
        %v3607 = vld [vmem:[%s3606] sm:$0xf]
        %v3609 = vsel %vm483, %v3558, 0
        %v3612 = vsel %vm483, %v3559, 0
        %v3615 = vsel %vm483, %v3560, 0
        %v3618 = vsel %vm483, %v3561, 0
        %v3621 = vsel %vm483, %v3562, 0
        %v3624 = vsel %vm483, %v3563, 0
        %v3627 = vsel %vm483, %v3564, 0
        %v3630 = vsel %vm483, %v3565, 0
        %v3633 = vsel %vm483, %v3566, 0
        %v3636 = vsel %vm483, %v3567, 0
        %v3639 = vsel %vm483, %v3568, 0
        %v3642 = vsel %vm483, %v3569, 0
        %v3645 = vsel %vm483, %v3570, 0
        %v3648 = vsel %vm483, %v3571, 0
        %v3651 = vsel %vm483, %v3572, 0
        %v3654 = vsel %vm483, %v3573, 0
        %v3657 = vsel %vm790, %v3607, 0
        %3659 = vmatprep.subr.bf16.mxu0 0
        %3660 = vmatpush1.bf16.msra.mxu0 %v3657
        %3661 = vmatprep.subr.bf16.mxu0 0
        %3662 = vmatpush1.bf16.msra.mxu0 0
        %3663 = vmatprep.subr.bf16.mxu0 0
        %3664 = vmatpush1.bf16.msra.mxu0 0
        %3665 = vmatprep.subr.bf16.mxu0 0
        %3666 = vmatpush1.bf16.msra.mxu0 0
        %3667 = vmatprep.subr.bf16.mxu0 0
        %3668 = vmatpush1.bf16.msra.mxu0 0
        %3669 = vmatprep.subr.bf16.mxu0 0
        %3670 = vmatpush1.bf16.msra.mxu0 0
        %3671 = vmatprep.subr.bf16.mxu0 0
        %3672 = vmatpush1.bf16.msra.mxu0 0
        %3673 = vmatprep.subr.bf16.mxu0 0
        %3674 = vmatpush1.bf16.msra.mxu0 0
        %3675 = vmatprep.subr.bf16.mxu0 0
        %3676 = vmatpush1.bf16.msra.mxu0 0
        %3677 = vmatprep.subr.bf16.mxu0 0
        %3678 = vmatpush1.bf16.msra.mxu0 0
        %3679 = vmatprep.subr.bf16.mxu0 0
        %3680 = vmatpush1.bf16.msra.mxu0 0
        %3681 = vmatprep.subr.bf16.mxu0 0
        %3682 = vmatpush1.bf16.msra.mxu0 0
        %3683 = vmatprep.subr.bf16.mxu0 0
        %3684 = vmatpush1.bf16.msra.mxu0 0
        %3685 = vmatprep.subr.bf16.mxu0 0
        %3686 = vmatpush1.bf16.msra.mxu0 0
        %3687 = vmatprep.subr.bf16.mxu0 0
        %3688 = vmatpush1.bf16.msra.mxu0 0
        %3689 = vmatprep.subr.bf16.mxu0 0
        %3690 = vmatpush1.bf16.msra.mxu0 0
        %3691 = vmatprep.mubr.bf16.mxu0 0
        %3692 = vmatmul.mubr.bf16.gmra.mrb[0].mxu0 %v3609
        %v3693 = vpop.f32.mrb[0].mxu0
        %v3694 = vadd.f32 0.0, %v3693
        %v3695 = vpop.f32.mrb[0].mxu0
        %v3696 = vpop.f32.mrb[0].mxu0
        %v3697 = vadd.f32 0.0, %v3696
        %v3698 = vpop.f32.mrb[0].mxu0
        %3699 = vmatprep.mubr.bf16.mxu0 0
        %3700 = vmatmul.mubr.bf16.gmra.mrb[0].mxu0 %v3612
        %v3701 = vpop.f32.mrb[0].mxu0
        %v3702 = vadd.f32 0.0, %v3701
        %v3703 = vpop.f32.mrb[0].mxu0
        %v3704 = vpop.f32.mrb[0].mxu0
        %v3705 = vadd.f32 0.0, %v3704
        %v3706 = vpop.f32.mrb[0].mxu0
        %3707 = vmatprep.mubr.bf16.mxu0 0
        %3708 = vmatmul.mubr.bf16.gmra.mrb[0].mxu0 %v3615
        %v3709 = vpop.f32.mrb[0].mxu0
        %v3710 = vadd.f32 0.0, %v3709
        %v3711 = vpop.f32.mrb[0].mxu0
        %v3712 = vpop.f32.mrb[0].mxu0
        %v3713 = vadd.f32 0.0, %v3712
        %v3714 = vpop.f32.mrb[0].mxu0
        %3715 = vmatprep.mubr.bf16.mxu0 0
        %3716 = vmatmul.mubr.bf16.gmra.mrb[0].mxu0 %v3618
        %v3717 = vpop.f32.mrb[0].mxu0
        %v3718 = vadd.f32 0.0, %v3717
        %v3719 = vpop.f32.mrb[0].mxu0
        %v3720 = vpop.f32.mrb[0].mxu0
        %v3721 = vadd.f32 0.0, %v3720
        %v3722 = vpop.f32.mrb[0].mxu0
        %3723 = vmatprep.mubr.bf16.mxu0 0
        %3724 = vmatmul.mubr.bf16.gmra.mrb[0].mxu0 %v3621
        %v3725 = vpop.f32.mrb[0].mxu0
        %v3726 = vadd.f32 0.0, %v3725
        %v3727 = vpop.f32.mrb[0].mxu0
        %v3728 = vpop.f32.mrb[0].mxu0
        %v3729 = vadd.f32 0.0, %v3728
        %v3730 = vpop.f32.mrb[0].mxu0
        %3731 = vmatprep.mubr.bf16.mxu0 0
        %3732 = vmatmul.mubr.bf16.gmra.mrb[0].mxu0 %v3624
        %v3733 = vpop.f32.mrb[0].mxu0
        %v3734 = vadd.f32 0.0, %v3733
        %v3735 = vpop.f32.mrb[0].mxu0
        %v3736 = vpop.f32.mrb[0].mxu0
        %v3737 = vadd.f32 0.0, %v3736
        %v3738 = vpop.f32.mrb[0].mxu0
        %3739 = vmatprep.mubr.bf16.mxu0 0
        %3740 = vmatmul.mubr.bf16.gmra.mrb[0].mxu0 %v3627
        %v3741 = vpop.f32.mrb[0].mxu0
        %v3742 = vadd.f32 0.0, %v3741
        %v3743 = vpop.f32.mrb[0].mxu0
        %v3744 = vpop.f32.mrb[0].mxu0
        %v3745 = vadd.f32 0.0, %v3744
        %v3746 = vpop.f32.mrb[0].mxu0
        %3747 = vmatprep.mubr.bf16.mxu0 0
        %3748 = vmatmul.mubr.bf16.gmra.mrb[0].mxu0 %v3630
        %v3749 = vpop.f32.mrb[0].mxu0
        %v3750 = vadd.f32 0.0, %v3749
        %v3751 = vpop.f32.mrb[0].mxu0
        %v3752 = vpop.f32.mrb[0].mxu0
        %v3753 = vadd.f32 0.0, %v3752
        %v3754 = vpop.f32.mrb[0].mxu0
        %3755 = vmatprep.mubr.bf16.mxu0 0
        %3756 = vmatmul.mubr.bf16.gmra.mrb[0].mxu0 %v3633
        %v3757 = vpop.f32.mrb[0].mxu0
        %v3758 = vadd.f32 0.0, %v3757
        %v3759 = vpop.f32.mrb[0].mxu0
        %v3760 = vpop.f32.mrb[0].mxu0
        %v3761 = vadd.f32 0.0, %v3760
        %v3762 = vpop.f32.mrb[0].mxu0
        %3763 = vmatprep.mubr.bf16.mxu0 0
        %3764 = vmatmul.mubr.bf16.gmra.mrb[0].mxu0 %v3636
        %v3765 = vpop.f32.mrb[0].mxu0
        %v3766 = vadd.f32 0.0, %v3765
        %v3767 = vpop.f32.mrb[0].mxu0
        %v3768 = vpop.f32.mrb[0].mxu0
        %v3769 = vadd.f32 0.0, %v3768
        %v3770 = vpop.f32.mrb[0].mxu0
        %3771 = vmatprep.mubr.bf16.mxu0 0
        %3772 = vmatmul.mubr.bf16.gmra.mrb[0].mxu0 %v3639
        %v3773 = vpop.f32.mrb[0].mxu0
        %v3774 = vadd.f32 0.0, %v3773
        %v3775 = vpop.f32.mrb[0].mxu0
        %v3776 = vpop.f32.mrb[0].mxu0
        %v3777 = vadd.f32 0.0, %v3776
        %v3778 = vpop.f32.mrb[0].mxu0
        %3779 = vmatprep.mubr.bf16.mxu0 0
        %3780 = vmatmul.mubr.bf16.gmra.mrb[0].mxu0 %v3642
        %v3781 = vpop.f32.mrb[0].mxu0
        %v3782 = vadd.f32 0.0, %v3781
        %v3783 = vpop.f32.mrb[0].mxu0
        %v3784 = vpop.f32.mrb[0].mxu0
        %v3785 = vadd.f32 0.0, %v3784
        %v3786 = vpop.f32.mrb[0].mxu0
        %3787 = vmatprep.mubr.bf16.mxu0 0
        %3788 = vmatmul.mubr.bf16.gmra.mrb[0].mxu0 %v3645
        %v3789 = vpop.f32.mrb[0].mxu0
        %v3790 = vadd.f32 0.0, %v3789
        %v3791 = vpop.f32.mrb[0].mxu0
        %v3792 = vpop.f32.mrb[0].mxu0
        %v3793 = vadd.f32 0.0, %v3792
        %v3794 = vpop.f32.mrb[0].mxu0
        %3795 = vmatprep.mubr.bf16.mxu0 0
        %3796 = vmatmul.mubr.bf16.gmra.mrb[0].mxu0 %v3648
        %v3797 = vpop.f32.mrb[0].mxu0
        %v3798 = vadd.f32 0.0, %v3797
        %v3799 = vpop.f32.mrb[0].mxu0
        %v3800 = vpop.f32.mrb[0].mxu0
        %v3801 = vadd.f32 0.0, %v3800
        %v3802 = vpop.f32.mrb[0].mxu0
        %3803 = vmatprep.mubr.bf16.mxu0 0
        %3804 = vmatmul.mubr.bf16.gmra.mrb[0].mxu0 %v3651
        %v3805 = vpop.f32.mrb[0].mxu0
        %v3806 = vadd.f32 0.0, %v3805
        %v3807 = vpop.f32.mrb[0].mxu0
        %v3808 = vpop.f32.mrb[0].mxu0
        %v3809 = vadd.f32 0.0, %v3808
        %v3810 = vpop.f32.mrb[0].mxu0
        %3811 = vmatprep.mubr.bf16.mxu0 0
        %3812 = vmatmul.mubr.bf16.gmra.mrb[0].mxu0 %v3654
        %v3813 = vpop.f32.mrb[0].mxu0
        %v3814 = vadd.f32 0.0, %v3813
        %v3815 = vpop.f32.mrb[0].mxu0
        %v3816 = vpop.f32.mrb[0].mxu0
        %v3817 = vadd.f32 0.0, %v3816
        %v3818 = vpop.f32.mrb[0].mxu0
        %3819 = vdwg.mxu0
        %v3820 = vadd.f32 %v3574, %v3694
        %v3821 = vadd.f32 %v3575, %v3697
        %v3822 = vadd.f32 %v3576, %v3702
        %v3823 = vadd.f32 %v3577, %v3705
        %v3824 = vadd.f32 %v3578, %v3710
        %v3825 = vadd.f32 %v3579, %v3713
        %v3826 = vadd.f32 %v3580, %v3718
        %v3827 = vadd.f32 %v3581, %v3721
        %v3828 = vadd.f32 %v3582, %v3726
        %v3829 = vadd.f32 %v3583, %v3729
        %v3830 = vadd.f32 %v3584, %v3734
        %v3831 = vadd.f32 %v3585, %v3737
        %v3832 = vadd.f32 %v3586, %v3742
        %v3833 = vadd.f32 %v3587, %v3745
        %v3834 = vadd.f32 %v3588, %v3750
        %v3835 = vadd.f32 %v3589, %v3753
        %v3836 = vadd.f32 %v3590, %v3758
        %v3837 = vadd.f32 %v3591, %v3761
        %v3838 = vadd.f32 %v3592, %v3766
        %v3839 = vadd.f32 %v3593, %v3769
        %v3840 = vadd.f32 %v3594, %v3774
        %v3841 = vadd.f32 %v3595, %v3777
        %v3842 = vadd.f32 %v3596, %v3782
        %v3843 = vadd.f32 %v3597, %v3785
        %v3844 = vadd.f32 %v3598, %v3790
        %v3845 = vadd.f32 %v3599, %v3793
        %v3846 = vadd.f32 %v3600, %v3798
        %v3847 = vadd.f32 %v3601, %v3801
        %v3848 = vadd.f32 %v3602, %v3806
        %v3849 = vadd.f32 %v3603, %v3809
        %v3850 = vadd.f32 %v3604, %v3814
        %v3851 = vadd.f32 %v3605, %v3817
        %3852 = vst [vmem:[#allocation3] sm:$0xff] %v3820
        %3853 = vst [vmem:[#allocation3 + $0x8] sm:$0xff] %v3821
        %3854 = vst [vmem:[#allocation3 + $0x10] sm:$0xff] %v3822
        %3855 = vst [vmem:[#allocation3 + $0x18] sm:$0xff] %v3823
        %3856 = vst [vmem:[#allocation3 + $0x20] sm:$0xff] %v3824
        %3857 = vst [vmem:[#allocation3 + $0x28] sm:$0xff] %v3825
        %3858 = vst [vmem:[#allocation3 + $0x30] sm:$0xff] %v3826
        %3859 = vst [vmem:[#allocation3 + $0x38] sm:$0xff] %v3827
        %3860 = vst [vmem:[#allocation3 + $0x40] sm:$0xff] %v3828
        %3861 = vst [vmem:[#allocation3 + $0x48] sm:$0xff] %v3829
        %3862 = vst [vmem:[#allocation3 + $0x50] sm:$0xff] %v3830
        %3863 = vst [vmem:[#allocation3 + $0x58] sm:$0xff] %v3831
        %3864 = vst [vmem:[#allocation3 + $0x60] sm:$0xff] %v3832
        %3865 = vst [vmem:[#allocation3 + $0x68] sm:$0xff] %v3833
        %3866 = vst [vmem:[#allocation3 + $0x70] sm:$0xff] %v3834
        %3867 = vst [vmem:[#allocation3 + $0x78] sm:$0xff] %v3835
        %3868 = vst [vmem:[#allocation3 + $0x80] sm:$0xff] %v3836
        %3869 = vst [vmem:[#allocation3 + $0x88] sm:$0xff] %v3837
        %3870 = vst [vmem:[#allocation3 + $0x90] sm:$0xff] %v3838
        %3871 = vst [vmem:[#allocation3 + $0x98] sm:$0xff] %v3839
        %3872 = vst [vmem:[#allocation3 + $0xa0] sm:$0xff] %v3840
        %3873 = vst [vmem:[#allocation3 + $0xa8] sm:$0xff] %v3841
        %3874 = vst [vmem:[#allocation3 + $0xb0] sm:$0xff] %v3842
        %3875 = vst [vmem:[#allocation3 + $0xb8] sm:$0xff] %v3843
        %3876 = vst [vmem:[#allocation3 + $0xc0] sm:$0xff] %v3844
        %3877 = vst [vmem:[#allocation3 + $0xc8] sm:$0xff] %v3845
        %3878 = vst [vmem:[#allocation3 + $0xd0] sm:$0xff] %v3846
        %3879 = vst [vmem:[#allocation3 + $0xd8] sm:$0xff] %v3847
        %3880 = vst [vmem:[#allocation3 + $0xe0] sm:$0xff] %v3848
        %3881 = vst [vmem:[#allocation3 + $0xe8] sm:$0xff] %v3849
        %3882 = vst [vmem:[#allocation3 + $0xf0] sm:$0xff] %v3850
        %3883 = vst [vmem:[#allocation3 + $0xf8] sm:$0xff] %v3851
        %v3884 = vld [vmem:[#allocation3] sm:$0xff]
        %v3885 = vld [vmem:[#allocation3 + $0x8] sm:$0xff]
        %v3886 = vld [vmem:[#allocation3 + $0x10] sm:$0xff]
        %v3887 = vld [vmem:[#allocation3 + $0x18] sm:$0xff]
        %v3888 = vld [vmem:[#allocation3 + $0x20] sm:$0xff]
        %v3889 = vld [vmem:[#allocation3 + $0x28] sm:$0xff]
        %v3890 = vld [vmem:[#allocation3 + $0x30] sm:$0xff]
        %v3891 = vld [vmem:[#allocation3 + $0x38] sm:$0xff]
        %v3892 = vld [vmem:[#allocation3 + $0x40] sm:$0xff]
        %v3893 = vld [vmem:[#allocation3 + $0x48] sm:$0xff]
        %v3894 = vld [vmem:[#allocation3 + $0x50] sm:$0xff]
        %v3895 = vld [vmem:[#allocation3 + $0x58] sm:$0xff]
        %v3896 = vld [vmem:[#allocation3 + $0x60] sm:$0xff]
        %v3897 = vld [vmem:[#allocation3 + $0x68] sm:$0xff]
        %v3898 = vld [vmem:[#allocation3 + $0x70] sm:$0xff]
        %v3899 = vld [vmem:[#allocation3 + $0x78] sm:$0xff]
        %v3900 = vld [vmem:[#allocation3 + $0x80] sm:$0xff]
        %v3901 = vld [vmem:[#allocation3 + $0x88] sm:$0xff]
        %v3902 = vld [vmem:[#allocation3 + $0x90] sm:$0xff]
        %v3903 = vld [vmem:[#allocation3 + $0x98] sm:$0xff]
        %v3904 = vld [vmem:[#allocation3 + $0xa0] sm:$0xff]
        %v3905 = vld [vmem:[#allocation3 + $0xa8] sm:$0xff]
        %v3906 = vld [vmem:[#allocation3 + $0xb0] sm:$0xff]
        %v3907 = vld [vmem:[#allocation3 + $0xb8] sm:$0xff]
        %v3908 = vld [vmem:[#allocation3 + $0xc0] sm:$0xff]
        %v3909 = vld [vmem:[#allocation3 + $0xc8] sm:$0xff]
        %v3910 = vld [vmem:[#allocation3 + $0xd0] sm:$0xff]
        %v3911 = vld [vmem:[#allocation3 + $0xd8] sm:$0xff]
        %v3912 = vld [vmem:[#allocation3 + $0xe0] sm:$0xff]
        %v3913 = vld [vmem:[#allocation3 + $0xe8] sm:$0xff]
        %v3914 = vld [vmem:[#allocation3 + $0xf0] sm:$0xff]
        %v3915 = vld [vmem:[#allocation3 + $0xf8] sm:$0xff]
        %v3916 = vmax.f32 %v3884, 0.0
        %v3917 = vmax.f32 %v3885, 0.0
        %v3918 = vmax.f32 %v3886, 0.0
        %v3919 = vmax.f32 %v3887, 0.0
        %v3920 = vmax.f32 %v3888, 0.0
        %v3921 = vmax.f32 %v3889, 0.0
        %v3922 = vmax.f32 %v3890, 0.0
        %v3923 = vmax.f32 %v3891, 0.0
        %v3924 = vmax.f32 %v3892, 0.0
        %v3925 = vmax.f32 %v3893, 0.0
        %v3926 = vmax.f32 %v3894, 0.0
        %v3927 = vmax.f32 %v3895, 0.0
        %v3928 = vmax.f32 %v3896, 0.0
        %v3929 = vmax.f32 %v3897, 0.0
        %v3930 = vmax.f32 %v3898, 0.0
        %v3931 = vmax.f32 %v3899, 0.0
        %v3932 = vmax.f32 %v3900, 0.0
        %v3933 = vmax.f32 %v3901, 0.0
        %v3934 = vmax.f32 %v3902, 0.0
        %v3935 = vmax.f32 %v3903, 0.0
        %v3936 = vmax.f32 %v3904, 0.0
        %v3937 = vmax.f32 %v3905, 0.0
        %v3938 = vmax.f32 %v3906, 0.0
        %v3939 = vmax.f32 %v3907, 0.0
        %v3940 = vmax.f32 %v3908, 0.0
        %v3941 = vmax.f32 %v3909, 0.0
        %v3942 = vmax.f32 %v3910, 0.0
        %v3943 = vmax.f32 %v3911, 0.0
        %v3944 = vmax.f32 %v3912, 0.0
        %v3945 = vmax.f32 %v3913, 0.0
        %v3946 = vmax.f32 %v3914, 0.0
        %v3947 = vmax.f32 %v3915, 0.0
        %v3948 = vpack.c.bf16 %v3917, %v3916
        %v3949 = vpack.c.bf16 %v3919, %v3918
        %v3950 = vpack.c.bf16 %v3921, %v3920
        %v3951 = vpack.c.bf16 %v3923, %v3922
        %v3952 = vpack.c.bf16 %v3925, %v3924
        %v3953 = vpack.c.bf16 %v3927, %v3926
        %v3954 = vpack.c.bf16 %v3929, %v3928
        %v3955 = vpack.c.bf16 %v3931, %v3930
        %v3956 = vpack.c.bf16 %v3933, %v3932
        %v3957 = vpack.c.bf16 %v3935, %v3934
        %v3958 = vpack.c.bf16 %v3937, %v3936
        %v3959 = vpack.c.bf16 %v3939, %v3938
        %v3960 = vpack.c.bf16 %v3941, %v3940
        %v3961 = vpack.c.bf16 %v3943, %v3942
        %v3962 = vpack.c.bf16 %v3945, %v3944
        %v3963 = vpack.c.bf16 %v3947, %v3946
        %v3964 = vld [vmem:[#allocation6] sm:$0xff]
        %v3965 = vld [vmem:[#allocation6 + $0x8] sm:$0xff]
        %v3966 = vld [vmem:[#allocation6 + $0x10] sm:$0xff]
        %v3967 = vld [vmem:[#allocation6 + $0x18] sm:$0xff]
        %v3968 = vld [vmem:[#allocation6 + $0x20] sm:$0xff]
        %v3969 = vld [vmem:[#allocation6 + $0x28] sm:$0xff]
        %v3970 = vld [vmem:[#allocation6 + $0x30] sm:$0xff]
        %v3971 = vld [vmem:[#allocation6 + $0x38] sm:$0xff]
        %v3980 = vunpack.c.l.b16 %v3964
        %v3981 = vunpack.c.h.b16 %v3964
        %v3982 = vunpack.c.l.b16 %v3965
        %v3983 = vunpack.c.h.b16 %v3965
        %v3984 = vunpack.c.l.b16 %v3966
        %v3985 = vunpack.c.h.b16 %v3966
        %v3986 = vunpack.c.l.b16 %v3967
        %v3987 = vunpack.c.h.b16 %v3967
        %v3988 = vunpack.c.l.b16 %v3968
        %v3989 = vunpack.c.h.b16 %v3968
        %v3990 = vunpack.c.l.b16 %v3969
        %v3991 = vunpack.c.h.b16 %v3969
        %v3992 = vunpack.c.l.b16 %v3970
        %v3993 = vunpack.c.h.b16 %v3970
        %v3994 = vunpack.c.l.b16 %v3971
        %v3995 = vunpack.c.h.b16 %v3971
        %v3996 = vpack.c.b16 %v3982, %v3980
        %v3997 = vpack.c.b16 %v3983, %v3981
        %v3998 = vpack.c.b16 %v3986, %v3984
        %v3999 = vpack.c.b16 %v3987, %v3985
        %v4000 = vpack.c.b16 %v3990, %v3988
        %v4001 = vpack.c.b16 %v3991, %v3989
        %v4002 = vpack.c.b16 %v3994, %v3992
        %v4003 = vpack.c.b16 %v3995, %v3993
        %4012 = vmatprep.subr.bf16.mxu0 0
        %4013 = vmatpush1.bf16.msra.mxu0 %v3948
        %4014 = vmatprep.subr.bf16.mxu0 0
        %4015 = vmatpush1.bf16.msra.mxu0 %v3949
        %4016 = vmatprep.subr.bf16.mxu0 0
        %4017 = vmatpush1.bf16.msra.mxu0 %v3950
        %4018 = vmatprep.subr.bf16.mxu0 0
        %4019 = vmatpush1.bf16.msra.mxu0 %v3951
        %4020 = vmatprep.subr.bf16.mxu0 0
        %4021 = vmatpush1.bf16.msra.mxu0 %v3952
        %4022 = vmatprep.subr.bf16.mxu0 0
        %4023 = vmatpush1.bf16.msra.mxu0 %v3953
        %4024 = vmatprep.subr.bf16.mxu0 0
        %4025 = vmatpush1.bf16.msra.mxu0 %v3954
        %4026 = vmatprep.subr.bf16.mxu0 0
        %4027 = vmatpush1.bf16.msra.mxu0 %v3955
        %4028 = vmatprep.subr.bf16.mxu0 0
        %4029 = vmatpush1.bf16.msra.mxu0 %v3956
        %4030 = vmatprep.subr.bf16.mxu0 0
        %4031 = vmatpush1.bf16.msra.mxu0 %v3957
        %4032 = vmatprep.subr.bf16.mxu0 0
        %4033 = vmatpush1.bf16.msra.mxu0 %v3958
        %4034 = vmatprep.subr.bf16.mxu0 0
        %4035 = vmatpush1.bf16.msra.mxu0 %v3959
        %4036 = vmatprep.subr.bf16.mxu0 0
        %4037 = vmatpush1.bf16.msra.mxu0 %v3960
        %4038 = vmatprep.subr.bf16.mxu0 0
        %4039 = vmatpush1.bf16.msra.mxu0 %v3961
        %4040 = vmatprep.subr.bf16.mxu0 0
        %4041 = vmatpush1.bf16.msra.mxu0 %v3962
        %4042 = vmatprep.subr.bf16.mxu0 0
        %4043 = vmatpush1.bf16.msra.mxu0 %v3963
        %4044 = vmatprep.mubr.bf16.mxu0 %v3997
        %4045 = vmatmul.mubr.bf16.gmra.mrb[0].mxu0 %v3996
        %v4046 = vpop.f32.mrb[0].mxu0
        %v4047 = vadd.f32 0.0, %v4046
        %v4048 = vpop.f32.mrb[0].mxu0
        %v4049 = vpop.f32.mrb[0].mxu0
        %v4050 = vadd.f32 0.0, %v4049
        %v4051 = vpop.f32.mrb[0].mxu0
        %4052 = vmatprep.mubr.bf16.mxu0 %v3999
        %4053 = vmatmul.mubr.bf16.gmra.mrb[0].mxu0 %v3998
        %v4054 = vpop.f32.mrb[0].mxu0
        %v4055 = vadd.f32 0.0, %v4054
        %v4056 = vpop.f32.mrb[0].mxu0
        %v4057 = vpop.f32.mrb[0].mxu0
        %v4058 = vadd.f32 0.0, %v4057
        %v4059 = vpop.f32.mrb[0].mxu0
        %4060 = vmatprep.mubr.bf16.mxu0 %v4001
        %4061 = vmatmul.mubr.bf16.gmra.mrb[0].mxu0 %v4000
        %v4062 = vpop.f32.mrb[0].mxu0
        %v4063 = vadd.f32 0.0, %v4062
        %v4064 = vpop.f32.mrb[0].mxu0
        %v4065 = vpop.f32.mrb[0].mxu0
        %v4066 = vadd.f32 0.0, %v4065
        %v4067 = vpop.f32.mrb[0].mxu0
        %4068 = vmatprep.mubr.bf16.mxu0 %v4003
        %4069 = vmatmul.mubr.bf16.gmra.mrb[0].mxu0 %v4002
        %v4070 = vpop.f32.mrb[0].mxu0
        %v4071 = vadd.f32 0.0, %v4070
        %v4072 = vpop.f32.mrb[0].mxu0
        %v4073 = vpop.f32.mrb[0].mxu0
        %v4074 = vadd.f32 0.0, %v4073
        %v4075 = vpop.f32.mrb[0].mxu0
        %4076 = vdwg.mxu0
        %s4077 = scalar_lea.vmem [#allocation6], 64
        %v4078 = vld [vmem:[%s4077] sm:$0xff]
        %v4079 = vld [vmem:[%s4077 + $0x8] sm:$0xff]
        %v4080 = vld [vmem:[%s4077 + $0x10] sm:$0xff]
        %v4081 = vld [vmem:[%s4077 + $0x18] sm:$0xff]
        %v4082 = vld [vmem:[%s4077 + $0x20] sm:$0xff]
        %v4083 = vld [vmem:[%s4077 + $0x28] sm:$0xff]
        %v4084 = vld [vmem:[%s4077 + $0x30] sm:$0xff]
        %v4085 = vld [vmem:[%s4077 + $0x38] sm:$0xff]
        %v4094 = vunpack.c.l.b16 %v4078
        %v4095 = vunpack.c.h.b16 %v4078
        %v4096 = vunpack.c.l.b16 %v4079
        %v4097 = vunpack.c.h.b16 %v4079
        %v4098 = vunpack.c.l.b16 %v4080
        %v4099 = vunpack.c.h.b16 %v4080
        %v4100 = vunpack.c.l.b16 %v4081
        %v4101 = vunpack.c.h.b16 %v4081
        %v4102 = vunpack.c.l.b16 %v4082
        %v4103 = vunpack.c.h.b16 %v4082
        %v4104 = vunpack.c.l.b16 %v4083
        %v4105 = vunpack.c.h.b16 %v4083
        %v4106 = vunpack.c.l.b16 %v4084
        %v4107 = vunpack.c.h.b16 %v4084
        %v4108 = vunpack.c.l.b16 %v4085
        %v4109 = vunpack.c.h.b16 %v4085
        %v4110 = vpack.c.b16 %v4096, %v4094
        %v4111 = vpack.c.b16 %v4097, %v4095
        %v4112 = vpack.c.b16 %v4100, %v4098
        %v4113 = vpack.c.b16 %v4101, %v4099
        %v4114 = vpack.c.b16 %v4104, %v4102
        %v4115 = vpack.c.b16 %v4105, %v4103
        %v4116 = vpack.c.b16 %v4108, %v4106
        %v4117 = vpack.c.b16 %v4109, %v4107
        %4126 = vmatprep.subr.bf16.mxu0 0
        %4127 = vmatpush1.bf16.msra.mxu0 %v3948
        %4128 = vmatprep.subr.bf16.mxu0 0
        %4129 = vmatpush1.bf16.msra.mxu0 %v3949
        %4130 = vmatprep.subr.bf16.mxu0 0
        %4131 = vmatpush1.bf16.msra.mxu0 %v3950
        %4132 = vmatprep.subr.bf16.mxu0 0
        %4133 = vmatpush1.bf16.msra.mxu0 %v3951
        %4134 = vmatprep.subr.bf16.mxu0 0
        %4135 = vmatpush1.bf16.msra.mxu0 %v3952
        %4136 = vmatprep.subr.bf16.mxu0 0
        %4137 = vmatpush1.bf16.msra.mxu0 %v3953
        %4138 = vmatprep.subr.bf16.mxu0 0
        %4139 = vmatpush1.bf16.msra.mxu0 %v3954
        %4140 = vmatprep.subr.bf16.mxu0 0
        %4141 = vmatpush1.bf16.msra.mxu0 %v3955
        %4142 = vmatprep.subr.bf16.mxu0 0
        %4143 = vmatpush1.bf16.msra.mxu0 %v3956
        %4144 = vmatprep.subr.bf16.mxu0 0
        %4145 = vmatpush1.bf16.msra.mxu0 %v3957
        %4146 = vmatprep.subr.bf16.mxu0 0
        %4147 = vmatpush1.bf16.msra.mxu0 %v3958
        %4148 = vmatprep.subr.bf16.mxu0 0
        %4149 = vmatpush1.bf16.msra.mxu0 %v3959
        %4150 = vmatprep.subr.bf16.mxu0 0
        %4151 = vmatpush1.bf16.msra.mxu0 %v3960
        %4152 = vmatprep.subr.bf16.mxu0 0
        %4153 = vmatpush1.bf16.msra.mxu0 %v3961
        %4154 = vmatprep.subr.bf16.mxu0 0
        %4155 = vmatpush1.bf16.msra.mxu0 %v3962
        %4156 = vmatprep.subr.bf16.mxu0 0
        %4157 = vmatpush1.bf16.msra.mxu0 %v3963
        %4158 = vmatprep.mubr.bf16.mxu0 %v4111
        %4159 = vmatmul.mubr.bf16.gmra.mrb[0].mxu0 %v4110
        %v4160 = vpop.f32.mrb[0].mxu0
        %v4161 = vadd.f32 0.0, %v4160
        %v4162 = vpop.f32.mrb[0].mxu0
        %v4163 = vpop.f32.mrb[0].mxu0
        %v4164 = vadd.f32 0.0, %v4163
        %v4165 = vpop.f32.mrb[0].mxu0
        %4166 = vmatprep.mubr.bf16.mxu0 %v4113
        %4167 = vmatmul.mubr.bf16.gmra.mrb[0].mxu0 %v4112
        %v4168 = vpop.f32.mrb[0].mxu0
        %v4169 = vadd.f32 0.0, %v4168
        %v4170 = vpop.f32.mrb[0].mxu0
        %v4171 = vpop.f32.mrb[0].mxu0
        %v4172 = vadd.f32 0.0, %v4171
        %v4173 = vpop.f32.mrb[0].mxu0
        %4174 = vmatprep.mubr.bf16.mxu0 %v4115
        %4175 = vmatmul.mubr.bf16.gmra.mrb[0].mxu0 %v4114
        %v4176 = vpop.f32.mrb[0].mxu0
        %v4177 = vadd.f32 0.0, %v4176
        %v4178 = vpop.f32.mrb[0].mxu0
        %v4179 = vpop.f32.mrb[0].mxu0
        %v4180 = vadd.f32 0.0, %v4179
        %v4181 = vpop.f32.mrb[0].mxu0
        %4182 = vmatprep.mubr.bf16.mxu0 %v4117
        %4183 = vmatmul.mubr.bf16.gmra.mrb[0].mxu0 %v4116
        %v4184 = vpop.f32.mrb[0].mxu0
        %v4185 = vadd.f32 0.0, %v4184
        %v4186 = vpop.f32.mrb[0].mxu0
        %v4187 = vpop.f32.mrb[0].mxu0
        %v4188 = vadd.f32 0.0, %v4187
        %v4189 = vpop.f32.mrb[0].mxu0
        %4190 = vdwg.mxu0
        %v4191 = vmax.f32 %v4047, %v4161
        %v4192 = vmax.f32 %v4050, %v4164
        %v4193 = vmax.f32 %v4055, %v4169
        %v4194 = vmax.f32 %v4058, %v4172
        %v4195 = vmax.f32 %v4063, %v4177
        %v4196 = vmax.f32 %v4066, %v4180
        %v4197 = vmax.f32 %v4071, %v4185
        %v4198 = vmax.f32 %v4074, %v4188
        %s4199 = scalar_lea.vmem [#allocation6], 128
        %v4200 = vld [vmem:[%s4199] sm:$0xff]
        %v4201 = vld [vmem:[%s4199 + $0x8] sm:$0xff]
        %v4202 = vld [vmem:[%s4199 + $0x10] sm:$0xff]
        %v4203 = vld [vmem:[%s4199 + $0x18] sm:$0xff]
        %v4204 = vld [vmem:[%s4199 + $0x20] sm:$0xff]
        %v4205 = vld [vmem:[%s4199 + $0x28] sm:$0xff]
        %v4206 = vld [vmem:[%s4199 + $0x30] sm:$0xff]
        %v4207 = vld [vmem:[%s4199 + $0x38] sm:$0xff]
        %v4216 = vunpack.c.l.b16 %v4200
        %v4217 = vunpack.c.h.b16 %v4200
        %v4218 = vunpack.c.l.b16 %v4201
        %v4219 = vunpack.c.h.b16 %v4201
        %v4220 = vunpack.c.l.b16 %v4202
        %v4221 = vunpack.c.h.b16 %v4202
        %v4222 = vunpack.c.l.b16 %v4203
        %v4223 = vunpack.c.h.b16 %v4203
        %v4224 = vunpack.c.l.b16 %v4204
        %v4225 = vunpack.c.h.b16 %v4204
        %v4226 = vunpack.c.l.b16 %v4205
        %v4227 = vunpack.c.h.b16 %v4205
        %v4228 = vunpack.c.l.b16 %v4206
        %v4229 = vunpack.c.h.b16 %v4206
        %v4230 = vunpack.c.l.b16 %v4207
        %v4231 = vunpack.c.h.b16 %v4207
        %v4232 = vpack.c.b16 %v4218, %v4216
        %v4233 = vpack.c.b16 %v4219, %v4217
        %v4234 = vpack.c.b16 %v4222, %v4220
        %v4235 = vpack.c.b16 %v4223, %v4221
        %v4236 = vpack.c.b16 %v4226, %v4224
        %v4237 = vpack.c.b16 %v4227, %v4225
        %v4238 = vpack.c.b16 %v4230, %v4228
        %v4239 = vpack.c.b16 %v4231, %v4229
        %4248 = vmatprep.subr.bf16.mxu0 0
        %4249 = vmatpush1.bf16.msra.mxu0 %v3948
        %4250 = vmatprep.subr.bf16.mxu0 0
        %4251 = vmatpush1.bf16.msra.mxu0 %v3949
        %4252 = vmatprep.subr.bf16.mxu0 0
        %4253 = vmatpush1.bf16.msra.mxu0 %v3950
        %4254 = vmatprep.subr.bf16.mxu0 0
        %4255 = vmatpush1.bf16.msra.mxu0 %v3951
        %4256 = vmatprep.subr.bf16.mxu0 0
        %4257 = vmatpush1.bf16.msra.mxu0 %v3952
        %4258 = vmatprep.subr.bf16.mxu0 0
        %4259 = vmatpush1.bf16.msra.mxu0 %v3953
        %4260 = vmatprep.subr.bf16.mxu0 0
        %4261 = vmatpush1.bf16.msra.mxu0 %v3954
        %4262 = vmatprep.subr.bf16.mxu0 0
        %4263 = vmatpush1.bf16.msra.mxu0 %v3955
        %4264 = vmatprep.subr.bf16.mxu0 0
        %4265 = vmatpush1.bf16.msra.mxu0 %v3956
        %4266 = vmatprep.subr.bf16.mxu0 0
        %4267 = vmatpush1.bf16.msra.mxu0 %v3957
        %4268 = vmatprep.subr.bf16.mxu0 0
        %4269 = vmatpush1.bf16.msra.mxu0 %v3958
        %4270 = vmatprep.subr.bf16.mxu0 0
        %4271 = vmatpush1.bf16.msra.mxu0 %v3959
        %4272 = vmatprep.subr.bf16.mxu0 0
        %4273 = vmatpush1.bf16.msra.mxu0 %v3960
        %4274 = vmatprep.subr.bf16.mxu0 0
        %4275 = vmatpush1.bf16.msra.mxu0 %v3961
        %4276 = vmatprep.subr.bf16.mxu0 0
        %4277 = vmatpush1.bf16.msra.mxu0 %v3962
        %4278 = vmatprep.subr.bf16.mxu0 0
        %4279 = vmatpush1.bf16.msra.mxu0 %v3963
        %4280 = vmatprep.mubr.bf16.mxu0 %v4233
        %4281 = vmatmul.mubr.bf16.gmra.mrb[0].mxu0 %v4232
        %v4282 = vpop.f32.mrb[0].mxu0
        %v4283 = vadd.f32 0.0, %v4282
        %v4284 = vpop.f32.mrb[0].mxu0
        %v4285 = vpop.f32.mrb[0].mxu0
        %v4286 = vadd.f32 0.0, %v4285
        %v4287 = vpop.f32.mrb[0].mxu0
        %4288 = vmatprep.mubr.bf16.mxu0 %v4235
        %4289 = vmatmul.mubr.bf16.gmra.mrb[0].mxu0 %v4234
        %v4290 = vpop.f32.mrb[0].mxu0
        %v4291 = vadd.f32 0.0, %v4290
        %v4292 = vpop.f32.mrb[0].mxu0
        %v4293 = vpop.f32.mrb[0].mxu0
        %v4294 = vadd.f32 0.0, %v4293
        %v4295 = vpop.f32.mrb[0].mxu0
        %4296 = vmatprep.mubr.bf16.mxu0 %v4237
        %4297 = vmatmul.mubr.bf16.gmra.mrb[0].mxu0 %v4236
        %v4298 = vpop.f32.mrb[0].mxu0
        %v4299 = vadd.f32 0.0, %v4298
        %v4300 = vpop.f32.mrb[0].mxu0
        %v4301 = vpop.f32.mrb[0].mxu0
        %v4302 = vadd.f32 0.0, %v4301
        %v4303 = vpop.f32.mrb[0].mxu0
        %4304 = vmatprep.mubr.bf16.mxu0 %v4239
        %4305 = vmatmul.mubr.bf16.gmra.mrb[0].mxu0 %v4238
        %v4306 = vpop.f32.mrb[0].mxu0
        %v4307 = vadd.f32 0.0, %v4306
        %v4308 = vpop.f32.mrb[0].mxu0
        %v4309 = vpop.f32.mrb[0].mxu0
        %v4310 = vadd.f32 0.0, %v4309
        %v4311 = vpop.f32.mrb[0].mxu0
        %4312 = vdwg.mxu0
        %v4313 = vmax.f32 %v4191, %v4283
        %v4314 = vmax.f32 %v4192, %v4286
        %v4315 = vmax.f32 %v4193, %v4291
        %v4316 = vmax.f32 %v4194, %v4294
        %v4317 = vmax.f32 %v4195, %v4299
        %v4318 = vmax.f32 %v4196, %v4302
        %v4319 = vmax.f32 %v4197, %v4307
        %v4320 = vmax.f32 %v4198, %v4310
        %s4321 = scalar_lea.vmem [#allocation6], 192
        %v4322 = vld [vmem:[%s4321] sm:$0xff]
        %v4323 = vld [vmem:[%s4321 + $0x8] sm:$0xff]
        %v4324 = vld [vmem:[%s4321 + $0x10] sm:$0xff]
        %v4325 = vld [vmem:[%s4321 + $0x18] sm:$0xff]
        %v4326 = vld [vmem:[%s4321 + $0x20] sm:$0xff]
        %v4327 = vld [vmem:[%s4321 + $0x28] sm:$0xff]
        %v4328 = vld [vmem:[%s4321 + $0x30] sm:$0xff]
        %v4329 = vld [vmem:[%s4321 + $0x38] sm:$0xff]
        %v4338 = vunpack.c.l.b16 %v4322
        %v4339 = vunpack.c.h.b16 %v4322
        %v4340 = vunpack.c.l.b16 %v4323
        %v4341 = vunpack.c.h.b16 %v4323
        %v4342 = vunpack.c.l.b16 %v4324
        %v4343 = vunpack.c.h.b16 %v4324
        %v4344 = vunpack.c.l.b16 %v4325
        %v4345 = vunpack.c.h.b16 %v4325
        %v4346 = vunpack.c.l.b16 %v4326
        %v4347 = vunpack.c.h.b16 %v4326
        %v4348 = vunpack.c.l.b16 %v4327
        %v4349 = vunpack.c.h.b16 %v4327
        %v4350 = vunpack.c.l.b16 %v4328
        %v4351 = vunpack.c.h.b16 %v4328
        %v4352 = vunpack.c.l.b16 %v4329
        %v4353 = vunpack.c.h.b16 %v4329
        %v4354 = vpack.c.b16 %v4340, %v4338
        %v4355 = vpack.c.b16 %v4341, %v4339
        %v4356 = vpack.c.b16 %v4344, %v4342
        %v4357 = vpack.c.b16 %v4345, %v4343
        %v4358 = vpack.c.b16 %v4348, %v4346
        %v4359 = vpack.c.b16 %v4349, %v4347
        %v4360 = vpack.c.b16 %v4352, %v4350
        %v4361 = vpack.c.b16 %v4353, %v4351
        %4370 = vmatprep.subr.bf16.mxu0 0
        %4371 = vmatpush1.bf16.msra.mxu0 %v3948
        %4372 = vmatprep.subr.bf16.mxu0 0
        %4373 = vmatpush1.bf16.msra.mxu0 %v3949
        %4374 = vmatprep.subr.bf16.mxu0 0
        %4375 = vmatpush1.bf16.msra.mxu0 %v3950
        %4376 = vmatprep.subr.bf16.mxu0 0
        %4377 = vmatpush1.bf16.msra.mxu0 %v3951
        %4378 = vmatprep.subr.bf16.mxu0 0
        %4379 = vmatpush1.bf16.msra.mxu0 %v3952
        %4380 = vmatprep.subr.bf16.mxu0 0
        %4381 = vmatpush1.bf16.msra.mxu0 %v3953
        %4382 = vmatprep.subr.bf16.mxu0 0
        %4383 = vmatpush1.bf16.msra.mxu0 %v3954
        %4384 = vmatprep.subr.bf16.mxu0 0
        %4385 = vmatpush1.bf16.msra.mxu0 %v3955
        %4386 = vmatprep.subr.bf16.mxu0 0
        %4387 = vmatpush1.bf16.msra.mxu0 %v3956
        %4388 = vmatprep.subr.bf16.mxu0 0
        %4389 = vmatpush1.bf16.msra.mxu0 %v3957
        %4390 = vmatprep.subr.bf16.mxu0 0
        %4391 = vmatpush1.bf16.msra.mxu0 %v3958
        %4392 = vmatprep.subr.bf16.mxu0 0
        %4393 = vmatpush1.bf16.msra.mxu0 %v3959
        %4394 = vmatprep.subr.bf16.mxu0 0
        %4395 = vmatpush1.bf16.msra.mxu0 %v3960
        %4396 = vmatprep.subr.bf16.mxu0 0
        %4397 = vmatpush1.bf16.msra.mxu0 %v3961
        %4398 = vmatprep.subr.bf16.mxu0 0
        %4399 = vmatpush1.bf16.msra.mxu0 %v3962
        %4400 = vmatprep.subr.bf16.mxu0 0
        %4401 = vmatpush1.bf16.msra.mxu0 %v3963
        %4402 = vmatprep.mubr.bf16.mxu0 %v4355
        %4403 = vmatmul.mubr.bf16.gmra.mrb[0].mxu0 %v4354
        %v4404 = vpop.f32.mrb[0].mxu0
        %v4405 = vadd.f32 0.0, %v4404
        %v4406 = vpop.f32.mrb[0].mxu0
        %v4407 = vpop.f32.mrb[0].mxu0
        %v4408 = vadd.f32 0.0, %v4407
        %v4409 = vpop.f32.mrb[0].mxu0
        %4410 = vmatprep.mubr.bf16.mxu0 %v4357
        %4411 = vmatmul.mubr.bf16.gmra.mrb[0].mxu0 %v4356
        %v4412 = vpop.f32.mrb[0].mxu0
        %v4413 = vadd.f32 0.0, %v4412
        %v4414 = vpop.f32.mrb[0].mxu0
        %v4415 = vpop.f32.mrb[0].mxu0
        %v4416 = vadd.f32 0.0, %v4415
        %v4417 = vpop.f32.mrb[0].mxu0
        %4418 = vmatprep.mubr.bf16.mxu0 %v4359
        %4419 = vmatmul.mubr.bf16.gmra.mrb[0].mxu0 %v4358
        %v4420 = vpop.f32.mrb[0].mxu0
        %v4421 = vadd.f32 0.0, %v4420
        %v4422 = vpop.f32.mrb[0].mxu0
        %v4423 = vpop.f32.mrb[0].mxu0
        %v4424 = vadd.f32 0.0, %v4423
        %v4425 = vpop.f32.mrb[0].mxu0
        %4426 = vmatprep.mubr.bf16.mxu0 %v4361
        %4427 = vmatmul.mubr.bf16.gmra.mrb[0].mxu0 %v4360
        %v4428 = vpop.f32.mrb[0].mxu0
        %v4429 = vadd.f32 0.0, %v4428
        %v4430 = vpop.f32.mrb[0].mxu0
        %v4431 = vpop.f32.mrb[0].mxu0
        %v4432 = vadd.f32 0.0, %v4431
        %v4433 = vpop.f32.mrb[0].mxu0
        %4434 = vdwg.mxu0
        %v4435 = vmax.f32 %v4313, %v4405
        %v4436 = vmax.f32 %v4314, %v4408
        %v4437 = vmax.f32 %v4315, %v4413
        %v4438 = vmax.f32 %v4316, %v4416
        %v4439 = vmax.f32 %v4317, %v4421
        %v4440 = vmax.f32 %v4318, %v4424
        %v4441 = vmax.f32 %v4319, %v4429
        %v4442 = vmax.f32 %v4320, %v4432
        %4443 = vst [vmem:[#allocation4] sm:$0xff] 0.0
        %4444 = vst [vmem:[#allocation4 + $0x8] sm:$0xff] 0.0
        %4445 = vst [vmem:[#allocation4 + $0x10] sm:$0x1] 0.0
        %4446 = vst [vmem:[#allocation4 + $0x18] sm:$0xff] 0.0
        %4447 = vst [vmem:[#allocation4 + $0x20] sm:$0xff] 0.0
        %4448 = vst [vmem:[#allocation4 + $0x28] sm:$0x1] 0.0
        %4449 = vst [vmem:[#allocation4 + $0x30] sm:$0xff] 0.0
        %4450 = vst [vmem:[#allocation4 + $0x38] sm:$0xff] 0.0
        %4451 = vst [vmem:[#allocation4 + $0x40] sm:$0x1] 0.0
        %4452 = vst [vmem:[#allocation4 + $0x48] sm:$0xff] 0.0
        %4453 = vst [vmem:[#allocation4 + $0x50] sm:$0xff] 0.0
        %4454 = vst [vmem:[#allocation4 + $0x58] sm:$0x1] 0.0
        %4455 = vst [vmem:[#allocation4 + $0x60] sm:$0xff] 0.0
        %4456 = vst [vmem:[#allocation4 + $0x68] sm:$0xff] 0.0
        %4457 = vst [vmem:[#allocation4 + $0x70] sm:$0x1] 0.0
        %4458 = vst [vmem:[#allocation4 + $0x78] sm:$0xff] 0.0
        %4459 = vst [vmem:[#allocation4 + $0x80] sm:$0xff] 0.0
        %4460 = vst [vmem:[#allocation4 + $0x88] sm:$0x1] 0.0
        %4461 = vst [vmem:[#allocation4 + $0x90] sm:$0xff] 0.0
        %4462 = vst [vmem:[#allocation4 + $0x98] sm:$0xff] 0.0
        %4463 = vst [vmem:[#allocation4 + $0xa0] sm:$0x1] 0.0
        %4464 = vst [vmem:[#allocation4 + $0xa8] sm:$0xff] 0.0
        %4465 = vst [vmem:[#allocation4 + $0xb0] sm:$0xff] 0.0
        %4466 = vst [vmem:[#allocation4 + $0xb8] sm:$0x1] 0.0
        %4467 = vst [vmem:[#allocation4 + $0xc0] sm:$0xff] 0.0
        %4468 = vst [vmem:[#allocation4 + $0xc8] sm:$0xff] 0.0
        %4469 = vst [vmem:[#allocation4 + $0xd0] sm:$0x1] 0.0
        %4470 = vst [vmem:[#allocation4 + $0xd8] sm:$0xff] 0.0
        %4471 = vst [vmem:[#allocation4 + $0xe0] sm:$0xff] 0.0
        %4472 = vst [vmem:[#allocation4 + $0xe8] sm:$0x1] 0.0
        %s4473 = scalar_lea.vmem [#allocation4], 24
        %4474 = vst [vmem:[%s4473 + $0x8] sm:$0xff] %v4435
        %4475 = vst [vmem:[%s4473 + $0x20] sm:$0xff] %v4436
        %4476 = vst [vmem:[%s4473 + $0x38] sm:$0xff] %v4437
        %4477 = vst [vmem:[%s4473 + $0x50] sm:$0xff] %v4438
        %4478 = vst [vmem:[%s4473 + $0x68] sm:$0xff] %v4439
        %4479 = vst [vmem:[%s4473 + $0x80] sm:$0xff] %v4440
        %4480 = vst [vmem:[%s4473 + $0x98] sm:$0xff] %v4441
        %4481 = vst [vmem:[%s4473 + $0xb0] sm:$0xff] %v4442
        %v4482 = vld [vmem:[%s5] sm:$0x1]
        %v4484 = vlaneseq
        %v4485 = vshrl.u32 %v4484, 7
        %v4486 = vsub.s32 0, %v4485
        %v4487 = vrot.slane %v4482, %v4486
        %4489 = vst [vmem:[#allocation5] sm:$0xff] %v4487
        %4490 = vst [vmem:[#allocation5 + $0x8] sm:$0xff] %v4487
        %4491 = vst [vmem:[#allocation5 + $0x10] sm:$0xff] %v4487
        %4492 = vst [vmem:[#allocation5 + $0x18] sm:$0xff] %v4487
        %4493 = vst [vmem:[#allocation5 + $0x20] sm:$0xff] %v4487
        %4494 = vst [vmem:[#allocation5 + $0x28] sm:$0xff] %v4487
        %4495 = vst [vmem:[#allocation5 + $0x30] sm:$0xff] %v4487
        %4496 = vst [vmem:[#allocation5 + $0x38] sm:$0xff] %v4487
        %v4497 = vld [vmem:[#allocation4 + $0x7] sm:$0xff]
        %v4498 = vld [vmem:[#allocation4 + $0x1f] sm:$0xff]
        %v4499 = vld [vmem:[#allocation4 + $0x37] sm:$0xff]
        %v4500 = vld [vmem:[#allocation4 + $0x4f] sm:$0xff]
        %v4501 = vld [vmem:[#allocation4 + $0x67] sm:$0xff]
        %v4502 = vld [vmem:[#allocation4 + $0x7f] sm:$0xff]
        %v4503 = vld [vmem:[#allocation4 + $0x97] sm:$0xff]
        %v4504 = vld [vmem:[#allocation4 + $0xaf] sm:$0xff]
        %v4505 = vpack.c.bf16 %v4498, %v4497
        %v4506 = vpack.c.bf16 %v4500, %v4499
        %v4507 = vpack.c.bf16 %v4502, %v4501
        %v4508 = vpack.c.bf16 %v4504, %v4503
        %v4509 = vld [vmem:[#allocation5] sm:$0xff]
        %v4510 = vld [vmem:[#allocation5 + $0x8] sm:$0xff]
        %v4511 = vld [vmem:[#allocation5 + $0x10] sm:$0xff]
        %v4512 = vld [vmem:[#allocation5 + $0x18] sm:$0xff]
        %v4513 = vld [vmem:[#allocation5 + $0x20] sm:$0xff]
        %v4514 = vld [vmem:[#allocation5 + $0x28] sm:$0xff]
        %v4515 = vld [vmem:[#allocation5 + $0x30] sm:$0xff]
        %v4516 = vld [vmem:[#allocation5 + $0x38] sm:$0xff]
        %v4517 = vld [vmem:[%s4] sm:$0xf]
        %v4518 = vld [vmem:[%s4 + $0x4] sm:$0xf]
        %v4519 = vld [vmem:[%s4 + $0x8] sm:$0xf]
        %v4520 = vld [vmem:[%s4 + $0xc] sm:$0xf]
        %v4521 = vld [vmem:[%s4 + $0x10] sm:$0xf]
        %v4522 = vld [vmem:[%s4 + $0x14] sm:$0xf]
        %v4523 = vld [vmem:[%s4 + $0x18] sm:$0xf]
        %v4524 = vld [vmem:[%s4 + $0x1c] sm:$0xf]
        %v4525 = vld [vmem:[%s4 + $0x20] sm:$0xf]
        %v4526 = vld [vmem:[%s4 + $0x24] sm:$0xf]
        %v4527 = vld [vmem:[%s4 + $0x28] sm:$0xf]
        %v4528 = vld [vmem:[%s4 + $0x2c] sm:$0xf]
        %v4529 = vld [vmem:[%s4 + $0x30] sm:$0xf]
        %v4530 = vld [vmem:[%s4 + $0x34] sm:$0xf]
        %v4531 = vld [vmem:[%s4 + $0x38] sm:$0xf]
        %v4532 = vld [vmem:[%s4 + $0x3c] sm:$0xf]
        %v4549 = vunpack.c.l.b16 %v4517
        %v4550 = vunpack.c.l.b16 %v4518
        %v4551 = vunpack.c.l.b16 %v4519
        %v4552 = vunpack.c.l.b16 %v4520
        %v4553 = vunpack.c.l.b16 %v4521
        %v4554 = vunpack.c.l.b16 %v4522
        %v4555 = vunpack.c.l.b16 %v4523
        %v4556 = vunpack.c.l.b16 %v4524
        %v4557 = vunpack.c.l.b16 %v4525
        %v4558 = vunpack.c.l.b16 %v4526
        %v4559 = vunpack.c.l.b16 %v4527
        %v4560 = vunpack.c.l.b16 %v4528
        %v4561 = vunpack.c.l.b16 %v4529
        %v4562 = vunpack.c.l.b16 %v4530
        %v4563 = vunpack.c.l.b16 %v4531
        %v4564 = vunpack.c.l.b16 %v4532
        %v4565 = vpack.c.b16 %v4550, %v4549
        %v4566 = vpack.c.b16 %v4552, %v4551
        %v4567 = vpack.c.b16 %v4554, %v4553
        %v4568 = vpack.c.b16 %v4556, %v4555
        %v4569 = vpack.c.b16 %v4558, %v4557
        %v4570 = vpack.c.b16 %v4560, %v4559
        %v4571 = vpack.c.b16 %v4562, %v4561
        %v4572 = vpack.c.b16 %v4564, %v4563
        %4581 = vmatprep.subr.bf16.mxu0 0
        %4582 = vmatpush1.bf16.msra.mxu0 %v4565
        %4583 = vmatprep.subr.bf16.mxu0 0
        %4584 = vmatpush1.bf16.msra.mxu0 %v4566
        %4585 = vmatprep.subr.bf16.mxu0 0
        %4586 = vmatpush1.bf16.msra.mxu0 %v4567
        %4587 = vmatprep.subr.bf16.mxu0 0
        %4588 = vmatpush1.bf16.msra.mxu0 %v4568
        %4589 = vmatprep.subr.bf16.mxu0 0
        %4590 = vmatpush1.bf16.msra.mxu0 %v4569
        %4591 = vmatprep.subr.bf16.mxu0 0
        %4592 = vmatpush1.bf16.msra.mxu0 %v4570
        %4593 = vmatprep.subr.bf16.mxu0 0
        %4594 = vmatpush1.bf16.msra.mxu0 %v4571
        %4595 = vmatprep.subr.bf16.mxu0 0
        %4596 = vmatpush1.bf16.msra.mxu0 %v4572
        %4597 = vmatprep.subr.bf16.mxu0 0
        %4598 = vmatpush1.bf16.msra.mxu0 0
        %4599 = vmatprep.subr.bf16.mxu0 0
        %4600 = vmatpush1.bf16.msra.mxu0 0
        %4601 = vmatprep.subr.bf16.mxu0 0
        %4602 = vmatpush1.bf16.msra.mxu0 0
        %4603 = vmatprep.subr.bf16.mxu0 0
        %4604 = vmatpush1.bf16.msra.mxu0 0
        %4605 = vmatprep.subr.bf16.mxu0 0
        %4606 = vmatpush1.bf16.msra.mxu0 0
        %4607 = vmatprep.subr.bf16.mxu0 0
        %4608 = vmatpush1.bf16.msra.mxu0 0
        %4609 = vmatprep.subr.bf16.mxu0 0
        %4610 = vmatpush1.bf16.msra.mxu0 0
        %4611 = vmatprep.subr.bf16.mxu0 0
        %4612 = vmatpush1.bf16.msra.mxu0 0
        %4613 = vmatprep.mubr.bf16.mxu0 0
        %4614 = vmatmul.mubr.bf16.gmra.mrb[0].mxu0 %v4505
        %v4615 = vpop.f32.mrb[0].mxu0
        %v4616 = vadd.f32 0.0, %v4615
        %v4617 = vpop.f32.mrb[0].mxu0
        %v4618 = vpop.f32.mrb[0].mxu0
        %v4619 = vadd.f32 0.0, %v4618
        %v4620 = vpop.f32.mrb[0].mxu0
        %4621 = vmatprep.mubr.bf16.mxu0 0
        %4622 = vmatmul.mubr.bf16.gmra.mrb[0].mxu0 %v4506
        %v4623 = vpop.f32.mrb[0].mxu0
        %v4624 = vadd.f32 0.0, %v4623
        %v4625 = vpop.f32.mrb[0].mxu0
        %v4626 = vpop.f32.mrb[0].mxu0
        %v4627 = vadd.f32 0.0, %v4626
        %v4628 = vpop.f32.mrb[0].mxu0
        %4629 = vmatprep.mubr.bf16.mxu0 0
        %4630 = vmatmul.mubr.bf16.gmra.mrb[0].mxu0 %v4507
        %v4631 = vpop.f32.mrb[0].mxu0
        %v4632 = vadd.f32 0.0, %v4631
        %v4633 = vpop.f32.mrb[0].mxu0
        %v4634 = vpop.f32.mrb[0].mxu0
        %v4635 = vadd.f32 0.0, %v4634
        %v4636 = vpop.f32.mrb[0].mxu0
        %4637 = vmatprep.mubr.bf16.mxu0 0
        %4638 = vmatmul.mubr.bf16.gmra.mrb[0].mxu0 %v4508
        %v4639 = vpop.f32.mrb[0].mxu0
        %v4640 = vadd.f32 0.0, %v4639
        %v4641 = vpop.f32.mrb[0].mxu0
        %v4642 = vpop.f32.mrb[0].mxu0
        %v4643 = vadd.f32 0.0, %v4642
        %v4644 = vpop.f32.mrb[0].mxu0
        %4645 = vdwg.mxu0
        %v4646 = vadd.f32 %v4509, %v4616
        %v4647 = vadd.f32 %v4510, %v4619
        %v4648 = vadd.f32 %v4511, %v4624
        %v4649 = vadd.f32 %v4512, %v4627
        %v4650 = vadd.f32 %v4513, %v4632
        %v4651 = vadd.f32 %v4514, %v4635
        %v4652 = vadd.f32 %v4515, %v4640
        %v4653 = vadd.f32 %v4516, %v4643
        %4654 = vst [vmem:[#allocation5] sm:$0xff] %v4646
        %4655 = vst [vmem:[#allocation5 + $0x8] sm:$0xff] %v4647
        %4656 = vst [vmem:[#allocation5 + $0x10] sm:$0xff] %v4648
        %4657 = vst [vmem:[#allocation5 + $0x18] sm:$0xff] %v4649
        %4658 = vst [vmem:[#allocation5 + $0x20] sm:$0xff] %v4650
        %4659 = vst [vmem:[#allocation5 + $0x28] sm:$0xff] %v4651
        %4660 = vst [vmem:[#allocation5 + $0x30] sm:$0xff] %v4652
        %4661 = vst [vmem:[#allocation5 + $0x38] sm:$0xff] %v4653
        %v4662 = vld [vmem:[#allocation4 + $0x8] sm:$0xff]
        %v4663 = vld [vmem:[#allocation4 + $0x20] sm:$0xff]
        %v4664 = vld [vmem:[#allocation4 + $0x38] sm:$0xff]
        %v4665 = vld [vmem:[#allocation4 + $0x50] sm:$0xff]
        %v4666 = vld [vmem:[#allocation4 + $0x68] sm:$0xff]
        %v4667 = vld [vmem:[#allocation4 + $0x80] sm:$0xff]
        %v4668 = vld [vmem:[#allocation4 + $0x98] sm:$0xff]
        %v4669 = vld [vmem:[#allocation4 + $0xb0] sm:$0xff]
        %v4670 = vpack.c.bf16 %v4663, %v4662
        %v4671 = vpack.c.bf16 %v4665, %v4664
        %v4672 = vpack.c.bf16 %v4667, %v4666
        %v4673 = vpack.c.bf16 %v4669, %v4668
        %v4674 = vld [vmem:[#allocation5] sm:$0xff]
        %v4675 = vld [vmem:[#allocation5 + $0x8] sm:$0xff]
        %v4676 = vld [vmem:[#allocation5 + $0x10] sm:$0xff]
        %v4677 = vld [vmem:[#allocation5 + $0x18] sm:$0xff]
        %v4678 = vld [vmem:[#allocation5 + $0x20] sm:$0xff]
        %v4679 = vld [vmem:[#allocation5 + $0x28] sm:$0xff]
        %v4680 = vld [vmem:[#allocation5 + $0x30] sm:$0xff]
        %v4681 = vld [vmem:[#allocation5 + $0x38] sm:$0xff]
        %s4682 = scalar_lea.vmem %s4, 64
        %v4683 = vld [vmem:[%s4682] sm:$0xf]
        %v4684 = vld [vmem:[%s4682 + $0x4] sm:$0xf]
        %v4685 = vld [vmem:[%s4682 + $0x8] sm:$0xf]
        %v4686 = vld [vmem:[%s4682 + $0xc] sm:$0xf]
        %v4687 = vld [vmem:[%s4682 + $0x10] sm:$0xf]
        %v4688 = vld [vmem:[%s4682 + $0x14] sm:$0xf]
        %v4689 = vld [vmem:[%s4682 + $0x18] sm:$0xf]
        %v4690 = vld [vmem:[%s4682 + $0x1c] sm:$0xf]
        %v4691 = vld [vmem:[%s4682 + $0x20] sm:$0xf]
        %v4692 = vld [vmem:[%s4682 + $0x24] sm:$0xf]
        %v4693 = vld [vmem:[%s4682 + $0x28] sm:$0xf]
        %v4694 = vld [vmem:[%s4682 + $0x2c] sm:$0xf]
        %v4695 = vld [vmem:[%s4682 + $0x30] sm:$0xf]
        %v4696 = vld [vmem:[%s4682 + $0x34] sm:$0xf]
        %v4697 = vld [vmem:[%s4682 + $0x38] sm:$0xf]
        %v4698 = vld [vmem:[%s4682 + $0x3c] sm:$0xf]
        %v4715 = vunpack.c.l.b16 %v4683
        %v4716 = vunpack.c.l.b16 %v4684
        %v4717 = vunpack.c.l.b16 %v4685
        %v4718 = vunpack.c.l.b16 %v4686
        %v4719 = vunpack.c.l.b16 %v4687
        %v4720 = vunpack.c.l.b16 %v4688
        %v4721 = vunpack.c.l.b16 %v4689
        %v4722 = vunpack.c.l.b16 %v4690
        %v4723 = vunpack.c.l.b16 %v4691
        %v4724 = vunpack.c.l.b16 %v4692
        %v4725 = vunpack.c.l.b16 %v4693
        %v4726 = vunpack.c.l.b16 %v4694
        %v4727 = vunpack.c.l.b16 %v4695
        %v4728 = vunpack.c.l.b16 %v4696
        %v4729 = vunpack.c.l.b16 %v4697
        %v4730 = vunpack.c.l.b16 %v4698
        %v4731 = vpack.c.b16 %v4716, %v4715
        %v4732 = vpack.c.b16 %v4718, %v4717
        %v4733 = vpack.c.b16 %v4720, %v4719
        %v4734 = vpack.c.b16 %v4722, %v4721
        %v4735 = vpack.c.b16 %v4724, %v4723
        %v4736 = vpack.c.b16 %v4726, %v4725
        %v4737 = vpack.c.b16 %v4728, %v4727
        %v4738 = vpack.c.b16 %v4730, %v4729
        %4747 = vmatprep.subr.bf16.mxu0 0
        %4748 = vmatpush1.bf16.msra.mxu0 %v4731
        %4749 = vmatprep.subr.bf16.mxu0 0
        %4750 = vmatpush1.bf16.msra.mxu0 %v4732
        %4751 = vmatprep.subr.bf16.mxu0 0
        %4752 = vmatpush1.bf16.msra.mxu0 %v4733
        %4753 = vmatprep.subr.bf16.mxu0 0
        %4754 = vmatpush1.bf16.msra.mxu0 %v4734
        %4755 = vmatprep.subr.bf16.mxu0 0
        %4756 = vmatpush1.bf16.msra.mxu0 %v4735
        %4757 = vmatprep.subr.bf16.mxu0 0
        %4758 = vmatpush1.bf16.msra.mxu0 %v4736
        %4759 = vmatprep.subr.bf16.mxu0 0
        %4760 = vmatpush1.bf16.msra.mxu0 %v4737
        %4761 = vmatprep.subr.bf16.mxu0 0
        %4762 = vmatpush1.bf16.msra.mxu0 %v4738
        %4763 = vmatprep.subr.bf16.mxu0 0
        %4764 = vmatpush1.bf16.msra.mxu0 0
        %4765 = vmatprep.subr.bf16.mxu0 0
        %4766 = vmatpush1.bf16.msra.mxu0 0
        %4767 = vmatprep.subr.bf16.mxu0 0
        %4768 = vmatpush1.bf16.msra.mxu0 0
        %4769 = vmatprep.subr.bf16.mxu0 0
        %4770 = vmatpush1.bf16.msra.mxu0 0
        %4771 = vmatprep.subr.bf16.mxu0 0
        %4772 = vmatpush1.bf16.msra.mxu0 0
        %4773 = vmatprep.subr.bf16.mxu0 0
        %4774 = vmatpush1.bf16.msra.mxu0 0
        %4775 = vmatprep.subr.bf16.mxu0 0
        %4776 = vmatpush1.bf16.msra.mxu0 0
        %4777 = vmatprep.subr.bf16.mxu0 0
        %4778 = vmatpush1.bf16.msra.mxu0 0
        %4779 = vmatprep.mubr.bf16.mxu0 0
        %4780 = vmatmul.mubr.bf16.gmra.mrb[0].mxu0 %v4670
        %v4781 = vpop.f32.mrb[0].mxu0
        %v4782 = vadd.f32 0.0, %v4781
        %v4783 = vpop.f32.mrb[0].mxu0
        %v4784 = vpop.f32.mrb[0].mxu0
        %v4785 = vadd.f32 0.0, %v4784
        %v4786 = vpop.f32.mrb[0].mxu0
        %4787 = vmatprep.mubr.bf16.mxu0 0
        %4788 = vmatmul.mubr.bf16.gmra.mrb[0].mxu0 %v4671
        %v4789 = vpop.f32.mrb[0].mxu0
        %v4790 = vadd.f32 0.0, %v4789
        %v4791 = vpop.f32.mrb[0].mxu0
        %v4792 = vpop.f32.mrb[0].mxu0
        %v4793 = vadd.f32 0.0, %v4792
        %v4794 = vpop.f32.mrb[0].mxu0
        %4795 = vmatprep.mubr.bf16.mxu0 0
        %4796 = vmatmul.mubr.bf16.gmra.mrb[0].mxu0 %v4672
        %v4797 = vpop.f32.mrb[0].mxu0
        %v4798 = vadd.f32 0.0, %v4797
        %v4799 = vpop.f32.mrb[0].mxu0
        %v4800 = vpop.f32.mrb[0].mxu0
        %v4801 = vadd.f32 0.0, %v4800
        %v4802 = vpop.f32.mrb[0].mxu0
        %4803 = vmatprep.mubr.bf16.mxu0 0
        %4804 = vmatmul.mubr.bf16.gmra.mrb[0].mxu0 %v4673
        %v4805 = vpop.f32.mrb[0].mxu0
        %v4806 = vadd.f32 0.0, %v4805
        %v4807 = vpop.f32.mrb[0].mxu0
        %v4808 = vpop.f32.mrb[0].mxu0
        %v4809 = vadd.f32 0.0, %v4808
        %v4810 = vpop.f32.mrb[0].mxu0
        %4811 = vdwg.mxu0
        %v4812 = vadd.f32 %v4674, %v4782
        %v4813 = vadd.f32 %v4675, %v4785
        %v4814 = vadd.f32 %v4676, %v4790
        %v4815 = vadd.f32 %v4677, %v4793
        %v4816 = vadd.f32 %v4678, %v4798
        %v4817 = vadd.f32 %v4679, %v4801
        %v4818 = vadd.f32 %v4680, %v4806
        %v4819 = vadd.f32 %v4681, %v4809
        %4820 = vst [vmem:[#allocation5] sm:$0xff] %v4812
        %4821 = vst [vmem:[#allocation5 + $0x8] sm:$0xff] %v4813
        %4822 = vst [vmem:[#allocation5 + $0x10] sm:$0xff] %v4814
        %4823 = vst [vmem:[#allocation5 + $0x18] sm:$0xff] %v4815
        %4824 = vst [vmem:[#allocation5 + $0x20] sm:$0xff] %v4816
        %4825 = vst [vmem:[#allocation5 + $0x28] sm:$0xff] %v4817
        %4826 = vst [vmem:[#allocation5 + $0x30] sm:$0xff] %v4818
        %4827 = vst [vmem:[#allocation5 + $0x38] sm:$0xff] %v4819
        %v4828 = vld [vmem:[#allocation4 + $0x9] sm:$0xff]
        %v4829 = vld [vmem:[#allocation4 + $0x21] sm:$0xff]
        %v4830 = vld [vmem:[#allocation4 + $0x39] sm:$0xff]
        %v4831 = vld [vmem:[#allocation4 + $0x51] sm:$0xff]
        %v4832 = vld [vmem:[#allocation4 + $0x69] sm:$0xff]
        %v4833 = vld [vmem:[#allocation4 + $0x81] sm:$0xff]
        %v4834 = vld [vmem:[#allocation4 + $0x99] sm:$0xff]
        %v4835 = vld [vmem:[#allocation4 + $0xb1] sm:$0xff]
        %v4836 = vpack.c.bf16 %v4829, %v4828
        %v4837 = vpack.c.bf16 %v4831, %v4830
        %v4838 = vpack.c.bf16 %v4833, %v4832
        %v4839 = vpack.c.bf16 %v4835, %v4834
        %v4840 = vld [vmem:[#allocation5] sm:$0xff]
        %v4841 = vld [vmem:[#allocation5 + $0x8] sm:$0xff]
        %v4842 = vld [vmem:[#allocation5 + $0x10] sm:$0xff]
        %v4843 = vld [vmem:[#allocation5 + $0x18] sm:$0xff]
        %v4844 = vld [vmem:[#allocation5 + $0x20] sm:$0xff]
        %v4845 = vld [vmem:[#allocation5 + $0x28] sm:$0xff]
        %v4846 = vld [vmem:[#allocation5 + $0x30] sm:$0xff]
        %v4847 = vld [vmem:[#allocation5 + $0x38] sm:$0xff]
        %s4848 = scalar_lea.vmem %s4, 128
        %v4849 = vld [vmem:[%s4848] sm:$0xf]
        %v4850 = vld [vmem:[%s4848 + $0x4] sm:$0xf]
        %v4851 = vld [vmem:[%s4848 + $0x8] sm:$0xf]
        %v4852 = vld [vmem:[%s4848 + $0xc] sm:$0xf]
        %v4853 = vld [vmem:[%s4848 + $0x10] sm:$0xf]
        %v4854 = vld [vmem:[%s4848 + $0x14] sm:$0xf]
        %v4855 = vld [vmem:[%s4848 + $0x18] sm:$0xf]
        %v4856 = vld [vmem:[%s4848 + $0x1c] sm:$0xf]
        %v4857 = vld [vmem:[%s4848 + $0x20] sm:$0xf]
        %v4858 = vld [vmem:[%s4848 + $0x24] sm:$0xf]
        %v4859 = vld [vmem:[%s4848 + $0x28] sm:$0xf]
        %v4860 = vld [vmem:[%s4848 + $0x2c] sm:$0xf]
        %v4861 = vld [vmem:[%s4848 + $0x30] sm:$0xf]
        %v4862 = vld [vmem:[%s4848 + $0x34] sm:$0xf]
        %v4863 = vld [vmem:[%s4848 + $0x38] sm:$0xf]
        %v4864 = vld [vmem:[%s4848 + $0x3c] sm:$0xf]
        %v4881 = vunpack.c.l.b16 %v4849
        %v4882 = vunpack.c.l.b16 %v4850
        %v4883 = vunpack.c.l.b16 %v4851
        %v4884 = vunpack.c.l.b16 %v4852
        %v4885 = vunpack.c.l.b16 %v4853
        %v4886 = vunpack.c.l.b16 %v4854
        %v4887 = vunpack.c.l.b16 %v4855
        %v4888 = vunpack.c.l.b16 %v4856
        %v4889 = vunpack.c.l.b16 %v4857
        %v4890 = vunpack.c.l.b16 %v4858
        %v4891 = vunpack.c.l.b16 %v4859
        %v4892 = vunpack.c.l.b16 %v4860
        %v4893 = vunpack.c.l.b16 %v4861
        %v4894 = vunpack.c.l.b16 %v4862
        %v4895 = vunpack.c.l.b16 %v4863
        %v4896 = vunpack.c.l.b16 %v4864
        %v4897 = vpack.c.b16 %v4882, %v4881
        %v4898 = vpack.c.b16 %v4884, %v4883
        %v4899 = vpack.c.b16 %v4886, %v4885
        %v4900 = vpack.c.b16 %v4888, %v4887
        %v4901 = vpack.c.b16 %v4890, %v4889
        %v4902 = vpack.c.b16 %v4892, %v4891
        %v4903 = vpack.c.b16 %v4894, %v4893
        %v4904 = vpack.c.b16 %v4896, %v4895
        %4913 = vmatprep.subr.bf16.mxu0 0
        %4914 = vmatpush1.bf16.msra.mxu0 %v4897
        %4915 = vmatprep.subr.bf16.mxu0 0
        %4916 = vmatpush1.bf16.msra.mxu0 %v4898
        %4917 = vmatprep.subr.bf16.mxu0 0
        %4918 = vmatpush1.bf16.msra.mxu0 %v4899
        %4919 = vmatprep.subr.bf16.mxu0 0
        %4920 = vmatpush1.bf16.msra.mxu0 %v4900
        %4921 = vmatprep.subr.bf16.mxu0 0
        %4922 = vmatpush1.bf16.msra.mxu0 %v4901
        %4923 = vmatprep.subr.bf16.mxu0 0
        %4924 = vmatpush1.bf16.msra.mxu0 %v4902
        %4925 = vmatprep.subr.bf16.mxu0 0
        %4926 = vmatpush1.bf16.msra.mxu0 %v4903
        %4927 = vmatprep.subr.bf16.mxu0 0
        %4928 = vmatpush1.bf16.msra.mxu0 %v4904
        %4929 = vmatprep.subr.bf16.mxu0 0
        %4930 = vmatpush1.bf16.msra.mxu0 0
        %4931 = vmatprep.subr.bf16.mxu0 0
        %4932 = vmatpush1.bf16.msra.mxu0 0
        %4933 = vmatprep.subr.bf16.mxu0 0
        %4934 = vmatpush1.bf16.msra.mxu0 0
        %4935 = vmatprep.subr.bf16.mxu0 0
        %4936 = vmatpush1.bf16.msra.mxu0 0
        %4937 = vmatprep.subr.bf16.mxu0 0
        %4938 = vmatpush1.bf16.msra.mxu0 0
        %4939 = vmatprep.subr.bf16.mxu0 0
        %4940 = vmatpush1.bf16.msra.mxu0 0
        %4941 = vmatprep.subr.bf16.mxu0 0
        %4942 = vmatpush1.bf16.msra.mxu0 0
        %4943 = vmatprep.subr.bf16.mxu0 0
        %4944 = vmatpush1.bf16.msra.mxu0 0
        %4945 = vmatprep.mubr.bf16.mxu0 0
        %4946 = vmatmul.mubr.bf16.gmra.mrb[0].mxu0 %v4836
        %v4947 = vpop.f32.mrb[0].mxu0
        %v4948 = vadd.f32 0.0, %v4947
        %v4949 = vpop.f32.mrb[0].mxu0
        %v4950 = vpop.f32.mrb[0].mxu0
        %v4951 = vadd.f32 0.0, %v4950
        %v4952 = vpop.f32.mrb[0].mxu0
        %4953 = vmatprep.mubr.bf16.mxu0 0
        %4954 = vmatmul.mubr.bf16.gmra.mrb[0].mxu0 %v4837
        %v4955 = vpop.f32.mrb[0].mxu0
        %v4956 = vadd.f32 0.0, %v4955
        %v4957 = vpop.f32.mrb[0].mxu0
        %v4958 = vpop.f32.mrb[0].mxu0
        %v4959 = vadd.f32 0.0, %v4958
        %v4960 = vpop.f32.mrb[0].mxu0
        %4961 = vmatprep.mubr.bf16.mxu0 0
        %4962 = vmatmul.mubr.bf16.gmra.mrb[0].mxu0 %v4838
        %v4963 = vpop.f32.mrb[0].mxu0
        %v4964 = vadd.f32 0.0, %v4963
        %v4965 = vpop.f32.mrb[0].mxu0
        %v4966 = vpop.f32.mrb[0].mxu0
        %v4967 = vadd.f32 0.0, %v4966
        %v4968 = vpop.f32.mrb[0].mxu0
        %4969 = vmatprep.mubr.bf16.mxu0 0
        %4970 = vmatmul.mubr.bf16.gmra.mrb[0].mxu0 %v4839
        %v4971 = vpop.f32.mrb[0].mxu0
        %v4972 = vadd.f32 0.0, %v4971
        %v4973 = vpop.f32.mrb[0].mxu0
        %v4974 = vpop.f32.mrb[0].mxu0
        %v4975 = vadd.f32 0.0, %v4974
        %v4976 = vpop.f32.mrb[0].mxu0
        %4977 = vdwg.mxu0
        %v4978 = vadd.f32 %v4840, %v4948
        %v4979 = vadd.f32 %v4841, %v4951
        %v4980 = vadd.f32 %v4842, %v4956
        %v4981 = vadd.f32 %v4843, %v4959
        %v4982 = vadd.f32 %v4844, %v4964
        %v4983 = vadd.f32 %v4845, %v4967
        %v4984 = vadd.f32 %v4846, %v4972
        %v4985 = vadd.f32 %v4847, %v4975
        %4986 = vst [vmem:[#allocation5] sm:$0xff] %v4978
        %4987 = vst [vmem:[#allocation5 + $0x8] sm:$0xff] %v4979
        %4988 = vst [vmem:[#allocation5 + $0x10] sm:$0xff] %v4980
        %4989 = vst [vmem:[#allocation5 + $0x18] sm:$0xff] %v4981
        %4990 = vst [vmem:[#allocation5 + $0x20] sm:$0xff] %v4982
        %4991 = vst [vmem:[#allocation5 + $0x28] sm:$0xff] %v4983
        %4992 = vst [vmem:[#allocation5 + $0x30] sm:$0xff] %v4984
        %4993 = vst [vmem:[#allocation5 + $0x38] sm:$0xff] %v4985
        %v4994 = vld [vmem:[%s4473 + $0x7] sm:$0xff]
        %v4995 = vld [vmem:[%s4473 + $0x1f] sm:$0xff]
        %v4996 = vld [vmem:[%s4473 + $0x37] sm:$0xff]
        %v4997 = vld [vmem:[%s4473 + $0x4f] sm:$0xff]
        %v4998 = vld [vmem:[%s4473 + $0x67] sm:$0xff]
        %v4999 = vld [vmem:[%s4473 + $0x7f] sm:$0xff]
        %v5000 = vld [vmem:[%s4473 + $0x97] sm:$0xff]
        %v5001 = vld [vmem:[%s4473 + $0xaf] sm:$0xff]
        %v5002 = vpack.c.bf16 %v4995, %v4994
        %v5003 = vpack.c.bf16 %v4997, %v4996
        %v5004 = vpack.c.bf16 %v4999, %v4998
        %v5005 = vpack.c.bf16 %v5001, %v5000
        %v5006 = vld [vmem:[#allocation5] sm:$0xff]
        %v5007 = vld [vmem:[#allocation5 + $0x8] sm:$0xff]
        %v5008 = vld [vmem:[#allocation5 + $0x10] sm:$0xff]
        %v5009 = vld [vmem:[#allocation5 + $0x18] sm:$0xff]
        %v5010 = vld [vmem:[#allocation5 + $0x20] sm:$0xff]
        %v5011 = vld [vmem:[#allocation5 + $0x28] sm:$0xff]
        %v5012 = vld [vmem:[#allocation5 + $0x30] sm:$0xff]
        %v5013 = vld [vmem:[#allocation5 + $0x38] sm:$0xff]
        %s5014 = scalar_lea.vmem %s4, 192
        %v5015 = vld [vmem:[%s5014] sm:$0xf]
        %v5016 = vld [vmem:[%s5014 + $0x4] sm:$0xf]
        %v5017 = vld [vmem:[%s5014 + $0x8] sm:$0xf]
        %v5018 = vld [vmem:[%s5014 + $0xc] sm:$0xf]
        %v5019 = vld [vmem:[%s5014 + $0x10] sm:$0xf]
        %v5020 = vld [vmem:[%s5014 + $0x14] sm:$0xf]
        %v5021 = vld [vmem:[%s5014 + $0x18] sm:$0xf]
        %v5022 = vld [vmem:[%s5014 + $0x1c] sm:$0xf]
        %v5023 = vld [vmem:[%s5014 + $0x20] sm:$0xf]
        %v5024 = vld [vmem:[%s5014 + $0x24] sm:$0xf]
        %v5025 = vld [vmem:[%s5014 + $0x28] sm:$0xf]
        %v5026 = vld [vmem:[%s5014 + $0x2c] sm:$0xf]
        %v5027 = vld [vmem:[%s5014 + $0x30] sm:$0xf]
        %v5028 = vld [vmem:[%s5014 + $0x34] sm:$0xf]
        %v5029 = vld [vmem:[%s5014 + $0x38] sm:$0xf]
        %v5030 = vld [vmem:[%s5014 + $0x3c] sm:$0xf]
        %v5047 = vunpack.c.l.b16 %v5015
        %v5048 = vunpack.c.l.b16 %v5016
        %v5049 = vunpack.c.l.b16 %v5017
        %v5050 = vunpack.c.l.b16 %v5018
        %v5051 = vunpack.c.l.b16 %v5019
        %v5052 = vunpack.c.l.b16 %v5020
        %v5053 = vunpack.c.l.b16 %v5021
        %v5054 = vunpack.c.l.b16 %v5022
        %v5055 = vunpack.c.l.b16 %v5023
        %v5056 = vunpack.c.l.b16 %v5024
        %v5057 = vunpack.c.l.b16 %v5025
        %v5058 = vunpack.c.l.b16 %v5026
        %v5059 = vunpack.c.l.b16 %v5027
        %v5060 = vunpack.c.l.b16 %v5028
        %v5061 = vunpack.c.l.b16 %v5029
        %v5062 = vunpack.c.l.b16 %v5030
        %v5063 = vpack.c.b16 %v5048, %v5047
        %v5064 = vpack.c.b16 %v5050, %v5049
        %v5065 = vpack.c.b16 %v5052, %v5051
        %v5066 = vpack.c.b16 %v5054, %v5053
        %v5067 = vpack.c.b16 %v5056, %v5055
        %v5068 = vpack.c.b16 %v5058, %v5057
        %v5069 = vpack.c.b16 %v5060, %v5059
        %v5070 = vpack.c.b16 %v5062, %v5061
        %5079 = vmatprep.subr.bf16.mxu0 0
        %5080 = vmatpush1.bf16.msra.mxu0 %v5063
        %5081 = vmatprep.subr.bf16.mxu0 0
        %5082 = vmatpush1.bf16.msra.mxu0 %v5064
        %5083 = vmatprep.subr.bf16.mxu0 0
        %5084 = vmatpush1.bf16.msra.mxu0 %v5065
        %5085 = vmatprep.subr.bf16.mxu0 0
        %5086 = vmatpush1.bf16.msra.mxu0 %v5066
        %5087 = vmatprep.subr.bf16.mxu0 0
        %5088 = vmatpush1.bf16.msra.mxu0 %v5067
        %5089 = vmatprep.subr.bf16.mxu0 0
        %5090 = vmatpush1.bf16.msra.mxu0 %v5068
        %5091 = vmatprep.subr.bf16.mxu0 0
        %5092 = vmatpush1.bf16.msra.mxu0 %v5069
        %5093 = vmatprep.subr.bf16.mxu0 0
        %5094 = vmatpush1.bf16.msra.mxu0 %v5070
        %5095 = vmatprep.subr.bf16.mxu0 0
        %5096 = vmatpush1.bf16.msra.mxu0 0
        %5097 = vmatprep.subr.bf16.mxu0 0
        %5098 = vmatpush1.bf16.msra.mxu0 0
        %5099 = vmatprep.subr.bf16.mxu0 0
        %5100 = vmatpush1.bf16.msra.mxu0 0
        %5101 = vmatprep.subr.bf16.mxu0 0
        %5102 = vmatpush1.bf16.msra.mxu0 0
        %5103 = vmatprep.subr.bf16.mxu0 0
        %5104 = vmatpush1.bf16.msra.mxu0 0
        %5105 = vmatprep.subr.bf16.mxu0 0
        %5106 = vmatpush1.bf16.msra.mxu0 0
        %5107 = vmatprep.subr.bf16.mxu0 0
        %5108 = vmatpush1.bf16.msra.mxu0 0
        %5109 = vmatprep.subr.bf16.mxu0 0
        %5110 = vmatpush1.bf16.msra.mxu0 0
        %5111 = vmatprep.mubr.bf16.mxu0 0
        %5112 = vmatmul.mubr.bf16.gmra.mrb[0].mxu0 %v5002
        %v5113 = vpop.f32.mrb[0].mxu0
        %v5114 = vadd.f32 0.0, %v5113
        %v5115 = vpop.f32.mrb[0].mxu0
        %v5116 = vpop.f32.mrb[0].mxu0
        %v5117 = vadd.f32 0.0, %v5116
        %v5118 = vpop.f32.mrb[0].mxu0
        %5119 = vmatprep.mubr.bf16.mxu0 0
        %5120 = vmatmul.mubr.bf16.gmra.mrb[0].mxu0 %v5003
        %v5121 = vpop.f32.mrb[0].mxu0
        %v5122 = vadd.f32 0.0, %v5121
        %v5123 = vpop.f32.mrb[0].mxu0
        %v5124 = vpop.f32.mrb[0].mxu0
        %v5125 = vadd.f32 0.0, %v5124
        %v5126 = vpop.f32.mrb[0].mxu0
        %5127 = vmatprep.mubr.bf16.mxu0 0
        %5128 = vmatmul.mubr.bf16.gmra.mrb[0].mxu0 %v5004
        %v5129 = vpop.f32.mrb[0].mxu0
        %v5130 = vadd.f32 0.0, %v5129
        %v5131 = vpop.f32.mrb[0].mxu0
        %v5132 = vpop.f32.mrb[0].mxu0
        %v5133 = vadd.f32 0.0, %v5132
        %v5134 = vpop.f32.mrb[0].mxu0
        %5135 = vmatprep.mubr.bf16.mxu0 0
        %5136 = vmatmul.mubr.bf16.gmra.mrb[0].mxu0 %v5005
        %v5137 = vpop.f32.mrb[0].mxu0
        %v5138 = vadd.f32 0.0, %v5137
        %v5139 = vpop.f32.mrb[0].mxu0
        %v5140 = vpop.f32.mrb[0].mxu0
        %v5141 = vadd.f32 0.0, %v5140
        %v5142 = vpop.f32.mrb[0].mxu0
        %5143 = vdwg.mxu0
        %v5144 = vadd.f32 %v5006, %v5114
        %v5145 = vadd.f32 %v5007, %v5117
        %v5146 = vadd.f32 %v5008, %v5122
        %v5147 = vadd.f32 %v5009, %v5125
        %v5148 = vadd.f32 %v5010, %v5130
        %v5149 = vadd.f32 %v5011, %v5133
        %v5150 = vadd.f32 %v5012, %v5138
        %v5151 = vadd.f32 %v5013, %v5141
        %5152 = vst [vmem:[#allocation5] sm:$0xff] %v5144
        %5153 = vst [vmem:[#allocation5 + $0x8] sm:$0xff] %v5145
        %5154 = vst [vmem:[#allocation5 + $0x10] sm:$0xff] %v5146
        %5155 = vst [vmem:[#allocation5 + $0x18] sm:$0xff] %v5147
        %5156 = vst [vmem:[#allocation5 + $0x20] sm:$0xff] %v5148
        %5157 = vst [vmem:[#allocation5 + $0x28] sm:$0xff] %v5149
        %5158 = vst [vmem:[#allocation5 + $0x30] sm:$0xff] %v5150
        %5159 = vst [vmem:[#allocation5 + $0x38] sm:$0xff] %v5151
        %v5160 = vld [vmem:[%s4473 + $0x8] sm:$0xff]
        %v5161 = vld [vmem:[%s4473 + $0x20] sm:$0xff]
        %v5162 = vld [vmem:[%s4473 + $0x38] sm:$0xff]
        %v5163 = vld [vmem:[%s4473 + $0x50] sm:$0xff]
        %v5164 = vld [vmem:[%s4473 + $0x68] sm:$0xff]
        %v5165 = vld [vmem:[%s4473 + $0x80] sm:$0xff]
        %v5166 = vld [vmem:[%s4473 + $0x98] sm:$0xff]
        %v5167 = vld [vmem:[%s4473 + $0xb0] sm:$0xff]
        %v5168 = vpack.c.bf16 %v5161, %v5160
        %v5169 = vpack.c.bf16 %v5163, %v5162
        %v5170 = vpack.c.bf16 %v5165, %v5164
        %v5171 = vpack.c.bf16 %v5167, %v5166
        %v5172 = vld [vmem:[#allocation5] sm:$0xff]
        %v5173 = vld [vmem:[#allocation5 + $0x8] sm:$0xff]
        %v5174 = vld [vmem:[#allocation5 + $0x10] sm:$0xff]
        %v5175 = vld [vmem:[#allocation5 + $0x18] sm:$0xff]
        %v5176 = vld [vmem:[#allocation5 + $0x20] sm:$0xff]
        %v5177 = vld [vmem:[#allocation5 + $0x28] sm:$0xff]
        %v5178 = vld [vmem:[#allocation5 + $0x30] sm:$0xff]
        %v5179 = vld [vmem:[#allocation5 + $0x38] sm:$0xff]
        %s5180 = scalar_lea.vmem %s4, 256
        %v5181 = vld [vmem:[%s5180] sm:$0xf]
        %v5182 = vld [vmem:[%s5180 + $0x4] sm:$0xf]
        %v5183 = vld [vmem:[%s5180 + $0x8] sm:$0xf]
        %v5184 = vld [vmem:[%s5180 + $0xc] sm:$0xf]
        %v5185 = vld [vmem:[%s5180 + $0x10] sm:$0xf]
        %v5186 = vld [vmem:[%s5180 + $0x14] sm:$0xf]
        %v5187 = vld [vmem:[%s5180 + $0x18] sm:$0xf]
        %v5188 = vld [vmem:[%s5180 + $0x1c] sm:$0xf]
        %v5189 = vld [vmem:[%s5180 + $0x20] sm:$0xf]
        %v5190 = vld [vmem:[%s5180 + $0x24] sm:$0xf]
        %v5191 = vld [vmem:[%s5180 + $0x28] sm:$0xf]
        %v5192 = vld [vmem:[%s5180 + $0x2c] sm:$0xf]
        %v5193 = vld [vmem:[%s5180 + $0x30] sm:$0xf]
        %v5194 = vld [vmem:[%s5180 + $0x34] sm:$0xf]
        %v5195 = vld [vmem:[%s5180 + $0x38] sm:$0xf]
        %v5196 = vld [vmem:[%s5180 + $0x3c] sm:$0xf]
        %v5213 = vunpack.c.l.b16 %v5181
        %v5214 = vunpack.c.l.b16 %v5182
        %v5215 = vunpack.c.l.b16 %v5183
        %v5216 = vunpack.c.l.b16 %v5184
        %v5217 = vunpack.c.l.b16 %v5185
        %v5218 = vunpack.c.l.b16 %v5186
        %v5219 = vunpack.c.l.b16 %v5187
        %v5220 = vunpack.c.l.b16 %v5188
        %v5221 = vunpack.c.l.b16 %v5189
        %v5222 = vunpack.c.l.b16 %v5190
        %v5223 = vunpack.c.l.b16 %v5191
        %v5224 = vunpack.c.l.b16 %v5192
        %v5225 = vunpack.c.l.b16 %v5193
        %v5226 = vunpack.c.l.b16 %v5194
        %v5227 = vunpack.c.l.b16 %v5195
        %v5228 = vunpack.c.l.b16 %v5196
        %v5229 = vpack.c.b16 %v5214, %v5213
        %v5230 = vpack.c.b16 %v5216, %v5215
        %v5231 = vpack.c.b16 %v5218, %v5217
        %v5232 = vpack.c.b16 %v5220, %v5219
        %v5233 = vpack.c.b16 %v5222, %v5221
        %v5234 = vpack.c.b16 %v5224, %v5223
        %v5235 = vpack.c.b16 %v5226, %v5225
        %v5236 = vpack.c.b16 %v5228, %v5227
        %5245 = vmatprep.subr.bf16.mxu0 0
        %5246 = vmatpush1.bf16.msra.mxu0 %v5229
        %5247 = vmatprep.subr.bf16.mxu0 0
        %5248 = vmatpush1.bf16.msra.mxu0 %v5230
        %5249 = vmatprep.subr.bf16.mxu0 0
        %5250 = vmatpush1.bf16.msra.mxu0 %v5231
        %5251 = vmatprep.subr.bf16.mxu0 0
        %5252 = vmatpush1.bf16.msra.mxu0 %v5232
        %5253 = vmatprep.subr.bf16.mxu0 0
        %5254 = vmatpush1.bf16.msra.mxu0 %v5233
        %5255 = vmatprep.subr.bf16.mxu0 0
        %5256 = vmatpush1.bf16.msra.mxu0 %v5234
        %5257 = vmatprep.subr.bf16.mxu0 0
        %5258 = vmatpush1.bf16.msra.mxu0 %v5235
        %5259 = vmatprep.subr.bf16.mxu0 0
        %5260 = vmatpush1.bf16.msra.mxu0 %v5236
        %5261 = vmatprep.subr.bf16.mxu0 0
        %5262 = vmatpush1.bf16.msra.mxu0 0
        %5263 = vmatprep.subr.bf16.mxu0 0
        %5264 = vmatpush1.bf16.msra.mxu0 0
        %5265 = vmatprep.subr.bf16.mxu0 0
        %5266 = vmatpush1.bf16.msra.mxu0 0
        %5267 = vmatprep.subr.bf16.mxu0 0
        %5268 = vmatpush1.bf16.msra.mxu0 0
        %5269 = vmatprep.subr.bf16.mxu0 0
        %5270 = vmatpush1.bf16.msra.mxu0 0
        %5271 = vmatprep.subr.bf16.mxu0 0
        %5272 = vmatpush1.bf16.msra.mxu0 0
        %5273 = vmatprep.subr.bf16.mxu0 0
        %5274 = vmatpush1.bf16.msra.mxu0 0
        %5275 = vmatprep.subr.bf16.mxu0 0
        %5276 = vmatpush1.bf16.msra.mxu0 0
        %5277 = vmatprep.mubr.bf16.mxu0 0
        %5278 = vmatmul.mubr.bf16.gmra.mrb[0].mxu0 %v5168
        %v5279 = vpop.f32.mrb[0].mxu0
        %v5280 = vadd.f32 0.0, %v5279
        %v5281 = vpop.f32.mrb[0].mxu0
        %v5282 = vpop.f32.mrb[0].mxu0
        %v5283 = vadd.f32 0.0, %v5282
        %v5284 = vpop.f32.mrb[0].mxu0
        %5285 = vmatprep.mubr.bf16.mxu0 0
        %5286 = vmatmul.mubr.bf16.gmra.mrb[0].mxu0 %v5169
        %v5287 = vpop.f32.mrb[0].mxu0
        %v5288 = vadd.f32 0.0, %v5287
        %v5289 = vpop.f32.mrb[0].mxu0
        %v5290 = vpop.f32.mrb[0].mxu0
        %v5291 = vadd.f32 0.0, %v5290
        %v5292 = vpop.f32.mrb[0].mxu0
        %5293 = vmatprep.mubr.bf16.mxu0 0
        %5294 = vmatmul.mubr.bf16.gmra.mrb[0].mxu0 %v5170
        %v5295 = vpop.f32.mrb[0].mxu0
        %v5296 = vadd.f32 0.0, %v5295
        %v5297 = vpop.f32.mrb[0].mxu0
        %v5298 = vpop.f32.mrb[0].mxu0
        %v5299 = vadd.f32 0.0, %v5298
        %v5300 = vpop.f32.mrb[0].mxu0
        %5301 = vmatprep.mubr.bf16.mxu0 0
        %5302 = vmatmul.mubr.bf16.gmra.mrb[0].mxu0 %v5171
        %v5303 = vpop.f32.mrb[0].mxu0
        %v5304 = vadd.f32 0.0, %v5303
        %v5305 = vpop.f32.mrb[0].mxu0
        %v5306 = vpop.f32.mrb[0].mxu0
        %v5307 = vadd.f32 0.0, %v5306
        %v5308 = vpop.f32.mrb[0].mxu0
        %5309 = vdwg.mxu0
        %v5310 = vadd.f32 %v5172, %v5280
        %v5311 = vadd.f32 %v5173, %v5283
        %v5312 = vadd.f32 %v5174, %v5288
        %v5313 = vadd.f32 %v5175, %v5291
        %v5314 = vadd.f32 %v5176, %v5296
        %v5315 = vadd.f32 %v5177, %v5299
        %v5316 = vadd.f32 %v5178, %v5304
        %v5317 = vadd.f32 %v5179, %v5307
        %5318 = vst [vmem:[#allocation5] sm:$0xff] %v5310
        %5319 = vst [vmem:[#allocation5 + $0x8] sm:$0xff] %v5311
        %5320 = vst [vmem:[#allocation5 + $0x10] sm:$0xff] %v5312
        %5321 = vst [vmem:[#allocation5 + $0x18] sm:$0xff] %v5313
        %5322 = vst [vmem:[#allocation5 + $0x20] sm:$0xff] %v5314
        %5323 = vst [vmem:[#allocation5 + $0x28] sm:$0xff] %v5315
        %5324 = vst [vmem:[#allocation5 + $0x30] sm:$0xff] %v5316
        %5325 = vst [vmem:[#allocation5 + $0x38] sm:$0xff] %v5317
        %v5326 = vld [vmem:[%s4473 + $0x9] sm:$0xff]
        %v5327 = vld [vmem:[%s4473 + $0x21] sm:$0xff]
        %v5328 = vld [vmem:[%s4473 + $0x39] sm:$0xff]
        %v5329 = vld [vmem:[%s4473 + $0x51] sm:$0xff]
        %v5330 = vld [vmem:[%s4473 + $0x69] sm:$0xff]
        %v5331 = vld [vmem:[%s4473 + $0x81] sm:$0xff]
        %v5332 = vld [vmem:[%s4473 + $0x99] sm:$0xff]
        %v5333 = vld [vmem:[%s4473 + $0xb1] sm:$0xff]
        %v5334 = vpack.c.bf16 %v5327, %v5326
        %v5335 = vpack.c.bf16 %v5329, %v5328
        %v5336 = vpack.c.bf16 %v5331, %v5330
        %v5337 = vpack.c.bf16 %v5333, %v5332
        %v5338 = vld [vmem:[#allocation5] sm:$0xff]
        %v5339 = vld [vmem:[#allocation5 + $0x8] sm:$0xff]
        %v5340 = vld [vmem:[#allocation5 + $0x10] sm:$0xff]
        %v5341 = vld [vmem:[#allocation5 + $0x18] sm:$0xff]
        %v5342 = vld [vmem:[#allocation5 + $0x20] sm:$0xff]
        %v5343 = vld [vmem:[#allocation5 + $0x28] sm:$0xff]
        %v5344 = vld [vmem:[#allocation5 + $0x30] sm:$0xff]
        %v5345 = vld [vmem:[#allocation5 + $0x38] sm:$0xff]
        %s5346 = scalar_lea.vmem %s4, 320
        %v5347 = vld [vmem:[%s5346] sm:$0xf]
        %v5348 = vld [vmem:[%s5346 + $0x4] sm:$0xf]
        %v5349 = vld [vmem:[%s5346 + $0x8] sm:$0xf]
        %v5350 = vld [vmem:[%s5346 + $0xc] sm:$0xf]
        %v5351 = vld [vmem:[%s5346 + $0x10] sm:$0xf]
        %v5352 = vld [vmem:[%s5346 + $0x14] sm:$0xf]
        %v5353 = vld [vmem:[%s5346 + $0x18] sm:$0xf]
        %v5354 = vld [vmem:[%s5346 + $0x1c] sm:$0xf]
        %v5355 = vld [vmem:[%s5346 + $0x20] sm:$0xf]
        %v5356 = vld [vmem:[%s5346 + $0x24] sm:$0xf]
        %v5357 = vld [vmem:[%s5346 + $0x28] sm:$0xf]
        %v5358 = vld [vmem:[%s5346 + $0x2c] sm:$0xf]
        %v5359 = vld [vmem:[%s5346 + $0x30] sm:$0xf]
        %v5360 = vld [vmem:[%s5346 + $0x34] sm:$0xf]
        %v5361 = vld [vmem:[%s5346 + $0x38] sm:$0xf]
        %v5362 = vld [vmem:[%s5346 + $0x3c] sm:$0xf]
        %v5379 = vunpack.c.l.b16 %v5347
        %v5380 = vunpack.c.l.b16 %v5348
        %v5381 = vunpack.c.l.b16 %v5349
        %v5382 = vunpack.c.l.b16 %v5350
        %v5383 = vunpack.c.l.b16 %v5351
        %v5384 = vunpack.c.l.b16 %v5352
        %v5385 = vunpack.c.l.b16 %v5353
        %v5386 = vunpack.c.l.b16 %v5354
        %v5387 = vunpack.c.l.b16 %v5355
        %v5388 = vunpack.c.l.b16 %v5356
        %v5389 = vunpack.c.l.b16 %v5357
        %v5390 = vunpack.c.l.b16 %v5358
        %v5391 = vunpack.c.l.b16 %v5359
        %v5392 = vunpack.c.l.b16 %v5360
        %v5393 = vunpack.c.l.b16 %v5361
        %v5394 = vunpack.c.l.b16 %v5362
        %v5395 = vpack.c.b16 %v5380, %v5379
        %v5396 = vpack.c.b16 %v5382, %v5381
        %v5397 = vpack.c.b16 %v5384, %v5383
        %v5398 = vpack.c.b16 %v5386, %v5385
        %v5399 = vpack.c.b16 %v5388, %v5387
        %v5400 = vpack.c.b16 %v5390, %v5389
        %v5401 = vpack.c.b16 %v5392, %v5391
        %v5402 = vpack.c.b16 %v5394, %v5393
        %5411 = vmatprep.subr.bf16.mxu0 0
        %5412 = vmatpush1.bf16.msra.mxu0 %v5395
        %5413 = vmatprep.subr.bf16.mxu0 0
        %5414 = vmatpush1.bf16.msra.mxu0 %v5396
        %5415 = vmatprep.subr.bf16.mxu0 0
        %5416 = vmatpush1.bf16.msra.mxu0 %v5397
        %5417 = vmatprep.subr.bf16.mxu0 0
        %5418 = vmatpush1.bf16.msra.mxu0 %v5398
        %5419 = vmatprep.subr.bf16.mxu0 0
        %5420 = vmatpush1.bf16.msra.mxu0 %v5399
        %5421 = vmatprep.subr.bf16.mxu0 0
        %5422 = vmatpush1.bf16.msra.mxu0 %v5400
        %5423 = vmatprep.subr.bf16.mxu0 0
        %5424 = vmatpush1.bf16.msra.mxu0 %v5401
        %5425 = vmatprep.subr.bf16.mxu0 0
        %5426 = vmatpush1.bf16.msra.mxu0 %v5402
        %5427 = vmatprep.subr.bf16.mxu0 0
        %5428 = vmatpush1.bf16.msra.mxu0 0
        %5429 = vmatprep.subr.bf16.mxu0 0
        %5430 = vmatpush1.bf16.msra.mxu0 0
        %5431 = vmatprep.subr.bf16.mxu0 0
        %5432 = vmatpush1.bf16.msra.mxu0 0
        %5433 = vmatprep.subr.bf16.mxu0 0
        %5434 = vmatpush1.bf16.msra.mxu0 0
        %5435 = vmatprep.subr.bf16.mxu0 0
        %5436 = vmatpush1.bf16.msra.mxu0 0
        %5437 = vmatprep.subr.bf16.mxu0 0
        %5438 = vmatpush1.bf16.msra.mxu0 0
        %5439 = vmatprep.subr.bf16.mxu0 0
        %5440 = vmatpush1.bf16.msra.mxu0 0
        %5441 = vmatprep.subr.bf16.mxu0 0
        %5442 = vmatpush1.bf16.msra.mxu0 0
        %5443 = vmatprep.mubr.bf16.mxu0 0
        %5444 = vmatmul.mubr.bf16.gmra.mrb[0].mxu0 %v5334
        %v5445 = vpop.f32.mrb[0].mxu0
        %v5446 = vadd.f32 0.0, %v5445
        %v5447 = vpop.f32.mrb[0].mxu0
        %v5448 = vpop.f32.mrb[0].mxu0
        %v5449 = vadd.f32 0.0, %v5448
        %v5450 = vpop.f32.mrb[0].mxu0
        %5451 = vmatprep.mubr.bf16.mxu0 0
        %5452 = vmatmul.mubr.bf16.gmra.mrb[0].mxu0 %v5335
        %v5453 = vpop.f32.mrb[0].mxu0
        %v5454 = vadd.f32 0.0, %v5453
        %v5455 = vpop.f32.mrb[0].mxu0
        %v5456 = vpop.f32.mrb[0].mxu0
        %v5457 = vadd.f32 0.0, %v5456
        %v5458 = vpop.f32.mrb[0].mxu0
        %5459 = vmatprep.mubr.bf16.mxu0 0
        %5460 = vmatmul.mubr.bf16.gmra.mrb[0].mxu0 %v5336
        %v5461 = vpop.f32.mrb[0].mxu0
        %v5462 = vadd.f32 0.0, %v5461
        %v5463 = vpop.f32.mrb[0].mxu0
        %v5464 = vpop.f32.mrb[0].mxu0
        %v5465 = vadd.f32 0.0, %v5464
        %v5466 = vpop.f32.mrb[0].mxu0
        %5467 = vmatprep.mubr.bf16.mxu0 0
        %5468 = vmatmul.mubr.bf16.gmra.mrb[0].mxu0 %v5337
        %v5469 = vpop.f32.mrb[0].mxu0
        %v5470 = vadd.f32 0.0, %v5469
        %v5471 = vpop.f32.mrb[0].mxu0
        %v5472 = vpop.f32.mrb[0].mxu0
        %v5473 = vadd.f32 0.0, %v5472
        %v5474 = vpop.f32.mrb[0].mxu0
        %5475 = vdwg.mxu0
        %v5476 = vadd.f32 %v5338, %v5446
        %v5477 = vadd.f32 %v5339, %v5449
        %v5478 = vadd.f32 %v5340, %v5454
        %v5479 = vadd.f32 %v5341, %v5457
        %v5480 = vadd.f32 %v5342, %v5462
        %v5481 = vadd.f32 %v5343, %v5465
        %v5482 = vadd.f32 %v5344, %v5470
        %v5483 = vadd.f32 %v5345, %v5473
        %5484 = vst [vmem:[#allocation5] sm:$0xff] %v5476
        %5485 = vst [vmem:[#allocation5 + $0x8] sm:$0xff] %v5477
        %5486 = vst [vmem:[#allocation5 + $0x10] sm:$0xff] %v5478
        %5487 = vst [vmem:[#allocation5 + $0x18] sm:$0xff] %v5479
        %5488 = vst [vmem:[#allocation5 + $0x20] sm:$0xff] %v5480
        %5489 = vst [vmem:[#allocation5 + $0x28] sm:$0xff] %v5481
        %5490 = vst [vmem:[#allocation5 + $0x30] sm:$0xff] %v5482
        %5491 = vst [vmem:[#allocation5 + $0x38] sm:$0xff] %v5483
        %s5492 = scalar_lea.vmem [#allocation4], 48
        %v5493 = vld [vmem:[%s5492 + $0x7] sm:$0xff]
        %v5494 = vld [vmem:[%s5492 + $0x1f] sm:$0xff]
        %v5495 = vld [vmem:[%s5492 + $0x37] sm:$0xff]
        %v5496 = vld [vmem:[%s5492 + $0x4f] sm:$0xff]
        %v5497 = vld [vmem:[%s5492 + $0x67] sm:$0xff]
        %v5498 = vld [vmem:[%s5492 + $0x7f] sm:$0xff]
        %v5499 = vld [vmem:[%s5492 + $0x97] sm:$0xff]
        %v5500 = vld [vmem:[%s5492 + $0xaf] sm:$0xff]
        %v5501 = vpack.c.bf16 %v5494, %v5493
        %v5502 = vpack.c.bf16 %v5496, %v5495
        %v5503 = vpack.c.bf16 %v5498, %v5497
        %v5504 = vpack.c.bf16 %v5500, %v5499
        %v5505 = vld [vmem:[#allocation5] sm:$0xff]
        %v5506 = vld [vmem:[#allocation5 + $0x8] sm:$0xff]
        %v5507 = vld [vmem:[#allocation5 + $0x10] sm:$0xff]
        %v5508 = vld [vmem:[#allocation5 + $0x18] sm:$0xff]
        %v5509 = vld [vmem:[#allocation5 + $0x20] sm:$0xff]
        %v5510 = vld [vmem:[#allocation5 + $0x28] sm:$0xff]
        %v5511 = vld [vmem:[#allocation5 + $0x30] sm:$0xff]
        %v5512 = vld [vmem:[#allocation5 + $0x38] sm:$0xff]
        %s5513 = scalar_lea.vmem %s4, 384
        %v5514 = vld [vmem:[%s5513] sm:$0xf]
        %v5515 = vld [vmem:[%s5513 + $0x4] sm:$0xf]
        %v5516 = vld [vmem:[%s5513 + $0x8] sm:$0xf]
        %v5517 = vld [vmem:[%s5513 + $0xc] sm:$0xf]
        %v5518 = vld [vmem:[%s5513 + $0x10] sm:$0xf]
        %v5519 = vld [vmem:[%s5513 + $0x14] sm:$0xf]
        %v5520 = vld [vmem:[%s5513 + $0x18] sm:$0xf]
        %v5521 = vld [vmem:[%s5513 + $0x1c] sm:$0xf]
        %v5522 = vld [vmem:[%s5513 + $0x20] sm:$0xf]
        %v5523 = vld [vmem:[%s5513 + $0x24] sm:$0xf]
        %v5524 = vld [vmem:[%s5513 + $0x28] sm:$0xf]
        %v5525 = vld [vmem:[%s5513 + $0x2c] sm:$0xf]
        %v5526 = vld [vmem:[%s5513 + $0x30] sm:$0xf]
        %v5527 = vld [vmem:[%s5513 + $0x34] sm:$0xf]
        %v5528 = vld [vmem:[%s5513 + $0x38] sm:$0xf]
        %v5529 = vld [vmem:[%s5513 + $0x3c] sm:$0xf]
        %v5546 = vunpack.c.l.b16 %v5514
        %v5547 = vunpack.c.l.b16 %v5515
        %v5548 = vunpack.c.l.b16 %v5516
        %v5549 = vunpack.c.l.b16 %v5517
        %v5550 = vunpack.c.l.b16 %v5518
        %v5551 = vunpack.c.l.b16 %v5519
        %v5552 = vunpack.c.l.b16 %v5520
        %v5553 = vunpack.c.l.b16 %v5521
        %v5554 = vunpack.c.l.b16 %v5522
        %v5555 = vunpack.c.l.b16 %v5523
        %v5556 = vunpack.c.l.b16 %v5524
        %v5557 = vunpack.c.l.b16 %v5525
        %v5558 = vunpack.c.l.b16 %v5526
        %v5559 = vunpack.c.l.b16 %v5527
        %v5560 = vunpack.c.l.b16 %v5528
        %v5561 = vunpack.c.l.b16 %v5529
        %v5562 = vpack.c.b16 %v5547, %v5546
        %v5563 = vpack.c.b16 %v5549, %v5548
        %v5564 = vpack.c.b16 %v5551, %v5550
        %v5565 = vpack.c.b16 %v5553, %v5552
        %v5566 = vpack.c.b16 %v5555, %v5554
        %v5567 = vpack.c.b16 %v5557, %v5556
        %v5568 = vpack.c.b16 %v5559, %v5558
        %v5569 = vpack.c.b16 %v5561, %v5560
        %5578 = vmatprep.subr.bf16.mxu0 0
        %5579 = vmatpush1.bf16.msra.mxu0 %v5562
        %5580 = vmatprep.subr.bf16.mxu0 0
        %5581 = vmatpush1.bf16.msra.mxu0 %v5563
        %5582 = vmatprep.subr.bf16.mxu0 0
        %5583 = vmatpush1.bf16.msra.mxu0 %v5564
        %5584 = vmatprep.subr.bf16.mxu0 0
        %5585 = vmatpush1.bf16.msra.mxu0 %v5565
        %5586 = vmatprep.subr.bf16.mxu0 0
        %5587 = vmatpush1.bf16.msra.mxu0 %v5566
        %5588 = vmatprep.subr.bf16.mxu0 0
        %5589 = vmatpush1.bf16.msra.mxu0 %v5567
        %5590 = vmatprep.subr.bf16.mxu0 0
        %5591 = vmatpush1.bf16.msra.mxu0 %v5568
        %5592 = vmatprep.subr.bf16.mxu0 0
        %5593 = vmatpush1.bf16.msra.mxu0 %v5569
        %5594 = vmatprep.subr.bf16.mxu0 0
        %5595 = vmatpush1.bf16.msra.mxu0 0
        %5596 = vmatprep.subr.bf16.mxu0 0
        %5597 = vmatpush1.bf16.msra.mxu0 0
        %5598 = vmatprep.subr.bf16.mxu0 0
        %5599 = vmatpush1.bf16.msra.mxu0 0
        %5600 = vmatprep.subr.bf16.mxu0 0
        %5601 = vmatpush1.bf16.msra.mxu0 0
        %5602 = vmatprep.subr.bf16.mxu0 0
        %5603 = vmatpush1.bf16.msra.mxu0 0
        %5604 = vmatprep.subr.bf16.mxu0 0
        %5605 = vmatpush1.bf16.msra.mxu0 0
        %5606 = vmatprep.subr.bf16.mxu0 0
        %5607 = vmatpush1.bf16.msra.mxu0 0
        %5608 = vmatprep.subr.bf16.mxu0 0
        %5609 = vmatpush1.bf16.msra.mxu0 0
        %5610 = vmatprep.mubr.bf16.mxu0 0
        %5611 = vmatmul.mubr.bf16.gmra.mrb[0].mxu0 %v5501
        %v5612 = vpop.f32.mrb[0].mxu0
        %v5613 = vadd.f32 0.0, %v5612
        %v5614 = vpop.f32.mrb[0].mxu0
        %v5615 = vpop.f32.mrb[0].mxu0
        %v5616 = vadd.f32 0.0, %v5615
        %v5617 = vpop.f32.mrb[0].mxu0
        %5618 = vmatprep.mubr.bf16.mxu0 0
        %5619 = vmatmul.mubr.bf16.gmra.mrb[0].mxu0 %v5502
        %v5620 = vpop.f32.mrb[0].mxu0
        %v5621 = vadd.f32 0.0, %v5620
        %v5622 = vpop.f32.mrb[0].mxu0
        %v5623 = vpop.f32.mrb[0].mxu0
        %v5624 = vadd.f32 0.0, %v5623
        %v5625 = vpop.f32.mrb[0].mxu0
        %5626 = vmatprep.mubr.bf16.mxu0 0
        %5627 = vmatmul.mubr.bf16.gmra.mrb[0].mxu0 %v5503
        %v5628 = vpop.f32.mrb[0].mxu0
        %v5629 = vadd.f32 0.0, %v5628
        %v5630 = vpop.f32.mrb[0].mxu0
        %v5631 = vpop.f32.mrb[0].mxu0
        %v5632 = vadd.f32 0.0, %v5631
        %v5633 = vpop.f32.mrb[0].mxu0
        %5634 = vmatprep.mubr.bf16.mxu0 0
        %5635 = vmatmul.mubr.bf16.gmra.mrb[0].mxu0 %v5504
        %v5636 = vpop.f32.mrb[0].mxu0
        %v5637 = vadd.f32 0.0, %v5636
        %v5638 = vpop.f32.mrb[0].mxu0
        %v5639 = vpop.f32.mrb[0].mxu0
        %v5640 = vadd.f32 0.0, %v5639
        %v5641 = vpop.f32.mrb[0].mxu0
        %5642 = vdwg.mxu0
        %v5643 = vadd.f32 %v5505, %v5613
        %v5644 = vadd.f32 %v5506, %v5616
        %v5645 = vadd.f32 %v5507, %v5621
        %v5646 = vadd.f32 %v5508, %v5624
        %v5647 = vadd.f32 %v5509, %v5629
        %v5648 = vadd.f32 %v5510, %v5632
        %v5649 = vadd.f32 %v5511, %v5637
        %v5650 = vadd.f32 %v5512, %v5640
        %5651 = vst [vmem:[#allocation5] sm:$0xff] %v5643
        %5652 = vst [vmem:[#allocation5 + $0x8] sm:$0xff] %v5644
        %5653 = vst [vmem:[#allocation5 + $0x10] sm:$0xff] %v5645
        %5654 = vst [vmem:[#allocation5 + $0x18] sm:$0xff] %v5646
        %5655 = vst [vmem:[#allocation5 + $0x20] sm:$0xff] %v5647
        %5656 = vst [vmem:[#allocation5 + $0x28] sm:$0xff] %v5648
        %5657 = vst [vmem:[#allocation5 + $0x30] sm:$0xff] %v5649
        %5658 = vst [vmem:[#allocation5 + $0x38] sm:$0xff] %v5650
        %v5659 = vld [vmem:[%s5492 + $0x8] sm:$0xff]
        %v5660 = vld [vmem:[%s5492 + $0x20] sm:$0xff]
        %v5661 = vld [vmem:[%s5492 + $0x38] sm:$0xff]
        %v5662 = vld [vmem:[%s5492 + $0x50] sm:$0xff]
        %v5663 = vld [vmem:[%s5492 + $0x68] sm:$0xff]
        %v5664 = vld [vmem:[%s5492 + $0x80] sm:$0xff]
        %v5665 = vld [vmem:[%s5492 + $0x98] sm:$0xff]
        %v5666 = vld [vmem:[%s5492 + $0xb0] sm:$0xff]
        %v5667 = vpack.c.bf16 %v5660, %v5659
        %v5668 = vpack.c.bf16 %v5662, %v5661
        %v5669 = vpack.c.bf16 %v5664, %v5663
        %v5670 = vpack.c.bf16 %v5666, %v5665
        %v5671 = vld [vmem:[#allocation5] sm:$0xff]
        %v5672 = vld [vmem:[#allocation5 + $0x8] sm:$0xff]
        %v5673 = vld [vmem:[#allocation5 + $0x10] sm:$0xff]
        %v5674 = vld [vmem:[#allocation5 + $0x18] sm:$0xff]
        %v5675 = vld [vmem:[#allocation5 + $0x20] sm:$0xff]
        %v5676 = vld [vmem:[#allocation5 + $0x28] sm:$0xff]
        %v5677 = vld [vmem:[#allocation5 + $0x30] sm:$0xff]
        %v5678 = vld [vmem:[#allocation5 + $0x38] sm:$0xff]
        %s5679 = scalar_lea.vmem %s4, 448
        %v5680 = vld [vmem:[%s5679] sm:$0xf]
        %v5681 = vld [vmem:[%s5679 + $0x4] sm:$0xf]
        %v5682 = vld [vmem:[%s5679 + $0x8] sm:$0xf]
        %v5683 = vld [vmem:[%s5679 + $0xc] sm:$0xf]
        %v5684 = vld [vmem:[%s5679 + $0x10] sm:$0xf]
        %v5685 = vld [vmem:[%s5679 + $0x14] sm:$0xf]
        %v5686 = vld [vmem:[%s5679 + $0x18] sm:$0xf]
        %v5687 = vld [vmem:[%s5679 + $0x1c] sm:$0xf]
        %v5688 = vld [vmem:[%s5679 + $0x20] sm:$0xf]
        %v5689 = vld [vmem:[%s5679 + $0x24] sm:$0xf]
        %v5690 = vld [vmem:[%s5679 + $0x28] sm:$0xf]
        %v5691 = vld [vmem:[%s5679 + $0x2c] sm:$0xf]
        %v5692 = vld [vmem:[%s5679 + $0x30] sm:$0xf]
        %v5693 = vld [vmem:[%s5679 + $0x34] sm:$0xf]
        %v5694 = vld [vmem:[%s5679 + $0x38] sm:$0xf]
        %v5695 = vld [vmem:[%s5679 + $0x3c] sm:$0xf]
        %v5712 = vunpack.c.l.b16 %v5680
        %v5713 = vunpack.c.l.b16 %v5681
        %v5714 = vunpack.c.l.b16 %v5682
        %v5715 = vunpack.c.l.b16 %v5683
        %v5716 = vunpack.c.l.b16 %v5684
        %v5717 = vunpack.c.l.b16 %v5685
        %v5718 = vunpack.c.l.b16 %v5686
        %v5719 = vunpack.c.l.b16 %v5687
        %v5720 = vunpack.c.l.b16 %v5688
        %v5721 = vunpack.c.l.b16 %v5689
        %v5722 = vunpack.c.l.b16 %v5690
        %v5723 = vunpack.c.l.b16 %v5691
        %v5724 = vunpack.c.l.b16 %v5692
        %v5725 = vunpack.c.l.b16 %v5693
        %v5726 = vunpack.c.l.b16 %v5694
        %v5727 = vunpack.c.l.b16 %v5695
        %v5728 = vpack.c.b16 %v5713, %v5712
        %v5729 = vpack.c.b16 %v5715, %v5714
        %v5730 = vpack.c.b16 %v5717, %v5716
        %v5731 = vpack.c.b16 %v5719, %v5718
        %v5732 = vpack.c.b16 %v5721, %v5720
        %v5733 = vpack.c.b16 %v5723, %v5722
        %v5734 = vpack.c.b16 %v5725, %v5724
        %v5735 = vpack.c.b16 %v5727, %v5726
        %5744 = vmatprep.subr.bf16.mxu0 0
        %5745 = vmatpush1.bf16.msra.mxu0 %v5728
        %5746 = vmatprep.subr.bf16.mxu0 0
        %5747 = vmatpush1.bf16.msra.mxu0 %v5729
        %5748 = vmatprep.subr.bf16.mxu0 0
        %5749 = vmatpush1.bf16.msra.mxu0 %v5730
        %5750 = vmatprep.subr.bf16.mxu0 0
        %5751 = vmatpush1.bf16.msra.mxu0 %v5731
        %5752 = vmatprep.subr.bf16.mxu0 0
        %5753 = vmatpush1.bf16.msra.mxu0 %v5732
        %5754 = vmatprep.subr.bf16.mxu0 0
        %5755 = vmatpush1.bf16.msra.mxu0 %v5733
        %5756 = vmatprep.subr.bf16.mxu0 0
        %5757 = vmatpush1.bf16.msra.mxu0 %v5734
        %5758 = vmatprep.subr.bf16.mxu0 0
        %5759 = vmatpush1.bf16.msra.mxu0 %v5735
        %5760 = vmatprep.subr.bf16.mxu0 0
        %5761 = vmatpush1.bf16.msra.mxu0 0
        %5762 = vmatprep.subr.bf16.mxu0 0
        %5763 = vmatpush1.bf16.msra.mxu0 0
        %5764 = vmatprep.subr.bf16.mxu0 0
        %5765 = vmatpush1.bf16.msra.mxu0 0
        %5766 = vmatprep.subr.bf16.mxu0 0
        %5767 = vmatpush1.bf16.msra.mxu0 0
        %5768 = vmatprep.subr.bf16.mxu0 0
        %5769 = vmatpush1.bf16.msra.mxu0 0
        %5770 = vmatprep.subr.bf16.mxu0 0
        %5771 = vmatpush1.bf16.msra.mxu0 0
        %5772 = vmatprep.subr.bf16.mxu0 0
        %5773 = vmatpush1.bf16.msra.mxu0 0
        %5774 = vmatprep.subr.bf16.mxu0 0
        %5775 = vmatpush1.bf16.msra.mxu0 0
        %5776 = vmatprep.mubr.bf16.mxu0 0
        %5777 = vmatmul.mubr.bf16.gmra.mrb[0].mxu0 %v5667
        %v5778 = vpop.f32.mrb[0].mxu0
        %v5779 = vadd.f32 0.0, %v5778
        %v5780 = vpop.f32.mrb[0].mxu0
        %v5781 = vpop.f32.mrb[0].mxu0
        %v5782 = vadd.f32 0.0, %v5781
        %v5783 = vpop.f32.mrb[0].mxu0
        %5784 = vmatprep.mubr.bf16.mxu0 0
        %5785 = vmatmul.mubr.bf16.gmra.mrb[0].mxu0 %v5668
        %v5786 = vpop.f32.mrb[0].mxu0
        %v5787 = vadd.f32 0.0, %v5786
        %v5788 = vpop.f32.mrb[0].mxu0
        %v5789 = vpop.f32.mrb[0].mxu0
        %v5790 = vadd.f32 0.0, %v5789
        %v5791 = vpop.f32.mrb[0].mxu0
        %5792 = vmatprep.mubr.bf16.mxu0 0
        %5793 = vmatmul.mubr.bf16.gmra.mrb[0].mxu0 %v5669
        %v5794 = vpop.f32.mrb[0].mxu0
        %v5795 = vadd.f32 0.0, %v5794
        %v5796 = vpop.f32.mrb[0].mxu0
        %v5797 = vpop.f32.mrb[0].mxu0
        %v5798 = vadd.f32 0.0, %v5797
        %v5799 = vpop.f32.mrb[0].mxu0
        %5800 = vmatprep.mubr.bf16.mxu0 0
        %5801 = vmatmul.mubr.bf16.gmra.mrb[0].mxu0 %v5670
        %v5802 = vpop.f32.mrb[0].mxu0
        %v5803 = vadd.f32 0.0, %v5802
        %v5804 = vpop.f32.mrb[0].mxu0
        %v5805 = vpop.f32.mrb[0].mxu0
        %v5806 = vadd.f32 0.0, %v5805
        %v5807 = vpop.f32.mrb[0].mxu0
        %5808 = vdwg.mxu0
        %v5809 = vadd.f32 %v5671, %v5779
        %v5810 = vadd.f32 %v5672, %v5782
        %v5811 = vadd.f32 %v5673, %v5787
        %v5812 = vadd.f32 %v5674, %v5790
        %v5813 = vadd.f32 %v5675, %v5795
        %v5814 = vadd.f32 %v5676, %v5798
        %v5815 = vadd.f32 %v5677, %v5803
        %v5816 = vadd.f32 %v5678, %v5806
        %5817 = vst [vmem:[#allocation5] sm:$0xff] %v5809
        %5818 = vst [vmem:[#allocation5 + $0x8] sm:$0xff] %v5810
        %5819 = vst [vmem:[#allocation5 + $0x10] sm:$0xff] %v5811
        %5820 = vst [vmem:[#allocation5 + $0x18] sm:$0xff] %v5812
        %5821 = vst [vmem:[#allocation5 + $0x20] sm:$0xff] %v5813
        %5822 = vst [vmem:[#allocation5 + $0x28] sm:$0xff] %v5814
        %5823 = vst [vmem:[#allocation5 + $0x30] sm:$0xff] %v5815
        %5824 = vst [vmem:[#allocation5 + $0x38] sm:$0xff] %v5816
        %v5825 = vld [vmem:[%s5492 + $0x9] sm:$0xff]
        %v5826 = vld [vmem:[%s5492 + $0x21] sm:$0xff]
        %v5827 = vld [vmem:[%s5492 + $0x39] sm:$0xff]
        %v5828 = vld [vmem:[%s5492 + $0x51] sm:$0xff]
        %v5829 = vld [vmem:[%s5492 + $0x69] sm:$0xff]
        %v5830 = vld [vmem:[%s5492 + $0x81] sm:$0xff]
        %v5831 = vld [vmem:[%s5492 + $0x99] sm:$0xff]
        %v5832 = vld [vmem:[%s5492 + $0xb1] sm:$0xff]
        %v5833 = vpack.c.bf16 %v5826, %v5825
        %v5834 = vpack.c.bf16 %v5828, %v5827
        %v5835 = vpack.c.bf16 %v5830, %v5829
        %v5836 = vpack.c.bf16 %v5832, %v5831
        %v5837 = vld [vmem:[#allocation5] sm:$0xff]
        %v5838 = vld [vmem:[#allocation5 + $0x8] sm:$0xff]
        %v5839 = vld [vmem:[#allocation5 + $0x10] sm:$0xff]
        %v5840 = vld [vmem:[#allocation5 + $0x18] sm:$0xff]
        %v5841 = vld [vmem:[#allocation5 + $0x20] sm:$0xff]
        %v5842 = vld [vmem:[#allocation5 + $0x28] sm:$0xff]
        %v5843 = vld [vmem:[#allocation5 + $0x30] sm:$0xff]
        %v5844 = vld [vmem:[#allocation5 + $0x38] sm:$0xff]
        %s5845 = scalar_lea.vmem %s4, 512
        %v5846 = vld [vmem:[%s5845] sm:$0xf]
        %v5847 = vld [vmem:[%s5845 + $0x4] sm:$0xf]
        %v5848 = vld [vmem:[%s5845 + $0x8] sm:$0xf]
        %v5849 = vld [vmem:[%s5845 + $0xc] sm:$0xf]
        %v5850 = vld [vmem:[%s5845 + $0x10] sm:$0xf]
        %v5851 = vld [vmem:[%s5845 + $0x14] sm:$0xf]
        %v5852 = vld [vmem:[%s5845 + $0x18] sm:$0xf]
        %v5853 = vld [vmem:[%s5845 + $0x1c] sm:$0xf]
        %v5854 = vld [vmem:[%s5845 + $0x20] sm:$0xf]
        %v5855 = vld [vmem:[%s5845 + $0x24] sm:$0xf]
        %v5856 = vld [vmem:[%s5845 + $0x28] sm:$0xf]
        %v5857 = vld [vmem:[%s5845 + $0x2c] sm:$0xf]
        %v5858 = vld [vmem:[%s5845 + $0x30] sm:$0xf]
        %v5859 = vld [vmem:[%s5845 + $0x34] sm:$0xf]
        %v5860 = vld [vmem:[%s5845 + $0x38] sm:$0xf]
        %v5861 = vld [vmem:[%s5845 + $0x3c] sm:$0xf]
        %v5878 = vunpack.c.l.b16 %v5846
        %v5879 = vunpack.c.l.b16 %v5847
        %v5880 = vunpack.c.l.b16 %v5848
        %v5881 = vunpack.c.l.b16 %v5849
        %v5882 = vunpack.c.l.b16 %v5850
        %v5883 = vunpack.c.l.b16 %v5851
        %v5884 = vunpack.c.l.b16 %v5852
        %v5885 = vunpack.c.l.b16 %v5853
        %v5886 = vunpack.c.l.b16 %v5854
        %v5887 = vunpack.c.l.b16 %v5855
        %v5888 = vunpack.c.l.b16 %v5856
        %v5889 = vunpack.c.l.b16 %v5857
        %v5890 = vunpack.c.l.b16 %v5858
        %v5891 = vunpack.c.l.b16 %v5859
        %v5892 = vunpack.c.l.b16 %v5860
        %v5893 = vunpack.c.l.b16 %v5861
        %v5894 = vpack.c.b16 %v5879, %v5878
        %v5895 = vpack.c.b16 %v5881, %v5880
        %v5896 = vpack.c.b16 %v5883, %v5882
        %v5897 = vpack.c.b16 %v5885, %v5884
        %v5898 = vpack.c.b16 %v5887, %v5886
        %v5899 = vpack.c.b16 %v5889, %v5888
        %v5900 = vpack.c.b16 %v5891, %v5890
        %v5901 = vpack.c.b16 %v5893, %v5892
        %5910 = vmatprep.subr.bf16.mxu0 0
        %5911 = vmatpush1.bf16.msra.mxu0 %v5894
        %5912 = vmatprep.subr.bf16.mxu0 0
        %5913 = vmatpush1.bf16.msra.mxu0 %v5895
        %5914 = vmatprep.subr.bf16.mxu0 0
        %5915 = vmatpush1.bf16.msra.mxu0 %v5896
        %5916 = vmatprep.subr.bf16.mxu0 0
        %5917 = vmatpush1.bf16.msra.mxu0 %v5897
        %5918 = vmatprep.subr.bf16.mxu0 0
        %5919 = vmatpush1.bf16.msra.mxu0 %v5898
        %5920 = vmatprep.subr.bf16.mxu0 0
        %5921 = vmatpush1.bf16.msra.mxu0 %v5899
        %5922 = vmatprep.subr.bf16.mxu0 0
        %5923 = vmatpush1.bf16.msra.mxu0 %v5900
        %5924 = vmatprep.subr.bf16.mxu0 0
        %5925 = vmatpush1.bf16.msra.mxu0 %v5901
        %5926 = vmatprep.subr.bf16.mxu0 0
        %5927 = vmatpush1.bf16.msra.mxu0 0
        %5928 = vmatprep.subr.bf16.mxu0 0
        %5929 = vmatpush1.bf16.msra.mxu0 0
        %5930 = vmatprep.subr.bf16.mxu0 0
        %5931 = vmatpush1.bf16.msra.mxu0 0
        %5932 = vmatprep.subr.bf16.mxu0 0
        %5933 = vmatpush1.bf16.msra.mxu0 0
        %5934 = vmatprep.subr.bf16.mxu0 0
        %5935 = vmatpush1.bf16.msra.mxu0 0
        %5936 = vmatprep.subr.bf16.mxu0 0
        %5937 = vmatpush1.bf16.msra.mxu0 0
        %5938 = vmatprep.subr.bf16.mxu0 0
        %5939 = vmatpush1.bf16.msra.mxu0 0
        %5940 = vmatprep.subr.bf16.mxu0 0
        %5941 = vmatpush1.bf16.msra.mxu0 0
        %5942 = vmatprep.mubr.bf16.mxu0 0
        %5943 = vmatmul.mubr.bf16.gmra.mrb[0].mxu0 %v5833
        %v5944 = vpop.f32.mrb[0].mxu0
        %v5945 = vadd.f32 0.0, %v5944
        %v5946 = vpop.f32.mrb[0].mxu0
        %v5947 = vpop.f32.mrb[0].mxu0
        %v5948 = vadd.f32 0.0, %v5947
        %v5949 = vpop.f32.mrb[0].mxu0
        %5950 = vmatprep.mubr.bf16.mxu0 0
        %5951 = vmatmul.mubr.bf16.gmra.mrb[0].mxu0 %v5834
        %v5952 = vpop.f32.mrb[0].mxu0
        %v5953 = vadd.f32 0.0, %v5952
        %v5954 = vpop.f32.mrb[0].mxu0
        %v5955 = vpop.f32.mrb[0].mxu0
        %v5956 = vadd.f32 0.0, %v5955
        %v5957 = vpop.f32.mrb[0].mxu0
        %5958 = vmatprep.mubr.bf16.mxu0 0
        %5959 = vmatmul.mubr.bf16.gmra.mrb[0].mxu0 %v5835
        %v5960 = vpop.f32.mrb[0].mxu0
        %v5961 = vadd.f32 0.0, %v5960
        %v5962 = vpop.f32.mrb[0].mxu0
        %v5963 = vpop.f32.mrb[0].mxu0
        %v5964 = vadd.f32 0.0, %v5963
        %v5965 = vpop.f32.mrb[0].mxu0
        %5966 = vmatprep.mubr.bf16.mxu0 0
        %5967 = vmatmul.mubr.bf16.gmra.mrb[0].mxu0 %v5836
        %v5968 = vpop.f32.mrb[0].mxu0
        %v5969 = vadd.f32 0.0, %v5968
        %v5970 = vpop.f32.mrb[0].mxu0
        %v5971 = vpop.f32.mrb[0].mxu0
        %v5972 = vadd.f32 0.0, %v5971
        %v5973 = vpop.f32.mrb[0].mxu0
        %5974 = vdwg.mxu0
        %v5975 = vadd.f32 %v5837, %v5945
        %v5976 = vadd.f32 %v5838, %v5948
        %v5977 = vadd.f32 %v5839, %v5953
        %v5978 = vadd.f32 %v5840, %v5956
        %v5979 = vadd.f32 %v5841, %v5961
        %v5980 = vadd.f32 %v5842, %v5964
        %v5981 = vadd.f32 %v5843, %v5969
        %v5982 = vadd.f32 %v5844, %v5972
        %5983 = vst [vmem:[#allocation5] sm:$0xff] %v5975
        %5984 = vst [vmem:[#allocation5 + $0x8] sm:$0xff] %v5976
        %5985 = vst [vmem:[#allocation5 + $0x10] sm:$0xff] %v5977
        %5986 = vst [vmem:[#allocation5 + $0x18] sm:$0xff] %v5978
        %5987 = vst [vmem:[#allocation5 + $0x20] sm:$0xff] %v5979
        %5988 = vst [vmem:[#allocation5 + $0x28] sm:$0xff] %v5980
        %5989 = vst [vmem:[#allocation5 + $0x30] sm:$0xff] %v5981
        %5990 = vst [vmem:[#allocation5 + $0x38] sm:$0xff] %v5982
        %v5991 = vld [vmem:[#allocation5] sm:$0xff]
        %v5992 = vld [vmem:[#allocation5 + $0x8] sm:$0xff]
        %v5993 = vld [vmem:[#allocation5 + $0x10] sm:$0xff]
        %v5994 = vld [vmem:[#allocation5 + $0x18] sm:$0xff]
        %v5995 = vld [vmem:[#allocation5 + $0x20] sm:$0xff]
        %v5996 = vld [vmem:[#allocation5 + $0x28] sm:$0xff]
        %v5997 = vld [vmem:[#allocation5 + $0x30] sm:$0xff]
        %v5998 = vld [vmem:[#allocation5 + $0x38] sm:$0xff]
        %v5999 = vmax.f32 %v5991, 0.0
        %v6000 = vmax.f32 %v5992, 0.0
        %v6001 = vmax.f32 %v5993, 0.0
        %v6002 = vmax.f32 %v5994, 0.0
        %v6003 = vmax.f32 %v5995, 0.0
        %v6004 = vmax.f32 %v5996, 0.0
        %v6005 = vmax.f32 %v5997, 0.0
        %v6006 = vmax.f32 %v5998, 0.0
        %v6007 = vpack.c.bf16 %v6000, %v5999
        %v6008 = vpack.c.bf16 %v6002, %v6001
        %v6009 = vpack.c.bf16 %v6004, %v6003
        %v6010 = vpack.c.bf16 %v6006, %v6005
        %v6011 = vld [vmem:[%s6] sm:$0xf]
        %v6012 = vld [vmem:[%s6 + $0x4] sm:$0xf]
        %v6015 = vunpack.c.l.b16 %v6011
        %v6016 = vunpack.c.l.b16 %v6012
        %v6017 = vpack.c.b16 %v6016, %v6015
        %vm6018 = vcmask 523264
        %v6020 = vsel %vm6018, %v6017, 0
        %6022 = vmatprep.subr.bf16.mxu0 0
        %6023 = vmatpush1.bf16.msra.mxu0 %v6007
        %6024 = vmatprep.subr.bf16.mxu0 0
        %6025 = vmatpush1.bf16.msra.mxu0 %v6008
        %6026 = vmatprep.subr.bf16.mxu0 0
        %6027 = vmatpush1.bf16.msra.mxu0 %v6009
        %6028 = vmatprep.subr.bf16.mxu0 0
        %6029 = vmatpush1.bf16.msra.mxu0 %v6010
        %6030 = vmatprep.subr.bf16.mxu0 0
        %6031 = vmatpush1.bf16.msra.mxu0 0
        %6032 = vmatprep.subr.bf16.mxu0 0
        %6033 = vmatpush1.bf16.msra.mxu0 0
        %6034 = vmatprep.subr.bf16.mxu0 0
        %6035 = vmatpush1.bf16.msra.mxu0 0
        %6036 = vmatprep.subr.bf16.mxu0 0
        %6037 = vmatpush1.bf16.msra.mxu0 0
        %6038 = vmatprep.subr.bf16.mxu0 0
        %6039 = vmatpush1.bf16.msra.mxu0 0
        %6040 = vmatprep.subr.bf16.mxu0 0
        %6041 = vmatpush1.bf16.msra.mxu0 0
        %6042 = vmatprep.subr.bf16.mxu0 0
        %6043 = vmatpush1.bf16.msra.mxu0 0
        %6044 = vmatprep.subr.bf16.mxu0 0
        %6045 = vmatpush1.bf16.msra.mxu0 0
        %6046 = vmatprep.subr.bf16.mxu0 0
        %6047 = vmatpush1.bf16.msra.mxu0 0
        %6048 = vmatprep.subr.bf16.mxu0 0
        %6049 = vmatpush1.bf16.msra.mxu0 0
        %6050 = vmatprep.subr.bf16.mxu0 0
        %6051 = vmatpush1.bf16.msra.mxu0 0
        %6052 = vmatprep.subr.bf16.mxu0 0
        %6053 = vmatpush1.bf16.msra.mxu0 0
        %6054 = vmatprep.mubr.bf16.mxu0 0
        %6055 = vmatmul.mubr.bf16.gmra.mrb[0].mxu0 %v6020
        %v6056 = vpop.f32.mrb[0].mxu0
        %v6057 = vadd.f32 0.0, %v6056
        %v6058 = vpop.f32.mrb[0].mxu0
        %v6059 = vpop.f32.mrb[0].mxu0
        %v6060 = vadd.f32 0.0, %v6059
        %v6061 = vpop.f32.mrb[0].mxu0
        %6062 = vdwg.mxu0
        %s6063 = scalar_lea.vmem %s6, 8
        %v6064 = vld [vmem:[%s6063] sm:$0xf]
        %v6065 = vld [vmem:[%s6063 + $0x4] sm:$0xf]
        %v6068 = vunpack.c.l.b16 %v6064
        %v6069 = vunpack.c.l.b16 %v6065
        %v6070 = vpack.c.b16 %v6069, %v6068
        %v6072 = vsel %vm6018, %v6070, 0
        %6074 = vmatprep.subr.bf16.mxu0 0
        %6075 = vmatpush1.bf16.msra.mxu0 %v6007
        %6076 = vmatprep.subr.bf16.mxu0 0
        %6077 = vmatpush1.bf16.msra.mxu0 %v6008
        %6078 = vmatprep.subr.bf16.mxu0 0
        %6079 = vmatpush1.bf16.msra.mxu0 %v6009
        %6080 = vmatprep.subr.bf16.mxu0 0
        %6081 = vmatpush1.bf16.msra.mxu0 %v6010
        %6082 = vmatprep.subr.bf16.mxu0 0
        %6083 = vmatpush1.bf16.msra.mxu0 0
        %6084 = vmatprep.subr.bf16.mxu0 0
        %6085 = vmatpush1.bf16.msra.mxu0 0
        %6086 = vmatprep.subr.bf16.mxu0 0
        %6087 = vmatpush1.bf16.msra.mxu0 0
        %6088 = vmatprep.subr.bf16.mxu0 0
        %6089 = vmatpush1.bf16.msra.mxu0 0
        %6090 = vmatprep.subr.bf16.mxu0 0
        %6091 = vmatpush1.bf16.msra.mxu0 0
        %6092 = vmatprep.subr.bf16.mxu0 0
        %6093 = vmatpush1.bf16.msra.mxu0 0
        %6094 = vmatprep.subr.bf16.mxu0 0
        %6095 = vmatpush1.bf16.msra.mxu0 0
        %6096 = vmatprep.subr.bf16.mxu0 0
        %6097 = vmatpush1.bf16.msra.mxu0 0
        %6098 = vmatprep.subr.bf16.mxu0 0
        %6099 = vmatpush1.bf16.msra.mxu0 0
        %6100 = vmatprep.subr.bf16.mxu0 0
        %6101 = vmatpush1.bf16.msra.mxu0 0
        %6102 = vmatprep.subr.bf16.mxu0 0
        %6103 = vmatpush1.bf16.msra.mxu0 0
        %6104 = vmatprep.subr.bf16.mxu0 0
        %6105 = vmatpush1.bf16.msra.mxu0 0
        %6106 = vmatprep.mubr.bf16.mxu0 0
        %6107 = vmatmul.mubr.bf16.gmra.mrb[0].mxu0 %v6072
        %v6108 = vpop.f32.mrb[0].mxu0
        %v6109 = vadd.f32 0.0, %v6108
        %v6110 = vpop.f32.mrb[0].mxu0
        %v6111 = vpop.f32.mrb[0].mxu0
        %v6112 = vadd.f32 0.0, %v6111
        %v6113 = vpop.f32.mrb[0].mxu0
        %6114 = vdwg.mxu0
        %v6115 = vmax.f32 %v6057, %v6109
        %v6116 = vmax.f32 %v6060, %v6112
        %s6117 = scalar_lea.vmem %s6, 16
        %v6118 = vld [vmem:[%s6117] sm:$0xf]
        %v6119 = vld [vmem:[%s6117 + $0x4] sm:$0xf]
        %v6122 = vunpack.c.l.b16 %v6118
        %v6123 = vunpack.c.l.b16 %v6119
        %v6124 = vpack.c.b16 %v6123, %v6122
        %v6126 = vsel %vm6018, %v6124, 0
        %6128 = vmatprep.subr.bf16.mxu0 0
        %6129 = vmatpush1.bf16.msra.mxu0 %v6007
        %6130 = vmatprep.subr.bf16.mxu0 0
        %6131 = vmatpush1.bf16.msra.mxu0 %v6008
        %6132 = vmatprep.subr.bf16.mxu0 0
        %6133 = vmatpush1.bf16.msra.mxu0 %v6009
        %6134 = vmatprep.subr.bf16.mxu0 0
        %6135 = vmatpush1.bf16.msra.mxu0 %v6010
        %6136 = vmatprep.subr.bf16.mxu0 0
        %6137 = vmatpush1.bf16.msra.mxu0 0
        %6138 = vmatprep.subr.bf16.mxu0 0
        %6139 = vmatpush1.bf16.msra.mxu0 0
        %6140 = vmatprep.subr.bf16.mxu0 0
        %6141 = vmatpush1.bf16.msra.mxu0 0
        %6142 = vmatprep.subr.bf16.mxu0 0
        %6143 = vmatpush1.bf16.msra.mxu0 0
        %6144 = vmatprep.subr.bf16.mxu0 0
        %6145 = vmatpush1.bf16.msra.mxu0 0
        %6146 = vmatprep.subr.bf16.mxu0 0
        %6147 = vmatpush1.bf16.msra.mxu0 0
        %6148 = vmatprep.subr.bf16.mxu0 0
        %6149 = vmatpush1.bf16.msra.mxu0 0
        %6150 = vmatprep.subr.bf16.mxu0 0
        %6151 = vmatpush1.bf16.msra.mxu0 0
        %6152 = vmatprep.subr.bf16.mxu0 0
        %6153 = vmatpush1.bf16.msra.mxu0 0
        %6154 = vmatprep.subr.bf16.mxu0 0
        %6155 = vmatpush1.bf16.msra.mxu0 0
        %6156 = vmatprep.subr.bf16.mxu0 0
        %6157 = vmatpush1.bf16.msra.mxu0 0
        %6158 = vmatprep.subr.bf16.mxu0 0
        %6159 = vmatpush1.bf16.msra.mxu0 0
        %6160 = vmatprep.mubr.bf16.mxu0 0
        %6161 = vmatmul.mubr.bf16.gmra.mrb[0].mxu0 %v6126
        %v6162 = vpop.f32.mrb[0].mxu0
        %v6163 = vadd.f32 0.0, %v6162
        %v6164 = vpop.f32.mrb[0].mxu0
        %v6165 = vpop.f32.mrb[0].mxu0
        %v6166 = vadd.f32 0.0, %v6165
        %v6167 = vpop.f32.mrb[0].mxu0
        %6168 = vdwg.mxu0
        %v6169 = vmax.f32 %v6115, %v6163
        %v6170 = vmax.f32 %v6116, %v6166
        %s6171 = scalar_lea.vmem %s6, 24
        %v6172 = vld [vmem:[%s6171] sm:$0xf]
        %v6173 = vld [vmem:[%s6171 + $0x4] sm:$0xf]
        %v6176 = vunpack.c.l.b16 %v6172
        %v6177 = vunpack.c.l.b16 %v6173
        %v6178 = vpack.c.b16 %v6177, %v6176
        %v6180 = vsel %vm6018, %v6178, 0
        %6182 = vmatprep.subr.bf16.mxu0 0
        %6183 = vmatpush1.bf16.msra.mxu0 %v6007
        %6184 = vmatprep.subr.bf16.mxu0 0
        %6185 = vmatpush1.bf16.msra.mxu0 %v6008
        %6186 = vmatprep.subr.bf16.mxu0 0
        %6187 = vmatpush1.bf16.msra.mxu0 %v6009
        %6188 = vmatprep.subr.bf16.mxu0 0
        %6189 = vmatpush1.bf16.msra.mxu0 %v6010
        %6190 = vmatprep.subr.bf16.mxu0 0
        %6191 = vmatpush1.bf16.msra.mxu0 0
        %6192 = vmatprep.subr.bf16.mxu0 0
        %6193 = vmatpush1.bf16.msra.mxu0 0
        %6194 = vmatprep.subr.bf16.mxu0 0
        %6195 = vmatpush1.bf16.msra.mxu0 0
        %6196 = vmatprep.subr.bf16.mxu0 0
        %6197 = vmatpush1.bf16.msra.mxu0 0
        %6198 = vmatprep.subr.bf16.mxu0 0
        %6199 = vmatpush1.bf16.msra.mxu0 0
        %6200 = vmatprep.subr.bf16.mxu0 0
        %6201 = vmatpush1.bf16.msra.mxu0 0
        %6202 = vmatprep.subr.bf16.mxu0 0
        %6203 = vmatpush1.bf16.msra.mxu0 0
        %6204 = vmatprep.subr.bf16.mxu0 0
        %6205 = vmatpush1.bf16.msra.mxu0 0
        %6206 = vmatprep.subr.bf16.mxu0 0
        %6207 = vmatpush1.bf16.msra.mxu0 0
        %6208 = vmatprep.subr.bf16.mxu0 0
        %6209 = vmatpush1.bf16.msra.mxu0 0
        %6210 = vmatprep.subr.bf16.mxu0 0
        %6211 = vmatpush1.bf16.msra.mxu0 0
        %6212 = vmatprep.subr.bf16.mxu0 0
        %6213 = vmatpush1.bf16.msra.mxu0 0
        %6214 = vmatprep.mubr.bf16.mxu0 0
        %6215 = vmatmul.mubr.bf16.gmra.mrb[0].mxu0 %v6180
        %v6216 = vpop.f32.mrb[0].mxu0
        %v6217 = vadd.f32 0.0, %v6216
        %v6218 = vpop.f32.mrb[0].mxu0
        %v6219 = vpop.f32.mrb[0].mxu0
        %v6220 = vadd.f32 0.0, %v6219
        %v6221 = vpop.f32.mrb[0].mxu0
        %6222 = vdwg.mxu0
        %v6223 = vmax.f32 %v6169, %v6217
        %v6224 = vmax.f32 %v6170, %v6220
        %v6225 = vld [vmem:[%s8] sm:$0x1]
        %v6226 = vpack.c.bf16 %v6223, %v6223
        %v6227 = vld [vmem:[%s7] sm:$0xf]
        %v6228 = vld [vmem:[%s7 + $0x4] sm:$0xf]
        %v6229 = vld [vmem:[%s7 + $0x8] sm:$0xf]
        %v6230 = vld [vmem:[%s7 + $0xc] sm:$0xf]
        %v6231 = vld [vmem:[%s7 + $0x10] sm:$0xf]
        %v6232 = vld [vmem:[%s7 + $0x14] sm:$0xf]
        %v6233 = vld [vmem:[%s7 + $0x18] sm:$0xf]
        %v6234 = vld [vmem:[%s7 + $0x1c] sm:$0xf]
        %v6235 = vld [vmem:[%s7 + $0x20] sm:$0xf]
        %v6236 = vld [vmem:[%s7 + $0x24] sm:$0xf]
        %v6237 = vld [vmem:[%s7 + $0x28] sm:$0xf]
        %v6238 = vld [vmem:[%s7 + $0x2c] sm:$0xf]
        %v6239 = vld [vmem:[%s7 + $0x30] sm:$0xf]
        %v6240 = vld [vmem:[%s7 + $0x34] sm:$0xf]
        %v6241 = vld [vmem:[%s7 + $0x38] sm:$0xf]
        %v6242 = vld [vmem:[%s7 + $0x3c] sm:$0xf]
        %v6259 = vunpack.c.l.b16 %v6227
        %v6260 = vunpack.c.l.b16 %v6228
        %v6261 = vunpack.c.l.b16 %v6229
        %v6262 = vunpack.c.l.b16 %v6230
        %v6263 = vunpack.c.l.b16 %v6231
        %v6264 = vunpack.c.l.b16 %v6232
        %v6265 = vunpack.c.l.b16 %v6233
        %v6266 = vunpack.c.l.b16 %v6234
        %v6267 = vunpack.c.l.b16 %v6235
        %v6268 = vunpack.c.l.b16 %v6236
        %v6269 = vunpack.c.l.b16 %v6237
        %v6270 = vunpack.c.l.b16 %v6238
        %v6271 = vunpack.c.l.b16 %v6239
        %v6272 = vunpack.c.l.b16 %v6240
        %v6273 = vunpack.c.l.b16 %v6241
        %v6274 = vunpack.c.l.b16 %v6242
        %v6275 = vpack.c.b16 %v6260, %v6259
        %v6276 = vpack.c.b16 %v6262, %v6261
        %v6277 = vpack.c.b16 %v6264, %v6263
        %v6278 = vpack.c.b16 %v6266, %v6265
        %v6279 = vpack.c.b16 %v6268, %v6267
        %v6280 = vpack.c.b16 %v6270, %v6269
        %v6281 = vpack.c.b16 %v6272, %v6271
        %v6282 = vpack.c.b16 %v6274, %v6273
        %6291 = vmatprep.subr.bf16.mxu0 0
        %6292 = vmatpush1.bf16.msra.mxu0 %v6275
        %6293 = vmatprep.subr.bf16.mxu0 0
        %6294 = vmatpush1.bf16.msra.mxu0 %v6276
        %6295 = vmatprep.subr.bf16.mxu0 0
        %6296 = vmatpush1.bf16.msra.mxu0 %v6277
        %6297 = vmatprep.subr.bf16.mxu0 0
        %6298 = vmatpush1.bf16.msra.mxu0 %v6278
        %6299 = vmatprep.subr.bf16.mxu0 0
        %6300 = vmatpush1.bf16.msra.mxu0 %v6279
        %6301 = vmatprep.subr.bf16.mxu0 0
        %6302 = vmatpush1.bf16.msra.mxu0 %v6280
        %6303 = vmatprep.subr.bf16.mxu0 0
        %6304 = vmatpush1.bf16.msra.mxu0 %v6281
        %6305 = vmatprep.subr.bf16.mxu0 0
        %6306 = vmatpush1.bf16.msra.mxu0 %v6282
        %6307 = vmatprep.subr.bf16.mxu0 0
        %6308 = vmatpush1.bf16.msra.mxu0 0
        %6309 = vmatprep.subr.bf16.mxu0 0
        %6310 = vmatpush1.bf16.msra.mxu0 0
        %6311 = vmatprep.subr.bf16.mxu0 0
        %6312 = vmatpush1.bf16.msra.mxu0 0
        %6313 = vmatprep.subr.bf16.mxu0 0
        %6314 = vmatpush1.bf16.msra.mxu0 0
        %6315 = vmatprep.subr.bf16.mxu0 0
        %6316 = vmatpush1.bf16.msra.mxu0 0
        %6317 = vmatprep.subr.bf16.mxu0 0
        %6318 = vmatpush1.bf16.msra.mxu0 0
        %6319 = vmatprep.subr.bf16.mxu0 0
        %6320 = vmatpush1.bf16.msra.mxu0 0
        %6321 = vmatprep.subr.bf16.mxu0 0
        %6322 = vmatpush1.bf16.msra.mxu0 0
        %6323 = vmatprep.mubr.bf16.mxu0 0
        %6324 = vmatmul.mubr.bf16.gmra.mrb[0].mxu0 %v6226
        %v6325 = vpop.f32.mrb[0].mxu0
        %v6326 = vadd.f32 0.0, %v6325
        %v6327 = vpop.f32.mrb[0].mxu0
        %v6328 = vpop.f32.mrb[0].mxu0
        %v6329 = vpop.f32.mrb[0].mxu0
        %6330 = vdwg.mxu0
        %v6331 = vadd.f32 %v6225, %v6326
        %s6332 = scalar_lea.vmem %s7, 64
        %v6333 = vld [vmem:[%s6332] sm:$0xf]
        %v6334 = vld [vmem:[%s6332 + $0x4] sm:$0xf]
        %v6335 = vld [vmem:[%s6332 + $0x8] sm:$0xf]
        %v6336 = vld [vmem:[%s6332 + $0xc] sm:$0xf]
        %v6337 = vld [vmem:[%s6332 + $0x10] sm:$0xf]
        %v6338 = vld [vmem:[%s6332 + $0x14] sm:$0xf]
        %v6339 = vld [vmem:[%s6332 + $0x18] sm:$0xf]
        %v6340 = vld [vmem:[%s6332 + $0x1c] sm:$0xf]
        %v6341 = vld [vmem:[%s6332 + $0x20] sm:$0xf]
        %v6342 = vld [vmem:[%s6332 + $0x24] sm:$0xf]
        %v6343 = vld [vmem:[%s6332 + $0x28] sm:$0xf]
        %v6344 = vld [vmem:[%s6332 + $0x2c] sm:$0xf]
        %v6345 = vld [vmem:[%s6332 + $0x30] sm:$0xf]
        %v6346 = vld [vmem:[%s6332 + $0x34] sm:$0xf]
        %v6347 = vld [vmem:[%s6332 + $0x38] sm:$0xf]
        %v6348 = vld [vmem:[%s6332 + $0x3c] sm:$0xf]
        %v6350 = vshrl.u32 %v6226, 16
        %v6369 = vunpack.c.l.b16 %v6333
        %v6370 = vunpack.c.l.b16 %v6334
        %v6371 = vunpack.c.l.b16 %v6335
        %v6372 = vunpack.c.l.b16 %v6336
        %v6373 = vunpack.c.l.b16 %v6337
        %v6374 = vunpack.c.l.b16 %v6338
        %v6375 = vunpack.c.l.b16 %v6339
        %v6376 = vunpack.c.l.b16 %v6340
        %v6377 = vunpack.c.l.b16 %v6341
        %v6378 = vunpack.c.l.b16 %v6342
        %v6379 = vunpack.c.l.b16 %v6343
        %v6380 = vunpack.c.l.b16 %v6344
        %v6381 = vunpack.c.l.b16 %v6345
        %v6382 = vunpack.c.l.b16 %v6346
        %v6383 = vunpack.c.l.b16 %v6347
        %v6384 = vunpack.c.l.b16 %v6348
        %v6385 = vpack.c.b16 %v6370, %v6369
        %v6386 = vpack.c.b16 %v6372, %v6371
        %v6387 = vpack.c.b16 %v6374, %v6373
        %v6388 = vpack.c.b16 %v6376, %v6375
        %v6389 = vpack.c.b16 %v6378, %v6377
        %v6390 = vpack.c.b16 %v6380, %v6379
        %v6391 = vpack.c.b16 %v6382, %v6381
        %v6392 = vpack.c.b16 %v6384, %v6383
        %6401 = vmatprep.subr.bf16.mxu0 0
        %6402 = vmatpush1.bf16.msra.mxu0 %v6385
        %6403 = vmatprep.subr.bf16.mxu0 0
        %6404 = vmatpush1.bf16.msra.mxu0 %v6386
        %6405 = vmatprep.subr.bf16.mxu0 0
        %6406 = vmatpush1.bf16.msra.mxu0 %v6387
        %6407 = vmatprep.subr.bf16.mxu0 0
        %6408 = vmatpush1.bf16.msra.mxu0 %v6388
        %6409 = vmatprep.subr.bf16.mxu0 0
        %6410 = vmatpush1.bf16.msra.mxu0 %v6389
        %6411 = vmatprep.subr.bf16.mxu0 0
        %6412 = vmatpush1.bf16.msra.mxu0 %v6390
        %6413 = vmatprep.subr.bf16.mxu0 0
        %6414 = vmatpush1.bf16.msra.mxu0 %v6391
        %6415 = vmatprep.subr.bf16.mxu0 0
        %6416 = vmatpush1.bf16.msra.mxu0 %v6392
        %6417 = vmatprep.subr.bf16.mxu0 0
        %6418 = vmatpush1.bf16.msra.mxu0 0
        %6419 = vmatprep.subr.bf16.mxu0 0
        %6420 = vmatpush1.bf16.msra.mxu0 0
        %6421 = vmatprep.subr.bf16.mxu0 0
        %6422 = vmatpush1.bf16.msra.mxu0 0
        %6423 = vmatprep.subr.bf16.mxu0 0
        %6424 = vmatpush1.bf16.msra.mxu0 0
        %6425 = vmatprep.subr.bf16.mxu0 0
        %6426 = vmatpush1.bf16.msra.mxu0 0
        %6427 = vmatprep.subr.bf16.mxu0 0
        %6428 = vmatpush1.bf16.msra.mxu0 0
        %6429 = vmatprep.subr.bf16.mxu0 0
        %6430 = vmatpush1.bf16.msra.mxu0 0
        %6431 = vmatprep.subr.bf16.mxu0 0
        %6432 = vmatpush1.bf16.msra.mxu0 0
        %6433 = vmatprep.mubr.bf16.mxu0 0
        %6434 = vmatmul.mubr.bf16.gmra.mrb[0].mxu0 %v6350
        %v6435 = vpop.f32.mrb[0].mxu0
        %v6436 = vadd.f32 0.0, %v6435
        %v6437 = vpop.f32.mrb[0].mxu0
        %v6438 = vpop.f32.mrb[0].mxu0
        %v6439 = vpop.f32.mrb[0].mxu0
        %6440 = vdwg.mxu0
        %v6441 = vadd.f32 %v6331, %v6436
        %s6442 = scalar_lea.vmem %s7, 128
        %v6443 = vld [vmem:[%s6442] sm:$0xf]
        %v6444 = vld [vmem:[%s6442 + $0x4] sm:$0xf]
        %v6445 = vld [vmem:[%s6442 + $0x8] sm:$0xf]
        %v6446 = vld [vmem:[%s6442 + $0xc] sm:$0xf]
        %v6447 = vld [vmem:[%s6442 + $0x10] sm:$0xf]
        %v6448 = vld [vmem:[%s6442 + $0x14] sm:$0xf]
        %v6449 = vld [vmem:[%s6442 + $0x18] sm:$0xf]
        %v6450 = vld [vmem:[%s6442 + $0x1c] sm:$0xf]
        %v6451 = vld [vmem:[%s6442 + $0x20] sm:$0xf]
        %v6452 = vld [vmem:[%s6442 + $0x24] sm:$0xf]
        %v6453 = vld [vmem:[%s6442 + $0x28] sm:$0xf]
        %v6454 = vld [vmem:[%s6442 + $0x2c] sm:$0xf]
        %v6455 = vld [vmem:[%s6442 + $0x30] sm:$0xf]
        %v6456 = vld [vmem:[%s6442 + $0x34] sm:$0xf]
        %v6457 = vld [vmem:[%s6442 + $0x38] sm:$0xf]
        %v6458 = vld [vmem:[%s6442 + $0x3c] sm:$0xf]
        %v6460 = vrot.slane %v6226, 1
        %v6478 = vunpack.c.l.b16 %v6443
        %v6479 = vunpack.c.l.b16 %v6444
        %v6480 = vunpack.c.l.b16 %v6445
        %v6481 = vunpack.c.l.b16 %v6446
        %v6482 = vunpack.c.l.b16 %v6447
        %v6483 = vunpack.c.l.b16 %v6448
        %v6484 = vunpack.c.l.b16 %v6449
        %v6485 = vunpack.c.l.b16 %v6450
        %v6486 = vunpack.c.l.b16 %v6451
        %v6487 = vunpack.c.l.b16 %v6452
        %v6488 = vunpack.c.l.b16 %v6453
        %v6489 = vunpack.c.l.b16 %v6454
        %v6490 = vunpack.c.l.b16 %v6455
        %v6491 = vunpack.c.l.b16 %v6456
        %v6492 = vunpack.c.l.b16 %v6457
        %v6493 = vunpack.c.l.b16 %v6458
        %v6494 = vpack.c.b16 %v6479, %v6478
        %v6495 = vpack.c.b16 %v6481, %v6480
        %v6496 = vpack.c.b16 %v6483, %v6482
        %v6497 = vpack.c.b16 %v6485, %v6484
        %v6498 = vpack.c.b16 %v6487, %v6486
        %v6499 = vpack.c.b16 %v6489, %v6488
        %v6500 = vpack.c.b16 %v6491, %v6490
        %v6501 = vpack.c.b16 %v6493, %v6492
        %6510 = vmatprep.subr.bf16.mxu0 0
        %6511 = vmatpush1.bf16.msra.mxu0 %v6494
        %6512 = vmatprep.subr.bf16.mxu0 0
        %6513 = vmatpush1.bf16.msra.mxu0 %v6495
        %6514 = vmatprep.subr.bf16.mxu0 0
        %6515 = vmatpush1.bf16.msra.mxu0 %v6496
        %6516 = vmatprep.subr.bf16.mxu0 0
        %6517 = vmatpush1.bf16.msra.mxu0 %v6497
        %6518 = vmatprep.subr.bf16.mxu0 0
        %6519 = vmatpush1.bf16.msra.mxu0 %v6498
        %6520 = vmatprep.subr.bf16.mxu0 0
        %6521 = vmatpush1.bf16.msra.mxu0 %v6499
        %6522 = vmatprep.subr.bf16.mxu0 0
        %6523 = vmatpush1.bf16.msra.mxu0 %v6500
        %6524 = vmatprep.subr.bf16.mxu0 0
        %6525 = vmatpush1.bf16.msra.mxu0 %v6501
        %6526 = vmatprep.subr.bf16.mxu0 0
        %6527 = vmatpush1.bf16.msra.mxu0 0
        %6528 = vmatprep.subr.bf16.mxu0 0
        %6529 = vmatpush1.bf16.msra.mxu0 0
        %6530 = vmatprep.subr.bf16.mxu0 0
        %6531 = vmatpush1.bf16.msra.mxu0 0
        %6532 = vmatprep.subr.bf16.mxu0 0
        %6533 = vmatpush1.bf16.msra.mxu0 0
        %6534 = vmatprep.subr.bf16.mxu0 0
        %6535 = vmatpush1.bf16.msra.mxu0 0
        %6536 = vmatprep.subr.bf16.mxu0 0
        %6537 = vmatpush1.bf16.msra.mxu0 0
        %6538 = vmatprep.subr.bf16.mxu0 0
        %6539 = vmatpush1.bf16.msra.mxu0 0
        %6540 = vmatprep.subr.bf16.mxu0 0
        %6541 = vmatpush1.bf16.msra.mxu0 0
        %6542 = vmatprep.mubr.bf16.mxu0 0
        %6543 = vmatmul.mubr.bf16.gmra.mrb[0].mxu0 %v6460
        %v6544 = vpop.f32.mrb[0].mxu0
        %v6545 = vadd.f32 0.0, %v6544
        %v6546 = vpop.f32.mrb[0].mxu0
        %v6547 = vpop.f32.mrb[0].mxu0
        %v6548 = vpop.f32.mrb[0].mxu0
        %6549 = vdwg.mxu0
        %v6550 = vadd.f32 %v6441, %v6545
        %s6551 = scalar_lea.vmem %s7, 192
        %v6552 = vld [vmem:[%s6551] sm:$0xf]
        %v6553 = vld [vmem:[%s6551 + $0x4] sm:$0xf]
        %v6554 = vld [vmem:[%s6551 + $0x8] sm:$0xf]
        %v6555 = vld [vmem:[%s6551 + $0xc] sm:$0xf]
        %v6556 = vld [vmem:[%s6551 + $0x10] sm:$0xf]
        %v6557 = vld [vmem:[%s6551 + $0x14] sm:$0xf]
        %v6558 = vld [vmem:[%s6551 + $0x18] sm:$0xf]
        %v6559 = vld [vmem:[%s6551 + $0x1c] sm:$0xf]
        %v6560 = vld [vmem:[%s6551 + $0x20] sm:$0xf]
        %v6561 = vld [vmem:[%s6551 + $0x24] sm:$0xf]
        %v6562 = vld [vmem:[%s6551 + $0x28] sm:$0xf]
        %v6563 = vld [vmem:[%s6551 + $0x2c] sm:$0xf]
        %v6564 = vld [vmem:[%s6551 + $0x30] sm:$0xf]
        %v6565 = vld [vmem:[%s6551 + $0x34] sm:$0xf]
        %v6566 = vld [vmem:[%s6551 + $0x38] sm:$0xf]
        %v6567 = vld [vmem:[%s6551 + $0x3c] sm:$0xf]
        %v6568 = vrot.slane %v6350, 1
        %v6586 = vunpack.c.l.b16 %v6552
        %v6587 = vunpack.c.l.b16 %v6553
        %v6588 = vunpack.c.l.b16 %v6554
        %v6589 = vunpack.c.l.b16 %v6555
        %v6590 = vunpack.c.l.b16 %v6556
        %v6591 = vunpack.c.l.b16 %v6557
        %v6592 = vunpack.c.l.b16 %v6558
        %v6593 = vunpack.c.l.b16 %v6559
        %v6594 = vunpack.c.l.b16 %v6560
        %v6595 = vunpack.c.l.b16 %v6561
        %v6596 = vunpack.c.l.b16 %v6562
        %v6597 = vunpack.c.l.b16 %v6563
        %v6598 = vunpack.c.l.b16 %v6564
        %v6599 = vunpack.c.l.b16 %v6565
        %v6600 = vunpack.c.l.b16 %v6566
        %v6601 = vunpack.c.l.b16 %v6567
        %v6602 = vpack.c.b16 %v6587, %v6586
        %v6603 = vpack.c.b16 %v6589, %v6588
        %v6604 = vpack.c.b16 %v6591, %v6590
        %v6605 = vpack.c.b16 %v6593, %v6592
        %v6606 = vpack.c.b16 %v6595, %v6594
        %v6607 = vpack.c.b16 %v6597, %v6596
        %v6608 = vpack.c.b16 %v6599, %v6598
        %v6609 = vpack.c.b16 %v6601, %v6600
        %6618 = vmatprep.subr.bf16.mxu0 0
        %6619 = vmatpush1.bf16.msra.mxu0 %v6602
        %6620 = vmatprep.subr.bf16.mxu0 0
        %6621 = vmatpush1.bf16.msra.mxu0 %v6603
        %6622 = vmatprep.subr.bf16.mxu0 0
        %6623 = vmatpush1.bf16.msra.mxu0 %v6604
        %6624 = vmatprep.subr.bf16.mxu0 0
        %6625 = vmatpush1.bf16.msra.mxu0 %v6605
        %6626 = vmatprep.subr.bf16.mxu0 0
        %6627 = vmatpush1.bf16.msra.mxu0 %v6606
        %6628 = vmatprep.subr.bf16.mxu0 0
        %6629 = vmatpush1.bf16.msra.mxu0 %v6607
        %6630 = vmatprep.subr.bf16.mxu0 0
        %6631 = vmatpush1.bf16.msra.mxu0 %v6608
        %6632 = vmatprep.subr.bf16.mxu0 0
        %6633 = vmatpush1.bf16.msra.mxu0 %v6609
        %6634 = vmatprep.subr.bf16.mxu0 0
        %6635 = vmatpush1.bf16.msra.mxu0 0
        %6636 = vmatprep.subr.bf16.mxu0 0
        %6637 = vmatpush1.bf16.msra.mxu0 0
        %6638 = vmatprep.subr.bf16.mxu0 0
        %6639 = vmatpush1.bf16.msra.mxu0 0
        %6640 = vmatprep.subr.bf16.mxu0 0
        %6641 = vmatpush1.bf16.msra.mxu0 0
        %6642 = vmatprep.subr.bf16.mxu0 0
        %6643 = vmatpush1.bf16.msra.mxu0 0
        %6644 = vmatprep.subr.bf16.mxu0 0
        %6645 = vmatpush1.bf16.msra.mxu0 0
        %6646 = vmatprep.subr.bf16.mxu0 0
        %6647 = vmatpush1.bf16.msra.mxu0 0
        %6648 = vmatprep.subr.bf16.mxu0 0
        %6649 = vmatpush1.bf16.msra.mxu0 0
        %6650 = vmatprep.mubr.bf16.mxu0 0
        %6651 = vmatmul.mubr.bf16.gmra.mrb[0].mxu0 %v6568
        %v6652 = vpop.f32.mrb[0].mxu0
        %v6653 = vadd.f32 0.0, %v6652
        %v6654 = vpop.f32.mrb[0].mxu0
        %v6655 = vpop.f32.mrb[0].mxu0
        %v6656 = vpop.f32.mrb[0].mxu0
        %6657 = vdwg.mxu0
        %v6658 = vadd.f32 %v6550, %v6653
        %s6659 = scalar_lea.vmem %s7, 256
        %v6660 = vld [vmem:[%s6659] sm:$0xf]
        %v6661 = vld [vmem:[%s6659 + $0x4] sm:$0xf]
        %v6662 = vld [vmem:[%s6659 + $0x8] sm:$0xf]
        %v6663 = vld [vmem:[%s6659 + $0xc] sm:$0xf]
        %v6664 = vld [vmem:[%s6659 + $0x10] sm:$0xf]
        %v6665 = vld [vmem:[%s6659 + $0x14] sm:$0xf]
        %v6666 = vld [vmem:[%s6659 + $0x18] sm:$0xf]
        %v6667 = vld [vmem:[%s6659 + $0x1c] sm:$0xf]
        %v6668 = vld [vmem:[%s6659 + $0x20] sm:$0xf]
        %v6669 = vld [vmem:[%s6659 + $0x24] sm:$0xf]
        %v6670 = vld [vmem:[%s6659 + $0x28] sm:$0xf]
        %v6671 = vld [vmem:[%s6659 + $0x2c] sm:$0xf]
        %v6672 = vld [vmem:[%s6659 + $0x30] sm:$0xf]
        %v6673 = vld [vmem:[%s6659 + $0x34] sm:$0xf]
        %v6674 = vld [vmem:[%s6659 + $0x38] sm:$0xf]
        %v6675 = vld [vmem:[%s6659 + $0x3c] sm:$0xf]
        %v6676 = vrot.slane %v6226, 2
        %v6694 = vunpack.c.l.b16 %v6660
        %v6695 = vunpack.c.l.b16 %v6661
        %v6696 = vunpack.c.l.b16 %v6662
        %v6697 = vunpack.c.l.b16 %v6663
        %v6698 = vunpack.c.l.b16 %v6664
        %v6699 = vunpack.c.l.b16 %v6665
        %v6700 = vunpack.c.l.b16 %v6666
        %v6701 = vunpack.c.l.b16 %v6667
        %v6702 = vunpack.c.l.b16 %v6668
        %v6703 = vunpack.c.l.b16 %v6669
        %v6704 = vunpack.c.l.b16 %v6670
        %v6705 = vunpack.c.l.b16 %v6671
        %v6706 = vunpack.c.l.b16 %v6672
        %v6707 = vunpack.c.l.b16 %v6673
        %v6708 = vunpack.c.l.b16 %v6674
        %v6709 = vunpack.c.l.b16 %v6675
        %v6710 = vpack.c.b16 %v6695, %v6694
        %v6711 = vpack.c.b16 %v6697, %v6696
        %v6712 = vpack.c.b16 %v6699, %v6698
        %v6713 = vpack.c.b16 %v6701, %v6700
        %v6714 = vpack.c.b16 %v6703, %v6702
        %v6715 = vpack.c.b16 %v6705, %v6704
        %v6716 = vpack.c.b16 %v6707, %v6706
        %v6717 = vpack.c.b16 %v6709, %v6708
        %6726 = vmatprep.subr.bf16.mxu0 0
        %6727 = vmatpush1.bf16.msra.mxu0 %v6710
        %6728 = vmatprep.subr.bf16.mxu0 0
        %6729 = vmatpush1.bf16.msra.mxu0 %v6711
        %6730 = vmatprep.subr.bf16.mxu0 0
        %6731 = vmatpush1.bf16.msra.mxu0 %v6712
        %6732 = vmatprep.subr.bf16.mxu0 0
        %6733 = vmatpush1.bf16.msra.mxu0 %v6713
        %6734 = vmatprep.subr.bf16.mxu0 0
        %6735 = vmatpush1.bf16.msra.mxu0 %v6714
        %6736 = vmatprep.subr.bf16.mxu0 0
        %6737 = vmatpush1.bf16.msra.mxu0 %v6715
        %6738 = vmatprep.subr.bf16.mxu0 0
        %6739 = vmatpush1.bf16.msra.mxu0 %v6716
        %6740 = vmatprep.subr.bf16.mxu0 0
        %6741 = vmatpush1.bf16.msra.mxu0 %v6717
        %6742 = vmatprep.subr.bf16.mxu0 0
        %6743 = vmatpush1.bf16.msra.mxu0 0
        %6744 = vmatprep.subr.bf16.mxu0 0
        %6745 = vmatpush1.bf16.msra.mxu0 0
        %6746 = vmatprep.subr.bf16.mxu0 0
        %6747 = vmatpush1.bf16.msra.mxu0 0
        %6748 = vmatprep.subr.bf16.mxu0 0
        %6749 = vmatpush1.bf16.msra.mxu0 0
        %6750 = vmatprep.subr.bf16.mxu0 0
        %6751 = vmatpush1.bf16.msra.mxu0 0
        %6752 = vmatprep.subr.bf16.mxu0 0
        %6753 = vmatpush1.bf16.msra.mxu0 0
        %6754 = vmatprep.subr.bf16.mxu0 0
        %6755 = vmatpush1.bf16.msra.mxu0 0
        %6756 = vmatprep.subr.bf16.mxu0 0
        %6757 = vmatpush1.bf16.msra.mxu0 0
        %6758 = vmatprep.mubr.bf16.mxu0 0
        %6759 = vmatmul.mubr.bf16.gmra.mrb[0].mxu0 %v6676
        %v6760 = vpop.f32.mrb[0].mxu0
        %v6761 = vadd.f32 0.0, %v6760
        %v6762 = vpop.f32.mrb[0].mxu0
        %v6763 = vpop.f32.mrb[0].mxu0
        %v6764 = vpop.f32.mrb[0].mxu0
        %6765 = vdwg.mxu0
        %v6766 = vadd.f32 %v6658, %v6761
        %s6767 = scalar_lea.vmem %s7, 320
        %v6768 = vld [vmem:[%s6767] sm:$0xf]
        %v6769 = vld [vmem:[%s6767 + $0x4] sm:$0xf]
        %v6770 = vld [vmem:[%s6767 + $0x8] sm:$0xf]
        %v6771 = vld [vmem:[%s6767 + $0xc] sm:$0xf]
        %v6772 = vld [vmem:[%s6767 + $0x10] sm:$0xf]
        %v6773 = vld [vmem:[%s6767 + $0x14] sm:$0xf]
        %v6774 = vld [vmem:[%s6767 + $0x18] sm:$0xf]
        %v6775 = vld [vmem:[%s6767 + $0x1c] sm:$0xf]
        %v6776 = vld [vmem:[%s6767 + $0x20] sm:$0xf]
        %v6777 = vld [vmem:[%s6767 + $0x24] sm:$0xf]
        %v6778 = vld [vmem:[%s6767 + $0x28] sm:$0xf]
        %v6779 = vld [vmem:[%s6767 + $0x2c] sm:$0xf]
        %v6780 = vld [vmem:[%s6767 + $0x30] sm:$0xf]
        %v6781 = vld [vmem:[%s6767 + $0x34] sm:$0xf]
        %v6782 = vld [vmem:[%s6767 + $0x38] sm:$0xf]
        %v6783 = vld [vmem:[%s6767 + $0x3c] sm:$0xf]
        %v6784 = vrot.slane %v6350, 2
        %v6802 = vunpack.c.l.b16 %v6768
        %v6803 = vunpack.c.l.b16 %v6769
        %v6804 = vunpack.c.l.b16 %v6770
        %v6805 = vunpack.c.l.b16 %v6771
        %v6806 = vunpack.c.l.b16 %v6772
        %v6807 = vunpack.c.l.b16 %v6773
        %v6808 = vunpack.c.l.b16 %v6774
        %v6809 = vunpack.c.l.b16 %v6775
        %v6810 = vunpack.c.l.b16 %v6776
        %v6811 = vunpack.c.l.b16 %v6777
        %v6812 = vunpack.c.l.b16 %v6778
        %v6813 = vunpack.c.l.b16 %v6779
        %v6814 = vunpack.c.l.b16 %v6780
        %v6815 = vunpack.c.l.b16 %v6781
        %v6816 = vunpack.c.l.b16 %v6782
        %v6817 = vunpack.c.l.b16 %v6783
        %v6818 = vpack.c.b16 %v6803, %v6802
        %v6819 = vpack.c.b16 %v6805, %v6804
        %v6820 = vpack.c.b16 %v6807, %v6806
        %v6821 = vpack.c.b16 %v6809, %v6808
        %v6822 = vpack.c.b16 %v6811, %v6810
        %v6823 = vpack.c.b16 %v6813, %v6812
        %v6824 = vpack.c.b16 %v6815, %v6814
        %v6825 = vpack.c.b16 %v6817, %v6816
        %6834 = vmatprep.subr.bf16.mxu0 0
        %6835 = vmatpush1.bf16.msra.mxu0 %v6818
        %6836 = vmatprep.subr.bf16.mxu0 0
        %6837 = vmatpush1.bf16.msra.mxu0 %v6819
        %6838 = vmatprep.subr.bf16.mxu0 0
        %6839 = vmatpush1.bf16.msra.mxu0 %v6820
        %6840 = vmatprep.subr.bf16.mxu0 0
        %6841 = vmatpush1.bf16.msra.mxu0 %v6821
        %6842 = vmatprep.subr.bf16.mxu0 0
        %6843 = vmatpush1.bf16.msra.mxu0 %v6822
        %6844 = vmatprep.subr.bf16.mxu0 0
        %6845 = vmatpush1.bf16.msra.mxu0 %v6823
        %6846 = vmatprep.subr.bf16.mxu0 0
        %6847 = vmatpush1.bf16.msra.mxu0 %v6824
        %6848 = vmatprep.subr.bf16.mxu0 0
        %6849 = vmatpush1.bf16.msra.mxu0 %v6825
        %6850 = vmatprep.subr.bf16.mxu0 0
        %6851 = vmatpush1.bf16.msra.mxu0 0
        %6852 = vmatprep.subr.bf16.mxu0 0
        %6853 = vmatpush1.bf16.msra.mxu0 0
        %6854 = vmatprep.subr.bf16.mxu0 0
        %6855 = vmatpush1.bf16.msra.mxu0 0
        %6856 = vmatprep.subr.bf16.mxu0 0
        %6857 = vmatpush1.bf16.msra.mxu0 0
        %6858 = vmatprep.subr.bf16.mxu0 0
        %6859 = vmatpush1.bf16.msra.mxu0 0
        %6860 = vmatprep.subr.bf16.mxu0 0
        %6861 = vmatpush1.bf16.msra.mxu0 0
        %6862 = vmatprep.subr.bf16.mxu0 0
        %6863 = vmatpush1.bf16.msra.mxu0 0
        %6864 = vmatprep.subr.bf16.mxu0 0
        %6865 = vmatpush1.bf16.msra.mxu0 0
        %6866 = vmatprep.mubr.bf16.mxu0 0
        %6867 = vmatmul.mubr.bf16.gmra.mrb[0].mxu0 %v6784
        %v6868 = vpop.f32.mrb[0].mxu0
        %v6869 = vadd.f32 0.0, %v6868
        %v6870 = vpop.f32.mrb[0].mxu0
        %v6871 = vpop.f32.mrb[0].mxu0
        %v6872 = vpop.f32.mrb[0].mxu0
        %6873 = vdwg.mxu0
        %v6874 = vadd.f32 %v6766, %v6869
        %s6875 = scalar_lea.vmem %s7, 384
        %v6876 = vld [vmem:[%s6875] sm:$0xf]
        %v6877 = vld [vmem:[%s6875 + $0x4] sm:$0xf]
        %v6878 = vld [vmem:[%s6875 + $0x8] sm:$0xf]
        %v6879 = vld [vmem:[%s6875 + $0xc] sm:$0xf]
        %v6880 = vld [vmem:[%s6875 + $0x10] sm:$0xf]
        %v6881 = vld [vmem:[%s6875 + $0x14] sm:$0xf]
        %v6882 = vld [vmem:[%s6875 + $0x18] sm:$0xf]
        %v6883 = vld [vmem:[%s6875 + $0x1c] sm:$0xf]
        %v6884 = vld [vmem:[%s6875 + $0x20] sm:$0xf]
        %v6885 = vld [vmem:[%s6875 + $0x24] sm:$0xf]
        %v6886 = vld [vmem:[%s6875 + $0x28] sm:$0xf]
        %v6887 = vld [vmem:[%s6875 + $0x2c] sm:$0xf]
        %v6888 = vld [vmem:[%s6875 + $0x30] sm:$0xf]
        %v6889 = vld [vmem:[%s6875 + $0x34] sm:$0xf]
        %v6890 = vld [vmem:[%s6875 + $0x38] sm:$0xf]
        %v6891 = vld [vmem:[%s6875 + $0x3c] sm:$0xf]
        %v6892 = vrot.slane %v6226, 3
        %v6910 = vunpack.c.l.b16 %v6876
        %v6911 = vunpack.c.l.b16 %v6877
        %v6912 = vunpack.c.l.b16 %v6878
        %v6913 = vunpack.c.l.b16 %v6879
        %v6914 = vunpack.c.l.b16 %v6880
        %v6915 = vunpack.c.l.b16 %v6881
        %v6916 = vunpack.c.l.b16 %v6882
        %v6917 = vunpack.c.l.b16 %v6883
        %v6918 = vunpack.c.l.b16 %v6884
        %v6919 = vunpack.c.l.b16 %v6885
        %v6920 = vunpack.c.l.b16 %v6886
        %v6921 = vunpack.c.l.b16 %v6887
        %v6922 = vunpack.c.l.b16 %v6888
        %v6923 = vunpack.c.l.b16 %v6889
        %v6924 = vunpack.c.l.b16 %v6890
        %v6925 = vunpack.c.l.b16 %v6891
        %v6926 = vpack.c.b16 %v6911, %v6910
        %v6927 = vpack.c.b16 %v6913, %v6912
        %v6928 = vpack.c.b16 %v6915, %v6914
        %v6929 = vpack.c.b16 %v6917, %v6916
        %v6930 = vpack.c.b16 %v6919, %v6918
        %v6931 = vpack.c.b16 %v6921, %v6920
        %v6932 = vpack.c.b16 %v6923, %v6922
        %v6933 = vpack.c.b16 %v6925, %v6924
        %6942 = vmatprep.subr.bf16.mxu0 0
        %6943 = vmatpush1.bf16.msra.mxu0 %v6926
        %6944 = vmatprep.subr.bf16.mxu0 0
        %6945 = vmatpush1.bf16.msra.mxu0 %v6927
        %6946 = vmatprep.subr.bf16.mxu0 0
        %6947 = vmatpush1.bf16.msra.mxu0 %v6928
        %6948 = vmatprep.subr.bf16.mxu0 0
        %6949 = vmatpush1.bf16.msra.mxu0 %v6929
        %6950 = vmatprep.subr.bf16.mxu0 0
        %6951 = vmatpush1.bf16.msra.mxu0 %v6930
        %6952 = vmatprep.subr.bf16.mxu0 0
        %6953 = vmatpush1.bf16.msra.mxu0 %v6931
        %6954 = vmatprep.subr.bf16.mxu0 0
        %6955 = vmatpush1.bf16.msra.mxu0 %v6932
        %6956 = vmatprep.subr.bf16.mxu0 0
        %6957 = vmatpush1.bf16.msra.mxu0 %v6933
        %6958 = vmatprep.subr.bf16.mxu0 0
        %6959 = vmatpush1.bf16.msra.mxu0 0
        %6960 = vmatprep.subr.bf16.mxu0 0
        %6961 = vmatpush1.bf16.msra.mxu0 0
        %6962 = vmatprep.subr.bf16.mxu0 0
        %6963 = vmatpush1.bf16.msra.mxu0 0
        %6964 = vmatprep.subr.bf16.mxu0 0
        %6965 = vmatpush1.bf16.msra.mxu0 0
        %6966 = vmatprep.subr.bf16.mxu0 0
        %6967 = vmatpush1.bf16.msra.mxu0 0
        %6968 = vmatprep.subr.bf16.mxu0 0
        %6969 = vmatpush1.bf16.msra.mxu0 0
        %6970 = vmatprep.subr.bf16.mxu0 0
        %6971 = vmatpush1.bf16.msra.mxu0 0
        %6972 = vmatprep.subr.bf16.mxu0 0
        %6973 = vmatpush1.bf16.msra.mxu0 0
        %6974 = vmatprep.mubr.bf16.mxu0 0
        %6975 = vmatmul.mubr.bf16.gmra.mrb[0].mxu0 %v6892
        %v6976 = vpop.f32.mrb[0].mxu0
        %v6977 = vadd.f32 0.0, %v6976
        %v6978 = vpop.f32.mrb[0].mxu0
        %v6979 = vpop.f32.mrb[0].mxu0
        %v6980 = vpop.f32.mrb[0].mxu0
        %6981 = vdwg.mxu0
        %v6982 = vadd.f32 %v6874, %v6977
        %s6983 = scalar_lea.vmem %s7, 448
        %v6984 = vld [vmem:[%s6983] sm:$0xf]
        %v6985 = vld [vmem:[%s6983 + $0x4] sm:$0xf]
        %v6986 = vld [vmem:[%s6983 + $0x8] sm:$0xf]
        %v6987 = vld [vmem:[%s6983 + $0xc] sm:$0xf]
        %v6988 = vld [vmem:[%s6983 + $0x10] sm:$0xf]
        %v6989 = vld [vmem:[%s6983 + $0x14] sm:$0xf]
        %v6990 = vld [vmem:[%s6983 + $0x18] sm:$0xf]
        %v6991 = vld [vmem:[%s6983 + $0x1c] sm:$0xf]
        %v6992 = vld [vmem:[%s6983 + $0x20] sm:$0xf]
        %v6993 = vld [vmem:[%s6983 + $0x24] sm:$0xf]
        %v6994 = vld [vmem:[%s6983 + $0x28] sm:$0xf]
        %v6995 = vld [vmem:[%s6983 + $0x2c] sm:$0xf]
        %v6996 = vld [vmem:[%s6983 + $0x30] sm:$0xf]
        %v6997 = vld [vmem:[%s6983 + $0x34] sm:$0xf]
        %v6998 = vld [vmem:[%s6983 + $0x38] sm:$0xf]
        %v6999 = vld [vmem:[%s6983 + $0x3c] sm:$0xf]
        %v7000 = vrot.slane %v6350, 3
        %v7018 = vunpack.c.l.b16 %v6984
        %v7019 = vunpack.c.l.b16 %v6985
        %v7020 = vunpack.c.l.b16 %v6986
        %v7021 = vunpack.c.l.b16 %v6987
        %v7022 = vunpack.c.l.b16 %v6988
        %v7023 = vunpack.c.l.b16 %v6989
        %v7024 = vunpack.c.l.b16 %v6990
        %v7025 = vunpack.c.l.b16 %v6991
        %v7026 = vunpack.c.l.b16 %v6992
        %v7027 = vunpack.c.l.b16 %v6993
        %v7028 = vunpack.c.l.b16 %v6994
        %v7029 = vunpack.c.l.b16 %v6995
        %v7030 = vunpack.c.l.b16 %v6996
        %v7031 = vunpack.c.l.b16 %v6997
        %v7032 = vunpack.c.l.b16 %v6998
        %v7033 = vunpack.c.l.b16 %v6999
        %v7034 = vpack.c.b16 %v7019, %v7018
        %v7035 = vpack.c.b16 %v7021, %v7020
        %v7036 = vpack.c.b16 %v7023, %v7022
        %v7037 = vpack.c.b16 %v7025, %v7024
        %v7038 = vpack.c.b16 %v7027, %v7026
        %v7039 = vpack.c.b16 %v7029, %v7028
        %v7040 = vpack.c.b16 %v7031, %v7030
        %v7041 = vpack.c.b16 %v7033, %v7032
        %7050 = vmatprep.subr.bf16.mxu0 0
        %7051 = vmatpush1.bf16.msra.mxu0 %v7034
        %7052 = vmatprep.subr.bf16.mxu0 0
        %7053 = vmatpush1.bf16.msra.mxu0 %v7035
        %7054 = vmatprep.subr.bf16.mxu0 0
        %7055 = vmatpush1.bf16.msra.mxu0 %v7036
        %7056 = vmatprep.subr.bf16.mxu0 0
        %7057 = vmatpush1.bf16.msra.mxu0 %v7037
        %7058 = vmatprep.subr.bf16.mxu0 0
        %7059 = vmatpush1.bf16.msra.mxu0 %v7038
        %7060 = vmatprep.subr.bf16.mxu0 0
        %7061 = vmatpush1.bf16.msra.mxu0 %v7039
        %7062 = vmatprep.subr.bf16.mxu0 0
        %7063 = vmatpush1.bf16.msra.mxu0 %v7040
        %7064 = vmatprep.subr.bf16.mxu0 0
        %7065 = vmatpush1.bf16.msra.mxu0 %v7041
        %7066 = vmatprep.subr.bf16.mxu0 0
        %7067 = vmatpush1.bf16.msra.mxu0 0
        %7068 = vmatprep.subr.bf16.mxu0 0
        %7069 = vmatpush1.bf16.msra.mxu0 0
        %7070 = vmatprep.subr.bf16.mxu0 0
        %7071 = vmatpush1.bf16.msra.mxu0 0
        %7072 = vmatprep.subr.bf16.mxu0 0
        %7073 = vmatpush1.bf16.msra.mxu0 0
        %7074 = vmatprep.subr.bf16.mxu0 0
        %7075 = vmatpush1.bf16.msra.mxu0 0
        %7076 = vmatprep.subr.bf16.mxu0 0
        %7077 = vmatpush1.bf16.msra.mxu0 0
        %7078 = vmatprep.subr.bf16.mxu0 0
        %7079 = vmatpush1.bf16.msra.mxu0 0
        %7080 = vmatprep.subr.bf16.mxu0 0
        %7081 = vmatpush1.bf16.msra.mxu0 0
        %7082 = vmatprep.mubr.bf16.mxu0 0
        %7083 = vmatmul.mubr.bf16.gmra.mrb[0].mxu0 %v7000
        %v7084 = vpop.f32.mrb[0].mxu0
        %v7085 = vadd.f32 0.0, %v7084
        %v7086 = vpop.f32.mrb[0].mxu0
        %v7087 = vpop.f32.mrb[0].mxu0
        %v7088 = vpop.f32.mrb[0].mxu0
        %7089 = vdwg.mxu0
        %v7090 = vadd.f32 %v6982, %v7085
        %v7091 = vpack.c.bf16 %v6224, %v6224
        %s7092 = scalar_lea.vmem %s7, 512
        %v7093 = vld [vmem:[%s7092] sm:$0xf]
        %v7094 = vld [vmem:[%s7092 + $0x4] sm:$0xf]
        %v7095 = vld [vmem:[%s7092 + $0x8] sm:$0xf]
        %v7096 = vld [vmem:[%s7092 + $0xc] sm:$0xf]
        %v7097 = vld [vmem:[%s7092 + $0x10] sm:$0xf]
        %v7098 = vld [vmem:[%s7092 + $0x14] sm:$0xf]
        %v7099 = vld [vmem:[%s7092 + $0x18] sm:$0xf]
        %v7100 = vld [vmem:[%s7092 + $0x1c] sm:$0xf]
        %v7101 = vld [vmem:[%s7092 + $0x20] sm:$0xf]
        %v7102 = vld [vmem:[%s7092 + $0x24] sm:$0xf]
        %v7103 = vld [vmem:[%s7092 + $0x28] sm:$0xf]
        %v7104 = vld [vmem:[%s7092 + $0x2c] sm:$0xf]
        %v7105 = vld [vmem:[%s7092 + $0x30] sm:$0xf]
        %v7106 = vld [vmem:[%s7092 + $0x34] sm:$0xf]
        %v7107 = vld [vmem:[%s7092 + $0x38] sm:$0xf]
        %v7108 = vld [vmem:[%s7092 + $0x3c] sm:$0xf]
        %v7125 = vunpack.c.l.b16 %v7093
        %v7126 = vunpack.c.l.b16 %v7094
        %v7127 = vunpack.c.l.b16 %v7095
        %v7128 = vunpack.c.l.b16 %v7096
        %v7129 = vunpack.c.l.b16 %v7097
        %v7130 = vunpack.c.l.b16 %v7098
        %v7131 = vunpack.c.l.b16 %v7099
        %v7132 = vunpack.c.l.b16 %v7100
        %v7133 = vunpack.c.l.b16 %v7101
        %v7134 = vunpack.c.l.b16 %v7102
        %v7135 = vunpack.c.l.b16 %v7103
        %v7136 = vunpack.c.l.b16 %v7104
        %v7137 = vunpack.c.l.b16 %v7105
        %v7138 = vunpack.c.l.b16 %v7106
        %v7139 = vunpack.c.l.b16 %v7107
        %v7140 = vunpack.c.l.b16 %v7108
        %v7141 = vpack.c.b16 %v7126, %v7125
        %v7142 = vpack.c.b16 %v7128, %v7127
        %v7143 = vpack.c.b16 %v7130, %v7129
        %v7144 = vpack.c.b16 %v7132, %v7131
        %v7145 = vpack.c.b16 %v7134, %v7133
        %v7146 = vpack.c.b16 %v7136, %v7135
        %v7147 = vpack.c.b16 %v7138, %v7137
        %v7148 = vpack.c.b16 %v7140, %v7139
        %7157 = vmatprep.subr.bf16.mxu0 0
        %7158 = vmatpush1.bf16.msra.mxu0 %v7141
        %7159 = vmatprep.subr.bf16.mxu0 0
        %7160 = vmatpush1.bf16.msra.mxu0 %v7142
        %7161 = vmatprep.subr.bf16.mxu0 0
        %7162 = vmatpush1.bf16.msra.mxu0 %v7143
        %7163 = vmatprep.subr.bf16.mxu0 0
        %7164 = vmatpush1.bf16.msra.mxu0 %v7144
        %7165 = vmatprep.subr.bf16.mxu0 0
        %7166 = vmatpush1.bf16.msra.mxu0 %v7145
        %7167 = vmatprep.subr.bf16.mxu0 0
        %7168 = vmatpush1.bf16.msra.mxu0 %v7146
        %7169 = vmatprep.subr.bf16.mxu0 0
        %7170 = vmatpush1.bf16.msra.mxu0 %v7147
        %7171 = vmatprep.subr.bf16.mxu0 0
        %7172 = vmatpush1.bf16.msra.mxu0 %v7148
        %7173 = vmatprep.subr.bf16.mxu0 0
        %7174 = vmatpush1.bf16.msra.mxu0 0
        %7175 = vmatprep.subr.bf16.mxu0 0
        %7176 = vmatpush1.bf16.msra.mxu0 0
        %7177 = vmatprep.subr.bf16.mxu0 0
        %7178 = vmatpush1.bf16.msra.mxu0 0
        %7179 = vmatprep.subr.bf16.mxu0 0
        %7180 = vmatpush1.bf16.msra.mxu0 0
        %7181 = vmatprep.subr.bf16.mxu0 0
        %7182 = vmatpush1.bf16.msra.mxu0 0
        %7183 = vmatprep.subr.bf16.mxu0 0
        %7184 = vmatpush1.bf16.msra.mxu0 0
        %7185 = vmatprep.subr.bf16.mxu0 0
        %7186 = vmatpush1.bf16.msra.mxu0 0
        %7187 = vmatprep.subr.bf16.mxu0 0
        %7188 = vmatpush1.bf16.msra.mxu0 0
        %7189 = vmatprep.mubr.bf16.mxu0 0
        %7190 = vmatmul.mubr.bf16.gmra.mrb[0].mxu0 %v7091
        %v7191 = vpop.f32.mrb[0].mxu0
        %v7192 = vadd.f32 0.0, %v7191
        %v7193 = vpop.f32.mrb[0].mxu0
        %v7194 = vpop.f32.mrb[0].mxu0
        %v7195 = vpop.f32.mrb[0].mxu0
        %7196 = vdwg.mxu0
        %v7197 = vadd.f32 %v7090, %v7192
        %s7198 = scalar_lea.vmem %s7, 576
        %v7199 = vld [vmem:[%s7198] sm:$0xf]
        %v7200 = vld [vmem:[%s7198 + $0x4] sm:$0xf]
        %v7201 = vld [vmem:[%s7198 + $0x8] sm:$0xf]
        %v7202 = vld [vmem:[%s7198 + $0xc] sm:$0xf]
        %v7203 = vld [vmem:[%s7198 + $0x10] sm:$0xf]
        %v7204 = vld [vmem:[%s7198 + $0x14] sm:$0xf]
        %v7205 = vld [vmem:[%s7198 + $0x18] sm:$0xf]
        %v7206 = vld [vmem:[%s7198 + $0x1c] sm:$0xf]
        %v7207 = vld [vmem:[%s7198 + $0x20] sm:$0xf]
        %v7208 = vld [vmem:[%s7198 + $0x24] sm:$0xf]
        %v7209 = vld [vmem:[%s7198 + $0x28] sm:$0xf]
        %v7210 = vld [vmem:[%s7198 + $0x2c] sm:$0xf]
        %v7211 = vld [vmem:[%s7198 + $0x30] sm:$0xf]
        %v7212 = vld [vmem:[%s7198 + $0x34] sm:$0xf]
        %v7213 = vld [vmem:[%s7198 + $0x38] sm:$0xf]
        %v7214 = vld [vmem:[%s7198 + $0x3c] sm:$0xf]
        %v7216 = vshrl.u32 %v7091, 16
        %v7235 = vunpack.c.l.b16 %v7199
        %v7236 = vunpack.c.l.b16 %v7200
        %v7237 = vunpack.c.l.b16 %v7201
        %v7238 = vunpack.c.l.b16 %v7202
        %v7239 = vunpack.c.l.b16 %v7203
        %v7240 = vunpack.c.l.b16 %v7204
        %v7241 = vunpack.c.l.b16 %v7205
        %v7242 = vunpack.c.l.b16 %v7206
        %v7243 = vunpack.c.l.b16 %v7207
        %v7244 = vunpack.c.l.b16 %v7208
        %v7245 = vunpack.c.l.b16 %v7209
        %v7246 = vunpack.c.l.b16 %v7210
        %v7247 = vunpack.c.l.b16 %v7211
        %v7248 = vunpack.c.l.b16 %v7212
        %v7249 = vunpack.c.l.b16 %v7213
        %v7250 = vunpack.c.l.b16 %v7214
        %v7251 = vpack.c.b16 %v7236, %v7235
        %v7252 = vpack.c.b16 %v7238, %v7237
        %v7253 = vpack.c.b16 %v7240, %v7239
        %v7254 = vpack.c.b16 %v7242, %v7241
        %v7255 = vpack.c.b16 %v7244, %v7243
        %v7256 = vpack.c.b16 %v7246, %v7245
        %v7257 = vpack.c.b16 %v7248, %v7247
        %v7258 = vpack.c.b16 %v7250, %v7249
        %7267 = vmatprep.subr.bf16.mxu0 0
        %7268 = vmatpush1.bf16.msra.mxu0 %v7251
        %7269 = vmatprep.subr.bf16.mxu0 0
        %7270 = vmatpush1.bf16.msra.mxu0 %v7252
        %7271 = vmatprep.subr.bf16.mxu0 0
        %7272 = vmatpush1.bf16.msra.mxu0 %v7253
        %7273 = vmatprep.subr.bf16.mxu0 0
        %7274 = vmatpush1.bf16.msra.mxu0 %v7254
        %7275 = vmatprep.subr.bf16.mxu0 0
        %7276 = vmatpush1.bf16.msra.mxu0 %v7255
        %7277 = vmatprep.subr.bf16.mxu0 0
        %7278 = vmatpush1.bf16.msra.mxu0 %v7256
        %7279 = vmatprep.subr.bf16.mxu0 0
        %7280 = vmatpush1.bf16.msra.mxu0 %v7257
        %7281 = vmatprep.subr.bf16.mxu0 0
        %7282 = vmatpush1.bf16.msra.mxu0 %v7258
        %7283 = vmatprep.subr.bf16.mxu0 0
        %7284 = vmatpush1.bf16.msra.mxu0 0
        %7285 = vmatprep.subr.bf16.mxu0 0
        %7286 = vmatpush1.bf16.msra.mxu0 0
        %7287 = vmatprep.subr.bf16.mxu0 0
        %7288 = vmatpush1.bf16.msra.mxu0 0
        %7289 = vmatprep.subr.bf16.mxu0 0
        %7290 = vmatpush1.bf16.msra.mxu0 0
        %7291 = vmatprep.subr.bf16.mxu0 0
        %7292 = vmatpush1.bf16.msra.mxu0 0
        %7293 = vmatprep.subr.bf16.mxu0 0
        %7294 = vmatpush1.bf16.msra.mxu0 0
        %7295 = vmatprep.subr.bf16.mxu0 0
        %7296 = vmatpush1.bf16.msra.mxu0 0
        %7297 = vmatprep.subr.bf16.mxu0 0
        %7298 = vmatpush1.bf16.msra.mxu0 0
        %7299 = vmatprep.mubr.bf16.mxu0 0
        %7300 = vmatmul.mubr.bf16.gmra.mrb[0].mxu0 %v7216
        %v7301 = vpop.f32.mrb[0].mxu0
        %v7302 = vadd.f32 0.0, %v7301
        %v7303 = vpop.f32.mrb[0].mxu0
        %v7304 = vpop.f32.mrb[0].mxu0
        %v7305 = vpop.f32.mrb[0].mxu0
        %7306 = vdwg.mxu0
        %v7307 = vadd.f32 %v7197, %v7302
        %s7308 = scalar_lea.vmem %s7, 640
        %v7309 = vld [vmem:[%s7308] sm:$0xf]
        %v7310 = vld [vmem:[%s7308 + $0x4] sm:$0xf]
        %v7311 = vld [vmem:[%s7308 + $0x8] sm:$0xf]
        %v7312 = vld [vmem:[%s7308 + $0xc] sm:$0xf]
        %v7313 = vld [vmem:[%s7308 + $0x10] sm:$0xf]
        %v7314 = vld [vmem:[%s7308 + $0x14] sm:$0xf]
        %v7315 = vld [vmem:[%s7308 + $0x18] sm:$0xf]
        %v7316 = vld [vmem:[%s7308 + $0x1c] sm:$0xf]
        %v7317 = vld [vmem:[%s7308 + $0x20] sm:$0xf]
        %v7318 = vld [vmem:[%s7308 + $0x24] sm:$0xf]
        %v7319 = vld [vmem:[%s7308 + $0x28] sm:$0xf]
        %v7320 = vld [vmem:[%s7308 + $0x2c] sm:$0xf]
        %v7321 = vld [vmem:[%s7308 + $0x30] sm:$0xf]
        %v7322 = vld [vmem:[%s7308 + $0x34] sm:$0xf]
        %v7323 = vld [vmem:[%s7308 + $0x38] sm:$0xf]
        %v7324 = vld [vmem:[%s7308 + $0x3c] sm:$0xf]
        %v7326 = vrot.slane %v7091, 1
        %v7344 = vunpack.c.l.b16 %v7309
        %v7345 = vunpack.c.l.b16 %v7310
        %v7346 = vunpack.c.l.b16 %v7311
        %v7347 = vunpack.c.l.b16 %v7312
        %v7348 = vunpack.c.l.b16 %v7313
        %v7349 = vunpack.c.l.b16 %v7314
        %v7350 = vunpack.c.l.b16 %v7315
        %v7351 = vunpack.c.l.b16 %v7316
        %v7352 = vunpack.c.l.b16 %v7317
        %v7353 = vunpack.c.l.b16 %v7318
        %v7354 = vunpack.c.l.b16 %v7319
        %v7355 = vunpack.c.l.b16 %v7320
        %v7356 = vunpack.c.l.b16 %v7321
        %v7357 = vunpack.c.l.b16 %v7322
        %v7358 = vunpack.c.l.b16 %v7323
        %v7359 = vunpack.c.l.b16 %v7324
        %v7360 = vpack.c.b16 %v7345, %v7344
        %v7361 = vpack.c.b16 %v7347, %v7346
        %v7362 = vpack.c.b16 %v7349, %v7348
        %v7363 = vpack.c.b16 %v7351, %v7350
        %v7364 = vpack.c.b16 %v7353, %v7352
        %v7365 = vpack.c.b16 %v7355, %v7354
        %v7366 = vpack.c.b16 %v7357, %v7356
        %v7367 = vpack.c.b16 %v7359, %v7358
        %7376 = vmatprep.subr.bf16.mxu0 0
        %7377 = vmatpush1.bf16.msra.mxu0 %v7360
        %7378 = vmatprep.subr.bf16.mxu0 0
        %7379 = vmatpush1.bf16.msra.mxu0 %v7361
        %7380 = vmatprep.subr.bf16.mxu0 0
        %7381 = vmatpush1.bf16.msra.mxu0 %v7362
        %7382 = vmatprep.subr.bf16.mxu0 0
        %7383 = vmatpush1.bf16.msra.mxu0 %v7363
        %7384 = vmatprep.subr.bf16.mxu0 0
        %7385 = vmatpush1.bf16.msra.mxu0 %v7364
        %7386 = vmatprep.subr.bf16.mxu0 0
        %7387 = vmatpush1.bf16.msra.mxu0 %v7365
        %7388 = vmatprep.subr.bf16.mxu0 0
        %7389 = vmatpush1.bf16.msra.mxu0 %v7366
        %7390 = vmatprep.subr.bf16.mxu0 0
        %7391 = vmatpush1.bf16.msra.mxu0 %v7367
        %7392 = vmatprep.subr.bf16.mxu0 0
        %7393 = vmatpush1.bf16.msra.mxu0 0
        %7394 = vmatprep.subr.bf16.mxu0 0
        %7395 = vmatpush1.bf16.msra.mxu0 0
        %7396 = vmatprep.subr.bf16.mxu0 0
        %7397 = vmatpush1.bf16.msra.mxu0 0
        %7398 = vmatprep.subr.bf16.mxu0 0
        %7399 = vmatpush1.bf16.msra.mxu0 0
        %7400 = vmatprep.subr.bf16.mxu0 0
        %7401 = vmatpush1.bf16.msra.mxu0 0
        %7402 = vmatprep.subr.bf16.mxu0 0
        %7403 = vmatpush1.bf16.msra.mxu0 0
        %7404 = vmatprep.subr.bf16.mxu0 0
        %7405 = vmatpush1.bf16.msra.mxu0 0
        %7406 = vmatprep.subr.bf16.mxu0 0
        %7407 = vmatpush1.bf16.msra.mxu0 0
        %7408 = vmatprep.mubr.bf16.mxu0 0
        %7409 = vmatmul.mubr.bf16.gmra.mrb[0].mxu0 %v7326
        %v7410 = vpop.f32.mrb[0].mxu0
        %v7411 = vadd.f32 0.0, %v7410
        %v7412 = vpop.f32.mrb[0].mxu0
        %v7413 = vpop.f32.mrb[0].mxu0
        %v7414 = vpop.f32.mrb[0].mxu0
        %7415 = vdwg.mxu0
        %v7416 = vadd.f32 %v7307, %v7411
        %s7417 = scalar_lea.vmem %s7, 704
        %v7418 = vld [vmem:[%s7417] sm:$0xf]
        %v7419 = vld [vmem:[%s7417 + $0x4] sm:$0xf]
        %v7420 = vld [vmem:[%s7417 + $0x8] sm:$0xf]
        %v7421 = vld [vmem:[%s7417 + $0xc] sm:$0xf]
        %v7422 = vld [vmem:[%s7417 + $0x10] sm:$0xf]
        %v7423 = vld [vmem:[%s7417 + $0x14] sm:$0xf]
        %v7424 = vld [vmem:[%s7417 + $0x18] sm:$0xf]
        %v7425 = vld [vmem:[%s7417 + $0x1c] sm:$0xf]
        %v7426 = vld [vmem:[%s7417 + $0x20] sm:$0xf]
        %v7427 = vld [vmem:[%s7417 + $0x24] sm:$0xf]
        %v7428 = vld [vmem:[%s7417 + $0x28] sm:$0xf]
        %v7429 = vld [vmem:[%s7417 + $0x2c] sm:$0xf]
        %v7430 = vld [vmem:[%s7417 + $0x30] sm:$0xf]
        %v7431 = vld [vmem:[%s7417 + $0x34] sm:$0xf]
        %v7432 = vld [vmem:[%s7417 + $0x38] sm:$0xf]
        %v7433 = vld [vmem:[%s7417 + $0x3c] sm:$0xf]
        %v7434 = vrot.slane %v7216, 1
        %v7452 = vunpack.c.l.b16 %v7418
        %v7453 = vunpack.c.l.b16 %v7419
        %v7454 = vunpack.c.l.b16 %v7420
        %v7455 = vunpack.c.l.b16 %v7421
        %v7456 = vunpack.c.l.b16 %v7422
        %v7457 = vunpack.c.l.b16 %v7423
        %v7458 = vunpack.c.l.b16 %v7424
        %v7459 = vunpack.c.l.b16 %v7425
        %v7460 = vunpack.c.l.b16 %v7426
        %v7461 = vunpack.c.l.b16 %v7427
        %v7462 = vunpack.c.l.b16 %v7428
        %v7463 = vunpack.c.l.b16 %v7429
        %v7464 = vunpack.c.l.b16 %v7430
        %v7465 = vunpack.c.l.b16 %v7431
        %v7466 = vunpack.c.l.b16 %v7432
        %v7467 = vunpack.c.l.b16 %v7433
        %v7468 = vpack.c.b16 %v7453, %v7452
        %v7469 = vpack.c.b16 %v7455, %v7454
        %v7470 = vpack.c.b16 %v7457, %v7456
        %v7471 = vpack.c.b16 %v7459, %v7458
        %v7472 = vpack.c.b16 %v7461, %v7460
        %v7473 = vpack.c.b16 %v7463, %v7462
        %v7474 = vpack.c.b16 %v7465, %v7464
        %v7475 = vpack.c.b16 %v7467, %v7466
        %7484 = vmatprep.subr.bf16.mxu0 0
        %7485 = vmatpush1.bf16.msra.mxu0 %v7468
        %7486 = vmatprep.subr.bf16.mxu0 0
        %7487 = vmatpush1.bf16.msra.mxu0 %v7469
        %7488 = vmatprep.subr.bf16.mxu0 0
        %7489 = vmatpush1.bf16.msra.mxu0 %v7470
        %7490 = vmatprep.subr.bf16.mxu0 0
        %7491 = vmatpush1.bf16.msra.mxu0 %v7471
        %7492 = vmatprep.subr.bf16.mxu0 0
        %7493 = vmatpush1.bf16.msra.mxu0 %v7472
        %7494 = vmatprep.subr.bf16.mxu0 0
        %7495 = vmatpush1.bf16.msra.mxu0 %v7473
        %7496 = vmatprep.subr.bf16.mxu0 0
        %7497 = vmatpush1.bf16.msra.mxu0 %v7474
        %7498 = vmatprep.subr.bf16.mxu0 0
        %7499 = vmatpush1.bf16.msra.mxu0 %v7475
        %7500 = vmatprep.subr.bf16.mxu0 0
        %7501 = vmatpush1.bf16.msra.mxu0 0
        %7502 = vmatprep.subr.bf16.mxu0 0
        %7503 = vmatpush1.bf16.msra.mxu0 0
        %7504 = vmatprep.subr.bf16.mxu0 0
        %7505 = vmatpush1.bf16.msra.mxu0 0
        %7506 = vmatprep.subr.bf16.mxu0 0
        %7507 = vmatpush1.bf16.msra.mxu0 0
        %7508 = vmatprep.subr.bf16.mxu0 0
        %7509 = vmatpush1.bf16.msra.mxu0 0
        %7510 = vmatprep.subr.bf16.mxu0 0
        %7511 = vmatpush1.bf16.msra.mxu0 0
        %7512 = vmatprep.subr.bf16.mxu0 0
        %7513 = vmatpush1.bf16.msra.mxu0 0
        %7514 = vmatprep.subr.bf16.mxu0 0
        %7515 = vmatpush1.bf16.msra.mxu0 0
        %7516 = vmatprep.mubr.bf16.mxu0 0
        %7517 = vmatmul.mubr.bf16.gmra.mrb[0].mxu0 %v7434
        %v7518 = vpop.f32.mrb[0].mxu0
        %v7519 = vadd.f32 0.0, %v7518
        %v7520 = vpop.f32.mrb[0].mxu0
        %v7521 = vpop.f32.mrb[0].mxu0
        %v7522 = vpop.f32.mrb[0].mxu0
        %7523 = vdwg.mxu0
        %v7524 = vadd.f32 %v7416, %v7519
        %s7525 = scalar_lea.vmem %s7, 768
        %v7526 = vld [vmem:[%s7525] sm:$0xf]
        %v7527 = vld [vmem:[%s7525 + $0x4] sm:$0xf]
        %v7528 = vld [vmem:[%s7525 + $0x8] sm:$0xf]
        %v7529 = vld [vmem:[%s7525 + $0xc] sm:$0xf]
        %v7530 = vld [vmem:[%s7525 + $0x10] sm:$0xf]
        %v7531 = vld [vmem:[%s7525 + $0x14] sm:$0xf]
        %v7532 = vld [vmem:[%s7525 + $0x18] sm:$0xf]
        %v7533 = vld [vmem:[%s7525 + $0x1c] sm:$0xf]
        %v7534 = vld [vmem:[%s7525 + $0x20] sm:$0xf]
        %v7535 = vld [vmem:[%s7525 + $0x24] sm:$0xf]
        %v7536 = vld [vmem:[%s7525 + $0x28] sm:$0xf]
        %v7537 = vld [vmem:[%s7525 + $0x2c] sm:$0xf]
        %v7538 = vld [vmem:[%s7525 + $0x30] sm:$0xf]
        %v7539 = vld [vmem:[%s7525 + $0x34] sm:$0xf]
        %v7540 = vld [vmem:[%s7525 + $0x38] sm:$0xf]
        %v7541 = vld [vmem:[%s7525 + $0x3c] sm:$0xf]
        %v7542 = vrot.slane %v7091, 2
        %v7560 = vunpack.c.l.b16 %v7526
        %v7561 = vunpack.c.l.b16 %v7527
        %v7562 = vunpack.c.l.b16 %v7528
        %v7563 = vunpack.c.l.b16 %v7529
        %v7564 = vunpack.c.l.b16 %v7530
        %v7565 = vunpack.c.l.b16 %v7531
        %v7566 = vunpack.c.l.b16 %v7532
        %v7567 = vunpack.c.l.b16 %v7533
        %v7568 = vunpack.c.l.b16 %v7534
        %v7569 = vunpack.c.l.b16 %v7535
        %v7570 = vunpack.c.l.b16 %v7536
        %v7571 = vunpack.c.l.b16 %v7537
        %v7572 = vunpack.c.l.b16 %v7538
        %v7573 = vunpack.c.l.b16 %v7539
        %v7574 = vunpack.c.l.b16 %v7540
        %v7575 = vunpack.c.l.b16 %v7541
        %v7576 = vpack.c.b16 %v7561, %v7560
        %v7577 = vpack.c.b16 %v7563, %v7562
        %v7578 = vpack.c.b16 %v7565, %v7564
        %v7579 = vpack.c.b16 %v7567, %v7566
        %v7580 = vpack.c.b16 %v7569, %v7568
        %v7581 = vpack.c.b16 %v7571, %v7570
        %v7582 = vpack.c.b16 %v7573, %v7572
        %v7583 = vpack.c.b16 %v7575, %v7574
        %7592 = vmatprep.subr.bf16.mxu0 0
        %7593 = vmatpush1.bf16.msra.mxu0 %v7576
        %7594 = vmatprep.subr.bf16.mxu0 0
        %7595 = vmatpush1.bf16.msra.mxu0 %v7577
        %7596 = vmatprep.subr.bf16.mxu0 0
        %7597 = vmatpush1.bf16.msra.mxu0 %v7578
        %7598 = vmatprep.subr.bf16.mxu0 0
        %7599 = vmatpush1.bf16.msra.mxu0 %v7579
        %7600 = vmatprep.subr.bf16.mxu0 0
        %7601 = vmatpush1.bf16.msra.mxu0 %v7580
        %7602 = vmatprep.subr.bf16.mxu0 0
        %7603 = vmatpush1.bf16.msra.mxu0 %v7581
        %7604 = vmatprep.subr.bf16.mxu0 0
        %7605 = vmatpush1.bf16.msra.mxu0 %v7582
        %7606 = vmatprep.subr.bf16.mxu0 0
        %7607 = vmatpush1.bf16.msra.mxu0 %v7583
        %7608 = vmatprep.subr.bf16.mxu0 0
        %7609 = vmatpush1.bf16.msra.mxu0 0
        %7610 = vmatprep.subr.bf16.mxu0 0
        %7611 = vmatpush1.bf16.msra.mxu0 0
        %7612 = vmatprep.subr.bf16.mxu0 0
        %7613 = vmatpush1.bf16.msra.mxu0 0
        %7614 = vmatprep.subr.bf16.mxu0 0
        %7615 = vmatpush1.bf16.msra.mxu0 0
        %7616 = vmatprep.subr.bf16.mxu0 0
        %7617 = vmatpush1.bf16.msra.mxu0 0
        %7618 = vmatprep.subr.bf16.mxu0 0
        %7619 = vmatpush1.bf16.msra.mxu0 0
        %7620 = vmatprep.subr.bf16.mxu0 0
        %7621 = vmatpush1.bf16.msra.mxu0 0
        %7622 = vmatprep.subr.bf16.mxu0 0
        %7623 = vmatpush1.bf16.msra.mxu0 0
        %7624 = vmatprep.mubr.bf16.mxu0 0
        %7625 = vmatmul.mubr.bf16.gmra.mrb[0].mxu0 %v7542
        %v7626 = vpop.f32.mrb[0].mxu0
        %v7627 = vadd.f32 0.0, %v7626
        %v7628 = vpop.f32.mrb[0].mxu0
        %v7629 = vpop.f32.mrb[0].mxu0
        %v7630 = vpop.f32.mrb[0].mxu0
        %7631 = vdwg.mxu0
        %v7632 = vadd.f32 %v7524, %v7627
        %s7633 = scalar_lea.vmem %s7, 832
        %v7634 = vld [vmem:[%s7633] sm:$0xf]
        %v7635 = vld [vmem:[%s7633 + $0x4] sm:$0xf]
        %v7636 = vld [vmem:[%s7633 + $0x8] sm:$0xf]
        %v7637 = vld [vmem:[%s7633 + $0xc] sm:$0xf]
        %v7638 = vld [vmem:[%s7633 + $0x10] sm:$0xf]
        %v7639 = vld [vmem:[%s7633 + $0x14] sm:$0xf]
        %v7640 = vld [vmem:[%s7633 + $0x18] sm:$0xf]
        %v7641 = vld [vmem:[%s7633 + $0x1c] sm:$0xf]
        %v7642 = vld [vmem:[%s7633 + $0x20] sm:$0xf]
        %v7643 = vld [vmem:[%s7633 + $0x24] sm:$0xf]
        %v7644 = vld [vmem:[%s7633 + $0x28] sm:$0xf]
        %v7645 = vld [vmem:[%s7633 + $0x2c] sm:$0xf]
        %v7646 = vld [vmem:[%s7633 + $0x30] sm:$0xf]
        %v7647 = vld [vmem:[%s7633 + $0x34] sm:$0xf]
        %v7648 = vld [vmem:[%s7633 + $0x38] sm:$0xf]
        %v7649 = vld [vmem:[%s7633 + $0x3c] sm:$0xf]
        %v7650 = vrot.slane %v7216, 2
        %v7668 = vunpack.c.l.b16 %v7634
        %v7669 = vunpack.c.l.b16 %v7635
        %v7670 = vunpack.c.l.b16 %v7636
        %v7671 = vunpack.c.l.b16 %v7637
        %v7672 = vunpack.c.l.b16 %v7638
        %v7673 = vunpack.c.l.b16 %v7639
        %v7674 = vunpack.c.l.b16 %v7640
        %v7675 = vunpack.c.l.b16 %v7641
        %v7676 = vunpack.c.l.b16 %v7642
        %v7677 = vunpack.c.l.b16 %v7643
        %v7678 = vunpack.c.l.b16 %v7644
        %v7679 = vunpack.c.l.b16 %v7645
        %v7680 = vunpack.c.l.b16 %v7646
        %v7681 = vunpack.c.l.b16 %v7647
        %v7682 = vunpack.c.l.b16 %v7648
        %v7683 = vunpack.c.l.b16 %v7649
        %v7684 = vpack.c.b16 %v7669, %v7668
        %v7685 = vpack.c.b16 %v7671, %v7670
        %v7686 = vpack.c.b16 %v7673, %v7672
        %v7687 = vpack.c.b16 %v7675, %v7674
        %v7688 = vpack.c.b16 %v7677, %v7676
        %v7689 = vpack.c.b16 %v7679, %v7678
        %v7690 = vpack.c.b16 %v7681, %v7680
        %v7691 = vpack.c.b16 %v7683, %v7682
        %7700 = vmatprep.subr.bf16.mxu0 0
        %7701 = vmatpush1.bf16.msra.mxu0 %v7684
        %7702 = vmatprep.subr.bf16.mxu0 0
        %7703 = vmatpush1.bf16.msra.mxu0 %v7685
        %7704 = vmatprep.subr.bf16.mxu0 0
        %7705 = vmatpush1.bf16.msra.mxu0 %v7686
        %7706 = vmatprep.subr.bf16.mxu0 0
        %7707 = vmatpush1.bf16.msra.mxu0 %v7687
        %7708 = vmatprep.subr.bf16.mxu0 0
        %7709 = vmatpush1.bf16.msra.mxu0 %v7688
        %7710 = vmatprep.subr.bf16.mxu0 0
        %7711 = vmatpush1.bf16.msra.mxu0 %v7689
        %7712 = vmatprep.subr.bf16.mxu0 0
        %7713 = vmatpush1.bf16.msra.mxu0 %v7690
        %7714 = vmatprep.subr.bf16.mxu0 0
        %7715 = vmatpush1.bf16.msra.mxu0 %v7691
        %7716 = vmatprep.subr.bf16.mxu0 0
        %7717 = vmatpush1.bf16.msra.mxu0 0
        %7718 = vmatprep.subr.bf16.mxu0 0
        %7719 = vmatpush1.bf16.msra.mxu0 0
        %7720 = vmatprep.subr.bf16.mxu0 0
        %7721 = vmatpush1.bf16.msra.mxu0 0
        %7722 = vmatprep.subr.bf16.mxu0 0
        %7723 = vmatpush1.bf16.msra.mxu0 0
        %7724 = vmatprep.subr.bf16.mxu0 0
        %7725 = vmatpush1.bf16.msra.mxu0 0
        %7726 = vmatprep.subr.bf16.mxu0 0
        %7727 = vmatpush1.bf16.msra.mxu0 0
        %7728 = vmatprep.subr.bf16.mxu0 0
        %7729 = vmatpush1.bf16.msra.mxu0 0
        %7730 = vmatprep.subr.bf16.mxu0 0
        %7731 = vmatpush1.bf16.msra.mxu0 0
        %7732 = vmatprep.mubr.bf16.mxu0 0
        %7733 = vmatmul.mubr.bf16.gmra.mrb[0].mxu0 %v7650
        %v7734 = vpop.f32.mrb[0].mxu0
        %v7735 = vadd.f32 0.0, %v7734
        %v7736 = vpop.f32.mrb[0].mxu0
        %v7737 = vpop.f32.mrb[0].mxu0
        %v7738 = vpop.f32.mrb[0].mxu0
        %7739 = vdwg.mxu0
        %v7740 = vadd.f32 %v7632, %v7735
        %s7741 = scalar_lea.vmem %s7, 896
        %v7742 = vld [vmem:[%s7741] sm:$0xf]
        %v7743 = vld [vmem:[%s7741 + $0x4] sm:$0xf]
        %v7744 = vld [vmem:[%s7741 + $0x8] sm:$0xf]
        %v7745 = vld [vmem:[%s7741 + $0xc] sm:$0xf]
        %v7746 = vld [vmem:[%s7741 + $0x10] sm:$0xf]
        %v7747 = vld [vmem:[%s7741 + $0x14] sm:$0xf]
        %v7748 = vld [vmem:[%s7741 + $0x18] sm:$0xf]
        %v7749 = vld [vmem:[%s7741 + $0x1c] sm:$0xf]
        %v7750 = vld [vmem:[%s7741 + $0x20] sm:$0xf]
        %v7751 = vld [vmem:[%s7741 + $0x24] sm:$0xf]
        %v7752 = vld [vmem:[%s7741 + $0x28] sm:$0xf]
        %v7753 = vld [vmem:[%s7741 + $0x2c] sm:$0xf]
        %v7754 = vld [vmem:[%s7741 + $0x30] sm:$0xf]
        %v7755 = vld [vmem:[%s7741 + $0x34] sm:$0xf]
        %v7756 = vld [vmem:[%s7741 + $0x38] sm:$0xf]
        %v7757 = vld [vmem:[%s7741 + $0x3c] sm:$0xf]
        %v7758 = vrot.slane %v7091, 3
        %v7776 = vunpack.c.l.b16 %v7742
        %v7777 = vunpack.c.l.b16 %v7743
        %v7778 = vunpack.c.l.b16 %v7744
        %v7779 = vunpack.c.l.b16 %v7745
        %v7780 = vunpack.c.l.b16 %v7746
        %v7781 = vunpack.c.l.b16 %v7747
        %v7782 = vunpack.c.l.b16 %v7748
        %v7783 = vunpack.c.l.b16 %v7749
        %v7784 = vunpack.c.l.b16 %v7750
        %v7785 = vunpack.c.l.b16 %v7751
        %v7786 = vunpack.c.l.b16 %v7752
        %v7787 = vunpack.c.l.b16 %v7753
        %v7788 = vunpack.c.l.b16 %v7754
        %v7789 = vunpack.c.l.b16 %v7755
        %v7790 = vunpack.c.l.b16 %v7756
        %v7791 = vunpack.c.l.b16 %v7757
        %v7792 = vpack.c.b16 %v7777, %v7776
        %v7793 = vpack.c.b16 %v7779, %v7778
        %v7794 = vpack.c.b16 %v7781, %v7780
        %v7795 = vpack.c.b16 %v7783, %v7782
        %v7796 = vpack.c.b16 %v7785, %v7784
        %v7797 = vpack.c.b16 %v7787, %v7786
        %v7798 = vpack.c.b16 %v7789, %v7788
        %v7799 = vpack.c.b16 %v7791, %v7790
        %7808 = vmatprep.subr.bf16.mxu0 0
        %7809 = vmatpush1.bf16.msra.mxu0 %v7792
        %7810 = vmatprep.subr.bf16.mxu0 0
        %7811 = vmatpush1.bf16.msra.mxu0 %v7793
        %7812 = vmatprep.subr.bf16.mxu0 0
        %7813 = vmatpush1.bf16.msra.mxu0 %v7794
        %7814 = vmatprep.subr.bf16.mxu0 0
        %7815 = vmatpush1.bf16.msra.mxu0 %v7795
        %7816 = vmatprep.subr.bf16.mxu0 0
        %7817 = vmatpush1.bf16.msra.mxu0 %v7796
        %7818 = vmatprep.subr.bf16.mxu0 0
        %7819 = vmatpush1.bf16.msra.mxu0 %v7797
        %7820 = vmatprep.subr.bf16.mxu0 0
        %7821 = vmatpush1.bf16.msra.mxu0 %v7798
        %7822 = vmatprep.subr.bf16.mxu0 0
        %7823 = vmatpush1.bf16.msra.mxu0 %v7799
        %7824 = vmatprep.subr.bf16.mxu0 0
        %7825 = vmatpush1.bf16.msra.mxu0 0
        %7826 = vmatprep.subr.bf16.mxu0 0
        %7827 = vmatpush1.bf16.msra.mxu0 0
        %7828 = vmatprep.subr.bf16.mxu0 0
        %7829 = vmatpush1.bf16.msra.mxu0 0
        %7830 = vmatprep.subr.bf16.mxu0 0
        %7831 = vmatpush1.bf16.msra.mxu0 0
        %7832 = vmatprep.subr.bf16.mxu0 0
        %7833 = vmatpush1.bf16.msra.mxu0 0
        %7834 = vmatprep.subr.bf16.mxu0 0
        %7835 = vmatpush1.bf16.msra.mxu0 0
        %7836 = vmatprep.subr.bf16.mxu0 0
        %7837 = vmatpush1.bf16.msra.mxu0 0
        %7838 = vmatprep.subr.bf16.mxu0 0
        %7839 = vmatpush1.bf16.msra.mxu0 0
        %7840 = vmatprep.mubr.bf16.mxu0 0
        %7841 = vmatmul.mubr.bf16.gmra.mrb[0].mxu0 %v7758
        %v7842 = vpop.f32.mrb[0].mxu0
        %v7843 = vadd.f32 0.0, %v7842
        %v7844 = vpop.f32.mrb[0].mxu0
        %v7845 = vpop.f32.mrb[0].mxu0
        %v7846 = vpop.f32.mrb[0].mxu0
        %7847 = vdwg.mxu0
        %v7848 = vadd.f32 %v7740, %v7843
        %s7849 = scalar_lea.vmem %s7, 960
        %v7850 = vld [vmem:[%s7849] sm:$0xf]
        %v7851 = vld [vmem:[%s7849 + $0x4] sm:$0xf]
        %v7852 = vld [vmem:[%s7849 + $0x8] sm:$0xf]
        %v7853 = vld [vmem:[%s7849 + $0xc] sm:$0xf]
        %v7854 = vld [vmem:[%s7849 + $0x10] sm:$0xf]
        %v7855 = vld [vmem:[%s7849 + $0x14] sm:$0xf]
        %v7856 = vld [vmem:[%s7849 + $0x18] sm:$0xf]
        %v7857 = vld [vmem:[%s7849 + $0x1c] sm:$0xf]
        %v7858 = vld [vmem:[%s7849 + $0x20] sm:$0xf]
        %v7859 = vld [vmem:[%s7849 + $0x24] sm:$0xf]
        %v7860 = vld [vmem:[%s7849 + $0x28] sm:$0xf]
        %v7861 = vld [vmem:[%s7849 + $0x2c] sm:$0xf]
        %v7862 = vld [vmem:[%s7849 + $0x30] sm:$0xf]
        %v7863 = vld [vmem:[%s7849 + $0x34] sm:$0xf]
        %v7864 = vld [vmem:[%s7849 + $0x38] sm:$0xf]
        %v7865 = vld [vmem:[%s7849 + $0x3c] sm:$0xf]
        %v7866 = vrot.slane %v7216, 3
        %v7884 = vunpack.c.l.b16 %v7850
        %v7885 = vunpack.c.l.b16 %v7851
        %v7886 = vunpack.c.l.b16 %v7852
        %v7887 = vunpack.c.l.b16 %v7853
        %v7888 = vunpack.c.l.b16 %v7854
        %v7889 = vunpack.c.l.b16 %v7855
        %v7890 = vunpack.c.l.b16 %v7856
        %v7891 = vunpack.c.l.b16 %v7857
        %v7892 = vunpack.c.l.b16 %v7858
        %v7893 = vunpack.c.l.b16 %v7859
        %v7894 = vunpack.c.l.b16 %v7860
        %v7895 = vunpack.c.l.b16 %v7861
        %v7896 = vunpack.c.l.b16 %v7862
        %v7897 = vunpack.c.l.b16 %v7863
        %v7898 = vunpack.c.l.b16 %v7864
        %v7899 = vunpack.c.l.b16 %v7865
        %v7900 = vpack.c.b16 %v7885, %v7884
        %v7901 = vpack.c.b16 %v7887, %v7886
        %v7902 = vpack.c.b16 %v7889, %v7888
        %v7903 = vpack.c.b16 %v7891, %v7890
        %v7904 = vpack.c.b16 %v7893, %v7892
        %v7905 = vpack.c.b16 %v7895, %v7894
        %v7906 = vpack.c.b16 %v7897, %v7896
        %v7907 = vpack.c.b16 %v7899, %v7898
        %7916 = vmatprep.subr.bf16.mxu0 0
        %7917 = vmatpush1.bf16.msra.mxu0 %v7900
        %7918 = vmatprep.subr.bf16.mxu0 0
        %7919 = vmatpush1.bf16.msra.mxu0 %v7901
        %7920 = vmatprep.subr.bf16.mxu0 0
        %7921 = vmatpush1.bf16.msra.mxu0 %v7902
        %7922 = vmatprep.subr.bf16.mxu0 0
        %7923 = vmatpush1.bf16.msra.mxu0 %v7903
        %7924 = vmatprep.subr.bf16.mxu0 0
        %7925 = vmatpush1.bf16.msra.mxu0 %v7904
        %7926 = vmatprep.subr.bf16.mxu0 0
        %7927 = vmatpush1.bf16.msra.mxu0 %v7905
        %7928 = vmatprep.subr.bf16.mxu0 0
        %7929 = vmatpush1.bf16.msra.mxu0 %v7906
        %7930 = vmatprep.subr.bf16.mxu0 0
        %7931 = vmatpush1.bf16.msra.mxu0 %v7907
        %7932 = vmatprep.subr.bf16.mxu0 0
        %7933 = vmatpush1.bf16.msra.mxu0 0
        %7934 = vmatprep.subr.bf16.mxu0 0
        %7935 = vmatpush1.bf16.msra.mxu0 0
        %7936 = vmatprep.subr.bf16.mxu0 0
        %7937 = vmatpush1.bf16.msra.mxu0 0
        %7938 = vmatprep.subr.bf16.mxu0 0
        %7939 = vmatpush1.bf16.msra.mxu0 0
        %7940 = vmatprep.subr.bf16.mxu0 0
        %7941 = vmatpush1.bf16.msra.mxu0 0
        %7942 = vmatprep.subr.bf16.mxu0 0
        %7943 = vmatpush1.bf16.msra.mxu0 0
        %7944 = vmatprep.subr.bf16.mxu0 0
        %7945 = vmatpush1.bf16.msra.mxu0 0
        %7946 = vmatprep.subr.bf16.mxu0 0
        %7947 = vmatpush1.bf16.msra.mxu0 0
        %7948 = vmatprep.mubr.bf16.mxu0 0
        %7949 = vmatmul.mubr.bf16.gmra.mrb[0].mxu0 %v7866
        %v7950 = vpop.f32.mrb[0].mxu0
        %v7951 = vadd.f32 0.0, %v7950
        %v7952 = vpop.f32.mrb[0].mxu0
        %v7953 = vpop.f32.mrb[0].mxu0
        %v7954 = vpop.f32.mrb[0].mxu0
        %7955 = vdwg.mxu0
        %v7956 = vadd.f32 %v7848, %v7951
        %v7957 = vmax.f32 %v7956, 0.0
        %v7958 = vpack.c.bf16 %v7957, %v7957
        %v7959 = vld [vmem:[#allocation9] sm:$0xf]
        %v7960 = vld [vmem:[#allocation9 + $0x4] sm:$0xf]
        %v7961 = vld [vmem:[#allocation9 + $0x8] sm:$0xf]
        %v7962 = vld [vmem:[#allocation9 + $0xc] sm:$0xf]
        %v7963 = vld [vmem:[#allocation9 + $0x10] sm:$0xf]
        %v7964 = vld [vmem:[#allocation9 + $0x14] sm:$0xf]
        %v7965 = vld [vmem:[#allocation9 + $0x18] sm:$0xf]
        %v7966 = vld [vmem:[#allocation9 + $0x1c] sm:$0xf]
        %v7967 = vld [vmem:[#allocation9 + $0x20] sm:$0xf]
        %v7968 = vld [vmem:[#allocation9 + $0x24] sm:$0xf]
        %v7969 = vld [vmem:[#allocation9 + $0x28] sm:$0xf]
        %v7970 = vld [vmem:[#allocation9 + $0x2c] sm:$0xf]
        %v7971 = vld [vmem:[#allocation9 + $0x30] sm:$0xf]
        %v7972 = vld [vmem:[#allocation9 + $0x34] sm:$0xf]
        %v7973 = vld [vmem:[#allocation9 + $0x38] sm:$0xf]
        %v7974 = vld [vmem:[#allocation9 + $0x3c] sm:$0xf]
        %v7975 = vld [vmem:[%s10] sm:$0x1]
        %v7992 = vunpack.c.l.b16 %v7959
        %v7993 = vunpack.c.l.b16 %v7960
        %v7994 = vunpack.c.l.b16 %v7961
        %v7995 = vunpack.c.l.b16 %v7962
        %v7996 = vunpack.c.l.b16 %v7963
        %v7997 = vunpack.c.l.b16 %v7964
        %v7998 = vunpack.c.l.b16 %v7965
        %v7999 = vunpack.c.l.b16 %v7966
        %v8000 = vunpack.c.l.b16 %v7967
        %v8001 = vunpack.c.l.b16 %v7968
        %v8002 = vunpack.c.l.b16 %v7969
        %v8003 = vunpack.c.l.b16 %v7970
        %v8004 = vunpack.c.l.b16 %v7971
        %v8005 = vunpack.c.l.b16 %v7972
        %v8006 = vunpack.c.l.b16 %v7973
        %v8007 = vunpack.c.l.b16 %v7974
        %v8008 = vpack.c.b16 %v7993, %v7992
        %v8009 = vpack.c.b16 %v7995, %v7994
        %v8010 = vpack.c.b16 %v7997, %v7996
        %v8011 = vpack.c.b16 %v7999, %v7998
        %v8012 = vpack.c.b16 %v8001, %v8000
        %v8013 = vpack.c.b16 %v8003, %v8002
        %v8014 = vpack.c.b16 %v8005, %v8004
        %v8015 = vpack.c.b16 %v8007, %v8006
        %8024 = vmatprep.subr.bf16.mxu0 0
        %8025 = vmatpush1.bf16.msra.mxu0 %v8008
        %8026 = vmatprep.subr.bf16.mxu0 0
        %8027 = vmatpush1.bf16.msra.mxu0 %v8009
        %8028 = vmatprep.subr.bf16.mxu0 0
        %8029 = vmatpush1.bf16.msra.mxu0 %v8010
        %8030 = vmatprep.subr.bf16.mxu0 0
        %8031 = vmatpush1.bf16.msra.mxu0 %v8011
        %8032 = vmatprep.subr.bf16.mxu0 0
        %8033 = vmatpush1.bf16.msra.mxu0 %v8012
        %8034 = vmatprep.subr.bf16.mxu0 0
        %8035 = vmatpush1.bf16.msra.mxu0 %v8013
        %8036 = vmatprep.subr.bf16.mxu0 0
        %8037 = vmatpush1.bf16.msra.mxu0 %v8014
        %8038 = vmatprep.subr.bf16.mxu0 0
        %8039 = vmatpush1.bf16.msra.mxu0 %v8015
        %8040 = vmatprep.subr.bf16.mxu0 0
        %8041 = vmatpush1.bf16.msra.mxu0 0
        %8042 = vmatprep.subr.bf16.mxu0 0
        %8043 = vmatpush1.bf16.msra.mxu0 0
        %8044 = vmatprep.subr.bf16.mxu0 0
        %8045 = vmatpush1.bf16.msra.mxu0 0
        %8046 = vmatprep.subr.bf16.mxu0 0
        %8047 = vmatpush1.bf16.msra.mxu0 0
        %8048 = vmatprep.subr.bf16.mxu0 0
        %8049 = vmatpush1.bf16.msra.mxu0 0
        %8050 = vmatprep.subr.bf16.mxu0 0
        %8051 = vmatpush1.bf16.msra.mxu0 0
        %8052 = vmatprep.subr.bf16.mxu0 0
        %8053 = vmatpush1.bf16.msra.mxu0 0
        %8054 = vmatprep.subr.bf16.mxu0 0
        %8055 = vmatpush1.bf16.msra.mxu0 0
        %8056 = vmatprep.mubr.bf16.mxu0 0
        %8057 = vmatmul.mubr.bf16.gmra.mrb[0].mxu0 %v7958
        %v8058 = vpop.f32.mrb[0].mxu0
        %v8059 = vadd.f32 %v7975, %v8058
        %v8060 = vpop.f32.mrb[0].mxu0
        %v8061 = vpop.f32.mrb[0].mxu0
        %v8062 = vpop.f32.mrb[0].mxu0
        %8063 = vdwg.mxu0
        %v8064 = vmax.f32 %v8059, 0.0
        %v8065 = vpack.c.bf16 %v8064, %v8064
        %v8066 = vld [vmem:[#allocation11] sm:$0xf]
        %v8067 = vld [vmem:[#allocation11 + $0x4] sm:$0xf]
        %v8068 = vld [vmem:[#allocation11 + $0x8] sm:$0xf]
        %v8069 = vld [vmem:[#allocation11 + $0xc] sm:$0xf]
        %v8070 = vld [vmem:[#allocation11 + $0x10] sm:$0xf]
        %v8071 = vld [vmem:[#allocation11 + $0x14] sm:$0xf]
        %v8072 = vld [vmem:[#allocation11 + $0x18] sm:$0xf]
        %v8073 = vld [vmem:[#allocation11 + $0x1c] sm:$0xf]
        %v8074 = vld [vmem:[#allocation11 + $0x20] sm:$0xf]
        %v8075 = vld [vmem:[#allocation11 + $0x24] sm:$0xf]
        %v8076 = vld [vmem:[#allocation11 + $0x28] sm:$0xf]
        %v8077 = vld [vmem:[#allocation11 + $0x2c] sm:$0xf]
        %v8078 = vld [vmem:[#allocation11 + $0x30] sm:$0xf]
        %v8079 = vld [vmem:[#allocation11 + $0x34] sm:$0xf]
        %v8080 = vld [vmem:[#allocation11 + $0x38] sm:$0xf]
        %v8081 = vld [vmem:[#allocation11 + $0x3c] sm:$0xf]
        %v8082 = vld [vmem:[%s12] sm:$0x1]
        %v8099 = vunpack.c.l.b16 %v8066
        %v8100 = vunpack.c.l.b16 %v8067
        %v8101 = vunpack.c.l.b16 %v8068
        %v8102 = vunpack.c.l.b16 %v8069
        %v8103 = vunpack.c.l.b16 %v8070
        %v8104 = vunpack.c.l.b16 %v8071
        %v8105 = vunpack.c.l.b16 %v8072
        %v8106 = vunpack.c.l.b16 %v8073
        %v8107 = vunpack.c.l.b16 %v8074
        %v8108 = vunpack.c.l.b16 %v8075
        %v8109 = vunpack.c.l.b16 %v8076
        %v8110 = vunpack.c.l.b16 %v8077
        %v8111 = vunpack.c.l.b16 %v8078
        %v8112 = vunpack.c.l.b16 %v8079
        %v8113 = vunpack.c.l.b16 %v8080
        %v8114 = vunpack.c.l.b16 %v8081
        %v8115 = vpack.c.b16 %v8100, %v8099
        %v8116 = vpack.c.b16 %v8102, %v8101
        %v8117 = vpack.c.b16 %v8104, %v8103
        %v8118 = vpack.c.b16 %v8106, %v8105
        %v8119 = vpack.c.b16 %v8108, %v8107
        %v8120 = vpack.c.b16 %v8110, %v8109
        %v8121 = vpack.c.b16 %v8112, %v8111
        %v8122 = vpack.c.b16 %v8114, %v8113
        %8131 = vmatprep.subr.bf16.mxu0 0
        %8132 = vmatpush1.bf16.msra.mxu0 %v8115
        %8133 = vmatprep.subr.bf16.mxu0 0
        %8134 = vmatpush1.bf16.msra.mxu0 %v8116
        %8135 = vmatprep.subr.bf16.mxu0 0
        %8136 = vmatpush1.bf16.msra.mxu0 %v8117
        %8137 = vmatprep.subr.bf16.mxu0 0
        %8138 = vmatpush1.bf16.msra.mxu0 %v8118
        %8139 = vmatprep.subr.bf16.mxu0 0
        %8140 = vmatpush1.bf16.msra.mxu0 %v8119
        %8141 = vmatprep.subr.bf16.mxu0 0
        %8142 = vmatpush1.bf16.msra.mxu0 %v8120
        %8143 = vmatprep.subr.bf16.mxu0 0
        %8144 = vmatpush1.bf16.msra.mxu0 %v8121
        %8145 = vmatprep.subr.bf16.mxu0 0
        %8146 = vmatpush1.bf16.msra.mxu0 %v8122
        %8147 = vmatprep.subr.bf16.mxu0 0
        %8148 = vmatpush1.bf16.msra.mxu0 0
        %8149 = vmatprep.subr.bf16.mxu0 0
        %8150 = vmatpush1.bf16.msra.mxu0 0
        %8151 = vmatprep.subr.bf16.mxu0 0
        %8152 = vmatpush1.bf16.msra.mxu0 0
        %8153 = vmatprep.subr.bf16.mxu0 0
        %8154 = vmatpush1.bf16.msra.mxu0 0
        %8155 = vmatprep.subr.bf16.mxu0 0
        %8156 = vmatpush1.bf16.msra.mxu0 0
        %8157 = vmatprep.subr.bf16.mxu0 0
        %8158 = vmatpush1.bf16.msra.mxu0 0
        %8159 = vmatprep.subr.bf16.mxu0 0
        %8160 = vmatpush1.bf16.msra.mxu0 0
        %8161 = vmatprep.subr.bf16.mxu0 0
        %8162 = vmatpush1.bf16.msra.mxu0 0
        %8163 = vmatprep.mubr.bf16.mxu0 0
        %8164 = vmatmul.mubr.bf16.gmra.mrb[0].mxu0 %v8065
        %v8165 = vpop.f32.mrb[0].mxu0
        %v8166 = vadd.f32 %v8082, %v8165
        %v8167 = vpop.f32.mrb[0].mxu0
        %v8168 = vpop.f32.mrb[0].mxu0
        %v8169 = vpop.f32.mrb[0].mxu0
        %8170 = vdwg.mxu0
        %8171 = vst [vmem:[%s476] sm:$0x1] %v8166
        %s8172 = sand.u32 %s315, 1
        %s8173 = scalar_lea.sflag [#allocation8], %s8172
        %s8174 = sand.u32 %s315, 1
        %s8175 = scalar_lea.vmem [#allocation12], %s8174
        // Predicated region
        $region85: #{localizer_vgg_forward.1} parent=71 // pred_check
          %p8176 = pneg %p325
        $region86: #{localizer_vgg_forward.1} parent=71 // pred_check_branch
          %8178 = sbr.rel (%p8176) target = $region88
        $region87: #{localizer_vgg_forward.1} parent=71 // pred_region
          %s8180 = ssub.s32 16, 16
          %8181 = vsyncadd %s8173, %s8180
          %s8182 = smul.addr %s29, 16
          %s8183 = scalar_lea.hbm %s13, %s8182
          %s8185 = sshll.u32 %s8175, 4
          %s8186 = int_to_ptr.vmem [resolvable:$true] %s8185
          %8188 = dma.vmem_to_hbm [thread:$0]  %s8186, 16, %s8183, %s8173
        $region88: #{localizer_vgg_forward.1} parent=71 // pred_fallthru
          _
      $region72: #{localizer_vgg_forward.1} parent=5 // pred_fallthru
        _
      %p8189 = scmp.le.s32.totalorder 2, %s24
      // Predicated region
      $region89: #{localizer_vgg_forward.1} parent=5 // pred_check
        %p8190 = pneg %p8189
      $region90: #{localizer_vgg_forward.1} parent=5 // pred_check_branch
        %8192 = sbr.rel (%p8190) target = $region92
      $region91: #{localizer_vgg_forward.1} parent=5 // pred_region
        %s8193 = ssub.s32 %s24, 2
        // Predicated region
        $region93: #{localizer_vgg_forward.1} parent=91 // pred_check
          %p8194 = pneg %p331
        $region94: #{localizer_vgg_forward.1} parent=91 // pred_check_branch
          %8196 = sbr.rel (%p8194) target = $region96
        $region95: #{localizer_vgg_forward.1} parent=91 // pred_region
          %s8197 = sand.u32 %s316, 1
          %s8198 = scalar_lea.sflag [#allocation8], %s8197
          %s8199 = sand.u32 %s316, 1
          %s8200 = scalar_lea.vmem [#allocation12], %s8199
          %8201 = dma.done %s8198, 16
        $region96: #{localizer_vgg_forward.1} parent=91 // pred_fallthru
          _
      $region92: #{localizer_vgg_forward.1} parent=5 // pred_fallthru
        _
    $region6: #{localizer_vgg_forward.1} parent=1 // loop_footer
      %s28 = sadd.s32 1, %s24
    $region7: #{localizer_vgg_forward.1} parent=1 // loop_footer_branch
      %23 = sbr.rel target = $region3
    $region8: #{localizer_vgg_forward.1} parent=1 // loop_exit
      _
    %8202 = vsyncpa [#allocation7], 1
    %s8203 = scalar_lea.sflag [#allocation7], 1
    %8204 = vsyncpa %s8203, 1
    %8205 = vsyncpa [#allocation10], 1
    %8206 = vsyncpa [#allocation8], 1
    %s8207 = scalar_lea.sflag [#allocation8], 1
    %8208 = vsyncpa %s8207, 1

</llo_original>
